<compile_context>
chip_gen: v5e
topology: v5e:2x2
jax: 0.10.0
libtpu: 0.0.40
codegen_flags: <defaults>
</compile_context>

<pallas_src>
import functools

import jax
import jax.numpy as jnp
import numpy as np
from jax.experimental import pallas as pl
from jax.experimental.pallas import tpu as pltpu


# ----------------------------------------------------------------------------
# In-kernel helpers
# ----------------------------------------------------------------------------
def _zero_border(ref, H2, W2):
    """Zero the 1-pixel frame of a (H2+2, W2+2, C) scratch ref (SAME padding)."""
    C = ref.shape[-1]
    zrow = jnp.zeros((1, W2 + 2, C), ref.dtype)
    ref[0:1, :, :] = zrow
    ref[H2 + 1:H2 + 2, :, :] = zrow
    zcol = jnp.zeros((H2 + 2, 1, C), ref.dtype)
    ref[:, 0:1, :] = zcol
    ref[:, W2 + 1:W2 + 2, :] = zcol


def _leaky_relu(y, slope):
    # For 0 <= slope <= 1, leaky_relu(y) == max(y, slope*y): one VPU op instead
    # of compare + select.
    if 0.0 <= slope <= 1.0:
        return jnp.maximum(y, slope * y)
    return jnp.where(y >= 0, y, slope * y)


def _conv3x3_from_padded(pad_ref, w, H2, W2):
    """3x3 SAME conv as 9 shifted-window ref loads + matmuls.

    pad_ref: VMEM ref (H2+2, W2+2, Ci) with zeroed border; w: (3,3,Ci,Co) value.
    Returns an f32 (H2*W2, Co) accumulator (bias added by the caller).
    """
    Ci = pad_ref.shape[-1]
    acc = None
    for dy in range(3):
        for dx in range(3):
            win = pad_ref[dy:dy + H2, dx:dx + W2, :].reshape(H2 * W2, Ci)
            t = jnp.dot(win, w[dy, dx], preferred_element_type=jnp.float32)
            acc = t if acc is None else acc + t
    return acc


# ----------------------------------------------------------------------------
# Fused kernel: ConvTranspose2d(2,2) + HINetConvBlock (two 3x3 + 1x1 residual)
# ----------------------------------------------------------------------------
def hinet_up_block_kernel(x_ref, skip_ref, wup_ref, bup_ref,
                          w1a_ref, w1b_ref, b1_ref, w2_ref, b2_ref,
                          wida_ref, widb_ref, bid_ref,
                          out_ref,
                          xup_pad, skip_pad, y1_pad,
                          *, relu_slope):
    _, H, W, Cin = x_ref.shape
    H2, W2 = 2 * H, 2 * W
    Cup = wup_ref.shape[-1]
    Cskip = skip_pad.shape[-1]
    Cout = out_ref.shape[-1]

    # --- zero the padding frames of the VMEM scratch buffers ---
    _zero_border(xup_pad, H2, W2)
    _zero_border(skip_pad, H2, W2)
    _zero_border(y1_pad, H2, W2)

    # --- ConvTranspose2d(k=2, s=2): 4 polyphase matmuls, interleaved in vregs
    #     and written once into the padded scratch (no HBM round trip) ---
    xf = x_ref[0].reshape(H * W, Cin)
    wup = wup_ref[...]
    bup = bup_ref[...]                                      # (1, Cup)
    rows = []
    for a in range(2):
        cols = []
        for b in range(2):
            p = jnp.dot(xf, wup[a, b], preferred_element_type=jnp.float32)
            cols.append((p + bup).reshape(H, W, Cup))
        # column interleave: (H, W, 2, Cup) -> (H, 2W, Cup)
        rows.append(jnp.stack(cols, axis=2).reshape(H, W2, Cup))
    # row interleave: (H, 2, 2W, Cup) -> (2H, 2W, Cup)
    xup = jnp.stack(rows, axis=1).reshape(H2, W2, Cup)
    xup_cast = xup.astype(xup_pad.dtype)
    xup_pad[1:H2 + 1, 1:W2 + 1, :] = xup_cast

    # --- skip connection into its own padded scratch (no channel concat) ---
    skip_val = skip_ref[0]                                   # (H2, W2, Cskip)
    skip_pad[1:H2 + 1, 1:W2 + 1, :] = skip_val.astype(skip_pad.dtype)

    # --- identity 1x1 conv over [x_up | skip] (split weights), computed from
    #     the values already in registers (no scratch re-read) ---
    ident = (jnp.dot(xup_cast.reshape(H2 * W2, Cup), wida_ref[...],
                     preferred_element_type=jnp.float32)
             + jnp.dot(skip_val.reshape(H2 * W2, Cskip), widb_ref[...],
                       preferred_element_type=jnp.float32)
             + bid_ref[...])

    # --- conv1 (3x3, SAME) over [x_up | skip] via split weights + LeakyReLU ---
    y = (_conv3x3_from_padded(xup_pad, w1a_ref[...], H2, W2)
         + _conv3x3_from_padded(skip_pad, w1b_ref[...], H2, W2)
         + b1_ref[...])
    y = _leaky_relu(y, relu_slope)
    y1_pad[1:H2 + 1, 1:W2 + 1, :] = y.reshape(H2, W2, Cout).astype(y1_pad.dtype)

    # --- conv2 (3x3, SAME) + LeakyReLU ---
    y2 = _conv3x3_from_padded(y1_pad, w2_ref[...], H2, W2) + b2_ref[...]
    y2 = _leaky_relu(y2, relu_slope)

    # --- residual add + single downcast store ---
    out_ref[0] = (y2 + ident).reshape(H2, W2, Cout).astype(out_ref.dtype)


# ----------------------------------------------------------------------------
# Wrapper
# ----------------------------------------------------------------------------
def _broadcast_spec(arr):
    nd = arr.ndim
    return pl.BlockSpec(arr.shape, lambda b, _nd=nd: (0,) * _nd)


def hinet_up_block(x, skip, params, relu_slope=0.2):
    """x: (B, H, W, in_ch) NHWC; skip: (B, 2H, 2W, in_ch - out_ch)."""
    B, H, W, Cin = x.shape
    H2, W2 = 2 * H, 2 * W
    Cup = params["wup"].shape[-1]
    Cskip = skip.shape[-1]
    Cout = params["w1"].shape[-1]
    assert skip.shape == (B, H2, W2, Cskip)
    assert params["w1"].shape[2] == Cup + Cskip

    # Split conv1 / identity weights so the kernel never builds the channel
    # concat (identical math; avoids unaligned lane concat + doubled footprint).
    w1a = params["w1"][:, :, :Cup, :]
    w1b = params["w1"][:, :, Cup:, :]
    wida = params["wid"][:Cup, :]
    widb = params["wid"][Cup:, :]

    kernel = functools.partial(hinet_up_block_kernel, relu_slope=relu_slope)

    itemsize = np.dtype(x.dtype).itemsize
    flops = 2 * B * (H * W * Cin * Cup * 4
                     + H2 * W2 * (Cup + Cskip) * Cout * 9
                     + H2 * W2 * Cout * Cout * 9
                     + H2 * W2 * (Cup + Cskip) * Cout)
    bytes_accessed = itemsize * (x.size + skip.size + B * H2 * W2 * Cout) \
        + 4 * sum(int(np.prod(v.shape)) for v in params.values())
    cost = pl.CostEstimate(flops=flops, transcendentals=0,
                           bytes_accessed=bytes_accessed)

    # TODO(synk): for production resolutions add spatial row tiling with a halo
    # (second "parallel" grid axis) so blocks fit v7x's 64 MiB VMEM and both
    # TensorCores are used at B=1; and lane-pad Cout toward 128 when channel
    # counts are small so the final stores are unmasked.
    return pl.pallas_call(
        kernel,
        out_shape=jax.ShapeDtypeStruct((B, H2, W2, Cout), x.dtype),
        grid=(B,),
        in_specs=[
            pl.BlockSpec((1, H, W, Cin), lambda b: (b, 0, 0, 0)),
            pl.BlockSpec((1, H2, W2, Cskip), lambda b: (b, 0, 0, 0)),
            _broadcast_spec(params["wup"]),
            _broadcast_spec(params["bup"]),
            _broadcast_spec(w1a),
            _broadcast_spec(w1b),
            _broadcast_spec(params["b1"]),
            _broadcast_spec(params["w2"]),
            _broadcast_spec(params["b2"]),
            _broadcast_spec(wida),
            _broadcast_spec(widb),
            _broadcast_spec(params["bid"]),
        ],
        out_specs=pl.BlockSpec((1, H2, W2, Cout), lambda b: (b, 0, 0, 0)),
        scratch_shapes=[
            pltpu.VMEM((H2 + 2, W2 + 2, Cup), x.dtype),       # padded x_up
            pltpu.VMEM((H2 + 2, W2 + 2, Cskip), skip.dtype),  # padded skip
            pltpu.VMEM((H2 + 2, W2 + 2, Cout), x.dtype),      # padded conv1 out
        ],
        compiler_params=pltpu.CompilerParams(
            dimension_semantics=("parallel",)),
        cost_estimate=cost,
    )(x, skip, params["wup"], params["bup"], w1a, w1b, params["b1"],
      params["w2"], params["b2"], wida, widb, params["bid"])


# ----------------------------------------------------------------------------
# Pure-JAX reference (for correctness check)
# ----------------------------------------------------------------------------
def reference(x, skip, p, slope):
    B, H, W, Cin = x.shape
    Cup = p["wup"].shape[-1]
    up = jnp.einsum("bhwi,yxio->bhywxo", x, p["wup"])
    up = up.reshape(B, 2 * H, 2 * W, Cup) + p["bup"]
    cat = jnp.concatenate([up, skip], axis=-1)

    def conv3(z, w, b):
        return jax.lax.conv_general_dilated(
            z, w, (1, 1), "SAME",
            dimension_numbers=("NHWC", "HWIO", "NHWC")) + b

    y = jax.nn.leaky_relu(conv3(cat, p["w1"], p["b1"]), slope)
    y = jax.nn.leaky_relu(conv3(y, p["w2"], p["b2"]), slope)
    ident = jnp.einsum("bhwi,io->bhwo", cat, p["wid"]) + p["bid"]
    return y + ident


# ----------------------------------------------------------------------------
if __name__ == "__main__":
    key = jax.random.PRNGKey(0)
    B, H, W = 2, 8, 8
    in_channels, out_channels = 8, 4          # typical HINet: in = 2 * out
    c_skip = in_channels - out_channels
    relu_slope = 0.2

    ks = jax.random.split(key, 10)

    def rnd(k, shape, scale=0.1):
        return jax.random.normal(k, shape, jnp.float32) * scale

    params = dict(
        wup=rnd(ks[0], (2, 2, in_channels, out_channels)),        # ConvT 2x2
        bup=rnd(ks[1], (1, out_channels)),
        w1=rnd(ks[2], (3, 3, in_channels, out_channels)),          # conv1 3x3
        b1=rnd(ks[3], (1, out_channels)),
        w2=rnd(ks[4], (3, 3, out_channels, out_channels)),         # conv2 3x3
        b2=rnd(ks[5], (1, out_channels)),
        wid=rnd(ks[6], (in_channels, out_channels)),               # identity 1x1
        bid=rnd(ks[7], (1, out_channels)),
    )

    x = rnd(ks[8], (B, H, W, in_channels), scale=1.0)
    skip = rnd(ks[9], (B, 2 * H, 2 * W, c_skip), scale=1.0)

    out = hinet_up_block(x, skip, params, relu_slope)
    out = jax.block_until_ready(out)

    ref = reference(x, skip, params, relu_slope)
    if not np.allclose(np.asarray(out), np.asarray(ref),
                       rtol=1e-3, atol=1e-4):
        raise AssertionError("Pallas kernel output does not match reference")

    print("KERNEL_OK")
</pallas_src>

<mosaic_0001>
module attributes {stable_mosaic.version = 11 : i64} {
  func.func @hinet_up_block_kernel(%arg0: i32, %arg1: memref<1x8x8x8xf32, #tpu.memory_space<vmem>>, %arg2: memref<1x16x16x4xf32, #tpu.memory_space<vmem>>, %arg3: memref<2x2x8x4xf32, #tpu.memory_space<vmem>>, %arg4: memref<1x4xf32, #tpu.memory_space<vmem>>, %arg5: memref<3x3x4x4xf32, #tpu.memory_space<vmem>>, %arg6: memref<3x3x4x4xf32, #tpu.memory_space<vmem>>, %arg7: memref<1x4xf32, #tpu.memory_space<vmem>>, %arg8: memref<3x3x4x4xf32, #tpu.memory_space<vmem>>, %arg9: memref<1x4xf32, #tpu.memory_space<vmem>>, %arg10: memref<4x4xf32, #tpu.memory_space<vmem>>, %arg11: memref<4x4xf32, #tpu.memory_space<vmem>>, %arg12: memref<1x4xf32, #tpu.memory_space<vmem>>, %arg13: memref<1x16x16x4xf32, #tpu.memory_space<vmem>>, %arg14: memref<18x18x4xf32, #tpu.memory_space<vmem>>, %arg15: memref<18x18x4xf32, #tpu.memory_space<vmem>>, %arg16: memref<18x18x4xf32, #tpu.memory_space<vmem>>) attributes {dimension_semantics = [#tpu.dimension_semantics<parallel>], iteration_bounds = array<i64: 2>, scalar_prefetch = 0 : i64, scratch_operands = 3 : i64, tpu.core_type = #tpu.core_type<tc>, window_params = [{transform_indices = @transform_0, window_bounds = array<i64: 1, 8, 8, 8>}, {transform_indices = @transform_1, window_bounds = array<i64: 1, 16, 16, 4>}, {pipeline_mode = #tpu.pipeline_mode<synchronous>, transform_indices = @transform_2, window_bounds = array<i64: 2, 2, 8, 4>}, {pipeline_mode = #tpu.pipeline_mode<synchronous>, transform_indices = @transform_3, window_bounds = array<i64: 1, 4>}, {pipeline_mode = #tpu.pipeline_mode<synchronous>, transform_indices = @transform_4, window_bounds = array<i64: 3, 3, 4, 4>}, {pipeline_mode = #tpu.pipeline_mode<synchronous>, transform_indices = @transform_5, window_bounds = array<i64: 3, 3, 4, 4>}, {pipeline_mode = #tpu.pipeline_mode<synchronous>, transform_indices = @transform_6, window_bounds = array<i64: 1, 4>}, {pipeline_mode = #tpu.pipeline_mode<synchronous>, transform_indices = @transform_7, window_bounds = array<i64: 3, 3, 4, 4>}, {pipeline_mode = #tpu.pipeline_mode<synchronous>, transform_indices = @transform_8, window_bounds = array<i64: 1, 4>}, {pipeline_mode = #tpu.pipeline_mode<synchronous>, transform_indices = @transform_9, window_bounds = array<i64: 4, 4>}, {pipeline_mode = #tpu.pipeline_mode<synchronous>, transform_indices = @transform_10, window_bounds = array<i64: 4, 4>}, {pipeline_mode = #tpu.pipeline_mode<synchronous>, transform_indices = @transform_11, window_bounds = array<i64: 1, 4>}, {transform_indices = @transform_12, window_bounds = array<i64: 1, 16, 16, 4>}]} {
    %cst = arith.constant 0.000000e+00 : f32
    %0 = vector.broadcast %cst : f32 to vector<1x18x4xf32>
    %c0 = arith.constant 0 : index
    %c0_0 = arith.constant 0 : index
    %c0_1 = arith.constant 0 : index
    %1 = vector.load %arg14[%c0, %c0_0, %c0_1] : memref<18x18x4xf32, #tpu.memory_space<vmem>>, vector<1x18x4xf32>
    tpu.vector_store %arg14[%c0, %c0_0, %c0_1], %0 {strides = array<i32>} : memref<18x18x4xf32, #tpu.memory_space<vmem>>, vector<1x18x4xf32>,
    %c17 = arith.constant 17 : index
    %c0_2 = arith.constant 0 : index
    %c0_3 = arith.constant 0 : index
    %2 = vector.load %arg14[%c17, %c0_2, %c0_3] : memref<18x18x4xf32, #tpu.memory_space<vmem>>, vector<1x18x4xf32>
    tpu.vector_store %arg14[%c17, %c0_2, %c0_3], %0 {strides = array<i32>} : memref<18x18x4xf32, #tpu.memory_space<vmem>>, vector<1x18x4xf32>,
    %cst_4 = arith.constant 0.000000e+00 : f32
    %3 = vector.broadcast %cst_4 : f32 to vector<18x1x4xf32>
    %c0_5 = arith.constant 0 : index
    %c0_6 = arith.constant 0 : index
    %c0_7 = arith.constant 0 : index
    %4 = vector.load %arg14[%c0_5, %c0_6, %c0_7] : memref<18x18x4xf32, #tpu.memory_space<vmem>>, vector<18x1x4xf32>
    tpu.vector_store %arg14[%c0_5, %c0_6, %c0_7], %3 {strides = array<i32>} : memref<18x18x4xf32, #tpu.memory_space<vmem>>, vector<18x1x4xf32>,
    %c0_8 = arith.constant 0 : index
    %c17_9 = arith.constant 17 : index
    %c0_10 = arith.constant 0 : index
    %5 = vector.load %arg14[%c0_8, %c17_9, %c0_10] : memref<18x18x4xf32, #tpu.memory_space<vmem>>, vector<18x1x4xf32>
    tpu.vector_store %arg14[%c0_8, %c17_9, %c0_10], %3 {strides = array<i32>} : memref<18x18x4xf32, #tpu.memory_space<vmem>>, vector<18x1x4xf32>,
    %cst_11 = arith.constant 0.000000e+00 : f32
    %6 = vector.broadcast %cst_11 : f32 to vector<1x18x4xf32>
    %c0_12 = arith.constant 0 : index
    %c0_13 = arith.constant 0 : index
    %c0_14 = arith.constant 0 : index
    %7 = vector.load %arg15[%c0_12, %c0_13, %c0_14] : memref<18x18x4xf32, #tpu.memory_space<vmem>>, vector<1x18x4xf32>
    tpu.vector_store %arg15[%c0_12, %c0_13, %c0_14], %6 {strides = array<i32>} : memref<18x18x4xf32, #tpu.memory_space<vmem>>, vector<1x18x4xf32>,
    %c17_15 = arith.constant 17 : index
    %c0_16 = arith.constant 0 : index
    %c0_17 = arith.constant 0 : index
    %8 = vector.load %arg15[%c17_15, %c0_16, %c0_17] : memref<18x18x4xf32, #tpu.memory_space<vmem>>, vector<1x18x4xf32>
    tpu.vector_store %arg15[%c17_15, %c0_16, %c0_17], %6 {strides = array<i32>} : memref<18x18x4xf32, #tpu.memory_space<vmem>>, vector<1x18x4xf32>,
    %cst_18 = arith.constant 0.000000e+00 : f32
    %9 = vector.broadcast %cst_18 : f32 to vector<18x1x4xf32>
    %c0_19 = arith.constant 0 : index
    %c0_20 = arith.constant 0 : index
    %c0_21 = arith.constant 0 : index
    %10 = vector.load %arg15[%c0_19, %c0_20, %c0_21] : memref<18x18x4xf32, #tpu.memory_space<vmem>>, vector<18x1x4xf32>
    tpu.vector_store %arg15[%c0_19, %c0_20, %c0_21], %9 {strides = array<i32>} : memref<18x18x4xf32, #tpu.memory_space<vmem>>, vector<18x1x4xf32>,
    %c0_22 = arith.constant 0 : index
    %c17_23 = arith.constant 17 : index
    %c0_24 = arith.constant 0 : index
    %11 = vector.load %arg15[%c0_22, %c17_23, %c0_24] : memref<18x18x4xf32, #tpu.memory_space<vmem>>, vector<18x1x4xf32>
    tpu.vector_store %arg15[%c0_22, %c17_23, %c0_24], %9 {strides = array<i32>} : memref<18x18x4xf32, #tpu.memory_space<vmem>>, vector<18x1x4xf32>,
    %cst_25 = arith.constant 0.000000e+00 : f32
    %12 = vector.broadcast %cst_25 : f32 to vector<1x18x4xf32>
    %c0_26 = arith.constant 0 : index
    %c0_27 = arith.constant 0 : index
    %c0_28 = arith.constant 0 : index
    %13 = vector.load %arg16[%c0_26, %c0_27, %c0_28] : memref<18x18x4xf32, #tpu.memory_space<vmem>>, vector<1x18x4xf32>
    tpu.vector_store %arg16[%c0_26, %c0_27, %c0_28], %12 {strides = array<i32>} : memref<18x18x4xf32, #tpu.memory_space<vmem>>, vector<1x18x4xf32>,
    %c17_29 = arith.constant 17 : index
    %c0_30 = arith.constant 0 : index
    %c0_31 = arith.constant 0 : index
    %14 = vector.load %arg16[%c17_29, %c0_30, %c0_31] : memref<18x18x4xf32, #tpu.memory_space<vmem>>, vector<1x18x4xf32>
    tpu.vector_store %arg16[%c17_29, %c0_30, %c0_31], %12 {strides = array<i32>} : memref<18x18x4xf32, #tpu.memory_space<vmem>>, vector<1x18x4xf32>,
    %cst_32 = arith.constant 0.000000e+00 : f32
    %15 = vector.broadcast %cst_32 : f32 to vector<18x1x4xf32>
    %c0_33 = arith.constant 0 : index
    %c0_34 = arith.constant 0 : index
    %c0_35 = arith.constant 0 : index
    %16 = vector.load %arg16[%c0_33, %c0_34, %c0_35] : memref<18x18x4xf32, #tpu.memory_space<vmem>>, vector<18x1x4xf32>
    tpu.vector_store %arg16[%c0_33, %c0_34, %c0_35], %15 {strides = array<i32>} : memref<18x18x4xf32, #tpu.memory_space<vmem>>, vector<18x1x4xf32>,
    %c0_36 = arith.constant 0 : index
    %c17_37 = arith.constant 17 : index
    %c0_38 = arith.constant 0 : index
    %17 = vector.load %arg16[%c0_36, %c17_37, %c0_38] : memref<18x18x4xf32, #tpu.memory_space<vmem>>, vector<18x1x4xf32>
    tpu.vector_store %arg16[%c0_36, %c17_37, %c0_38], %15 {strides = array<i32>} : memref<18x18x4xf32, #tpu.memory_space<vmem>>, vector<18x1x4xf32>,
    %c0_39 = arith.constant 0 : index
    %c0_40 = arith.constant 0 : index
    %c0_41 = arith.constant 0 : index
    %c0_42 = arith.constant 0 : index
    %18 = vector.load %arg1[%c0_39, %c0_40, %c0_41, %c0_42] : memref<1x8x8x8xf32, #tpu.memory_space<vmem>>, vector<1x8x8x8xf32>
    %19 = vector.shape_cast %18 : vector<1x8x8x8xf32> to vector<8x8x8xf32>
    %20 = vector.shape_cast %19 : vector<8x8x8xf32> to vector<64x8xf32>
    %c0_43 = arith.constant 0 : index
    %c0_44 = arith.constant 0 : index
    %c0_45 = arith.constant 0 : index
    %c0_46 = arith.constant 0 : index
    %21 = vector.load %arg3[%c0_43, %c0_44, %c0_45, %c0_46] : memref<2x2x8x4xf32, #tpu.memory_space<vmem>>, vector<2x2x8x4xf32>
    %c0_47 = arith.constant 0 : index
    %c0_48 = arith.constant 0 : index
    %22 = vector.load %arg4[%c0_47, %c0_48] : memref<1x4xf32, #tpu.memory_space<vmem>>, vector<1x4xf32>
    %23 = vector.extract_strided_slice %21 {offsets = [0, 0, 0, 0], sizes = [1, 1, 8, 4], strides = [1, 1, 1, 1]} : vector<2x2x8x4xf32> to vector<1x1x8x4xf32>
    %24 = vector.shape_cast %23 : vector<1x1x8x4xf32> to vector<8x4xf32>
    %cst_49 = arith.constant dense<0.000000e+00> : vector<64x4xf32>
    %25 = tpu.matmul %20, %24, %cst_49 {dimension_numbers = #tpu.dot_dimension_numbers<[1], [0], [0], [1], [0, 0, 1, 1], [], []>} : vector<64x8xf32>, vector<8x4xf32>, vector<64x4xf32> -> vector<64x4xf32>
    %26 = vector.broadcast %22 : vector<1x4xf32> to vector<64x4xf32>
    %27 = arith.addf %25, %26 : vector<64x4xf32>
    %28 = vector.shape_cast %27 : vector<64x4xf32> to vector<8x8x4xf32>
    %29 = vector.extract_strided_slice %21 {offsets = [0, 1, 0, 0], sizes = [1, 1, 8, 4], strides = [1, 1, 1, 1]} : vector<2x2x8x4xf32> to vector<1x1x8x4xf32>
    %30 = vector.shape_cast %29 : vector<1x1x8x4xf32> to vector<8x4xf32>
    %cst_50 = arith.constant dense<0.000000e+00> : vector<64x4xf32>
    %31 = tpu.matmul %20, %30, %cst_50 {dimension_numbers = #tpu.dot_dimension_numbers<[1], [0], [0], [1], [0, 0, 1, 1], [], []>} : vector<64x8xf32>, vector<8x4xf32>, vector<64x4xf32> -> vector<64x4xf32>
    %32 = vector.broadcast %22 : vector<1x4xf32> to vector<64x4xf32>
    %33 = arith.addf %31, %32 : vector<64x4xf32>
    %34 = vector.shape_cast %33 : vector<64x4xf32> to vector<8x8x4xf32>
    %35 = vector.shape_cast %28 : vector<8x8x4xf32> to vector<8x8x1x4xf32>
    %36 = vector.shape_cast %34 : vector<8x8x4xf32> to vector<8x8x1x4xf32>
    %37 = tpu.concatenate %35, %36 in 2 : vector<8x8x1x4xf32>, vector<8x8x1x4xf32> -> vector<8x8x2x4xf32>
    %38 = vector.shape_cast %37 : vector<8x8x2x4xf32> to vector<8x16x4xf32>
    %39 = vector.extract_strided_slice %21 {offsets = [1, 0, 0, 0], sizes = [1, 1, 8, 4], strides = [1, 1, 1, 1]} : vector<2x2x8x4xf32> to vector<1x1x8x4xf32>
    %40 = vector.shape_cast %39 : vector<1x1x8x4xf32> to vector<8x4xf32>
    %cst_51 = arith.constant dense<0.000000e+00> : vector<64x4xf32>
    %41 = tpu.matmul %20, %40, %cst_51 {dimension_numbers = #tpu.dot_dimension_numbers<[1], [0], [0], [1], [0, 0, 1, 1], [], []>} : vector<64x8xf32>, vector<8x4xf32>, vector<64x4xf32> -> vector<64x4xf32>
    %42 = vector.broadcast %22 : vector<1x4xf32> to vector<64x4xf32>
    %43 = arith.addf %41, %42 : vector<64x4xf32>
    %44 = vector.shape_cast %43 : vector<64x4xf32> to vector<8x8x4xf32>
    %45 = vector.extract_strided_slice %21 {offsets = [1, 1, 0, 0], sizes = [1, 1, 8, 4], strides = [1, 1, 1, 1]} : vector<2x2x8x4xf32> to vector<1x1x8x4xf32>
    %46 = vector.shape_cast %45 : vector<1x1x8x4xf32> to vector<8x4xf32>
    %cst_52 = arith.constant dense<0.000000e+00> : vector<64x4xf32>
    %47 = tpu.matmul %20, %46, %cst_52 {dimension_numbers = #tpu.dot_dimension_numbers<[1], [0], [0], [1], [0, 0, 1, 1], [], []>} : vector<64x8xf32>, vector<8x4xf32>, vector<64x4xf32> -> vector<64x4xf32>
    %48 = vector.broadcast %22 : vector<1x4xf32> to vector<64x4xf32>
    %49 = arith.addf %47, %48 : vector<64x4xf32>
    %50 = vector.shape_cast %49 : vector<64x4xf32> to vector<8x8x4xf32>
    %51 = vector.shape_cast %44 : vector<8x8x4xf32> to vector<8x8x1x4xf32>
    %52 = vector.shape_cast %50 : vector<8x8x4xf32> to vector<8x8x1x4xf32>
    %53 = tpu.concatenate %51, %52 in 2 : vector<8x8x1x4xf32>, vector<8x8x1x4xf32> -> vector<8x8x2x4xf32>
    %54 = vector.shape_cast %53 : vector<8x8x2x4xf32> to vector<8x16x4xf32>
    %55 = vector.shape_cast %38 : vector<8x16x4xf32> to vector<8x1x16x4xf32>
    %56 = vector.shape_cast %54 : vector<8x16x4xf32> to vector<8x1x16x4xf32>
    %57 = tpu.concatenate %55, %56 in 1 : vector<8x1x16x4xf32>, vector<8x1x16x4xf32> -> vector<8x2x16x4xf32>
    %58 = vector.shape_cast %57 : vector<8x2x16x4xf32> to vector<16x16x4xf32>
    %c1 = arith.constant 1 : index
    %c1_53 = arith.constant 1 : index
    %c0_54 = arith.constant 0 : index
    %59 = vector.load %arg14[%c1, %c1_53, %c0_54] : memref<18x18x4xf32, #tpu.memory_space<vmem>>, vector<16x16x4xf32>
    tpu.vector_store %arg14[%c1, %c1_53, %c0_54], %58 {strides = array<i32>} : memref<18x18x4xf32, #tpu.memory_space<vmem>>, vector<16x16x4xf32>,
    %c0_55 = arith.constant 0 : index
    %c0_56 = arith.constant 0 : index
    %c0_57 = arith.constant 0 : index
    %c0_58 = arith.constant 0 : index
    %60 = vector.load %arg2[%c0_55, %c0_56, %c0_57, %c0_58] : memref<1x16x16x4xf32, #tpu.memory_space<vmem>>, vector<1x16x16x4xf32>
    %61 = vector.shape_cast %60 : vector<1x16x16x4xf32> to vector<16x16x4xf32>
    %c1_59 = arith.constant 1 : index
    %c1_60 = arith.constant 1 : index
    %c0_61 = arith.constant 0 : index
    %62 = vector.load %arg15[%c1_59, %c1_60, %c0_61] : memref<18x18x4xf32, #tpu.memory_space<vmem>>, vector<16x16x4xf32>
    tpu.vector_store %arg15[%c1_59, %c1_60, %c0_61], %61 {strides = array<i32>} : memref<18x18x4xf32, #tpu.memory_space<vmem>>, vector<16x16x4xf32>,
    %63 = vector.shape_cast %58 : vector<16x16x4xf32> to vector<256x4xf32>
    %c0_62 = arith.constant 0 : index
    %c0_63 = arith.constant 0 : index
    %64 = vector.load %arg10[%c0_62, %c0_63] : memref<4x4xf32, #tpu.memory_space<vmem>>, vector<4x4xf32>
    %cst_64 = arith.constant dense<0.000000e+00> : vector<256x4xf32>
    %65 = tpu.matmul %63, %64, %cst_64 {dimension_numbers = #tpu.dot_dimension_numbers<[1], [0], [0], [1], [0, 0, 1, 1], [], []>} : vector<256x4xf32>, vector<4x4xf32>, vector<256x4xf32> -> vector<256x4xf32>
    %66 = vector.shape_cast %61 : vector<16x16x4xf32> to vector<256x4xf32>
    %c0_65 = arith.constant 0 : index
    %c0_66 = arith.constant 0 : index
    %67 = vector.load %arg11[%c0_65, %c0_66] : memref<4x4xf32, #tpu.memory_space<vmem>>, vector<4x4xf32>
    %cst_67 = arith.constant dense<0.000000e+00> : vector<256x4xf32>
    %68 = tpu.matmul %66, %67, %cst_67 {dimension_numbers = #tpu.dot_dimension_numbers<[1], [0], [0], [1], [0, 0, 1, 1], [], []>} : vector<256x4xf32>, vector<4x4xf32>, vector<256x4xf32> -> vector<256x4xf32>
    %69 = arith.addf %65, %68 : vector<256x4xf32>
    %c0_68 = arith.constant 0 : index
    %c0_69 = arith.constant 0 : index
    %70 = vector.load %arg12[%c0_68, %c0_69] : memref<1x4xf32, #tpu.memory_space<vmem>>, vector<1x4xf32>
    %71 = vector.broadcast %70 : vector<1x4xf32> to vector<256x4xf32>
    %72 = arith.addf %69, %71 : vector<256x4xf32>
    %c0_70 = arith.constant 0 : index
    %c0_71 = arith.constant 0 : index
    %c0_72 = arith.constant 0 : index
    %c0_73 = arith.constant 0 : index
    %73 = vector.load %arg5[%c0_70, %c0_71, %c0_72, %c0_73] : memref<3x3x4x4xf32, #tpu.memory_space<vmem>>, vector<3x3x4x4xf32>
    %c0_74 = arith.constant 0 : index
    %c0_75 = arith.constant 0 : index
    %c0_76 = arith.constant 0 : index
    %74 = vector.load %arg14[%c0_74, %c0_75, %c0_76] : memref<18x18x4xf32, #tpu.memory_space<vmem>>, vector<16x16x4xf32>
    %75 = vector.shape_cast %74 : vector<16x16x4xf32> to vector<256x4xf32>
    %76 = vector.extract_strided_slice %73 {offsets = [0, 0, 0, 0], sizes = [1, 1, 4, 4], strides = [1, 1, 1, 1]} : vector<3x3x4x4xf32> to vector<1x1x4x4xf32>
    %77 = vector.shape_cast %76 : vector<1x1x4x4xf32> to vector<4x4xf32>
    %cst_77 = arith.constant dense<0.000000e+00> : vector<256x4xf32>
    %78 = tpu.matmul %75, %77, %cst_77 {dimension_numbers = #tpu.dot_dimension_numbers<[1], [0], [0], [1], [0, 0, 1, 1], [], []>} : vector<256x4xf32>, vector<4x4xf32>, vector<256x4xf32> -> vector<256x4xf32>
    %c0_78 = arith.constant 0 : index
    %c1_79 = arith.constant 1 : index
    %c0_80 = arith.constant 0 : index
    %79 = vector.load %arg14[%c0_78, %c1_79, %c0_80] : memref<18x18x4xf32, #tpu.memory_space<vmem>>, vector<16x16x4xf32>
    %80 = vector.shape_cast %79 : vector<16x16x4xf32> to vector<256x4xf32>
    %81 = vector.extract_strided_slice %73 {offsets = [0, 1, 0, 0], sizes = [1, 1, 4, 4], strides = [1, 1, 1, 1]} : vector<3x3x4x4xf32> to vector<1x1x4x4xf32>
    %82 = vector.shape_cast %81 : vector<1x1x4x4xf32> to vector<4x4xf32>
    %cst_81 = arith.constant dense<0.000000e+00> : vector<256x4xf32>
    %83 = tpu.matmul %80, %82, %cst_81 {dimension_numbers = #tpu.dot_dimension_numbers<[1], [0], [0], [1], [0, 0, 1, 1], [], []>} : vector<256x4xf32>, vector<4x4xf32>, vector<256x4xf32> -> vector<256x4xf32>
    %84 = arith.addf %78, %83 : vector<256x4xf32>
    %c0_82 = arith.constant 0 : index
    %c2 = arith.constant 2 : index
    %c0_83 = arith.constant 0 : index
    %85 = vector.load %arg14[%c0_82, %c2, %c0_83] : memref<18x18x4xf32, #tpu.memory_space<vmem>>, vector<16x16x4xf32>
    %86 = vector.shape_cast %85 : vector<16x16x4xf32> to vector<256x4xf32>
    %87 = vector.extract_strided_slice %73 {offsets = [0, 2, 0, 0], sizes = [1, 1, 4, 4], strides = [1, 1, 1, 1]} : vector<3x3x4x4xf32> to vector<1x1x4x4xf32>
    %88 = vector.shape_cast %87 : vector<1x1x4x4xf32> to vector<4x4xf32>
    %cst_84 = arith.constant dense<0.000000e+00> : vector<256x4xf32>
    %89 = tpu.matmul %86, %88, %cst_84 {dimension_numbers = #tpu.dot_dimension_numbers<[1], [0], [0], [1], [0, 0, 1, 1], [], []>} : vector<256x4xf32>, vector<4x4xf32>, vector<256x4xf32> -> vector<256x4xf32>
    %90 = arith.addf %84, %89 : vector<256x4xf32>
    %c1_85 = arith.constant 1 : index
    %c0_86 = arith.constant 0 : index
    %c0_87 = arith.constant 0 : index
    %91 = vector.load %arg14[%c1_85, %c0_86, %c0_87] : memref<18x18x4xf32, #tpu.memory_space<vmem>>, vector<16x16x4xf32>
    %92 = vector.shape_cast %91 : vector<16x16x4xf32> to vector<256x4xf32>
    %93 = vector.extract_strided_slice %73 {offsets = [1, 0, 0, 0], sizes = [1, 1, 4, 4], strides = [1, 1, 1, 1]} : vector<3x3x4x4xf32> to vector<1x1x4x4xf32>
    %94 = vector.shape_cast %93 : vector<1x1x4x4xf32> to vector<4x4xf32>
    %cst_88 = arith.constant dense<0.000000e+00> : vector<256x4xf32>
    %95 = tpu.matmul %92, %94, %cst_88 {dimension_numbers = #tpu.dot_dimension_numbers<[1], [0], [0], [1], [0, 0, 1, 1], [], []>} : vector<256x4xf32>, vector<4x4xf32>, vector<256x4xf32> -> vector<256x4xf32>
    %96 = arith.addf %90, %95 : vector<256x4xf32>
    %c1_89 = arith.constant 1 : index
    %c1_90 = arith.constant 1 : index
    %c0_91 = arith.constant 0 : index
    %97 = vector.load %arg14[%c1_89, %c1_90, %c0_91] : memref<18x18x4xf32, #tpu.memory_space<vmem>>, vector<16x16x4xf32>
    %98 = vector.shape_cast %97 : vector<16x16x4xf32> to vector<256x4xf32>
    %99 = vector.extract_strided_slice %73 {offsets = [1, 1, 0, 0], sizes = [1, 1, 4, 4], strides = [1, 1, 1, 1]} : vector<3x3x4x4xf32> to vector<1x1x4x4xf32>
    %100 = vector.shape_cast %99 : vector<1x1x4x4xf32> to vector<4x4xf32>
    %cst_92 = arith.constant dense<0.000000e+00> : vector<256x4xf32>
    %101 = tpu.matmul %98, %100, %cst_92 {dimension_numbers = #tpu.dot_dimension_numbers<[1], [0], [0], [1], [0, 0, 1, 1], [], []>} : vector<256x4xf32>, vector<4x4xf32>, vector<256x4xf32> -> vector<256x4xf32>
    %102 = arith.addf %96, %101 : vector<256x4xf32>
    %c1_93 = arith.constant 1 : index
    %c2_94 = arith.constant 2 : index
    %c0_95 = arith.constant 0 : index
    %103 = vector.load %arg14[%c1_93, %c2_94, %c0_95] : memref<18x18x4xf32, #tpu.memory_space<vmem>>, vector<16x16x4xf32>
    %104 = vector.shape_cast %103 : vector<16x16x4xf32> to vector<256x4xf32>
    %105 = vector.extract_strided_slice %73 {offsets = [1, 2, 0, 0], sizes = [1, 1, 4, 4], strides = [1, 1, 1, 1]} : vector<3x3x4x4xf32> to vector<1x1x4x4xf32>
    %106 = vector.shape_cast %105 : vector<1x1x4x4xf32> to vector<4x4xf32>
    %cst_96 = arith.constant dense<0.000000e+00> : vector<256x4xf32>
    %107 = tpu.matmul %104, %106, %cst_96 {dimension_numbers = #tpu.dot_dimension_numbers<[1], [0], [0], [1], [0, 0, 1, 1], [], []>} : vector<256x4xf32>, vector<4x4xf32>, vector<256x4xf32> -> vector<256x4xf32>
    %108 = arith.addf %102, %107 : vector<256x4xf32>
    %c2_97 = arith.constant 2 : index
    %c0_98 = arith.constant 0 : index
    %c0_99 = arith.constant 0 : index
    %109 = vector.load %arg14[%c2_97, %c0_98, %c0_99] : memref<18x18x4xf32, #tpu.memory_space<vmem>>, vector<16x16x4xf32>
    %110 = vector.shape_cast %109 : vector<16x16x4xf32> to vector<256x4xf32>
    %111 = vector.extract_strided_slice %73 {offsets = [2, 0, 0, 0], sizes = [1, 1, 4, 4], strides = [1, 1, 1, 1]} : vector<3x3x4x4xf32> to vector<1x1x4x4xf32>
    %112 = vector.shape_cast %111 : vector<1x1x4x4xf32> to vector<4x4xf32>
    %cst_100 = arith.constant dense<0.000000e+00> : vector<256x4xf32>
    %113 = tpu.matmul %110, %112, %cst_100 {dimension_numbers = #tpu.dot_dimension_numbers<[1], [0], [0], [1], [0, 0, 1, 1], [], []>} : vector<256x4xf32>, vector<4x4xf32>, vector<256x4xf32> -> vector<256x4xf32>
    %114 = arith.addf %108, %113 : vector<256x4xf32>
    %c2_101 = arith.constant 2 : index
    %c1_102 = arith.constant 1 : index
    %c0_103 = arith.constant 0 : index
    %115 = vector.load %arg14[%c2_101, %c1_102, %c0_103] : memref<18x18x4xf32, #tpu.memory_space<vmem>>, vector<16x16x4xf32>
    %116 = vector.shape_cast %115 : vector<16x16x4xf32> to vector<256x4xf32>
    %117 = vector.extract_strided_slice %73 {offsets = [2, 1, 0, 0], sizes = [1, 1, 4, 4], strides = [1, 1, 1, 1]} : vector<3x3x4x4xf32> to vector<1x1x4x4xf32>
    %118 = vector.shape_cast %117 : vector<1x1x4x4xf32> to vector<4x4xf32>
    %cst_104 = arith.constant dense<0.000000e+00> : vector<256x4xf32>
    %119 = tpu.matmul %116, %118, %cst_104 {dimension_numbers = #tpu.dot_dimension_numbers<[1], [0], [0], [1], [0, 0, 1, 1], [], []>} : vector<256x4xf32>, vector<4x4xf32>, vector<256x4xf32> -> vector<256x4xf32>
    %120 = arith.addf %114, %119 : vector<256x4xf32>
    %c2_105 = arith.constant 2 : index
    %c2_106 = arith.constant 2 : index
    %c0_107 = arith.constant 0 : index
    %121 = vector.load %arg14[%c2_105, %c2_106, %c0_107] : memref<18x18x4xf32, #tpu.memory_space<vmem>>, vector<16x16x4xf32>
    %122 = vector.shape_cast %121 : vector<16x16x4xf32> to vector<256x4xf32>
    %123 = vector.extract_strided_slice %73 {offsets = [2, 2, 0, 0], sizes = [1, 1, 4, 4], strides = [1, 1, 1, 1]} : vector<3x3x4x4xf32> to vector<1x1x4x4xf32>
    %124 = vector.shape_cast %123 : vector<1x1x4x4xf32> to vector<4x4xf32>
    %cst_108 = arith.constant dense<0.000000e+00> : vector<256x4xf32>
    %125 = tpu.matmul %122, %124, %cst_108 {dimension_numbers = #tpu.dot_dimension_numbers<[1], [0], [0], [1], [0, 0, 1, 1], [], []>} : vector<256x4xf32>, vector<4x4xf32>, vector<256x4xf32> -> vector<256x4xf32>
    %126 = arith.addf %120, %125 : vector<256x4xf32>
    %c0_109 = arith.constant 0 : index
    %c0_110 = arith.constant 0 : index
    %c0_111 = arith.constant 0 : index
    %c0_112 = arith.constant 0 : index
    %127 = vector.load %arg6[%c0_109, %c0_110, %c0_111, %c0_112] : memref<3x3x4x4xf32, #tpu.memory_space<vmem>>, vector<3x3x4x4xf32>
    %c0_113 = arith.constant 0 : index
    %c0_114 = arith.constant 0 : index
    %c0_115 = arith.constant 0 : index
    %128 = vector.load %arg15[%c0_113, %c0_114, %c0_115] : memref<18x18x4xf32, #tpu.memory_space<vmem>>, vector<16x16x4xf32>
    %129 = vector.shape_cast %128 : vector<16x16x4xf32> to vector<256x4xf32>
    %130 = vector.extract_strided_slice %127 {offsets = [0, 0, 0, 0], sizes = [1, 1, 4, 4], strides = [1, 1, 1, 1]} : vector<3x3x4x4xf32> to vector<1x1x4x4xf32>
    %131 = vector.shape_cast %130 : vector<1x1x4x4xf32> to vector<4x4xf32>
    %cst_116 = arith.constant dense<0.000000e+00> : vector<256x4xf32>
    %132 = tpu.matmul %129, %131, %cst_116 {dimension_numbers = #tpu.dot_dimension_numbers<[1], [0], [0], [1], [0, 0, 1, 1], [], []>} : vector<256x4xf32>, vector<4x4xf32>, vector<256x4xf32> -> vector<256x4xf32>
    %c0_117 = arith.constant 0 : index
    %c1_118 = arith.constant 1 : index
    %c0_119 = arith.constant 0 : index
    %133 = vector.load %arg15[%c0_117, %c1_118, %c0_119] : memref<18x18x4xf32, #tpu.memory_space<vmem>>, vector<16x16x4xf32>
    %134 = vector.shape_cast %133 : vector<16x16x4xf32> to vector<256x4xf32>
    %135 = vector.extract_strided_slice %127 {offsets = [0, 1, 0, 0], sizes = [1, 1, 4, 4], strides = [1, 1, 1, 1]} : vector<3x3x4x4xf32> to vector<1x1x4x4xf32>
    %136 = vector.shape_cast %135 : vector<1x1x4x4xf32> to vector<4x4xf32>
    %cst_120 = arith.constant dense<0.000000e+00> : vector<256x4xf32>
    %137 = tpu.matmul %134, %136, %cst_120 {dimension_numbers = #tpu.dot_dimension_numbers<[1], [0], [0], [1], [0, 0, 1, 1], [], []>} : vector<256x4xf32>, vector<4x4xf32>, vector<256x4xf32> -> vector<256x4xf32>
    %138 = arith.addf %132, %137 : vector<256x4xf32>
    %c0_121 = arith.constant 0 : index
    %c2_122 = arith.constant 2 : index
    %c0_123 = arith.constant 0 : index
    %139 = vector.load %arg15[%c0_121, %c2_122, %c0_123] : memref<18x18x4xf32, #tpu.memory_space<vmem>>, vector<16x16x4xf32>
    %140 = vector.shape_cast %139 : vector<16x16x4xf32> to vector<256x4xf32>
    %141 = vector.extract_strided_slice %127 {offsets = [0, 2, 0, 0], sizes = [1, 1, 4, 4], strides = [1, 1, 1, 1]} : vector<3x3x4x4xf32> to vector<1x1x4x4xf32>
    %142 = vector.shape_cast %141 : vector<1x1x4x4xf32> to vector<4x4xf32>
    %cst_124 = arith.constant dense<0.000000e+00> : vector<256x4xf32>
    %143 = tpu.matmul %140, %142, %cst_124 {dimension_numbers = #tpu.dot_dimension_numbers<[1], [0], [0], [1], [0, 0, 1, 1], [], []>} : vector<256x4xf32>, vector<4x4xf32>, vector<256x4xf32> -> vector<256x4xf32>
    %144 = arith.addf %138, %143 : vector<256x4xf32>
    %c1_125 = arith.constant 1 : index
    %c0_126 = arith.constant 0 : index
    %c0_127 = arith.constant 0 : index
    %145 = vector.load %arg15[%c1_125, %c0_126, %c0_127] : memref<18x18x4xf32, #tpu.memory_space<vmem>>, vector<16x16x4xf32>
    %146 = vector.shape_cast %145 : vector<16x16x4xf32> to vector<256x4xf32>
    %147 = vector.extract_strided_slice %127 {offsets = [1, 0, 0, 0], sizes = [1, 1, 4, 4], strides = [1, 1, 1, 1]} : vector<3x3x4x4xf32> to vector<1x1x4x4xf32>
    %148 = vector.shape_cast %147 : vector<1x1x4x4xf32> to vector<4x4xf32>
    %cst_128 = arith.constant dense<0.000000e+00> : vector<256x4xf32>
    %149 = tpu.matmul %146, %148, %cst_128 {dimension_numbers = #tpu.dot_dimension_numbers<[1], [0], [0], [1], [0, 0, 1, 1], [], []>} : vector<256x4xf32>, vector<4x4xf32>, vector<256x4xf32> -> vector<256x4xf32>
    %150 = arith.addf %144, %149 : vector<256x4xf32>
    %c1_129 = arith.constant 1 : index
    %c1_130 = arith.constant 1 : index
    %c0_131 = arith.constant 0 : index
    %151 = vector.load %arg15[%c1_129, %c1_130, %c0_131] : memref<18x18x4xf32, #tpu.memory_space<vmem>>, vector<16x16x4xf32>
    %152 = vector.shape_cast %151 : vector<16x16x4xf32> to vector<256x4xf32>
    %153 = vector.extract_strided_slice %127 {offsets = [1, 1, 0, 0], sizes = [1, 1, 4, 4], strides = [1, 1, 1, 1]} : vector<3x3x4x4xf32> to vector<1x1x4x4xf32>
    %154 = vector.shape_cast %153 : vector<1x1x4x4xf32> to vector<4x4xf32>
    %cst_132 = arith.constant dense<0.000000e+00> : vector<256x4xf32>
    %155 = tpu.matmul %152, %154, %cst_132 {dimension_numbers = #tpu.dot_dimension_numbers<[1], [0], [0], [1], [0, 0, 1, 1], [], []>} : vector<256x4xf32>, vector<4x4xf32>, vector<256x4xf32> -> vector<256x4xf32>
    %156 = arith.addf %150, %155 : vector<256x4xf32>
    %c1_133 = arith.constant 1 : index
    %c2_134 = arith.constant 2 : index
    %c0_135 = arith.constant 0 : index
    %157 = vector.load %arg15[%c1_133, %c2_134, %c0_135] : memref<18x18x4xf32, #tpu.memory_space<vmem>>, vector<16x16x4xf32>
    %158 = vector.shape_cast %157 : vector<16x16x4xf32> to vector<256x4xf32>
    %159 = vector.extract_strided_slice %127 {offsets = [1, 2, 0, 0], sizes = [1, 1, 4, 4], strides = [1, 1, 1, 1]} : vector<3x3x4x4xf32> to vector<1x1x4x4xf32>
    %160 = vector.shape_cast %159 : vector<1x1x4x4xf32> to vector<4x4xf32>
    %cst_136 = arith.constant dense<0.000000e+00> : vector<256x4xf32>
    %161 = tpu.matmul %158, %160, %cst_136 {dimension_numbers = #tpu.dot_dimension_numbers<[1], [0], [0], [1], [0, 0, 1, 1], [], []>} : vector<256x4xf32>, vector<4x4xf32>, vector<256x4xf32> -> vector<256x4xf32>
    %162 = arith.addf %156, %161 : vector<256x4xf32>
    %c2_137 = arith.constant 2 : index
    %c0_138 = arith.constant 0 : index
    %c0_139 = arith.constant 0 : index
    %163 = vector.load %arg15[%c2_137, %c0_138, %c0_139] : memref<18x18x4xf32, #tpu.memory_space<vmem>>, vector<16x16x4xf32>
    %164 = vector.shape_cast %163 : vector<16x16x4xf32> to vector<256x4xf32>
    %165 = vector.extract_strided_slice %127 {offsets = [2, 0, 0, 0], sizes = [1, 1, 4, 4], strides = [1, 1, 1, 1]} : vector<3x3x4x4xf32> to vector<1x1x4x4xf32>
    %166 = vector.shape_cast %165 : vector<1x1x4x4xf32> to vector<4x4xf32>
    %cst_140 = arith.constant dense<0.000000e+00> : vector<256x4xf32>
    %167 = tpu.matmul %164, %166, %cst_140 {dimension_numbers = #tpu.dot_dimension_numbers<[1], [0], [0], [1], [0, 0, 1, 1], [], []>} : vector<256x4xf32>, vector<4x4xf32>, vector<256x4xf32> -> vector<256x4xf32>
    %168 = arith.addf %162, %167 : vector<256x4xf32>
    %c2_141 = arith.constant 2 : index
    %c1_142 = arith.constant 1 : index
    %c0_143 = arith.constant 0 : index
    %169 = vector.load %arg15[%c2_141, %c1_142, %c0_143] : memref<18x18x4xf32, #tpu.memory_space<vmem>>, vector<16x16x4xf32>
    %170 = vector.shape_cast %169 : vector<16x16x4xf32> to vector<256x4xf32>
    %171 = vector.extract_strided_slice %127 {offsets = [2, 1, 0, 0], sizes = [1, 1, 4, 4], strides = [1, 1, 1, 1]} : vector<3x3x4x4xf32> to vector<1x1x4x4xf32>
    %172 = vector.shape_cast %171 : vector<1x1x4x4xf32> to vector<4x4xf32>
    %cst_144 = arith.constant dense<0.000000e+00> : vector<256x4xf32>
    %173 = tpu.matmul %170, %172, %cst_144 {dimension_numbers = #tpu.dot_dimension_numbers<[1], [0], [0], [1], [0, 0, 1, 1], [], []>} : vector<256x4xf32>, vector<4x4xf32>, vector<256x4xf32> -> vector<256x4xf32>
    %174 = arith.addf %168, %173 : vector<256x4xf32>
    %c2_145 = arith.constant 2 : index
    %c2_146 = arith.constant 2 : index
    %c0_147 = arith.constant 0 : index
    %175 = vector.load %arg15[%c2_145, %c2_146, %c0_147] : memref<18x18x4xf32, #tpu.memory_space<vmem>>, vector<16x16x4xf32>
    %176 = vector.shape_cast %175 : vector<16x16x4xf32> to vector<256x4xf32>
    %177 = vector.extract_strided_slice %127 {offsets = [2, 2, 0, 0], sizes = [1, 1, 4, 4], strides = [1, 1, 1, 1]} : vector<3x3x4x4xf32> to vector<1x1x4x4xf32>
    %178 = vector.shape_cast %177 : vector<1x1x4x4xf32> to vector<4x4xf32>
    %cst_148 = arith.constant dense<0.000000e+00> : vector<256x4xf32>
    %179 = tpu.matmul %176, %178, %cst_148 {dimension_numbers = #tpu.dot_dimension_numbers<[1], [0], [0], [1], [0, 0, 1, 1], [], []>} : vector<256x4xf32>, vector<4x4xf32>, vector<256x4xf32> -> vector<256x4xf32>
    %180 = arith.addf %174, %179 : vector<256x4xf32>
    %181 = arith.addf %126, %180 : vector<256x4xf32>
    %c0_149 = arith.constant 0 : index
    %c0_150 = arith.constant 0 : index
    %182 = vector.load %arg7[%c0_149, %c0_150] : memref<1x4xf32, #tpu.memory_space<vmem>>, vector<1x4xf32>
    %183 = vector.broadcast %182 : vector<1x4xf32> to vector<256x4xf32>
    %184 = arith.addf %181, %183 : vector<256x4xf32>
    %cst_151 = arith.constant 2.000000e-01 : f32
    %185 = vector.broadcast %cst_151 : f32 to vector<256x4xf32>
    %186 = arith.mulf %185, %184 : vector<256x4xf32>
    %187 = arith.maximumf %184, %186 : vector<256x4xf32>
    %188 = vector.shape_cast %187 : vector<256x4xf32> to vector<16x16x4xf32>
    %c1_152 = arith.constant 1 : index
    %c1_153 = arith.constant 1 : index
    %c0_154 = arith.constant 0 : index
    %189 = vector.load %arg16[%c1_152, %c1_153, %c0_154] : memref<18x18x4xf32, #tpu.memory_space<vmem>>, vector<16x16x4xf32>
    tpu.vector_store %arg16[%c1_152, %c1_153, %c0_154], %188 {strides = array<i32>} : memref<18x18x4xf32, #tpu.memory_space<vmem>>, vector<16x16x4xf32>,
    %c0_155 = arith.constant 0 : index
    %c0_156 = arith.constant 0 : index
    %c0_157 = arith.constant 0 : index
    %c0_158 = arith.constant 0 : index
    %190 = vector.load %arg8[%c0_155, %c0_156, %c0_157, %c0_158] : memref<3x3x4x4xf32, #tpu.memory_space<vmem>>, vector<3x3x4x4xf32>
    %c0_159 = arith.constant 0 : index
    %c0_160 = arith.constant 0 : index
    %c0_161 = arith.constant 0 : index
    %191 = vector.load %arg16[%c0_159, %c0_160, %c0_161] : memref<18x18x4xf32, #tpu.memory_space<vmem>>, vector<16x16x4xf32>
    %192 = vector.shape_cast %191 : vector<16x16x4xf32> to vector<256x4xf32>
    %193 = vector.extract_strided_slice %190 {offsets = [0, 0, 0, 0], sizes = [1, 1, 4, 4], strides = [1, 1, 1, 1]} : vector<3x3x4x4xf32> to vector<1x1x4x4xf32>
    %194 = vector.shape_cast %193 : vector<1x1x4x4xf32> to vector<4x4xf32>
    %cst_162 = arith.constant dense<0.000000e+00> : vector<256x4xf32>
    %195 = tpu.matmul %192, %194, %cst_162 {dimension_numbers = #tpu.dot_dimension_numbers<[1], [0], [0], [1], [0, 0, 1, 1], [], []>} : vector<256x4xf32>, vector<4x4xf32>, vector<256x4xf32> -> vector<256x4xf32>
    %c0_163 = arith.constant 0 : index
    %c1_164 = arith.constant 1 : index
    %c0_165 = arith.constant 0 : index
    %196 = vector.load %arg16[%c0_163, %c1_164, %c0_165] : memref<18x18x4xf32, #tpu.memory_space<vmem>>, vector<16x16x4xf32>
    %197 = vector.shape_cast %196 : vector<16x16x4xf32> to vector<256x4xf32>
    %198 = vector.extract_strided_slice %190 {offsets = [0, 1, 0, 0], sizes = [1, 1, 4, 4], strides = [1, 1, 1, 1]} : vector<3x3x4x4xf32> to vector<1x1x4x4xf32>
    %199 = vector.shape_cast %198 : vector<1x1x4x4xf32> to vector<4x4xf32>
    %cst_166 = arith.constant dense<0.000000e+00> : vector<256x4xf32>
    %200 = tpu.matmul %197, %199, %cst_166 {dimension_numbers = #tpu.dot_dimension_numbers<[1], [0], [0], [1], [0, 0, 1, 1], [], []>} : vector<256x4xf32>, vector<4x4xf32>, vector<256x4xf32> -> vector<256x4xf32>
    %201 = arith.addf %195, %200 : vector<256x4xf32>
    %c0_167 = arith.constant 0 : index
    %c2_168 = arith.constant 2 : index
    %c0_169 = arith.constant 0 : index
    %202 = vector.load %arg16[%c0_167, %c2_168, %c0_169] : memref<18x18x4xf32, #tpu.memory_space<vmem>>, vector<16x16x4xf32>
    %203 = vector.shape_cast %202 : vector<16x16x4xf32> to vector<256x4xf32>
    %204 = vector.extract_strided_slice %190 {offsets = [0, 2, 0, 0], sizes = [1, 1, 4, 4], strides = [1, 1, 1, 1]} : vector<3x3x4x4xf32> to vector<1x1x4x4xf32>
    %205 = vector.shape_cast %204 : vector<1x1x4x4xf32> to vector<4x4xf32>
    %cst_170 = arith.constant dense<0.000000e+00> : vector<256x4xf32>
    %206 = tpu.matmul %203, %205, %cst_170 {dimension_numbers = #tpu.dot_dimension_numbers<[1], [0], [0], [1], [0, 0, 1, 1], [], []>} : vector<256x4xf32>, vector<4x4xf32>, vector<256x4xf32> -> vector<256x4xf32>
    %207 = arith.addf %201, %206 : vector<256x4xf32>
    %c1_171 = arith.constant 1 : index
    %c0_172 = arith.constant 0 : index
    %c0_173 = arith.constant 0 : index
    %208 = vector.load %arg16[%c1_171, %c0_172, %c0_173] : memref<18x18x4xf32, #tpu.memory_space<vmem>>, vector<16x16x4xf32>
    %209 = vector.shape_cast %208 : vector<16x16x4xf32> to vector<256x4xf32>
    %210 = vector.extract_strided_slice %190 {offsets = [1, 0, 0, 0], sizes = [1, 1, 4, 4], strides = [1, 1, 1, 1]} : vector<3x3x4x4xf32> to vector<1x1x4x4xf32>
    %211 = vector.shape_cast %210 : vector<1x1x4x4xf32> to vector<4x4xf32>
    %cst_174 = arith.constant dense<0.000000e+00> : vector<256x4xf32>
    %212 = tpu.matmul %209, %211, %cst_174 {dimension_numbers = #tpu.dot_dimension_numbers<[1], [0], [0], [1], [0, 0, 1, 1], [], []>} : vector<256x4xf32>, vector<4x4xf32>, vector<256x4xf32> -> vector<256x4xf32>
    %213 = arith.addf %207, %212 : vector<256x4xf32>
    %c1_175 = arith.constant 1 : index
    %c1_176 = arith.constant 1 : index
    %c0_177 = arith.constant 0 : index
    %214 = vector.load %arg16[%c1_175, %c1_176, %c0_177] : memref<18x18x4xf32, #tpu.memory_space<vmem>>, vector<16x16x4xf32>
    %215 = vector.shape_cast %214 : vector<16x16x4xf32> to vector<256x4xf32>
    %216 = vector.extract_strided_slice %190 {offsets = [1, 1, 0, 0], sizes = [1, 1, 4, 4], strides = [1, 1, 1, 1]} : vector<3x3x4x4xf32> to vector<1x1x4x4xf32>
    %217 = vector.shape_cast %216 : vector<1x1x4x4xf32> to vector<4x4xf32>
    %cst_178 = arith.constant dense<0.000000e+00> : vector<256x4xf32>
    %218 = tpu.matmul %215, %217, %cst_178 {dimension_numbers = #tpu.dot_dimension_numbers<[1], [0], [0], [1], [0, 0, 1, 1], [], []>} : vector<256x4xf32>, vector<4x4xf32>, vector<256x4xf32> -> vector<256x4xf32>
    %219 = arith.addf %213, %218 : vector<256x4xf32>
    %c1_179 = arith.constant 1 : index
    %c2_180 = arith.constant 2 : index
    %c0_181 = arith.constant 0 : index
    %220 = vector.load %arg16[%c1_179, %c2_180, %c0_181] : memref<18x18x4xf32, #tpu.memory_space<vmem>>, vector<16x16x4xf32>
    %221 = vector.shape_cast %220 : vector<16x16x4xf32> to vector<256x4xf32>
    %222 = vector.extract_strided_slice %190 {offsets = [1, 2, 0, 0], sizes = [1, 1, 4, 4], strides = [1, 1, 1, 1]} : vector<3x3x4x4xf32> to vector<1x1x4x4xf32>
    %223 = vector.shape_cast %222 : vector<1x1x4x4xf32> to vector<4x4xf32>
    %cst_182 = arith.constant dense<0.000000e+00> : vector<256x4xf32>
    %224 = tpu.matmul %221, %223, %cst_182 {dimension_numbers = #tpu.dot_dimension_numbers<[1], [0], [0], [1], [0, 0, 1, 1], [], []>} : vector<256x4xf32>, vector<4x4xf32>, vector<256x4xf32> -> vector<256x4xf32>
    %225 = arith.addf %219, %224 : vector<256x4xf32>
    %c2_183 = arith.constant 2 : index
    %c0_184 = arith.constant 0 : index
    %c0_185 = arith.constant 0 : index
    %226 = vector.load %arg16[%c2_183, %c0_184, %c0_185] : memref<18x18x4xf32, #tpu.memory_space<vmem>>, vector<16x16x4xf32>
    %227 = vector.shape_cast %226 : vector<16x16x4xf32> to vector<256x4xf32>
    %228 = vector.extract_strided_slice %190 {offsets = [2, 0, 0, 0], sizes = [1, 1, 4, 4], strides = [1, 1, 1, 1]} : vector<3x3x4x4xf32> to vector<1x1x4x4xf32>
    %229 = vector.shape_cast %228 : vector<1x1x4x4xf32> to vector<4x4xf32>
    %cst_186 = arith.constant dense<0.000000e+00> : vector<256x4xf32>
    %230 = tpu.matmul %227, %229, %cst_186 {dimension_numbers = #tpu.dot_dimension_numbers<[1], [0], [0], [1], [0, 0, 1, 1], [], []>} : vector<256x4xf32>, vector<4x4xf32>, vector<256x4xf32> -> vector<256x4xf32>
    %231 = arith.addf %225, %230 : vector<256x4xf32>
    %c2_187 = arith.constant 2 : index
    %c1_188 = arith.constant 1 : index
    %c0_189 = arith.constant 0 : index
    %232 = vector.load %arg16[%c2_187, %c1_188, %c0_189] : memref<18x18x4xf32, #tpu.memory_space<vmem>>, vector<16x16x4xf32>
    %233 = vector.shape_cast %232 : vector<16x16x4xf32> to vector<256x4xf32>
    %234 = vector.extract_strided_slice %190 {offsets = [2, 1, 0, 0], sizes = [1, 1, 4, 4], strides = [1, 1, 1, 1]} : vector<3x3x4x4xf32> to vector<1x1x4x4xf32>
    %235 = vector.shape_cast %234 : vector<1x1x4x4xf32> to vector<4x4xf32>
    %cst_190 = arith.constant dense<0.000000e+00> : vector<256x4xf32>
    %236 = tpu.matmul %233, %235, %cst_190 {dimension_numbers = #tpu.dot_dimension_numbers<[1], [0], [0], [1], [0, 0, 1, 1], [], []>} : vector<256x4xf32>, vector<4x4xf32>, vector<256x4xf32> -> vector<256x4xf32>
    %237 = arith.addf %231, %236 : vector<256x4xf32>
    %c2_191 = arith.constant 2 : index
    %c2_192 = arith.constant 2 : index
    %c0_193 = arith.constant 0 : index
    %238 = vector.load %arg16[%c2_191, %c2_192, %c0_193] : memref<18x18x4xf32, #tpu.memory_space<vmem>>, vector<16x16x4xf32>
    %239 = vector.shape_cast %238 : vector<16x16x4xf32> to vector<256x4xf32>
    %240 = vector.extract_strided_slice %190 {offsets = [2, 2, 0, 0], sizes = [1, 1, 4, 4], strides = [1, 1, 1, 1]} : vector<3x3x4x4xf32> to vector<1x1x4x4xf32>
    %241 = vector.shape_cast %240 : vector<1x1x4x4xf32> to vector<4x4xf32>
    %cst_194 = arith.constant dense<0.000000e+00> : vector<256x4xf32>
    %242 = tpu.matmul %239, %241, %cst_194 {dimension_numbers = #tpu.dot_dimension_numbers<[1], [0], [0], [1], [0, 0, 1, 1], [], []>} : vector<256x4xf32>, vector<4x4xf32>, vector<256x4xf32> -> vector<256x4xf32>
    %243 = arith.addf %237, %242 : vector<256x4xf32>
    %c0_195 = arith.constant 0 : index
    %c0_196 = arith.constant 0 : index
    %244 = vector.load %arg9[%c0_195, %c0_196] : memref<1x4xf32, #tpu.memory_space<vmem>>, vector<1x4xf32>
    %245 = vector.broadcast %244 : vector<1x4xf32> to vector<256x4xf32>
    %246 = arith.addf %243, %245 : vector<256x4xf32>
    %cst_197 = arith.constant 2.000000e-01 : f32
    %247 = vector.broadcast %cst_197 : f32 to vector<256x4xf32>
    %248 = arith.mulf %247, %246 : vector<256x4xf32>
    %249 = arith.maximumf %246, %248 : vector<256x4xf32>
    %250 = arith.addf %249, %72 : vector<256x4xf32>
    %251 = vector.shape_cast %250 : vector<256x4xf32> to vector<16x16x4xf32>
    %c0_198 = arith.constant 0 : index
    %c0_199 = arith.constant 0 : index
    %c0_200 = arith.constant 0 : index
    %c0_201 = arith.constant 0 : index
    %252 = vector.load %arg13[%c0_198, %c0_199, %c0_200, %c0_201] : memref<1x16x16x4xf32, #tpu.memory_space<vmem>>, vector<1x16x16x4xf32>
    %253 = vector.shape_cast %252 : vector<1x16x16x4xf32> to vector<16x16x4xf32>
    %254 = vector.shape_cast %251 : vector<16x16x4xf32> to vector<1x16x16x4xf32>
    tpu.vector_store %arg13[%c0_198, %c0_199, %c0_200, %c0_201], %254 {strides = array<i32>} : memref<1x16x16x4xf32, #tpu.memory_space<vmem>>, vector<1x16x16x4xf32>,
    return
  }
  func.func @transform_0(%arg0: i32) -> (i32, i32, i32, i32) {
    %c0_i32 = arith.constant 0 : i32
    %c0_i32_0 = arith.constant 0 : i32
    %c0_i32_1 = arith.constant 0 : i32
    %c0_i32_2 = arith.constant 0 : i32
    return %arg0, %c0_i32, %c0_i32_0, %c0_i32_1 : i32, i32, i32, i32
  }
  func.func @transform_1(%arg0: i32) -> (i32, i32, i32, i32) {
    %c0_i32 = arith.constant 0 : i32
    %c0_i32_0 = arith.constant 0 : i32
    %c0_i32_1 = arith.constant 0 : i32
    %c0_i32_2 = arith.constant 0 : i32
    return %arg0, %c0_i32, %c0_i32_0, %c0_i32_1 : i32, i32, i32, i32
  }
  func.func @transform_2(%arg0: i32) -> (i32, i32, i32, i32) {
    %c0_i32 = arith.constant 0 : i32
    %c0_i32_0 = arith.constant 0 : i32
    %c0_i32_1 = arith.constant 0 : i32
    %c0_i32_2 = arith.constant 0 : i32
    %c0_i32_3 = arith.constant 0 : i32
    return %c0_i32, %c0_i32_0, %c0_i32_1, %c0_i32_2 : i32, i32, i32, i32
  }
  func.func @transform_3(%arg0: i32) -> (i32, i32) {
    %c0_i32 = arith.constant 0 : i32
    %c0_i32_0 = arith.constant 0 : i32
    %c0_i32_1 = arith.constant 0 : i32
    return %c0_i32, %c0_i32_0 : i32, i32
  }
  func.func @transform_4(%arg0: i32) -> (i32, i32, i32, i32) {
    %c0_i32 = arith.constant 0 : i32
    %c0_i32_0 = arith.constant 0 : i32
    %c0_i32_1 = arith.constant 0 : i32
    %c0_i32_2 = arith.constant 0 : i32
    %c0_i32_3 = arith.constant 0 : i32
    return %c0_i32, %c0_i32_0, %c0_i32_1, %c0_i32_2 : i32, i32, i32, i32
  }
  func.func @transform_5(%arg0: i32) -> (i32, i32, i32, i32) {
    %c0_i32 = arith.constant 0 : i32
    %c0_i32_0 = arith.constant 0 : i32
    %c0_i32_1 = arith.constant 0 : i32
    %c0_i32_2 = arith.constant 0 : i32
    %c0_i32_3 = arith.constant 0 : i32
    return %c0_i32, %c0_i32_0, %c0_i32_1, %c0_i32_2 : i32, i32, i32, i32
  }
  func.func @transform_6(%arg0: i32) -> (i32, i32) {
    %c0_i32 = arith.constant 0 : i32
    %c0_i32_0 = arith.constant 0 : i32
    %c0_i32_1 = arith.constant 0 : i32
    return %c0_i32, %c0_i32_0 : i32, i32
  }
  func.func @transform_7(%arg0: i32) -> (i32, i32, i32, i32) {
    %c0_i32 = arith.constant 0 : i32
    %c0_i32_0 = arith.constant 0 : i32
    %c0_i32_1 = arith.constant 0 : i32
    %c0_i32_2 = arith.constant 0 : i32
    %c0_i32_3 = arith.constant 0 : i32
    return %c0_i32, %c0_i32_0, %c0_i32_1, %c0_i32_2 : i32, i32, i32, i32
  }
  func.func @transform_8(%arg0: i32) -> (i32, i32) {
    %c0_i32 = arith.constant 0 : i32
    %c0_i32_0 = arith.constant 0 : i32
    %c0_i32_1 = arith.constant 0 : i32
    return %c0_i32, %c0_i32_0 : i32, i32
  }
  func.func @transform_9(%arg0: i32) -> (i32, i32) {
    %c0_i32 = arith.constant 0 : i32
    %c0_i32_0 = arith.constant 0 : i32
    %c0_i32_1 = arith.constant 0 : i32
    return %c0_i32, %c0_i32_0 : i32, i32
  }
  func.func @transform_10(%arg0: i32) -> (i32, i32) {
    %c0_i32 = arith.constant 0 : i32
    %c0_i32_0 = arith.constant 0 : i32
    %c0_i32_1 = arith.constant 0 : i32
    return %c0_i32, %c0_i32_0 : i32, i32
  }
  func.func @transform_11(%arg0: i32) -> (i32, i32) {
    %c0_i32 = arith.constant 0 : i32
    %c0_i32_0 = arith.constant 0 : i32
    %c0_i32_1 = arith.constant 0 : i32
    return %c0_i32, %c0_i32_0 : i32, i32
  }
  func.func @transform_12(%arg0: i32) -> (i32, i32, i32, i32) {
    %c0_i32 = arith.constant 0 : i32
    %c0_i32_0 = arith.constant 0 : i32
    %c0_i32_1 = arith.constant 0 : i32
    %c0_i32_2 = arith.constant 0 : i32
    return %arg0, %c0_i32, %c0_i32_0, %c0_i32_1 : i32, i32, i32, i32
  }
}

</mosaic_0001>

<llo_original>
// kernel: tpu_custom_call.1
$region0: #{tpu_custom_call.1}
  #allocation0 [shape = 'u32[]', space=smem, size = 0x4, offset = 0x4, fixed_abs, tag = 'smem constant byte address 0x4 - core index']
  #allocation1 [shape = 'u32[72,128]{1,0:T(1,128)}', space=vmem, size = 0x9000, scoped, tag = 'internal scratch']
  #allocation2 [shape = 'f32[18,18,4]{2,1,0:T(8,128)}', space=vmem, size = 0x36000, scoped, tag = 'scratch operand']
  #allocation3 [shape = 'f32[18,18,4]{2,1,0:T(8,128)}', space=vmem, size = 0x36000, scoped, tag = 'scratch operand']
  #allocation4 [shape = 'f32[18,18,4]{2,1,0:T(8,128)}', space=vmem, size = 0x36000, scoped, tag = 'scratch operand']
  %s0 = inlined_call_operand.vmem [shape: f32[2,8,8,8], index: 0, kind: input, shape index: {}]
  %s1 = inlined_call_operand.vmem [shape: f32[2,16,16,4], index: 1, kind: input, shape index: {}]
  %s2 = inlined_call_operand.vmem [shape: f32[2,2,8,4], index: 2, kind: input, shape index: {}]
  %s3 = inlined_call_operand.vmem [shape: f32[1,4], index: 3, kind: input, shape index: {}]
  %s4 = inlined_call_operand.vmem [shape: f32[3,3,4,4], index: 4, kind: input, shape index: {}]
  %s5 = inlined_call_operand.vmem [shape: f32[3,3,4,4], index: 5, kind: input, shape index: {}]
  %s6 = inlined_call_operand.vmem [shape: f32[1,4], index: 6, kind: input, shape index: {}]
  %s7 = inlined_call_operand.vmem [shape: f32[3,3,4,4], index: 7, kind: input, shape index: {}]
  %s8 = inlined_call_operand.vmem [shape: f32[1,4], index: 8, kind: input, shape index: {}]
  %s9 = inlined_call_operand.vmem [shape: f32[4,4], index: 9, kind: input, shape index: {}]
  %s10 = inlined_call_operand.vmem [shape: f32[4,4], index: 10, kind: input, shape index: {}]
  %s11 = inlined_call_operand.vmem [shape: f32[1,4], index: 11, kind: input, shape index: {}]
  %s12 = inlined_call_operand.vmem [shape: f32[2,16,16,4], index: 12, kind: output, shape index: {}]
  %s13 = sld [smem:[#allocation0]]
  $region81: #{tpu_custom_call.1} parent=0
    _
  %s15 = ssub.s32 1, %s13
  %s16 = scalar_select 0, %s15, %s13
  loop: start=0, step=1, limit=4
  $region2: #{tpu_custom_call.1} parent=0 // loop_pre_header
    _
  $region3: #{tpu_custom_call.1} parent=0 // loop_header
    %s18 = sphi 0, %s22
    %p19 = scmp.ge.s32.totalorder %s18, 4
    %s28 = sphi 0, %s30
    %s31 = sphi 0, %s28
    %s32 = sphi 0, %s31
    %s48 = sphi 0, %s32
    %s54 = sphi 0, %s56
    %s57 = sphi 0, %s54
    %s58 = sphi 0, %s57
    %s74 = sphi 0, %s58
    %s78 = sphi 0, %s78
    %s80 = sphi 0, %s78
    %s81 = sphi 0, %s80
    %s95 = sphi 0, %s81
    %s99 = sphi 0, %s99
    %s101 = sphi 0, %s99
    %s102 = sphi 0, %s101
    %s116 = sphi 0, %s102
    %s120 = sphi 0, %s120
    %s122 = sphi 0, %s120
    %s123 = sphi 0, %s122
    %s137 = sphi 0, %s123
    %s141 = sphi 0, %s141
    %s143 = sphi 0, %s141
    %s144 = sphi 0, %s143
    %s158 = sphi 0, %s144
    %s162 = sphi 0, %s162
    %s164 = sphi 0, %s162
    %s165 = sphi 0, %s164
    %s179 = sphi 0, %s165
    %s183 = sphi 0, %s183
    %s185 = sphi 0, %s183
    %s186 = sphi 0, %s185
    %s200 = sphi 0, %s186
    %s204 = sphi 0, %s204
    %s206 = sphi 0, %s204
    %s207 = sphi 0, %s206
    %s221 = sphi 0, %s207
    %s225 = sphi 0, %s225
    %s227 = sphi 0, %s225
    %s228 = sphi 0, %s227
    %s242 = sphi 0, %s228
    %s246 = sphi 0, %s246
    %s248 = sphi 0, %s246
    %s249 = sphi 0, %s248
    %s263 = sphi 0, %s249
    %s267 = sphi 0, %s267
    %s269 = sphi 0, %s267
    %s270 = sphi 0, %s269
    %s284 = sphi 0, %s270
    %s290 = sphi 0, %s292
    %s293 = sphi 0, %s290
    %s294 = sphi 0, %s293
    %s310 = sphi 0, %s294
  $region4: #{tpu_custom_call.1} parent=0 // loop_header_branch
    %21 = sbr.rel (%p19) target = $region8
  $region5: #{tpu_custom_call.1} parent=0 // loop_body
    %s23 = ssub.s32 %s18, 1
    %s24 = ssub.s32 %s18, 2
    %s25 = sadd.s32 %s18, 1
    %s26 = ssub.s32 %s18, %s25
    %p27 = scmp.eq.s32.totalorder %s26, 0
    %s29 = sadd.s32 %s28, 1
    %s30 = scalar_select %p27, %s28, %s29
    %p33 = pneg %p27
    %p34 = scmp.eq.s32.totalorder %s18, 1
    %p35 = por %p33, %p34
    %p36 = scmp.ne.s32.totalorder %s28, %s31
    %p37 = scmp.eq.s32.totalorder %s18, 0
    %p38 = por %p36, %p37
    %p39 = scmp.ne.s32.totalorder %s28, %s31
    %p40 = scmp.eq.s32.totalorder %s23, 1
    %p41 = por %p39, %p40
    %p42 = scmp.ne.s32.totalorder %s31, %s32
    %p43 = scmp.eq.s32.totalorder %s23, 0
    %p44 = por %p42, %p43
    %p45 = scmp.ne.s32.totalorder %s31, %s32
    %p46 = scmp.eq.s32.totalorder %s24, 1
    %p47 = por %p45, %p46
    %p49 = scmp.ne.s32.totalorder %s32, %s48
    %p50 = scmp.eq.s32.totalorder %s24, 0
    %p51 = por %p49, %p50
    %s52 = ssub.s32 %s18, %s25
    %p53 = scmp.eq.s32.totalorder %s52, 0
    %s55 = sadd.s32 %s54, 1
    %s56 = scalar_select %p53, %s54, %s55
    %p59 = pneg %p53
    %p60 = scmp.eq.s32.totalorder %s18, 1
    %p61 = por %p59, %p60
    %p62 = scmp.ne.s32.totalorder %s54, %s57
    %p63 = scmp.eq.s32.totalorder %s18, 0
    %p64 = por %p62, %p63
    %p65 = scmp.ne.s32.totalorder %s54, %s57
    %p66 = scmp.eq.s32.totalorder %s23, 1
    %p67 = por %p65, %p66
    %p68 = scmp.ne.s32.totalorder %s57, %s58
    %p69 = scmp.eq.s32.totalorder %s23, 0
    %p70 = por %p68, %p69
    %p71 = scmp.ne.s32.totalorder %s57, %s58
    %p72 = scmp.eq.s32.totalorder %s24, 1
    %p73 = por %p71, %p72
    %p75 = scmp.ne.s32.totalorder %s58, %s74
    %p76 = scmp.eq.s32.totalorder %s24, 0
    %p77 = por %p75, %p76
    %s79 = sadd.s32 %s78, 1
    %p82 = scmp.eq.s32.totalorder %s18, 1
    %p83 = scmp.ne.s32.totalorder %s78, %s80
    %p84 = scmp.eq.s32.totalorder %s18, 0
    %p85 = por %p83, %p84
    %p86 = scmp.ne.s32.totalorder %s78, %s80
    %p87 = scmp.eq.s32.totalorder %s23, 1
    %p88 = por %p86, %p87
    %p89 = scmp.ne.s32.totalorder %s80, %s81
    %p90 = scmp.eq.s32.totalorder %s23, 0
    %p91 = por %p89, %p90
    %p92 = scmp.ne.s32.totalorder %s80, %s81
    %p93 = scmp.eq.s32.totalorder %s24, 1
    %p94 = por %p92, %p93
    %p96 = scmp.ne.s32.totalorder %s81, %s95
    %p97 = scmp.eq.s32.totalorder %s24, 0
    %p98 = por %p96, %p97
    %s100 = sadd.s32 %s99, 1
    %p103 = scmp.eq.s32.totalorder %s18, 1
    %p104 = scmp.ne.s32.totalorder %s99, %s101
    %p105 = scmp.eq.s32.totalorder %s18, 0
    %p106 = por %p104, %p105
    %p107 = scmp.ne.s32.totalorder %s99, %s101
    %p108 = scmp.eq.s32.totalorder %s23, 1
    %p109 = por %p107, %p108
    %p110 = scmp.ne.s32.totalorder %s101, %s102
    %p111 = scmp.eq.s32.totalorder %s23, 0
    %p112 = por %p110, %p111
    %p113 = scmp.ne.s32.totalorder %s101, %s102
    %p114 = scmp.eq.s32.totalorder %s24, 1
    %p115 = por %p113, %p114
    %p117 = scmp.ne.s32.totalorder %s102, %s116
    %p118 = scmp.eq.s32.totalorder %s24, 0
    %p119 = por %p117, %p118
    %s121 = sadd.s32 %s120, 1
    %p124 = scmp.eq.s32.totalorder %s18, 1
    %p125 = scmp.ne.s32.totalorder %s120, %s122
    %p126 = scmp.eq.s32.totalorder %s18, 0
    %p127 = por %p125, %p126
    %p128 = scmp.ne.s32.totalorder %s120, %s122
    %p129 = scmp.eq.s32.totalorder %s23, 1
    %p130 = por %p128, %p129
    %p131 = scmp.ne.s32.totalorder %s122, %s123
    %p132 = scmp.eq.s32.totalorder %s23, 0
    %p133 = por %p131, %p132
    %p134 = scmp.ne.s32.totalorder %s122, %s123
    %p135 = scmp.eq.s32.totalorder %s24, 1
    %p136 = por %p134, %p135
    %p138 = scmp.ne.s32.totalorder %s123, %s137
    %p139 = scmp.eq.s32.totalorder %s24, 0
    %p140 = por %p138, %p139
    %s142 = sadd.s32 %s141, 1
    %p145 = scmp.eq.s32.totalorder %s18, 1
    %p146 = scmp.ne.s32.totalorder %s141, %s143
    %p147 = scmp.eq.s32.totalorder %s18, 0
    %p148 = por %p146, %p147
    %p149 = scmp.ne.s32.totalorder %s141, %s143
    %p150 = scmp.eq.s32.totalorder %s23, 1
    %p151 = por %p149, %p150
    %p152 = scmp.ne.s32.totalorder %s143, %s144
    %p153 = scmp.eq.s32.totalorder %s23, 0
    %p154 = por %p152, %p153
    %p155 = scmp.ne.s32.totalorder %s143, %s144
    %p156 = scmp.eq.s32.totalorder %s24, 1
    %p157 = por %p155, %p156
    %p159 = scmp.ne.s32.totalorder %s144, %s158
    %p160 = scmp.eq.s32.totalorder %s24, 0
    %p161 = por %p159, %p160
    %s163 = sadd.s32 %s162, 1
    %p166 = scmp.eq.s32.totalorder %s18, 1
    %p167 = scmp.ne.s32.totalorder %s162, %s164
    %p168 = scmp.eq.s32.totalorder %s18, 0
    %p169 = por %p167, %p168
    %p170 = scmp.ne.s32.totalorder %s162, %s164
    %p171 = scmp.eq.s32.totalorder %s23, 1
    %p172 = por %p170, %p171
    %p173 = scmp.ne.s32.totalorder %s164, %s165
    %p174 = scmp.eq.s32.totalorder %s23, 0
    %p175 = por %p173, %p174
    %p176 = scmp.ne.s32.totalorder %s164, %s165
    %p177 = scmp.eq.s32.totalorder %s24, 1
    %p178 = por %p176, %p177
    %p180 = scmp.ne.s32.totalorder %s165, %s179
    %p181 = scmp.eq.s32.totalorder %s24, 0
    %p182 = por %p180, %p181
    %s184 = sadd.s32 %s183, 1
    %p187 = scmp.eq.s32.totalorder %s18, 1
    %p188 = scmp.ne.s32.totalorder %s183, %s185
    %p189 = scmp.eq.s32.totalorder %s18, 0
    %p190 = por %p188, %p189
    %p191 = scmp.ne.s32.totalorder %s183, %s185
    %p192 = scmp.eq.s32.totalorder %s23, 1
    %p193 = por %p191, %p192
    %p194 = scmp.ne.s32.totalorder %s185, %s186
    %p195 = scmp.eq.s32.totalorder %s23, 0
    %p196 = por %p194, %p195
    %p197 = scmp.ne.s32.totalorder %s185, %s186
    %p198 = scmp.eq.s32.totalorder %s24, 1
    %p199 = por %p197, %p198
    %p201 = scmp.ne.s32.totalorder %s186, %s200
    %p202 = scmp.eq.s32.totalorder %s24, 0
    %p203 = por %p201, %p202
    %s205 = sadd.s32 %s204, 1
    %p208 = scmp.eq.s32.totalorder %s18, 1
    %p209 = scmp.ne.s32.totalorder %s204, %s206
    %p210 = scmp.eq.s32.totalorder %s18, 0
    %p211 = por %p209, %p210
    %p212 = scmp.ne.s32.totalorder %s204, %s206
    %p213 = scmp.eq.s32.totalorder %s23, 1
    %p214 = por %p212, %p213
    %p215 = scmp.ne.s32.totalorder %s206, %s207
    %p216 = scmp.eq.s32.totalorder %s23, 0
    %p217 = por %p215, %p216
    %p218 = scmp.ne.s32.totalorder %s206, %s207
    %p219 = scmp.eq.s32.totalorder %s24, 1
    %p220 = por %p218, %p219
    %p222 = scmp.ne.s32.totalorder %s207, %s221
    %p223 = scmp.eq.s32.totalorder %s24, 0
    %p224 = por %p222, %p223
    %s226 = sadd.s32 %s225, 1
    %p229 = scmp.eq.s32.totalorder %s18, 1
    %p230 = scmp.ne.s32.totalorder %s225, %s227
    %p231 = scmp.eq.s32.totalorder %s18, 0
    %p232 = por %p230, %p231
    %p233 = scmp.ne.s32.totalorder %s225, %s227
    %p234 = scmp.eq.s32.totalorder %s23, 1
    %p235 = por %p233, %p234
    %p236 = scmp.ne.s32.totalorder %s227, %s228
    %p237 = scmp.eq.s32.totalorder %s23, 0
    %p238 = por %p236, %p237
    %p239 = scmp.ne.s32.totalorder %s227, %s228
    %p240 = scmp.eq.s32.totalorder %s24, 1
    %p241 = por %p239, %p240
    %p243 = scmp.ne.s32.totalorder %s228, %s242
    %p244 = scmp.eq.s32.totalorder %s24, 0
    %p245 = por %p243, %p244
    %s247 = sadd.s32 %s246, 1
    %p250 = scmp.eq.s32.totalorder %s18, 1
    %p251 = scmp.ne.s32.totalorder %s246, %s248
    %p252 = scmp.eq.s32.totalorder %s18, 0
    %p253 = por %p251, %p252
    %p254 = scmp.ne.s32.totalorder %s246, %s248
    %p255 = scmp.eq.s32.totalorder %s23, 1
    %p256 = por %p254, %p255
    %p257 = scmp.ne.s32.totalorder %s248, %s249
    %p258 = scmp.eq.s32.totalorder %s23, 0
    %p259 = por %p257, %p258
    %p260 = scmp.ne.s32.totalorder %s248, %s249
    %p261 = scmp.eq.s32.totalorder %s24, 1
    %p262 = por %p260, %p261
    %p264 = scmp.ne.s32.totalorder %s249, %s263
    %p265 = scmp.eq.s32.totalorder %s24, 0
    %p266 = por %p264, %p265
    %s268 = sadd.s32 %s267, 1
    %p271 = scmp.eq.s32.totalorder %s18, 1
    %p272 = scmp.ne.s32.totalorder %s267, %s269
    %p273 = scmp.eq.s32.totalorder %s18, 0
    %p274 = por %p272, %p273
    %p275 = scmp.ne.s32.totalorder %s267, %s269
    %p276 = scmp.eq.s32.totalorder %s23, 1
    %p277 = por %p275, %p276
    %p278 = scmp.ne.s32.totalorder %s269, %s270
    %p279 = scmp.eq.s32.totalorder %s23, 0
    %p280 = por %p278, %p279
    %p281 = scmp.ne.s32.totalorder %s269, %s270
    %p282 = scmp.eq.s32.totalorder %s24, 1
    %p283 = por %p281, %p282
    %p285 = scmp.ne.s32.totalorder %s270, %s284
    %p286 = scmp.eq.s32.totalorder %s24, 0
    %p287 = por %p285, %p286
    %s288 = ssub.s32 %s18, %s25
    %p289 = scmp.eq.s32.totalorder %s288, 0
    %s291 = sadd.s32 %s290, 1
    %s292 = scalar_select %p289, %s290, %s291
    %p295 = pneg %p289
    %p296 = scmp.eq.s32.totalorder %s18, 1
    %p297 = por %p295, %p296
    %p298 = scmp.ne.s32.totalorder %s290, %s293
    %p299 = scmp.eq.s32.totalorder %s18, 0
    %p300 = por %p298, %p299
    %p301 = scmp.ne.s32.totalorder %s290, %s293
    %p302 = scmp.eq.s32.totalorder %s23, 1
    %p303 = por %p301, %p302
    %p304 = scmp.ne.s32.totalorder %s293, %s294
    %p305 = scmp.eq.s32.totalorder %s23, 0
    %p306 = por %p304, %p305
    %p307 = scmp.ne.s32.totalorder %s293, %s294
    %p308 = scmp.eq.s32.totalorder %s24, 1
    %p309 = por %p307, %p308
    %p311 = scmp.ne.s32.totalorder %s294, %s310
    %p312 = scmp.eq.s32.totalorder %s24, 0
    %p313 = por %p311, %p312
    %p314 = scmp.le.s32.totalorder 1, %s18
    %p315 = scmp.lt.s32.totalorder %s18, 3
    %p316 = pnand %p314, %p315
    %p317 = pneg %p316
    // Predicated region
    $region9: #{tpu_custom_call.1} parent=5 // pred_check
      _
    $region10: #{tpu_custom_call.1} parent=5 // pred_check_branch
      %319 = sbr.rel (%p316) target = $region12
    $region11: #{tpu_custom_call.1} parent=5 // pred_region
      %s320 = ssub.s32 %s18, 1
      // Predicated region
      $region13: #{tpu_custom_call.1} parent=11 // pred_check
        %p321 = pneg %p91
      $region14: #{tpu_custom_call.1} parent=11 // pred_check_branch
        %323 = sbr.rel (%p321) target = $region16
      $region15: #{tpu_custom_call.1} parent=11 // pred_region
        _
      $region16: #{tpu_custom_call.1} parent=11 // pred_fallthru
        _
      // Predicated region
      $region17: #{tpu_custom_call.1} parent=11 // pred_check
        %p324 = pneg %p112
      $region18: #{tpu_custom_call.1} parent=11 // pred_check_branch
        %326 = sbr.rel (%p324) target = $region20
      $region19: #{tpu_custom_call.1} parent=11 // pred_region
        _
      $region20: #{tpu_custom_call.1} parent=11 // pred_fallthru
        _
      // Predicated region
      $region21: #{tpu_custom_call.1} parent=11 // pred_check
        %p327 = pneg %p133
      $region22: #{tpu_custom_call.1} parent=11 // pred_check_branch
        %329 = sbr.rel (%p327) target = $region24
      $region23: #{tpu_custom_call.1} parent=11 // pred_region
        _
      $region24: #{tpu_custom_call.1} parent=11 // pred_fallthru
        _
      // Predicated region
      $region25: #{tpu_custom_call.1} parent=11 // pred_check
        %p330 = pneg %p154
      $region26: #{tpu_custom_call.1} parent=11 // pred_check_branch
        %332 = sbr.rel (%p330) target = $region28
      $region27: #{tpu_custom_call.1} parent=11 // pred_region
        _
      $region28: #{tpu_custom_call.1} parent=11 // pred_fallthru
        _
      // Predicated region
      $region29: #{tpu_custom_call.1} parent=11 // pred_check
        %p333 = pneg %p175
      $region30: #{tpu_custom_call.1} parent=11 // pred_check_branch
        %335 = sbr.rel (%p333) target = $region32
      $region31: #{tpu_custom_call.1} parent=11 // pred_region
        _
      $region32: #{tpu_custom_call.1} parent=11 // pred_fallthru
        _
      // Predicated region
      $region33: #{tpu_custom_call.1} parent=11 // pred_check
        %p336 = pneg %p196
      $region34: #{tpu_custom_call.1} parent=11 // pred_check_branch
        %338 = sbr.rel (%p336) target = $region36
      $region35: #{tpu_custom_call.1} parent=11 // pred_region
        _
      $region36: #{tpu_custom_call.1} parent=11 // pred_fallthru
        _
      // Predicated region
      $region37: #{tpu_custom_call.1} parent=11 // pred_check
        %p339 = pneg %p217
      $region38: #{tpu_custom_call.1} parent=11 // pred_check_branch
        %341 = sbr.rel (%p339) target = $region40
      $region39: #{tpu_custom_call.1} parent=11 // pred_region
        _
      $region40: #{tpu_custom_call.1} parent=11 // pred_fallthru
        _
      // Predicated region
      $region41: #{tpu_custom_call.1} parent=11 // pred_check
        %p342 = pneg %p238
      $region42: #{tpu_custom_call.1} parent=11 // pred_check_branch
        %344 = sbr.rel (%p342) target = $region44
      $region43: #{tpu_custom_call.1} parent=11 // pred_region
        _
      $region44: #{tpu_custom_call.1} parent=11 // pred_fallthru
        _
      // Predicated region
      $region45: #{tpu_custom_call.1} parent=11 // pred_check
        %p345 = pneg %p259
      $region46: #{tpu_custom_call.1} parent=11 // pred_check_branch
        %347 = sbr.rel (%p345) target = $region48
      $region47: #{tpu_custom_call.1} parent=11 // pred_region
        _
      $region48: #{tpu_custom_call.1} parent=11 // pred_fallthru
        _
      // Predicated region
      $region49: #{tpu_custom_call.1} parent=11 // pred_check
        %p348 = pneg %p280
      $region50: #{tpu_custom_call.1} parent=11 // pred_check_branch
        %350 = sbr.rel (%p348) target = $region52
      $region51: #{tpu_custom_call.1} parent=11 // pred_region
        _
      $region52: #{tpu_custom_call.1} parent=11 // pred_fallthru
        _
    $region12: #{tpu_custom_call.1} parent=5 // pred_fallthru
      _
    %p351 = scmp.lt.s32.totalorder %s18, 2
    // Predicated region
    $region53: #{tpu_custom_call.1} parent=5 // pred_check
      %p352 = pneg %p351
    $region54: #{tpu_custom_call.1} parent=5 // pred_check_branch
      %354 = sbr.rel (%p352) target = $region56
    $region55: #{tpu_custom_call.1} parent=5 // pred_region
      // Predicated region
      $region57: #{tpu_custom_call.1} parent=55 // pred_check
        %p355 = pneg %p38
      $region58: #{tpu_custom_call.1} parent=55 // pred_check_branch
        %357 = sbr.rel (%p355) target = $region60
      $region59: #{tpu_custom_call.1} parent=55 // pred_region
        %p358 = scmp.lt.s32.totalorder %s18, 1
        %s359 = scalar_select %p358, %s18, 1
        %s360 = smul.addr %s359, 8
        %s361 = smul.addr %s360, 8
        %s362 = scalar_lea.vmem %s0, %s361
      $region60: #{tpu_custom_call.1} parent=55 // pred_fallthru
        _
      // Predicated region
      $region61: #{tpu_custom_call.1} parent=55 // pred_check
        %p363 = pneg %p64
      $region62: #{tpu_custom_call.1} parent=55 // pred_check_branch
        %365 = sbr.rel (%p363) target = $region64
      $region63: #{tpu_custom_call.1} parent=55 // pred_region
        %p366 = scmp.lt.s32.totalorder %s18, 1
        %s367 = scalar_select %p366, %s18, 1
        %s368 = smul.addr %s367, 32
        %s369 = smul.addr %s368, 8
        %s370 = scalar_lea.vmem %s1, %s369
      $region64: #{tpu_custom_call.1} parent=55 // pred_fallthru
        _
    $region56: #{tpu_custom_call.1} parent=5 // pred_fallthru
      _
    %p371 = scmp.le.s32.totalorder 1, %s18
    %p372 = scmp.lt.s32.totalorder %s18, 3
    %p373 = pnand %p371, %p372
    %p374 = pneg %p373
    // Predicated region
    $region65: #{tpu_custom_call.1} parent=5 // pred_check
      _
    $region66: #{tpu_custom_call.1} parent=5 // pred_check_branch
      %376 = sbr.rel (%p373) target = $region68
    $region67: #{tpu_custom_call.1} parent=5 // pred_region
      %s377 = ssub.s32 %s18, 1
      %p378 = scmp.lt.s32.totalorder %s23, 1
      %s379 = scalar_select %p378, %s23, 1
      %s380 = smul.addr %s379, 8
      %s381 = smul.addr %s380, 8
      %s382 = scalar_lea.vmem %s0, %s381
      %p383 = pneg %p44
      %p384 = pneg %p41
      %p385 = scmp.lt.s32.totalorder %s23, 1
      %s386 = scalar_select %p385, %s23, 1
      %s387 = smul.addr %s386, 32
      %s388 = smul.addr %s387, 8
      %s389 = scalar_lea.vmem %s1, %s388
      %p390 = pneg %p70
      %p391 = pneg %p67
      %p392 = pneg %p91
      %p393 = pneg %p88
      %p394 = pneg %p112
      %p395 = pneg %p109
      %p396 = pneg %p133
      %p397 = pneg %p130
      %p398 = pneg %p154
      %p399 = pneg %p151
      %p400 = pneg %p175
      %p401 = pneg %p172
      %p402 = pneg %p196
      %p403 = pneg %p193
      %p404 = pneg %p217
      %p405 = pneg %p214
      %p406 = pneg %p238
      %p407 = pneg %p235
      %p408 = pneg %p259
      %p409 = pneg %p256
      %p410 = pneg %p280
      %p411 = pneg %p277
      %p412 = pneg %p306
      %p413 = pneg %p303
      %p414 = scmp.lt.s32.totalorder %s23, 1
      %s415 = scalar_select %p414, %s23, 1
      %s416 = smul.addr %s415, 32
      %s417 = smul.addr %s416, 8
      %s418 = scalar_lea.vmem %s12, %s417
      %p419 = scmp.lt.s32.totalorder %s23, 1
      %s420 = scalar_select %p419, %s23, 1
      %s421 = smul.addr %s420, 8
      %s422 = smul.addr %s421, 8
      %s423 = scalar_lea.vmem %s0, %s422
      %p424 = scmp.lt.s32.totalorder %s23, 1
      %s425 = scalar_select %p424, %s23, 1
      %s426 = smul.addr %s425, 32
      %s427 = smul.addr %s426, 8
      %s428 = scalar_lea.vmem %s1, %s427
      %p429 = scmp.lt.s32.totalorder %s23, 1
      %s430 = scalar_select %p429, %s23, 1
      %s431 = smul.addr %s430, 32
      %s432 = smul.addr %s431, 8
      %s433 = scalar_lea.vmem %s12, %s432
      %vm434 = vcmask 31744
      %435 = vst.msk [vmem:[#allocation2] sm:$0xff] %vm434, 0.0
      %436 = vst.msk [vmem:[#allocation2 + $0x8] sm:$0xff] %vm434, 0.0
      %vm437 = vcmask 25600
      %438 = vst.msk [vmem:[#allocation2 + $0x10] sm:$0x3] %vm437, 0.0
      %s439 = scalar_lea.vmem [#allocation2], 408
      %440 = vst.msk [vmem:[%s439] sm:$0xff] %vm434, 0.0
      %441 = vst.msk [vmem:[%s439 + $0x8] sm:$0xff] %vm434, 0.0
      %442 = vst.msk [vmem:[%s439 + $0x10] sm:$0x3] %vm437, 0.0
      %vm443 = vcmask 24576
      %444 = vst.msk [vmem:[#allocation2] sm:$0x1] %vm443, 0.0
      %445 = vst.msk [vmem:[#allocation2 + $0x18] sm:$0x1] %vm443, 0.0
      %446 = vst.msk [vmem:[#allocation2 + $0x30] sm:$0x1] %vm443, 0.0
      %447 = vst.msk [vmem:[#allocation2 + $0x48] sm:$0x1] %vm443, 0.0
      %448 = vst.msk [vmem:[#allocation2 + $0x60] sm:$0x1] %vm443, 0.0
      %449 = vst.msk [vmem:[#allocation2 + $0x78] sm:$0x1] %vm443, 0.0
      %450 = vst.msk [vmem:[#allocation2 + $0x90] sm:$0x1] %vm443, 0.0
      %451 = vst.msk [vmem:[#allocation2 + $0xa8] sm:$0x1] %vm443, 0.0
      %452 = vst.msk [vmem:[#allocation2 + $0xc0] sm:$0x1] %vm443, 0.0
      %453 = vst.msk [vmem:[#allocation2 + $0xd8] sm:$0x1] %vm443, 0.0
      %454 = vst.msk [vmem:[#allocation2 + $0xf0] sm:$0x1] %vm443, 0.0
      %455 = vst.msk [vmem:[#allocation2 + $0x108] sm:$0x1] %vm443, 0.0
      %456 = vst.msk [vmem:[#allocation2 + $0x120] sm:$0x1] %vm443, 0.0
      %457 = vst.msk [vmem:[#allocation2 + $0x138] sm:$0x1] %vm443, 0.0
      %458 = vst.msk [vmem:[#allocation2 + $0x150] sm:$0x1] %vm443, 0.0
      %459 = vst.msk [vmem:[#allocation2 + $0x168] sm:$0x1] %vm443, 0.0
      %460 = vst.msk [vmem:[#allocation2 + $0x180] sm:$0x1] %vm443, 0.0
      %461 = vst.msk [vmem:[#allocation2 + $0x198] sm:$0x1] %vm443, 0.0
      %462 = vst.msk [vmem:[#allocation2 + $0x11] sm:$0x1] %vm443, 0.0
      %463 = vst.msk [vmem:[#allocation2 + $0x29] sm:$0x1] %vm443, 0.0
      %464 = vst.msk [vmem:[#allocation2 + $0x41] sm:$0x1] %vm443, 0.0
      %465 = vst.msk [vmem:[#allocation2 + $0x59] sm:$0x1] %vm443, 0.0
      %466 = vst.msk [vmem:[#allocation2 + $0x71] sm:$0x1] %vm443, 0.0
      %467 = vst.msk [vmem:[#allocation2 + $0x89] sm:$0x1] %vm443, 0.0
      %468 = vst.msk [vmem:[#allocation2 + $0xa1] sm:$0x1] %vm443, 0.0
      %469 = vst.msk [vmem:[#allocation2 + $0xb9] sm:$0x1] %vm443, 0.0
      %470 = vst.msk [vmem:[#allocation2 + $0xd1] sm:$0x1] %vm443, 0.0
      %471 = vst.msk [vmem:[#allocation2 + $0xe9] sm:$0x1] %vm443, 0.0
      %472 = vst.msk [vmem:[#allocation2 + $0x101] sm:$0x1] %vm443, 0.0
      %473 = vst.msk [vmem:[#allocation2 + $0x119] sm:$0x1] %vm443, 0.0
      %474 = vst.msk [vmem:[#allocation2 + $0x131] sm:$0x1] %vm443, 0.0
      %475 = vst.msk [vmem:[#allocation2 + $0x149] sm:$0x1] %vm443, 0.0
      %476 = vst.msk [vmem:[#allocation2 + $0x161] sm:$0x1] %vm443, 0.0
      %477 = vst.msk [vmem:[#allocation2 + $0x179] sm:$0x1] %vm443, 0.0
      %478 = vst.msk [vmem:[#allocation2 + $0x191] sm:$0x1] %vm443, 0.0
      %479 = vst.msk [vmem:[#allocation2 + $0x1a9] sm:$0x1] %vm443, 0.0
      %480 = vst.msk [vmem:[#allocation3] sm:$0xff] %vm434, 0.0
      %481 = vst.msk [vmem:[#allocation3 + $0x8] sm:$0xff] %vm434, 0.0
      %482 = vst.msk [vmem:[#allocation3 + $0x10] sm:$0x3] %vm437, 0.0
      %s483 = scalar_lea.vmem [#allocation3], 408
      %484 = vst.msk [vmem:[%s483] sm:$0xff] %vm434, 0.0
      %485 = vst.msk [vmem:[%s483 + $0x8] sm:$0xff] %vm434, 0.0
      %486 = vst.msk [vmem:[%s483 + $0x10] sm:$0x3] %vm437, 0.0
      %487 = vst.msk [vmem:[#allocation3] sm:$0x1] %vm443, 0.0
      %488 = vst.msk [vmem:[#allocation3 + $0x18] sm:$0x1] %vm443, 0.0
      %489 = vst.msk [vmem:[#allocation3 + $0x30] sm:$0x1] %vm443, 0.0
      %490 = vst.msk [vmem:[#allocation3 + $0x48] sm:$0x1] %vm443, 0.0
      %491 = vst.msk [vmem:[#allocation3 + $0x60] sm:$0x1] %vm443, 0.0
      %492 = vst.msk [vmem:[#allocation3 + $0x78] sm:$0x1] %vm443, 0.0
      %493 = vst.msk [vmem:[#allocation3 + $0x90] sm:$0x1] %vm443, 0.0
      %494 = vst.msk [vmem:[#allocation3 + $0xa8] sm:$0x1] %vm443, 0.0
      %495 = vst.msk [vmem:[#allocation3 + $0xc0] sm:$0x1] %vm443, 0.0
      %496 = vst.msk [vmem:[#allocation3 + $0xd8] sm:$0x1] %vm443, 0.0
      %497 = vst.msk [vmem:[#allocation3 + $0xf0] sm:$0x1] %vm443, 0.0
      %498 = vst.msk [vmem:[#allocation3 + $0x108] sm:$0x1] %vm443, 0.0
      %499 = vst.msk [vmem:[#allocation3 + $0x120] sm:$0x1] %vm443, 0.0
      %500 = vst.msk [vmem:[#allocation3 + $0x138] sm:$0x1] %vm443, 0.0
      %501 = vst.msk [vmem:[#allocation3 + $0x150] sm:$0x1] %vm443, 0.0
      %502 = vst.msk [vmem:[#allocation3 + $0x168] sm:$0x1] %vm443, 0.0
      %503 = vst.msk [vmem:[#allocation3 + $0x180] sm:$0x1] %vm443, 0.0
      %504 = vst.msk [vmem:[#allocation3 + $0x198] sm:$0x1] %vm443, 0.0
      %505 = vst.msk [vmem:[#allocation3 + $0x11] sm:$0x1] %vm443, 0.0
      %506 = vst.msk [vmem:[#allocation3 + $0x29] sm:$0x1] %vm443, 0.0
      %507 = vst.msk [vmem:[#allocation3 + $0x41] sm:$0x1] %vm443, 0.0
      %508 = vst.msk [vmem:[#allocation3 + $0x59] sm:$0x1] %vm443, 0.0
      %509 = vst.msk [vmem:[#allocation3 + $0x71] sm:$0x1] %vm443, 0.0
      %510 = vst.msk [vmem:[#allocation3 + $0x89] sm:$0x1] %vm443, 0.0
      %511 = vst.msk [vmem:[#allocation3 + $0xa1] sm:$0x1] %vm443, 0.0
      %512 = vst.msk [vmem:[#allocation3 + $0xb9] sm:$0x1] %vm443, 0.0
      %513 = vst.msk [vmem:[#allocation3 + $0xd1] sm:$0x1] %vm443, 0.0
      %514 = vst.msk [vmem:[#allocation3 + $0xe9] sm:$0x1] %vm443, 0.0
      %515 = vst.msk [vmem:[#allocation3 + $0x101] sm:$0x1] %vm443, 0.0
      %516 = vst.msk [vmem:[#allocation3 + $0x119] sm:$0x1] %vm443, 0.0
      %517 = vst.msk [vmem:[#allocation3 + $0x131] sm:$0x1] %vm443, 0.0
      %518 = vst.msk [vmem:[#allocation3 + $0x149] sm:$0x1] %vm443, 0.0
      %519 = vst.msk [vmem:[#allocation3 + $0x161] sm:$0x1] %vm443, 0.0
      %520 = vst.msk [vmem:[#allocation3 + $0x179] sm:$0x1] %vm443, 0.0
      %521 = vst.msk [vmem:[#allocation3 + $0x191] sm:$0x1] %vm443, 0.0
      %522 = vst.msk [vmem:[#allocation3 + $0x1a9] sm:$0x1] %vm443, 0.0
      %523 = vst.msk [vmem:[#allocation4] sm:$0xff] %vm434, 0.0
      %524 = vst.msk [vmem:[#allocation4 + $0x8] sm:$0xff] %vm434, 0.0
      %525 = vst.msk [vmem:[#allocation4 + $0x10] sm:$0x3] %vm437, 0.0
      %s526 = scalar_lea.vmem [#allocation4], 408
      %527 = vst.msk [vmem:[%s526] sm:$0xff] %vm434, 0.0
      %528 = vst.msk [vmem:[%s526 + $0x8] sm:$0xff] %vm434, 0.0
      %529 = vst.msk [vmem:[%s526 + $0x10] sm:$0x3] %vm437, 0.0
      %530 = vst.msk [vmem:[#allocation4] sm:$0x1] %vm443, 0.0
      %531 = vst.msk [vmem:[#allocation4 + $0x18] sm:$0x1] %vm443, 0.0
      %532 = vst.msk [vmem:[#allocation4 + $0x30] sm:$0x1] %vm443, 0.0
      %533 = vst.msk [vmem:[#allocation4 + $0x48] sm:$0x1] %vm443, 0.0
      %534 = vst.msk [vmem:[#allocation4 + $0x60] sm:$0x1] %vm443, 0.0
      %535 = vst.msk [vmem:[#allocation4 + $0x78] sm:$0x1] %vm443, 0.0
      %536 = vst.msk [vmem:[#allocation4 + $0x90] sm:$0x1] %vm443, 0.0
      %537 = vst.msk [vmem:[#allocation4 + $0xa8] sm:$0x1] %vm443, 0.0
      %538 = vst.msk [vmem:[#allocation4 + $0xc0] sm:$0x1] %vm443, 0.0
      %539 = vst.msk [vmem:[#allocation4 + $0xd8] sm:$0x1] %vm443, 0.0
      %540 = vst.msk [vmem:[#allocation4 + $0xf0] sm:$0x1] %vm443, 0.0
      %541 = vst.msk [vmem:[#allocation4 + $0x108] sm:$0x1] %vm443, 0.0
      %542 = vst.msk [vmem:[#allocation4 + $0x120] sm:$0x1] %vm443, 0.0
      %543 = vst.msk [vmem:[#allocation4 + $0x138] sm:$0x1] %vm443, 0.0
      %544 = vst.msk [vmem:[#allocation4 + $0x150] sm:$0x1] %vm443, 0.0
      %545 = vst.msk [vmem:[#allocation4 + $0x168] sm:$0x1] %vm443, 0.0
      %546 = vst.msk [vmem:[#allocation4 + $0x180] sm:$0x1] %vm443, 0.0
      %547 = vst.msk [vmem:[#allocation4 + $0x198] sm:$0x1] %vm443, 0.0
      %548 = vst.msk [vmem:[#allocation4 + $0x11] sm:$0x1] %vm443, 0.0
      %549 = vst.msk [vmem:[#allocation4 + $0x29] sm:$0x1] %vm443, 0.0
      %550 = vst.msk [vmem:[#allocation4 + $0x41] sm:$0x1] %vm443, 0.0
      %551 = vst.msk [vmem:[#allocation4 + $0x59] sm:$0x1] %vm443, 0.0
      %552 = vst.msk [vmem:[#allocation4 + $0x71] sm:$0x1] %vm443, 0.0
      %553 = vst.msk [vmem:[#allocation4 + $0x89] sm:$0x1] %vm443, 0.0
      %554 = vst.msk [vmem:[#allocation4 + $0xa1] sm:$0x1] %vm443, 0.0
      %555 = vst.msk [vmem:[#allocation4 + $0xb9] sm:$0x1] %vm443, 0.0
      %556 = vst.msk [vmem:[#allocation4 + $0xd1] sm:$0x1] %vm443, 0.0
      %557 = vst.msk [vmem:[#allocation4 + $0xe9] sm:$0x1] %vm443, 0.0
      %558 = vst.msk [vmem:[#allocation4 + $0x101] sm:$0x1] %vm443, 0.0
      %559 = vst.msk [vmem:[#allocation4 + $0x119] sm:$0x1] %vm443, 0.0
      %560 = vst.msk [vmem:[#allocation4 + $0x131] sm:$0x1] %vm443, 0.0
      %561 = vst.msk [vmem:[#allocation4 + $0x149] sm:$0x1] %vm443, 0.0
      %562 = vst.msk [vmem:[#allocation4 + $0x161] sm:$0x1] %vm443, 0.0
      %563 = vst.msk [vmem:[#allocation4 + $0x179] sm:$0x1] %vm443, 0.0
      %564 = vst.msk [vmem:[#allocation4 + $0x191] sm:$0x1] %vm443, 0.0
      %565 = vst.msk [vmem:[#allocation4 + $0x1a9] sm:$0x1] %vm443, 0.0
      %v566 = vld [vmem:[%s423] sm:$0xff]
      %v567 = vld [vmem:[%s423 + $0x8] sm:$0xff]
      %v568 = vld [vmem:[%s423 + $0x10] sm:$0xff]
      %v569 = vld [vmem:[%s423 + $0x18] sm:$0xff]
      %v570 = vld [vmem:[%s423 + $0x20] sm:$0xff]
      %v571 = vld [vmem:[%s423 + $0x28] sm:$0xff]
      %v572 = vld [vmem:[%s423 + $0x30] sm:$0xff]
      %v573 = vld [vmem:[%s423 + $0x38] sm:$0xff]
      %v574 = vld [vmem:[%s2] sm:$0xff]
      %v575 = vld [vmem:[%s2 + $0x8] sm:$0xff]
      %v576 = vld [vmem:[%s2 + $0x10] sm:$0xff]
      %v577 = vld [vmem:[%s2 + $0x18] sm:$0xff]
      %v578 = vld [vmem:[%s3] sm:$0x1]
      %v580 = vperm.slane %v578, 0
      %vm582 = vcmask 64512
      %v584 = vsel %vm582, %v566, 0
      %v587 = vsel %vm582, %v567, 0
      %v590 = vsel %vm582, %v568, 0
      %v593 = vsel %vm582, %v569, 0
      %v596 = vsel %vm582, %v570, 0
      %v599 = vsel %vm582, %v571, 0
      %v602 = vsel %vm582, %v572, 0
      %v605 = vsel %vm582, %v573, 0
      %607 = vmatpush.msra.mxu0 0.0
      %608 = vmatpush.msra.mxu0 0.0
      %609 = vmatpush.msra.mxu0 0.0
      %610 = vmatpush.msra.mxu0 0.0
      %611 = vmatpush.msra.mxu0 0.0
      %612 = vmatpush.msra.mxu0 0.0
      %613 = vmatpush.msra.mxu0 0.0
      %614 = vmatpush.msra.mxu0 0.0
      %615 = vmatpush.msra.mxu0 0.0
      %616 = vmatpush.msra.mxu0 0.0
      %617 = vmatpush.msra.mxu0 0.0
      %618 = vmatpush.msra.mxu0 0.0
      %619 = vmatpush.msra.mxu0 0.0
      %620 = vmatpush.msra.mxu0 0.0
      %621 = vmatpush.msra.mxu0 0.0
      %622 = vmatpush.msra.mxu0 %v574
      %623 = vmatmul.f32.gmra.mxu0 %v584
      %v624 = vpop.f32.mrf.mxu0
      %v625 = vadd.f32 %v580, %v624
      %626 = vmatmul.f32.gmra.mxu0 %v587
      %v627 = vpop.f32.mrf.mxu0
      %v628 = vadd.f32 %v580, %v627
      %629 = vmatmul.f32.gmra.mxu0 %v590
      %v630 = vpop.f32.mrf.mxu0
      %v631 = vadd.f32 %v580, %v630
      %632 = vmatmul.f32.gmra.mxu0 %v593
      %v633 = vpop.f32.mrf.mxu0
      %v634 = vadd.f32 %v580, %v633
      %635 = vmatmul.f32.gmra.mxu0 %v596
      %v636 = vpop.f32.mrf.mxu0
      %v637 = vadd.f32 %v580, %v636
      %638 = vmatmul.f32.gmra.mxu0 %v599
      %v639 = vpop.f32.mrf.mxu0
      %v640 = vadd.f32 %v580, %v639
      %641 = vmatmul.f32.gmra.mxu0 %v602
      %v642 = vpop.f32.mrf.mxu0
      %v643 = vadd.f32 %v580, %v642
      %644 = vmatmul.f32.gmra.mxu0 %v605
      %v645 = vpop.f32.mrf.mxu0
      %v646 = vadd.f32 %v580, %v645
      %647 = vdwg.mxu0
      %648 = vmatpush.msra.mxu0 0.0
      %649 = vmatpush.msra.mxu0 0.0
      %650 = vmatpush.msra.mxu0 0.0
      %651 = vmatpush.msra.mxu0 0.0
      %652 = vmatpush.msra.mxu0 0.0
      %653 = vmatpush.msra.mxu0 0.0
      %654 = vmatpush.msra.mxu0 0.0
      %655 = vmatpush.msra.mxu0 0.0
      %656 = vmatpush.msra.mxu0 0.0
      %657 = vmatpush.msra.mxu0 0.0
      %658 = vmatpush.msra.mxu0 0.0
      %659 = vmatpush.msra.mxu0 0.0
      %660 = vmatpush.msra.mxu0 0.0
      %661 = vmatpush.msra.mxu0 0.0
      %662 = vmatpush.msra.mxu0 0.0
      %663 = vmatpush.msra.mxu0 %v575
      %664 = vmatmul.f32.gmra.mxu0 %v584
      %v665 = vpop.f32.mrf.mxu0
      %v666 = vadd.f32 %v580, %v665
      %667 = vmatmul.f32.gmra.mxu0 %v587
      %v668 = vpop.f32.mrf.mxu0
      %v669 = vadd.f32 %v580, %v668
      %670 = vmatmul.f32.gmra.mxu0 %v590
      %v671 = vpop.f32.mrf.mxu0
      %v672 = vadd.f32 %v580, %v671
      %673 = vmatmul.f32.gmra.mxu0 %v593
      %v674 = vpop.f32.mrf.mxu0
      %v675 = vadd.f32 %v580, %v674
      %676 = vmatmul.f32.gmra.mxu0 %v596
      %v677 = vpop.f32.mrf.mxu0
      %v678 = vadd.f32 %v580, %v677
      %679 = vmatmul.f32.gmra.mxu0 %v599
      %v680 = vpop.f32.mrf.mxu0
      %v681 = vadd.f32 %v580, %v680
      %682 = vmatmul.f32.gmra.mxu0 %v602
      %v683 = vpop.f32.mrf.mxu0
      %v684 = vadd.f32 %v580, %v683
      %685 = vmatmul.f32.gmra.mxu0 %v605
      %v686 = vpop.f32.mrf.mxu0
      %v687 = vadd.f32 %v580, %v686
      %688 = vdwg.mxu0
      %v697 = vrot.slane %v625, 1
      %v698 = vrot.slane %v625, 2
      %v699 = vrot.slane %v625, 3
      %v700 = vrot.slane %v625, 4
      %v701 = vrot.slane %v625, 5
      %v702 = vrot.slane %v625, 6
      %v703 = vrot.slane %v625, 7
      %v704 = vrot.slane %v628, 1
      %v705 = vrot.slane %v628, 2
      %v706 = vrot.slane %v628, 3
      %v707 = vrot.slane %v628, 4
      %v708 = vrot.slane %v628, 5
      %v709 = vrot.slane %v628, 6
      %v710 = vrot.slane %v628, 7
      %v711 = vrot.slane %v631, 1
      %v712 = vrot.slane %v631, 2
      %v713 = vrot.slane %v631, 3
      %v714 = vrot.slane %v631, 4
      %v715 = vrot.slane %v631, 5
      %v716 = vrot.slane %v631, 6
      %v717 = vrot.slane %v631, 7
      %v718 = vrot.slane %v634, 1
      %v719 = vrot.slane %v634, 2
      %v720 = vrot.slane %v634, 3
      %v721 = vrot.slane %v634, 4
      %v722 = vrot.slane %v634, 5
      %v723 = vrot.slane %v634, 6
      %v724 = vrot.slane %v634, 7
      %v725 = vrot.slane %v637, 1
      %v726 = vrot.slane %v637, 2
      %v727 = vrot.slane %v637, 3
      %v728 = vrot.slane %v637, 4
      %v729 = vrot.slane %v637, 5
      %v730 = vrot.slane %v637, 6
      %v731 = vrot.slane %v637, 7
      %v732 = vrot.slane %v640, 1
      %v733 = vrot.slane %v640, 2
      %v734 = vrot.slane %v640, 3
      %v735 = vrot.slane %v640, 4
      %v736 = vrot.slane %v640, 5
      %v737 = vrot.slane %v640, 6
      %v738 = vrot.slane %v640, 7
      %v739 = vrot.slane %v643, 1
      %v740 = vrot.slane %v643, 2
      %v741 = vrot.slane %v643, 3
      %v742 = vrot.slane %v643, 4
      %v743 = vrot.slane %v643, 5
      %v744 = vrot.slane %v643, 6
      %v745 = vrot.slane %v643, 7
      %v746 = vrot.slane %v646, 1
      %v747 = vrot.slane %v646, 2
      %v748 = vrot.slane %v646, 3
      %v749 = vrot.slane %v646, 4
      %v750 = vrot.slane %v646, 5
      %v751 = vrot.slane %v646, 6
      %v752 = vrot.slane %v646, 7
      %v817 = vrot.slane %v666, 1
      %v818 = vrot.slane %v666, 2
      %v819 = vrot.slane %v666, 3
      %v820 = vrot.slane %v666, 4
      %v821 = vrot.slane %v666, 5
      %v822 = vrot.slane %v666, 6
      %v823 = vrot.slane %v666, 7
      %v824 = vrot.slane %v669, 1
      %v825 = vrot.slane %v669, 2
      %v826 = vrot.slane %v669, 3
      %v827 = vrot.slane %v669, 4
      %v828 = vrot.slane %v669, 5
      %v829 = vrot.slane %v669, 6
      %v830 = vrot.slane %v669, 7
      %v831 = vrot.slane %v672, 1
      %v832 = vrot.slane %v672, 2
      %v833 = vrot.slane %v672, 3
      %v834 = vrot.slane %v672, 4
      %v835 = vrot.slane %v672, 5
      %v836 = vrot.slane %v672, 6
      %v837 = vrot.slane %v672, 7
      %v838 = vrot.slane %v675, 1
      %v839 = vrot.slane %v675, 2
      %v840 = vrot.slane %v675, 3
      %v841 = vrot.slane %v675, 4
      %v842 = vrot.slane %v675, 5
      %v843 = vrot.slane %v675, 6
      %v844 = vrot.slane %v675, 7
      %v845 = vrot.slane %v678, 1
      %v846 = vrot.slane %v678, 2
      %v847 = vrot.slane %v678, 3
      %v848 = vrot.slane %v678, 4
      %v849 = vrot.slane %v678, 5
      %v850 = vrot.slane %v678, 6
      %v851 = vrot.slane %v678, 7
      %v852 = vrot.slane %v681, 1
      %v853 = vrot.slane %v681, 2
      %v854 = vrot.slane %v681, 3
      %v855 = vrot.slane %v681, 4
      %v856 = vrot.slane %v681, 5
      %v857 = vrot.slane %v681, 6
      %v858 = vrot.slane %v681, 7
      %v859 = vrot.slane %v684, 1
      %v860 = vrot.slane %v684, 2
      %v861 = vrot.slane %v684, 3
      %v862 = vrot.slane %v684, 4
      %v863 = vrot.slane %v684, 5
      %v864 = vrot.slane %v684, 6
      %v865 = vrot.slane %v684, 7
      %v866 = vrot.slane %v687, 1
      %v867 = vrot.slane %v687, 2
      %v868 = vrot.slane %v687, 3
      %v869 = vrot.slane %v687, 4
      %v870 = vrot.slane %v687, 5
      %v871 = vrot.slane %v687, 6
      %v872 = vrot.slane %v687, 7
      %v873 = vperm.slane %v666, 0
      %v874 = vperm.slane %v817, 0
      %v875 = vperm.slane %v818, 0
      %v876 = vperm.slane %v819, 0
      %v877 = vperm.slane %v820, 0
      %v878 = vperm.slane %v821, 0
      %v879 = vperm.slane %v822, 0
      %v880 = vperm.slane %v823, 0
      %v881 = vperm.slane %v669, 0
      %v882 = vperm.slane %v824, 0
      %v883 = vperm.slane %v825, 0
      %v884 = vperm.slane %v826, 0
      %v885 = vperm.slane %v827, 0
      %v886 = vperm.slane %v828, 0
      %v887 = vperm.slane %v829, 0
      %v888 = vperm.slane %v830, 0
      %v889 = vperm.slane %v672, 0
      %v890 = vperm.slane %v831, 0
      %v891 = vperm.slane %v832, 0
      %v892 = vperm.slane %v833, 0
      %v893 = vperm.slane %v834, 0
      %v894 = vperm.slane %v835, 0
      %v895 = vperm.slane %v836, 0
      %v896 = vperm.slane %v837, 0
      %v897 = vperm.slane %v675, 0
      %v898 = vperm.slane %v838, 0
      %v899 = vperm.slane %v839, 0
      %v900 = vperm.slane %v840, 0
      %v901 = vperm.slane %v841, 0
      %v902 = vperm.slane %v842, 0
      %v903 = vperm.slane %v843, 0
      %v904 = vperm.slane %v844, 0
      %v905 = vperm.slane %v678, 0
      %v906 = vperm.slane %v845, 0
      %v907 = vperm.slane %v846, 0
      %v908 = vperm.slane %v847, 0
      %v909 = vperm.slane %v848, 0
      %v910 = vperm.slane %v849, 0
      %v911 = vperm.slane %v850, 0
      %v912 = vperm.slane %v851, 0
      %v913 = vperm.slane %v681, 0
      %v914 = vperm.slane %v852, 0
      %v915 = vperm.slane %v853, 0
      %v916 = vperm.slane %v854, 0
      %v917 = vperm.slane %v855, 0
      %v918 = vperm.slane %v856, 0
      %v919 = vperm.slane %v857, 0
      %v920 = vperm.slane %v858, 0
      %v921 = vperm.slane %v684, 0
      %v922 = vperm.slane %v859, 0
      %v923 = vperm.slane %v860, 0
      %v924 = vperm.slane %v861, 0
      %v925 = vperm.slane %v862, 0
      %v926 = vperm.slane %v863, 0
      %v927 = vperm.slane %v864, 0
      %v928 = vperm.slane %v865, 0
      %v929 = vperm.slane %v687, 0
      %v930 = vperm.slane %v866, 0
      %v931 = vperm.slane %v867, 0
      %v932 = vperm.slane %v868, 0
      %v933 = vperm.slane %v869, 0
      %v934 = vperm.slane %v870, 0
      %v935 = vperm.slane %v871, 0
      %v936 = vperm.slane %v872, 0
      %vm1001 = vcmask 1040384
      %v1002 = vsel %vm1001, %v625, %v873
      %v1003 = vsel %vm1001, %v697, %v874
      %v1004 = vsel %vm1001, %v698, %v875
      %v1005 = vsel %vm1001, %v699, %v876
      %v1006 = vsel %vm1001, %v700, %v877
      %v1007 = vsel %vm1001, %v701, %v878
      %v1008 = vsel %vm1001, %v702, %v879
      %v1009 = vsel %vm1001, %v703, %v880
      %v1010 = vsel %vm1001, %v628, %v881
      %v1011 = vsel %vm1001, %v704, %v882
      %v1012 = vsel %vm1001, %v705, %v883
      %v1013 = vsel %vm1001, %v706, %v884
      %v1014 = vsel %vm1001, %v707, %v885
      %v1015 = vsel %vm1001, %v708, %v886
      %v1016 = vsel %vm1001, %v709, %v887
      %v1017 = vsel %vm1001, %v710, %v888
      %v1018 = vsel %vm1001, %v631, %v889
      %v1019 = vsel %vm1001, %v711, %v890
      %v1020 = vsel %vm1001, %v712, %v891
      %v1021 = vsel %vm1001, %v713, %v892
      %v1022 = vsel %vm1001, %v714, %v893
      %v1023 = vsel %vm1001, %v715, %v894
      %v1024 = vsel %vm1001, %v716, %v895
      %v1025 = vsel %vm1001, %v717, %v896
      %v1026 = vsel %vm1001, %v634, %v897
      %v1027 = vsel %vm1001, %v718, %v898
      %v1028 = vsel %vm1001, %v719, %v899
      %v1029 = vsel %vm1001, %v720, %v900
      %v1030 = vsel %vm1001, %v721, %v901
      %v1031 = vsel %vm1001, %v722, %v902
      %v1032 = vsel %vm1001, %v723, %v903
      %v1033 = vsel %vm1001, %v724, %v904
      %v1034 = vsel %vm1001, %v637, %v905
      %v1035 = vsel %vm1001, %v725, %v906
      %v1036 = vsel %vm1001, %v726, %v907
      %v1037 = vsel %vm1001, %v727, %v908
      %v1038 = vsel %vm1001, %v728, %v909
      %v1039 = vsel %vm1001, %v729, %v910
      %v1040 = vsel %vm1001, %v730, %v911
      %v1041 = vsel %vm1001, %v731, %v912
      %v1042 = vsel %vm1001, %v640, %v913
      %v1043 = vsel %vm1001, %v732, %v914
      %v1044 = vsel %vm1001, %v733, %v915
      %v1045 = vsel %vm1001, %v734, %v916
      %v1046 = vsel %vm1001, %v735, %v917
      %v1047 = vsel %vm1001, %v736, %v918
      %v1048 = vsel %vm1001, %v737, %v919
      %v1049 = vsel %vm1001, %v738, %v920
      %v1050 = vsel %vm1001, %v643, %v921
      %v1051 = vsel %vm1001, %v739, %v922
      %v1052 = vsel %vm1001, %v740, %v923
      %v1053 = vsel %vm1001, %v741, %v924
      %v1054 = vsel %vm1001, %v742, %v925
      %v1055 = vsel %vm1001, %v743, %v926
      %v1056 = vsel %vm1001, %v744, %v927
      %v1057 = vsel %vm1001, %v745, %v928
      %v1058 = vsel %vm1001, %v646, %v929
      %v1059 = vsel %vm1001, %v746, %v930
      %v1060 = vsel %vm1001, %v747, %v931
      %v1061 = vsel %vm1001, %v748, %v932
      %v1062 = vsel %vm1001, %v749, %v933
      %v1063 = vsel %vm1001, %v750, %v934
      %v1064 = vsel %vm1001, %v751, %v935
      %v1065 = vsel %vm1001, %v752, %v936
      %1066 = vmatpush.msra.mxu0 0.0
      %1067 = vmatpush.msra.mxu0 0.0
      %1068 = vmatpush.msra.mxu0 0.0
      %1069 = vmatpush.msra.mxu0 0.0
      %1070 = vmatpush.msra.mxu0 0.0
      %1071 = vmatpush.msra.mxu0 0.0
      %1072 = vmatpush.msra.mxu0 0.0
      %1073 = vmatpush.msra.mxu0 0.0
      %1074 = vmatpush.msra.mxu0 0.0
      %1075 = vmatpush.msra.mxu0 0.0
      %1076 = vmatpush.msra.mxu0 0.0
      %1077 = vmatpush.msra.mxu0 0.0
      %1078 = vmatpush.msra.mxu0 0.0
      %1079 = vmatpush.msra.mxu0 0.0
      %1080 = vmatpush.msra.mxu0 0.0
      %1081 = vmatpush.msra.mxu0 %v576
      %1082 = vmatmul.f32.gmra.mxu0 %v584
      %v1083 = vpop.f32.mrf.mxu0
      %v1084 = vadd.f32 %v580, %v1083
      %1085 = vmatmul.f32.gmra.mxu0 %v587
      %v1086 = vpop.f32.mrf.mxu0
      %v1087 = vadd.f32 %v580, %v1086
      %1088 = vmatmul.f32.gmra.mxu0 %v590
      %v1089 = vpop.f32.mrf.mxu0
      %v1090 = vadd.f32 %v580, %v1089
      %1091 = vmatmul.f32.gmra.mxu0 %v593
      %v1092 = vpop.f32.mrf.mxu0
      %v1093 = vadd.f32 %v580, %v1092
      %1094 = vmatmul.f32.gmra.mxu0 %v596
      %v1095 = vpop.f32.mrf.mxu0
      %v1096 = vadd.f32 %v580, %v1095
      %1097 = vmatmul.f32.gmra.mxu0 %v599
      %v1098 = vpop.f32.mrf.mxu0
      %v1099 = vadd.f32 %v580, %v1098
      %1100 = vmatmul.f32.gmra.mxu0 %v602
      %v1101 = vpop.f32.mrf.mxu0
      %v1102 = vadd.f32 %v580, %v1101
      %1103 = vmatmul.f32.gmra.mxu0 %v605
      %v1104 = vpop.f32.mrf.mxu0
      %v1105 = vadd.f32 %v580, %v1104
      %1106 = vdwg.mxu0
      %1107 = vmatpush.msra.mxu0 0.0
      %1108 = vmatpush.msra.mxu0 0.0
      %1109 = vmatpush.msra.mxu0 0.0
      %1110 = vmatpush.msra.mxu0 0.0
      %1111 = vmatpush.msra.mxu0 0.0
      %1112 = vmatpush.msra.mxu0 0.0
      %1113 = vmatpush.msra.mxu0 0.0
      %1114 = vmatpush.msra.mxu0 0.0
      %1115 = vmatpush.msra.mxu0 0.0
      %1116 = vmatpush.msra.mxu0 0.0
      %1117 = vmatpush.msra.mxu0 0.0
      %1118 = vmatpush.msra.mxu0 0.0
      %1119 = vmatpush.msra.mxu0 0.0
      %1120 = vmatpush.msra.mxu0 0.0
      %1121 = vmatpush.msra.mxu0 0.0
      %1122 = vmatpush.msra.mxu0 %v577
      %1123 = vmatmul.f32.gmra.mxu0 %v584
      %v1124 = vpop.f32.mrf.mxu0
      %v1125 = vadd.f32 %v580, %v1124
      %1126 = vmatmul.f32.gmra.mxu0 %v587
      %v1127 = vpop.f32.mrf.mxu0
      %v1128 = vadd.f32 %v580, %v1127
      %1129 = vmatmul.f32.gmra.mxu0 %v590
      %v1130 = vpop.f32.mrf.mxu0
      %v1131 = vadd.f32 %v580, %v1130
      %1132 = vmatmul.f32.gmra.mxu0 %v593
      %v1133 = vpop.f32.mrf.mxu0
      %v1134 = vadd.f32 %v580, %v1133
      %1135 = vmatmul.f32.gmra.mxu0 %v596
      %v1136 = vpop.f32.mrf.mxu0
      %v1137 = vadd.f32 %v580, %v1136
      %1138 = vmatmul.f32.gmra.mxu0 %v599
      %v1139 = vpop.f32.mrf.mxu0
      %v1140 = vadd.f32 %v580, %v1139
      %1141 = vmatmul.f32.gmra.mxu0 %v602
      %v1142 = vpop.f32.mrf.mxu0
      %v1143 = vadd.f32 %v580, %v1142
      %1144 = vmatmul.f32.gmra.mxu0 %v605
      %v1145 = vpop.f32.mrf.mxu0
      %v1146 = vadd.f32 %v580, %v1145
      %1147 = vdwg.mxu0
      %v1156 = vrot.slane %v1084, 1
      %v1157 = vrot.slane %v1084, 2
      %v1158 = vrot.slane %v1084, 3
      %v1159 = vrot.slane %v1084, 4
      %v1160 = vrot.slane %v1084, 5
      %v1161 = vrot.slane %v1084, 6
      %v1162 = vrot.slane %v1084, 7
      %v1163 = vrot.slane %v1087, 1
      %v1164 = vrot.slane %v1087, 2
      %v1165 = vrot.slane %v1087, 3
      %v1166 = vrot.slane %v1087, 4
      %v1167 = vrot.slane %v1087, 5
      %v1168 = vrot.slane %v1087, 6
      %v1169 = vrot.slane %v1087, 7
      %v1170 = vrot.slane %v1090, 1
      %v1171 = vrot.slane %v1090, 2
      %v1172 = vrot.slane %v1090, 3
      %v1173 = vrot.slane %v1090, 4
      %v1174 = vrot.slane %v1090, 5
      %v1175 = vrot.slane %v1090, 6
      %v1176 = vrot.slane %v1090, 7
      %v1177 = vrot.slane %v1093, 1
      %v1178 = vrot.slane %v1093, 2
      %v1179 = vrot.slane %v1093, 3
      %v1180 = vrot.slane %v1093, 4
      %v1181 = vrot.slane %v1093, 5
      %v1182 = vrot.slane %v1093, 6
      %v1183 = vrot.slane %v1093, 7
      %v1184 = vrot.slane %v1096, 1
      %v1185 = vrot.slane %v1096, 2
      %v1186 = vrot.slane %v1096, 3
      %v1187 = vrot.slane %v1096, 4
      %v1188 = vrot.slane %v1096, 5
      %v1189 = vrot.slane %v1096, 6
      %v1190 = vrot.slane %v1096, 7
      %v1191 = vrot.slane %v1099, 1
      %v1192 = vrot.slane %v1099, 2
      %v1193 = vrot.slane %v1099, 3
      %v1194 = vrot.slane %v1099, 4
      %v1195 = vrot.slane %v1099, 5
      %v1196 = vrot.slane %v1099, 6
      %v1197 = vrot.slane %v1099, 7
      %v1198 = vrot.slane %v1102, 1
      %v1199 = vrot.slane %v1102, 2
      %v1200 = vrot.slane %v1102, 3
      %v1201 = vrot.slane %v1102, 4
      %v1202 = vrot.slane %v1102, 5
      %v1203 = vrot.slane %v1102, 6
      %v1204 = vrot.slane %v1102, 7
      %v1205 = vrot.slane %v1105, 1
      %v1206 = vrot.slane %v1105, 2
      %v1207 = vrot.slane %v1105, 3
      %v1208 = vrot.slane %v1105, 4
      %v1209 = vrot.slane %v1105, 5
      %v1210 = vrot.slane %v1105, 6
      %v1211 = vrot.slane %v1105, 7
      %v1276 = vrot.slane %v1125, 1
      %v1277 = vrot.slane %v1125, 2
      %v1278 = vrot.slane %v1125, 3
      %v1279 = vrot.slane %v1125, 4
      %v1280 = vrot.slane %v1125, 5
      %v1281 = vrot.slane %v1125, 6
      %v1282 = vrot.slane %v1125, 7
      %v1283 = vrot.slane %v1128, 1
      %v1284 = vrot.slane %v1128, 2
      %v1285 = vrot.slane %v1128, 3
      %v1286 = vrot.slane %v1128, 4
      %v1287 = vrot.slane %v1128, 5
      %v1288 = vrot.slane %v1128, 6
      %v1289 = vrot.slane %v1128, 7
      %v1290 = vrot.slane %v1131, 1
      %v1291 = vrot.slane %v1131, 2
      %v1292 = vrot.slane %v1131, 3
      %v1293 = vrot.slane %v1131, 4
      %v1294 = vrot.slane %v1131, 5
      %v1295 = vrot.slane %v1131, 6
      %v1296 = vrot.slane %v1131, 7
      %v1297 = vrot.slane %v1134, 1
      %v1298 = vrot.slane %v1134, 2
      %v1299 = vrot.slane %v1134, 3
      %v1300 = vrot.slane %v1134, 4
      %v1301 = vrot.slane %v1134, 5
      %v1302 = vrot.slane %v1134, 6
      %v1303 = vrot.slane %v1134, 7
      %v1304 = vrot.slane %v1137, 1
      %v1305 = vrot.slane %v1137, 2
      %v1306 = vrot.slane %v1137, 3
      %v1307 = vrot.slane %v1137, 4
      %v1308 = vrot.slane %v1137, 5
      %v1309 = vrot.slane %v1137, 6
      %v1310 = vrot.slane %v1137, 7
      %v1311 = vrot.slane %v1140, 1
      %v1312 = vrot.slane %v1140, 2
      %v1313 = vrot.slane %v1140, 3
      %v1314 = vrot.slane %v1140, 4
      %v1315 = vrot.slane %v1140, 5
      %v1316 = vrot.slane %v1140, 6
      %v1317 = vrot.slane %v1140, 7
      %v1318 = vrot.slane %v1143, 1
      %v1319 = vrot.slane %v1143, 2
      %v1320 = vrot.slane %v1143, 3
      %v1321 = vrot.slane %v1143, 4
      %v1322 = vrot.slane %v1143, 5
      %v1323 = vrot.slane %v1143, 6
      %v1324 = vrot.slane %v1143, 7
      %v1325 = vrot.slane %v1146, 1
      %v1326 = vrot.slane %v1146, 2
      %v1327 = vrot.slane %v1146, 3
      %v1328 = vrot.slane %v1146, 4
      %v1329 = vrot.slane %v1146, 5
      %v1330 = vrot.slane %v1146, 6
      %v1331 = vrot.slane %v1146, 7
      %v1332 = vperm.slane %v1125, 0
      %v1333 = vperm.slane %v1276, 0
      %v1334 = vperm.slane %v1277, 0
      %v1335 = vperm.slane %v1278, 0
      %v1336 = vperm.slane %v1279, 0
      %v1337 = vperm.slane %v1280, 0
      %v1338 = vperm.slane %v1281, 0
      %v1339 = vperm.slane %v1282, 0
      %v1340 = vperm.slane %v1128, 0
      %v1341 = vperm.slane %v1283, 0
      %v1342 = vperm.slane %v1284, 0
      %v1343 = vperm.slane %v1285, 0
      %v1344 = vperm.slane %v1286, 0
      %v1345 = vperm.slane %v1287, 0
      %v1346 = vperm.slane %v1288, 0
      %v1347 = vperm.slane %v1289, 0
      %v1348 = vperm.slane %v1131, 0
      %v1349 = vperm.slane %v1290, 0
      %v1350 = vperm.slane %v1291, 0
      %v1351 = vperm.slane %v1292, 0
      %v1352 = vperm.slane %v1293, 0
      %v1353 = vperm.slane %v1294, 0
      %v1354 = vperm.slane %v1295, 0
      %v1355 = vperm.slane %v1296, 0
      %v1356 = vperm.slane %v1134, 0
      %v1357 = vperm.slane %v1297, 0
      %v1358 = vperm.slane %v1298, 0
      %v1359 = vperm.slane %v1299, 0
      %v1360 = vperm.slane %v1300, 0
      %v1361 = vperm.slane %v1301, 0
      %v1362 = vperm.slane %v1302, 0
      %v1363 = vperm.slane %v1303, 0
      %v1364 = vperm.slane %v1137, 0
      %v1365 = vperm.slane %v1304, 0
      %v1366 = vperm.slane %v1305, 0
      %v1367 = vperm.slane %v1306, 0
      %v1368 = vperm.slane %v1307, 0
      %v1369 = vperm.slane %v1308, 0
      %v1370 = vperm.slane %v1309, 0
      %v1371 = vperm.slane %v1310, 0
      %v1372 = vperm.slane %v1140, 0
      %v1373 = vperm.slane %v1311, 0
      %v1374 = vperm.slane %v1312, 0
      %v1375 = vperm.slane %v1313, 0
      %v1376 = vperm.slane %v1314, 0
      %v1377 = vperm.slane %v1315, 0
      %v1378 = vperm.slane %v1316, 0
      %v1379 = vperm.slane %v1317, 0
      %v1380 = vperm.slane %v1143, 0
      %v1381 = vperm.slane %v1318, 0
      %v1382 = vperm.slane %v1319, 0
      %v1383 = vperm.slane %v1320, 0
      %v1384 = vperm.slane %v1321, 0
      %v1385 = vperm.slane %v1322, 0
      %v1386 = vperm.slane %v1323, 0
      %v1387 = vperm.slane %v1324, 0
      %v1388 = vperm.slane %v1146, 0
      %v1389 = vperm.slane %v1325, 0
      %v1390 = vperm.slane %v1326, 0
      %v1391 = vperm.slane %v1327, 0
      %v1392 = vperm.slane %v1328, 0
      %v1393 = vperm.slane %v1329, 0
      %v1394 = vperm.slane %v1330, 0
      %v1395 = vperm.slane %v1331, 0
      %v1460 = vsel %vm1001, %v1084, %v1332
      %v1461 = vsel %vm1001, %v1156, %v1333
      %v1462 = vsel %vm1001, %v1157, %v1334
      %v1463 = vsel %vm1001, %v1158, %v1335
      %v1464 = vsel %vm1001, %v1159, %v1336
      %v1465 = vsel %vm1001, %v1160, %v1337
      %v1466 = vsel %vm1001, %v1161, %v1338
      %v1467 = vsel %vm1001, %v1162, %v1339
      %v1468 = vsel %vm1001, %v1087, %v1340
      %v1469 = vsel %vm1001, %v1163, %v1341
      %v1470 = vsel %vm1001, %v1164, %v1342
      %v1471 = vsel %vm1001, %v1165, %v1343
      %v1472 = vsel %vm1001, %v1166, %v1344
      %v1473 = vsel %vm1001, %v1167, %v1345
      %v1474 = vsel %vm1001, %v1168, %v1346
      %v1475 = vsel %vm1001, %v1169, %v1347
      %v1476 = vsel %vm1001, %v1090, %v1348
      %v1477 = vsel %vm1001, %v1170, %v1349
      %v1478 = vsel %vm1001, %v1171, %v1350
      %v1479 = vsel %vm1001, %v1172, %v1351
      %v1480 = vsel %vm1001, %v1173, %v1352
      %v1481 = vsel %vm1001, %v1174, %v1353
      %v1482 = vsel %vm1001, %v1175, %v1354
      %v1483 = vsel %vm1001, %v1176, %v1355
      %v1484 = vsel %vm1001, %v1093, %v1356
      %v1485 = vsel %vm1001, %v1177, %v1357
      %v1486 = vsel %vm1001, %v1178, %v1358
      %v1487 = vsel %vm1001, %v1179, %v1359
      %v1488 = vsel %vm1001, %v1180, %v1360
      %v1489 = vsel %vm1001, %v1181, %v1361
      %v1490 = vsel %vm1001, %v1182, %v1362
      %v1491 = vsel %vm1001, %v1183, %v1363
      %v1492 = vsel %vm1001, %v1096, %v1364
      %v1493 = vsel %vm1001, %v1184, %v1365
      %v1494 = vsel %vm1001, %v1185, %v1366
      %v1495 = vsel %vm1001, %v1186, %v1367
      %v1496 = vsel %vm1001, %v1187, %v1368
      %v1497 = vsel %vm1001, %v1188, %v1369
      %v1498 = vsel %vm1001, %v1189, %v1370
      %v1499 = vsel %vm1001, %v1190, %v1371
      %v1500 = vsel %vm1001, %v1099, %v1372
      %v1501 = vsel %vm1001, %v1191, %v1373
      %v1502 = vsel %vm1001, %v1192, %v1374
      %v1503 = vsel %vm1001, %v1193, %v1375
      %v1504 = vsel %vm1001, %v1194, %v1376
      %v1505 = vsel %vm1001, %v1195, %v1377
      %v1506 = vsel %vm1001, %v1196, %v1378
      %v1507 = vsel %vm1001, %v1197, %v1379
      %v1508 = vsel %vm1001, %v1102, %v1380
      %v1509 = vsel %vm1001, %v1198, %v1381
      %v1510 = vsel %vm1001, %v1199, %v1382
      %v1511 = vsel %vm1001, %v1200, %v1383
      %v1512 = vsel %vm1001, %v1201, %v1384
      %v1513 = vsel %vm1001, %v1202, %v1385
      %v1514 = vsel %vm1001, %v1203, %v1386
      %v1515 = vsel %vm1001, %v1204, %v1387
      %v1516 = vsel %vm1001, %v1105, %v1388
      %v1517 = vsel %vm1001, %v1205, %v1389
      %v1518 = vsel %vm1001, %v1206, %v1390
      %v1519 = vsel %vm1001, %v1207, %v1391
      %v1520 = vsel %vm1001, %v1208, %v1392
      %v1521 = vsel %vm1001, %v1209, %v1393
      %v1522 = vsel %vm1001, %v1210, %v1394
      %v1523 = vsel %vm1001, %v1211, %v1395
      %1652 = vst [vmem:[#allocation1] ss:$4 sm:$0xff] %v1002
      %s1653 = scalar_lea.vmem [#allocation1], 1
      %1654 = vst [vmem:[%s1653] ss:$4 sm:$0xff] %v1003
      %s1655 = scalar_lea.vmem [#allocation1], 2
      %1656 = vst [vmem:[%s1655] ss:$4 sm:$0xff] %v1004
      %s1657 = scalar_lea.vmem [#allocation1], 3
      %1658 = vst [vmem:[%s1657] ss:$4 sm:$0xff] %v1005
      %s1659 = scalar_lea.vmem [#allocation1], 32
      %1660 = vst [vmem:[%s1659] ss:$4 sm:$0xff] %v1006
      %s1661 = scalar_lea.vmem [#allocation1], 33
      %1662 = vst [vmem:[%s1661] ss:$4 sm:$0xff] %v1007
      %s1663 = scalar_lea.vmem [#allocation1], 34
      %1664 = vst [vmem:[%s1663] ss:$4 sm:$0xff] %v1008
      %s1665 = scalar_lea.vmem [#allocation1], 35
      %1666 = vst [vmem:[%s1665] ss:$4 sm:$0xff] %v1009
      %v1667 = vld.sshfl [vmem:[#allocation1] sm:$0xff pattern:$0x73625140]
      %v1668 = vld.sshfl [vmem:[#allocation1 + $0x20] sm:$0xff pattern:$0x73625140]
      %1669 = vst [vmem:[#allocation1] ss:$4 sm:$0xff] %v1460
      %1670 = vst [vmem:[%s1653] ss:$4 sm:$0xff] %v1461
      %1671 = vst [vmem:[%s1655] ss:$4 sm:$0xff] %v1462
      %1672 = vst [vmem:[%s1657] ss:$4 sm:$0xff] %v1463
      %1673 = vst [vmem:[%s1659] ss:$4 sm:$0xff] %v1464
      %1674 = vst [vmem:[%s1661] ss:$4 sm:$0xff] %v1465
      %1675 = vst [vmem:[%s1663] ss:$4 sm:$0xff] %v1466
      %1676 = vst [vmem:[%s1665] ss:$4 sm:$0xff] %v1467
      %v1677 = vld.sshfl [vmem:[#allocation1] sm:$0xff pattern:$0x73625140]
      %v1678 = vld.sshfl [vmem:[#allocation1 + $0x20] sm:$0xff pattern:$0x73625140]
      %1679 = vst [vmem:[#allocation1] ss:$4 sm:$0xff] %v1010
      %1680 = vst [vmem:[%s1653] ss:$4 sm:$0xff] %v1011
      %1681 = vst [vmem:[%s1655] ss:$4 sm:$0xff] %v1012
      %1682 = vst [vmem:[%s1657] ss:$4 sm:$0xff] %v1013
      %1683 = vst [vmem:[%s1659] ss:$4 sm:$0xff] %v1014
      %1684 = vst [vmem:[%s1661] ss:$4 sm:$0xff] %v1015
      %1685 = vst [vmem:[%s1663] ss:$4 sm:$0xff] %v1016
      %1686 = vst [vmem:[%s1665] ss:$4 sm:$0xff] %v1017
      %v1687 = vld.sshfl [vmem:[#allocation1] sm:$0xff pattern:$0x73625140]
      %v1688 = vld.sshfl [vmem:[#allocation1 + $0x20] sm:$0xff pattern:$0x73625140]
      %1689 = vst [vmem:[#allocation1] ss:$4 sm:$0xff] %v1468
      %1690 = vst [vmem:[%s1653] ss:$4 sm:$0xff] %v1469
      %1691 = vst [vmem:[%s1655] ss:$4 sm:$0xff] %v1470
      %1692 = vst [vmem:[%s1657] ss:$4 sm:$0xff] %v1471
      %1693 = vst [vmem:[%s1659] ss:$4 sm:$0xff] %v1472
      %1694 = vst [vmem:[%s1661] ss:$4 sm:$0xff] %v1473
      %1695 = vst [vmem:[%s1663] ss:$4 sm:$0xff] %v1474
      %1696 = vst [vmem:[%s1665] ss:$4 sm:$0xff] %v1475
      %v1697 = vld.sshfl [vmem:[#allocation1] sm:$0xff pattern:$0x73625140]
      %v1698 = vld.sshfl [vmem:[#allocation1 + $0x20] sm:$0xff pattern:$0x73625140]
      %1699 = vst [vmem:[#allocation1] ss:$4 sm:$0xff] %v1018
      %1700 = vst [vmem:[%s1653] ss:$4 sm:$0xff] %v1019
      %1701 = vst [vmem:[%s1655] ss:$4 sm:$0xff] %v1020
      %1702 = vst [vmem:[%s1657] ss:$4 sm:$0xff] %v1021
      %1703 = vst [vmem:[%s1659] ss:$4 sm:$0xff] %v1022
      %1704 = vst [vmem:[%s1661] ss:$4 sm:$0xff] %v1023
      %1705 = vst [vmem:[%s1663] ss:$4 sm:$0xff] %v1024
      %1706 = vst [vmem:[%s1665] ss:$4 sm:$0xff] %v1025
      %v1707 = vld.sshfl [vmem:[#allocation1] sm:$0xff pattern:$0x73625140]
      %v1708 = vld.sshfl [vmem:[#allocation1 + $0x20] sm:$0xff pattern:$0x73625140]
      %1709 = vst [vmem:[#allocation1] ss:$4 sm:$0xff] %v1476
      %1710 = vst [vmem:[%s1653] ss:$4 sm:$0xff] %v1477
      %1711 = vst [vmem:[%s1655] ss:$4 sm:$0xff] %v1478
      %1712 = vst [vmem:[%s1657] ss:$4 sm:$0xff] %v1479
      %1713 = vst [vmem:[%s1659] ss:$4 sm:$0xff] %v1480
      %1714 = vst [vmem:[%s1661] ss:$4 sm:$0xff] %v1481
      %1715 = vst [vmem:[%s1663] ss:$4 sm:$0xff] %v1482
      %1716 = vst [vmem:[%s1665] ss:$4 sm:$0xff] %v1483
      %v1717 = vld.sshfl [vmem:[#allocation1] sm:$0xff pattern:$0x73625140]
      %v1718 = vld.sshfl [vmem:[#allocation1 + $0x20] sm:$0xff pattern:$0x73625140]
      %1719 = vst [vmem:[#allocation1] ss:$4 sm:$0xff] %v1026
      %1720 = vst [vmem:[%s1653] ss:$4 sm:$0xff] %v1027
      %1721 = vst [vmem:[%s1655] ss:$4 sm:$0xff] %v1028
      %1722 = vst [vmem:[%s1657] ss:$4 sm:$0xff] %v1029
      %1723 = vst [vmem:[%s1659] ss:$4 sm:$0xff] %v1030
      %1724 = vst [vmem:[%s1661] ss:$4 sm:$0xff] %v1031
      %1725 = vst [vmem:[%s1663] ss:$4 sm:$0xff] %v1032
      %1726 = vst [vmem:[%s1665] ss:$4 sm:$0xff] %v1033
      %v1727 = vld.sshfl [vmem:[#allocation1] sm:$0xff pattern:$0x73625140]
      %v1728 = vld.sshfl [vmem:[#allocation1 + $0x20] sm:$0xff pattern:$0x73625140]
      %1729 = vst [vmem:[#allocation1] ss:$4 sm:$0xff] %v1484
      %1730 = vst [vmem:[%s1653] ss:$4 sm:$0xff] %v1485
      %1731 = vst [vmem:[%s1655] ss:$4 sm:$0xff] %v1486
      %1732 = vst [vmem:[%s1657] ss:$4 sm:$0xff] %v1487
      %1733 = vst [vmem:[%s1659] ss:$4 sm:$0xff] %v1488
      %1734 = vst [vmem:[%s1661] ss:$4 sm:$0xff] %v1489
      %1735 = vst [vmem:[%s1663] ss:$4 sm:$0xff] %v1490
      %1736 = vst [vmem:[%s1665] ss:$4 sm:$0xff] %v1491
      %v1737 = vld.sshfl [vmem:[#allocation1] sm:$0xff pattern:$0x73625140]
      %v1738 = vld.sshfl [vmem:[#allocation1 + $0x20] sm:$0xff pattern:$0x73625140]
      %1739 = vst [vmem:[#allocation1] ss:$4 sm:$0xff] %v1034
      %1740 = vst [vmem:[%s1653] ss:$4 sm:$0xff] %v1035
      %1741 = vst [vmem:[%s1655] ss:$4 sm:$0xff] %v1036
      %1742 = vst [vmem:[%s1657] ss:$4 sm:$0xff] %v1037
      %1743 = vst [vmem:[%s1659] ss:$4 sm:$0xff] %v1038
      %1744 = vst [vmem:[%s1661] ss:$4 sm:$0xff] %v1039
      %1745 = vst [vmem:[%s1663] ss:$4 sm:$0xff] %v1040
      %1746 = vst [vmem:[%s1665] ss:$4 sm:$0xff] %v1041
      %v1747 = vld.sshfl [vmem:[#allocation1] sm:$0xff pattern:$0x73625140]
      %v1748 = vld.sshfl [vmem:[#allocation1 + $0x20] sm:$0xff pattern:$0x73625140]
      %1749 = vst [vmem:[#allocation1] ss:$4 sm:$0xff] %v1492
      %1750 = vst [vmem:[%s1653] ss:$4 sm:$0xff] %v1493
      %1751 = vst [vmem:[%s1655] ss:$4 sm:$0xff] %v1494
      %1752 = vst [vmem:[%s1657] ss:$4 sm:$0xff] %v1495
      %1753 = vst [vmem:[%s1659] ss:$4 sm:$0xff] %v1496
      %1754 = vst [vmem:[%s1661] ss:$4 sm:$0xff] %v1497
      %1755 = vst [vmem:[%s1663] ss:$4 sm:$0xff] %v1498
      %1756 = vst [vmem:[%s1665] ss:$4 sm:$0xff] %v1499
      %v1757 = vld.sshfl [vmem:[#allocation1] sm:$0xff pattern:$0x73625140]
      %v1758 = vld.sshfl [vmem:[#allocation1 + $0x20] sm:$0xff pattern:$0x73625140]
      %1759 = vst [vmem:[#allocation1] ss:$4 sm:$0xff] %v1042
      %1760 = vst [vmem:[%s1653] ss:$4 sm:$0xff] %v1043
      %1761 = vst [vmem:[%s1655] ss:$4 sm:$0xff] %v1044
      %1762 = vst [vmem:[%s1657] ss:$4 sm:$0xff] %v1045
      %1763 = vst [vmem:[%s1659] ss:$4 sm:$0xff] %v1046
      %1764 = vst [vmem:[%s1661] ss:$4 sm:$0xff] %v1047
      %1765 = vst [vmem:[%s1663] ss:$4 sm:$0xff] %v1048
      %1766 = vst [vmem:[%s1665] ss:$4 sm:$0xff] %v1049
      %v1767 = vld.sshfl [vmem:[#allocation1] sm:$0xff pattern:$0x73625140]
      %v1768 = vld.sshfl [vmem:[#allocation1 + $0x20] sm:$0xff pattern:$0x73625140]
      %1769 = vst [vmem:[#allocation1] ss:$4 sm:$0xff] %v1500
      %1770 = vst [vmem:[%s1653] ss:$4 sm:$0xff] %v1501
      %1771 = vst [vmem:[%s1655] ss:$4 sm:$0xff] %v1502
      %1772 = vst [vmem:[%s1657] ss:$4 sm:$0xff] %v1503
      %1773 = vst [vmem:[%s1659] ss:$4 sm:$0xff] %v1504
      %1774 = vst [vmem:[%s1661] ss:$4 sm:$0xff] %v1505
      %1775 = vst [vmem:[%s1663] ss:$4 sm:$0xff] %v1506
      %1776 = vst [vmem:[%s1665] ss:$4 sm:$0xff] %v1507
      %v1777 = vld.sshfl [vmem:[#allocation1] sm:$0xff pattern:$0x73625140]
      %v1778 = vld.sshfl [vmem:[#allocation1 + $0x20] sm:$0xff pattern:$0x73625140]
      %1779 = vst [vmem:[#allocation1] ss:$4 sm:$0xff] %v1050
      %1780 = vst [vmem:[%s1653] ss:$4 sm:$0xff] %v1051
      %1781 = vst [vmem:[%s1655] ss:$4 sm:$0xff] %v1052
      %1782 = vst [vmem:[%s1657] ss:$4 sm:$0xff] %v1053
      %1783 = vst [vmem:[%s1659] ss:$4 sm:$0xff] %v1054
      %1784 = vst [vmem:[%s1661] ss:$4 sm:$0xff] %v1055
      %1785 = vst [vmem:[%s1663] ss:$4 sm:$0xff] %v1056
      %1786 = vst [vmem:[%s1665] ss:$4 sm:$0xff] %v1057
      %v1787 = vld.sshfl [vmem:[#allocation1] sm:$0xff pattern:$0x73625140]
      %v1788 = vld.sshfl [vmem:[#allocation1 + $0x20] sm:$0xff pattern:$0x73625140]
      %1789 = vst [vmem:[#allocation1] ss:$4 sm:$0xff] %v1508
      %1790 = vst [vmem:[%s1653] ss:$4 sm:$0xff] %v1509
      %1791 = vst [vmem:[%s1655] ss:$4 sm:$0xff] %v1510
      %1792 = vst [vmem:[%s1657] ss:$4 sm:$0xff] %v1511
      %1793 = vst [vmem:[%s1659] ss:$4 sm:$0xff] %v1512
      %1794 = vst [vmem:[%s1661] ss:$4 sm:$0xff] %v1513
      %1795 = vst [vmem:[%s1663] ss:$4 sm:$0xff] %v1514
      %1796 = vst [vmem:[%s1665] ss:$4 sm:$0xff] %v1515
      %v1797 = vld.sshfl [vmem:[#allocation1] sm:$0xff pattern:$0x73625140]
      %v1798 = vld.sshfl [vmem:[#allocation1 + $0x20] sm:$0xff pattern:$0x73625140]
      %1799 = vst [vmem:[#allocation1] ss:$4 sm:$0xff] %v1058
      %1800 = vst [vmem:[%s1653] ss:$4 sm:$0xff] %v1059
      %1801 = vst [vmem:[%s1655] ss:$4 sm:$0xff] %v1060
      %1802 = vst [vmem:[%s1657] ss:$4 sm:$0xff] %v1061
      %1803 = vst [vmem:[%s1659] ss:$4 sm:$0xff] %v1062
      %1804 = vst [vmem:[%s1661] ss:$4 sm:$0xff] %v1063
      %1805 = vst [vmem:[%s1663] ss:$4 sm:$0xff] %v1064
      %1806 = vst [vmem:[%s1665] ss:$4 sm:$0xff] %v1065
      %v1807 = vld.sshfl [vmem:[#allocation1] sm:$0xff pattern:$0x73625140]
      %v1808 = vld.sshfl [vmem:[#allocation1 + $0x20] sm:$0xff pattern:$0x73625140]
      %1809 = vst [vmem:[#allocation1] ss:$4 sm:$0xff] %v1516
      %1810 = vst [vmem:[%s1653] ss:$4 sm:$0xff] %v1517
      %1811 = vst [vmem:[%s1655] ss:$4 sm:$0xff] %v1518
      %1812 = vst [vmem:[%s1657] ss:$4 sm:$0xff] %v1519
      %1813 = vst [vmem:[%s1659] ss:$4 sm:$0xff] %v1520
      %1814 = vst [vmem:[%s1661] ss:$4 sm:$0xff] %v1521
      %1815 = vst [vmem:[%s1663] ss:$4 sm:$0xff] %v1522
      %1816 = vst [vmem:[%s1665] ss:$4 sm:$0xff] %v1523
      %v1817 = vld.sshfl [vmem:[#allocation1] sm:$0xff pattern:$0x73625140]
      %v1818 = vld.sshfl [vmem:[#allocation1 + $0x20] sm:$0xff pattern:$0x73625140]
      %s1851 = scalar_lea.vmem [#allocation2], 24
      %1852 = vst.msk [vmem:[%s1851 + $0x1] sm:$0xff] %vm434, %v1667
      %1853 = vst.msk [vmem:[%s1851 + $0x9] sm:$0xff] %vm434, %v1668
      %1854 = vst.msk [vmem:[%s1851 + $0x19] sm:$0xff] %vm434, %v1677
      %1855 = vst.msk [vmem:[%s1851 + $0x21] sm:$0xff] %vm434, %v1678
      %1856 = vst.msk [vmem:[%s1851 + $0x31] sm:$0xff] %vm434, %v1687
      %1857 = vst.msk [vmem:[%s1851 + $0x39] sm:$0xff] %vm434, %v1688
      %1858 = vst.msk [vmem:[%s1851 + $0x49] sm:$0xff] %vm434, %v1697
      %1859 = vst.msk [vmem:[%s1851 + $0x51] sm:$0xff] %vm434, %v1698
      %1860 = vst.msk [vmem:[%s1851 + $0x61] sm:$0xff] %vm434, %v1707
      %1861 = vst.msk [vmem:[%s1851 + $0x69] sm:$0xff] %vm434, %v1708
      %1862 = vst.msk [vmem:[%s1851 + $0x79] sm:$0xff] %vm434, %v1717
      %1863 = vst.msk [vmem:[%s1851 + $0x81] sm:$0xff] %vm434, %v1718
      %1864 = vst.msk [vmem:[%s1851 + $0x91] sm:$0xff] %vm434, %v1727
      %1865 = vst.msk [vmem:[%s1851 + $0x99] sm:$0xff] %vm434, %v1728
      %1866 = vst.msk [vmem:[%s1851 + $0xa9] sm:$0xff] %vm434, %v1737
      %1867 = vst.msk [vmem:[%s1851 + $0xb1] sm:$0xff] %vm434, %v1738
      %1868 = vst.msk [vmem:[%s1851 + $0xc1] sm:$0xff] %vm434, %v1747
      %1869 = vst.msk [vmem:[%s1851 + $0xc9] sm:$0xff] %vm434, %v1748
      %1870 = vst.msk [vmem:[%s1851 + $0xd9] sm:$0xff] %vm434, %v1757
      %1871 = vst.msk [vmem:[%s1851 + $0xe1] sm:$0xff] %vm434, %v1758
      %1872 = vst.msk [vmem:[%s1851 + $0xf1] sm:$0xff] %vm434, %v1767
      %1873 = vst.msk [vmem:[%s1851 + $0xf9] sm:$0xff] %vm434, %v1768
      %1874 = vst.msk [vmem:[%s1851 + $0x109] sm:$0xff] %vm434, %v1777
      %1875 = vst.msk [vmem:[%s1851 + $0x111] sm:$0xff] %vm434, %v1778
      %1876 = vst.msk [vmem:[%s1851 + $0x121] sm:$0xff] %vm434, %v1787
      %1877 = vst.msk [vmem:[%s1851 + $0x129] sm:$0xff] %vm434, %v1788
      %1878 = vst.msk [vmem:[%s1851 + $0x139] sm:$0xff] %vm434, %v1797
      %1879 = vst.msk [vmem:[%s1851 + $0x141] sm:$0xff] %vm434, %v1798
      %1880 = vst.msk [vmem:[%s1851 + $0x151] sm:$0xff] %vm434, %v1807
      %1881 = vst.msk [vmem:[%s1851 + $0x159] sm:$0xff] %vm434, %v1808
      %1882 = vst.msk [vmem:[%s1851 + $0x169] sm:$0xff] %vm434, %v1817
      %1883 = vst.msk [vmem:[%s1851 + $0x171] sm:$0xff] %vm434, %v1818
      %v1884 = vld [vmem:[%s428] sm:$0xff]
      %v1885 = vld [vmem:[%s428 + $0x8] sm:$0xff]
      %v1886 = vld [vmem:[%s428 + $0x10] sm:$0xff]
      %v1887 = vld [vmem:[%s428 + $0x18] sm:$0xff]
      %v1888 = vld [vmem:[%s428 + $0x20] sm:$0xff]
      %v1889 = vld [vmem:[%s428 + $0x28] sm:$0xff]
      %v1890 = vld [vmem:[%s428 + $0x30] sm:$0xff]
      %v1891 = vld [vmem:[%s428 + $0x38] sm:$0xff]
      %v1892 = vld [vmem:[%s428 + $0x40] sm:$0xff]
      %v1893 = vld [vmem:[%s428 + $0x48] sm:$0xff]
      %v1894 = vld [vmem:[%s428 + $0x50] sm:$0xff]
      %v1895 = vld [vmem:[%s428 + $0x58] sm:$0xff]
      %v1896 = vld [vmem:[%s428 + $0x60] sm:$0xff]
      %v1897 = vld [vmem:[%s428 + $0x68] sm:$0xff]
      %v1898 = vld [vmem:[%s428 + $0x70] sm:$0xff]
      %v1899 = vld [vmem:[%s428 + $0x78] sm:$0xff]
      %v1900 = vld [vmem:[%s428 + $0x80] sm:$0xff]
      %v1901 = vld [vmem:[%s428 + $0x88] sm:$0xff]
      %v1902 = vld [vmem:[%s428 + $0x90] sm:$0xff]
      %v1903 = vld [vmem:[%s428 + $0x98] sm:$0xff]
      %v1904 = vld [vmem:[%s428 + $0xa0] sm:$0xff]
      %v1905 = vld [vmem:[%s428 + $0xa8] sm:$0xff]
      %v1906 = vld [vmem:[%s428 + $0xb0] sm:$0xff]
      %v1907 = vld [vmem:[%s428 + $0xb8] sm:$0xff]
      %v1908 = vld [vmem:[%s428 + $0xc0] sm:$0xff]
      %v1909 = vld [vmem:[%s428 + $0xc8] sm:$0xff]
      %v1910 = vld [vmem:[%s428 + $0xd0] sm:$0xff]
      %v1911 = vld [vmem:[%s428 + $0xd8] sm:$0xff]
      %v1912 = vld [vmem:[%s428 + $0xe0] sm:$0xff]
      %v1913 = vld [vmem:[%s428 + $0xe8] sm:$0xff]
      %v1914 = vld [vmem:[%s428 + $0xf0] sm:$0xff]
      %v1915 = vld [vmem:[%s428 + $0xf8] sm:$0xff]
      %s1916 = scalar_lea.vmem [#allocation3], 24
      %1917 = vst.msk [vmem:[%s1916 + $0x1] sm:$0xff] %vm434, %v1884
      %1918 = vst.msk [vmem:[%s1916 + $0x9] sm:$0xff] %vm434, %v1885
      %1919 = vst.msk [vmem:[%s1916 + $0x19] sm:$0xff] %vm434, %v1886
      %1920 = vst.msk [vmem:[%s1916 + $0x21] sm:$0xff] %vm434, %v1887
      %1921 = vst.msk [vmem:[%s1916 + $0x31] sm:$0xff] %vm434, %v1888
      %1922 = vst.msk [vmem:[%s1916 + $0x39] sm:$0xff] %vm434, %v1889
      %1923 = vst.msk [vmem:[%s1916 + $0x49] sm:$0xff] %vm434, %v1890
      %1924 = vst.msk [vmem:[%s1916 + $0x51] sm:$0xff] %vm434, %v1891
      %1925 = vst.msk [vmem:[%s1916 + $0x61] sm:$0xff] %vm434, %v1892
      %1926 = vst.msk [vmem:[%s1916 + $0x69] sm:$0xff] %vm434, %v1893
      %1927 = vst.msk [vmem:[%s1916 + $0x79] sm:$0xff] %vm434, %v1894
      %1928 = vst.msk [vmem:[%s1916 + $0x81] sm:$0xff] %vm434, %v1895
      %1929 = vst.msk [vmem:[%s1916 + $0x91] sm:$0xff] %vm434, %v1896
      %1930 = vst.msk [vmem:[%s1916 + $0x99] sm:$0xff] %vm434, %v1897
      %1931 = vst.msk [vmem:[%s1916 + $0xa9] sm:$0xff] %vm434, %v1898
      %1932 = vst.msk [vmem:[%s1916 + $0xb1] sm:$0xff] %vm434, %v1899
      %1933 = vst.msk [vmem:[%s1916 + $0xc1] sm:$0xff] %vm434, %v1900
      %1934 = vst.msk [vmem:[%s1916 + $0xc9] sm:$0xff] %vm434, %v1901
      %1935 = vst.msk [vmem:[%s1916 + $0xd9] sm:$0xff] %vm434, %v1902
      %1936 = vst.msk [vmem:[%s1916 + $0xe1] sm:$0xff] %vm434, %v1903
      %1937 = vst.msk [vmem:[%s1916 + $0xf1] sm:$0xff] %vm434, %v1904
      %1938 = vst.msk [vmem:[%s1916 + $0xf9] sm:$0xff] %vm434, %v1905
      %1939 = vst.msk [vmem:[%s1916 + $0x109] sm:$0xff] %vm434, %v1906
      %1940 = vst.msk [vmem:[%s1916 + $0x111] sm:$0xff] %vm434, %v1907
      %1941 = vst.msk [vmem:[%s1916 + $0x121] sm:$0xff] %vm434, %v1908
      %1942 = vst.msk [vmem:[%s1916 + $0x129] sm:$0xff] %vm434, %v1909
      %1943 = vst.msk [vmem:[%s1916 + $0x139] sm:$0xff] %vm434, %v1910
      %1944 = vst.msk [vmem:[%s1916 + $0x141] sm:$0xff] %vm434, %v1911
      %1945 = vst.msk [vmem:[%s1916 + $0x151] sm:$0xff] %vm434, %v1912
      %1946 = vst.msk [vmem:[%s1916 + $0x159] sm:$0xff] %vm434, %v1913
      %1947 = vst.msk [vmem:[%s1916 + $0x169] sm:$0xff] %vm434, %v1914
      %1948 = vst.msk [vmem:[%s1916 + $0x171] sm:$0xff] %vm434, %v1915
      %v1949 = vld [vmem:[%s9] sm:$0xf]
      %v1950 = vld [vmem:[%s10] sm:$0xf]
      %v1952 = vsel %vm434, %v1884, 0
      %v1955 = vsel %vm434, %v1885, 0
      %v1958 = vsel %vm434, %v1886, 0
      %v1961 = vsel %vm434, %v1887, 0
      %v1964 = vsel %vm434, %v1888, 0
      %v1967 = vsel %vm434, %v1889, 0
      %v1970 = vsel %vm434, %v1890, 0
      %v1973 = vsel %vm434, %v1891, 0
      %v1976 = vsel %vm434, %v1892, 0
      %v1979 = vsel %vm434, %v1893, 0
      %v1982 = vsel %vm434, %v1894, 0
      %v1985 = vsel %vm434, %v1895, 0
      %v1988 = vsel %vm434, %v1896, 0
      %v1991 = vsel %vm434, %v1897, 0
      %v1994 = vsel %vm434, %v1898, 0
      %v1997 = vsel %vm434, %v1899, 0
      %v2000 = vsel %vm434, %v1900, 0
      %v2003 = vsel %vm434, %v1901, 0
      %v2006 = vsel %vm434, %v1902, 0
      %v2009 = vsel %vm434, %v1903, 0
      %v2012 = vsel %vm434, %v1904, 0
      %v2015 = vsel %vm434, %v1905, 0
      %v2018 = vsel %vm434, %v1906, 0
      %v2021 = vsel %vm434, %v1907, 0
      %v2024 = vsel %vm434, %v1908, 0
      %v2027 = vsel %vm434, %v1909, 0
      %v2030 = vsel %vm434, %v1910, 0
      %v2033 = vsel %vm434, %v1911, 0
      %v2036 = vsel %vm434, %v1912, 0
      %v2039 = vsel %vm434, %v1913, 0
      %v2042 = vsel %vm434, %v1914, 0
      %v2045 = vsel %vm434, %v1915, 0
      %vm2047 = vcmask 1043456
      %v2049 = vsel %vm2047, %v1950, 0
      %2051 = vmatpush.msra.mxu0 0.0
      %2052 = vmatpush.msra.mxu0 0.0
      %2053 = vmatpush.msra.mxu0 0.0
      %2054 = vmatpush.msra.mxu0 0.0
      %2055 = vmatpush.msra.mxu0 0.0
      %2056 = vmatpush.msra.mxu0 0.0
      %2057 = vmatpush.msra.mxu0 0.0
      %2058 = vmatpush.msra.mxu0 0.0
      %2059 = vmatpush.msra.mxu0 0.0
      %2060 = vmatpush.msra.mxu0 0.0
      %2061 = vmatpush.msra.mxu0 0.0
      %2062 = vmatpush.msra.mxu0 0.0
      %2063 = vmatpush.msra.mxu0 0.0
      %2064 = vmatpush.msra.mxu0 0.0
      %2065 = vmatpush.msra.mxu0 0.0
      %2066 = vmatpush.msra.mxu0 %v2049
      %2067 = vmatmul.f32.gmra.mxu0 %v1952
      %v2068 = vpop.f32.mrf.mxu0
      %v2069 = vadd.f32 0.0, %v2068
      %2070 = vmatmul.f32.gmra.mxu0 %v1955
      %v2071 = vpop.f32.mrf.mxu0
      %v2072 = vadd.f32 0.0, %v2071
      %2073 = vmatmul.f32.gmra.mxu0 %v1958
      %v2074 = vpop.f32.mrf.mxu0
      %v2075 = vadd.f32 0.0, %v2074
      %2076 = vmatmul.f32.gmra.mxu0 %v1961
      %v2077 = vpop.f32.mrf.mxu0
      %v2078 = vadd.f32 0.0, %v2077
      %2079 = vmatmul.f32.gmra.mxu0 %v1964
      %v2080 = vpop.f32.mrf.mxu0
      %v2081 = vadd.f32 0.0, %v2080
      %2082 = vmatmul.f32.gmra.mxu0 %v1967
      %v2083 = vpop.f32.mrf.mxu0
      %v2084 = vadd.f32 0.0, %v2083
      %2085 = vmatmul.f32.gmra.mxu0 %v1970
      %v2086 = vpop.f32.mrf.mxu0
      %v2087 = vadd.f32 0.0, %v2086
      %2088 = vmatmul.f32.gmra.mxu0 %v1973
      %v2089 = vpop.f32.mrf.mxu0
      %v2090 = vadd.f32 0.0, %v2089
      %2091 = vmatmul.f32.gmra.mxu0 %v1976
      %v2092 = vpop.f32.mrf.mxu0
      %v2093 = vadd.f32 0.0, %v2092
      %2094 = vmatmul.f32.gmra.mxu0 %v1979
      %v2095 = vpop.f32.mrf.mxu0
      %v2096 = vadd.f32 0.0, %v2095
      %2097 = vmatmul.f32.gmra.mxu0 %v1982
      %v2098 = vpop.f32.mrf.mxu0
      %v2099 = vadd.f32 0.0, %v2098
      %2100 = vmatmul.f32.gmra.mxu0 %v1985
      %v2101 = vpop.f32.mrf.mxu0
      %v2102 = vadd.f32 0.0, %v2101
      %2103 = vmatmul.f32.gmra.mxu0 %v1988
      %v2104 = vpop.f32.mrf.mxu0
      %v2105 = vadd.f32 0.0, %v2104
      %2106 = vmatmul.f32.gmra.mxu0 %v1991
      %v2107 = vpop.f32.mrf.mxu0
      %v2108 = vadd.f32 0.0, %v2107
      %2109 = vmatmul.f32.gmra.mxu0 %v1994
      %v2110 = vpop.f32.mrf.mxu0
      %v2111 = vadd.f32 0.0, %v2110
      %2112 = vmatmul.f32.gmra.mxu0 %v1997
      %v2113 = vpop.f32.mrf.mxu0
      %v2114 = vadd.f32 0.0, %v2113
      %2115 = vmatmul.f32.gmra.mxu0 %v2000
      %v2116 = vpop.f32.mrf.mxu0
      %v2117 = vadd.f32 0.0, %v2116
      %2118 = vmatmul.f32.gmra.mxu0 %v2003
      %v2119 = vpop.f32.mrf.mxu0
      %v2120 = vadd.f32 0.0, %v2119
      %2121 = vmatmul.f32.gmra.mxu0 %v2006
      %v2122 = vpop.f32.mrf.mxu0
      %v2123 = vadd.f32 0.0, %v2122
      %2124 = vmatmul.f32.gmra.mxu0 %v2009
      %v2125 = vpop.f32.mrf.mxu0
      %v2126 = vadd.f32 0.0, %v2125
      %2127 = vmatmul.f32.gmra.mxu0 %v2012
      %v2128 = vpop.f32.mrf.mxu0
      %v2129 = vadd.f32 0.0, %v2128
      %2130 = vmatmul.f32.gmra.mxu0 %v2015
      %v2131 = vpop.f32.mrf.mxu0
      %v2132 = vadd.f32 0.0, %v2131
      %2133 = vmatmul.f32.gmra.mxu0 %v2018
      %v2134 = vpop.f32.mrf.mxu0
      %v2135 = vadd.f32 0.0, %v2134
      %2136 = vmatmul.f32.gmra.mxu0 %v2021
      %v2137 = vpop.f32.mrf.mxu0
      %v2138 = vadd.f32 0.0, %v2137
      %2139 = vmatmul.f32.gmra.mxu0 %v2024
      %v2140 = vpop.f32.mrf.mxu0
      %v2141 = vadd.f32 0.0, %v2140
      %2142 = vmatmul.f32.gmra.mxu0 %v2027
      %v2143 = vpop.f32.mrf.mxu0
      %v2144 = vadd.f32 0.0, %v2143
      %2145 = vmatmul.f32.gmra.mxu0 %v2030
      %v2146 = vpop.f32.mrf.mxu0
      %v2147 = vadd.f32 0.0, %v2146
      %2148 = vmatmul.f32.gmra.mxu0 %v2033
      %v2149 = vpop.f32.mrf.mxu0
      %v2150 = vadd.f32 0.0, %v2149
      %2151 = vmatmul.f32.gmra.mxu0 %v2036
      %v2152 = vpop.f32.mrf.mxu0
      %v2153 = vadd.f32 0.0, %v2152
      %2154 = vmatmul.f32.gmra.mxu0 %v2039
      %v2155 = vpop.f32.mrf.mxu0
      %v2156 = vadd.f32 0.0, %v2155
      %2157 = vmatmul.f32.gmra.mxu0 %v2042
      %v2158 = vpop.f32.mrf.mxu0
      %v2159 = vadd.f32 0.0, %v2158
      %2160 = vmatmul.f32.gmra.mxu0 %v2045
      %v2161 = vpop.f32.mrf.mxu0
      %v2162 = vadd.f32 0.0, %v2161
      %2163 = vdwg.mxu0
      %2164 = vst [vmem:[#allocation1] ss:$4 sm:$0xff] %v1002
      %s2165 = scalar_lea.vmem [#allocation1], 1
      %2166 = vst [vmem:[%s2165] ss:$4 sm:$0xff] %v1003
      %s2167 = scalar_lea.vmem [#allocation1], 2
      %2168 = vst [vmem:[%s2167] ss:$4 sm:$0xff] %v1004
      %s2169 = scalar_lea.vmem [#allocation1], 3
      %2170 = vst [vmem:[%s2169] ss:$4 sm:$0xff] %v1005
      %s2171 = scalar_lea.vmem [#allocation1], 32
      %2172 = vst [vmem:[%s2171] ss:$4 sm:$0xff] %v1006
      %s2173 = scalar_lea.vmem [#allocation1], 33
      %2174 = vst [vmem:[%s2173] ss:$4 sm:$0xff] %v1007
      %s2175 = scalar_lea.vmem [#allocation1], 34
      %2176 = vst [vmem:[%s2175] ss:$4 sm:$0xff] %v1008
      %s2177 = scalar_lea.vmem [#allocation1], 35
      %2178 = vst [vmem:[%s2177] ss:$4 sm:$0xff] %v1009
      %v2179 = vld.sshfl [vmem:[#allocation1] sm:$0xff pattern:$0x73625140]
      %v2180 = vld.sshfl [vmem:[#allocation1 + $0x20] sm:$0xff pattern:$0x73625140]
      %2181 = vst [vmem:[#allocation1] ss:$4 sm:$0xff] %v1460
      %2182 = vst [vmem:[%s2165] ss:$4 sm:$0xff] %v1461
      %2183 = vst [vmem:[%s2167] ss:$4 sm:$0xff] %v1462
      %2184 = vst [vmem:[%s2169] ss:$4 sm:$0xff] %v1463
      %2185 = vst [vmem:[%s2171] ss:$4 sm:$0xff] %v1464
      %2186 = vst [vmem:[%s2173] ss:$4 sm:$0xff] %v1465
      %2187 = vst [vmem:[%s2175] ss:$4 sm:$0xff] %v1466
      %2188 = vst [vmem:[%s2177] ss:$4 sm:$0xff] %v1467
      %v2189 = vld.sshfl [vmem:[#allocation1] sm:$0xff pattern:$0x73625140]
      %v2190 = vld.sshfl [vmem:[#allocation1 + $0x20] sm:$0xff pattern:$0x73625140]
      %2191 = vst [vmem:[#allocation1] ss:$4 sm:$0xff] %v1010
      %2192 = vst [vmem:[%s2165] ss:$4 sm:$0xff] %v1011
      %2193 = vst [vmem:[%s2167] ss:$4 sm:$0xff] %v1012
      %2194 = vst [vmem:[%s2169] ss:$4 sm:$0xff] %v1013
      %2195 = vst [vmem:[%s2171] ss:$4 sm:$0xff] %v1014
      %2196 = vst [vmem:[%s2173] ss:$4 sm:$0xff] %v1015
      %2197 = vst [vmem:[%s2175] ss:$4 sm:$0xff] %v1016
      %2198 = vst [vmem:[%s2177] ss:$4 sm:$0xff] %v1017
      %v2199 = vld.sshfl [vmem:[#allocation1] sm:$0xff pattern:$0x73625140]
      %v2200 = vld.sshfl [vmem:[#allocation1 + $0x20] sm:$0xff pattern:$0x73625140]
      %2201 = vst [vmem:[#allocation1] ss:$4 sm:$0xff] %v1468
      %2202 = vst [vmem:[%s2165] ss:$4 sm:$0xff] %v1469
      %2203 = vst [vmem:[%s2167] ss:$4 sm:$0xff] %v1470
      %2204 = vst [vmem:[%s2169] ss:$4 sm:$0xff] %v1471
      %2205 = vst [vmem:[%s2171] ss:$4 sm:$0xff] %v1472
      %2206 = vst [vmem:[%s2173] ss:$4 sm:$0xff] %v1473
      %2207 = vst [vmem:[%s2175] ss:$4 sm:$0xff] %v1474
      %2208 = vst [vmem:[%s2177] ss:$4 sm:$0xff] %v1475
      %v2209 = vld.sshfl [vmem:[#allocation1] sm:$0xff pattern:$0x73625140]
      %v2210 = vld.sshfl [vmem:[#allocation1 + $0x20] sm:$0xff pattern:$0x73625140]
      %2211 = vst [vmem:[#allocation1] ss:$4 sm:$0xff] %v1018
      %2212 = vst [vmem:[%s2165] ss:$4 sm:$0xff] %v1019
      %2213 = vst [vmem:[%s2167] ss:$4 sm:$0xff] %v1020
      %2214 = vst [vmem:[%s2169] ss:$4 sm:$0xff] %v1021
      %2215 = vst [vmem:[%s2171] ss:$4 sm:$0xff] %v1022
      %2216 = vst [vmem:[%s2173] ss:$4 sm:$0xff] %v1023
      %2217 = vst [vmem:[%s2175] ss:$4 sm:$0xff] %v1024
      %2218 = vst [vmem:[%s2177] ss:$4 sm:$0xff] %v1025
      %v2219 = vld.sshfl [vmem:[#allocation1] sm:$0xff pattern:$0x73625140]
      %v2220 = vld.sshfl [vmem:[#allocation1 + $0x20] sm:$0xff pattern:$0x73625140]
      %2221 = vst [vmem:[#allocation1] ss:$4 sm:$0xff] %v1476
      %2222 = vst [vmem:[%s2165] ss:$4 sm:$0xff] %v1477
      %2223 = vst [vmem:[%s2167] ss:$4 sm:$0xff] %v1478
      %2224 = vst [vmem:[%s2169] ss:$4 sm:$0xff] %v1479
      %2225 = vst [vmem:[%s2171] ss:$4 sm:$0xff] %v1480
      %2226 = vst [vmem:[%s2173] ss:$4 sm:$0xff] %v1481
      %2227 = vst [vmem:[%s2175] ss:$4 sm:$0xff] %v1482
      %2228 = vst [vmem:[%s2177] ss:$4 sm:$0xff] %v1483
      %v2229 = vld.sshfl [vmem:[#allocation1] sm:$0xff pattern:$0x73625140]
      %v2230 = vld.sshfl [vmem:[#allocation1 + $0x20] sm:$0xff pattern:$0x73625140]
      %2231 = vst [vmem:[#allocation1] ss:$4 sm:$0xff] %v1026
      %2232 = vst [vmem:[%s2165] ss:$4 sm:$0xff] %v1027
      %2233 = vst [vmem:[%s2167] ss:$4 sm:$0xff] %v1028
      %2234 = vst [vmem:[%s2169] ss:$4 sm:$0xff] %v1029
      %2235 = vst [vmem:[%s2171] ss:$4 sm:$0xff] %v1030
      %2236 = vst [vmem:[%s2173] ss:$4 sm:$0xff] %v1031
      %2237 = vst [vmem:[%s2175] ss:$4 sm:$0xff] %v1032
      %2238 = vst [vmem:[%s2177] ss:$4 sm:$0xff] %v1033
      %v2239 = vld.sshfl [vmem:[#allocation1] sm:$0xff pattern:$0x73625140]
      %v2240 = vld.sshfl [vmem:[#allocation1 + $0x20] sm:$0xff pattern:$0x73625140]
      %2241 = vst [vmem:[#allocation1] ss:$4 sm:$0xff] %v1484
      %2242 = vst [vmem:[%s2165] ss:$4 sm:$0xff] %v1485
      %2243 = vst [vmem:[%s2167] ss:$4 sm:$0xff] %v1486
      %2244 = vst [vmem:[%s2169] ss:$4 sm:$0xff] %v1487
      %2245 = vst [vmem:[%s2171] ss:$4 sm:$0xff] %v1488
      %2246 = vst [vmem:[%s2173] ss:$4 sm:$0xff] %v1489
      %2247 = vst [vmem:[%s2175] ss:$4 sm:$0xff] %v1490
      %2248 = vst [vmem:[%s2177] ss:$4 sm:$0xff] %v1491
      %v2249 = vld.sshfl [vmem:[#allocation1] sm:$0xff pattern:$0x73625140]
      %v2250 = vld.sshfl [vmem:[#allocation1 + $0x20] sm:$0xff pattern:$0x73625140]
      %2251 = vst [vmem:[#allocation1] ss:$4 sm:$0xff] %v1034
      %2252 = vst [vmem:[%s2165] ss:$4 sm:$0xff] %v1035
      %2253 = vst [vmem:[%s2167] ss:$4 sm:$0xff] %v1036
      %2254 = vst [vmem:[%s2169] ss:$4 sm:$0xff] %v1037
      %2255 = vst [vmem:[%s2171] ss:$4 sm:$0xff] %v1038
      %2256 = vst [vmem:[%s2173] ss:$4 sm:$0xff] %v1039
      %2257 = vst [vmem:[%s2175] ss:$4 sm:$0xff] %v1040
      %2258 = vst [vmem:[%s2177] ss:$4 sm:$0xff] %v1041
      %v2259 = vld.sshfl [vmem:[#allocation1] sm:$0xff pattern:$0x73625140]
      %v2260 = vld.sshfl [vmem:[#allocation1 + $0x20] sm:$0xff pattern:$0x73625140]
      %2261 = vst [vmem:[#allocation1] ss:$4 sm:$0xff] %v1492
      %2262 = vst [vmem:[%s2165] ss:$4 sm:$0xff] %v1493
      %2263 = vst [vmem:[%s2167] ss:$4 sm:$0xff] %v1494
      %2264 = vst [vmem:[%s2169] ss:$4 sm:$0xff] %v1495
      %2265 = vst [vmem:[%s2171] ss:$4 sm:$0xff] %v1496
      %2266 = vst [vmem:[%s2173] ss:$4 sm:$0xff] %v1497
      %2267 = vst [vmem:[%s2175] ss:$4 sm:$0xff] %v1498
      %2268 = vst [vmem:[%s2177] ss:$4 sm:$0xff] %v1499
      %v2269 = vld.sshfl [vmem:[#allocation1] sm:$0xff pattern:$0x73625140]
      %v2270 = vld.sshfl [vmem:[#allocation1 + $0x20] sm:$0xff pattern:$0x73625140]
      %2271 = vst [vmem:[#allocation1] ss:$4 sm:$0xff] %v1042
      %2272 = vst [vmem:[%s2165] ss:$4 sm:$0xff] %v1043
      %2273 = vst [vmem:[%s2167] ss:$4 sm:$0xff] %v1044
      %2274 = vst [vmem:[%s2169] ss:$4 sm:$0xff] %v1045
      %2275 = vst [vmem:[%s2171] ss:$4 sm:$0xff] %v1046
      %2276 = vst [vmem:[%s2173] ss:$4 sm:$0xff] %v1047
      %2277 = vst [vmem:[%s2175] ss:$4 sm:$0xff] %v1048
      %2278 = vst [vmem:[%s2177] ss:$4 sm:$0xff] %v1049
      %v2279 = vld.sshfl [vmem:[#allocation1] sm:$0xff pattern:$0x73625140]
      %v2280 = vld.sshfl [vmem:[#allocation1 + $0x20] sm:$0xff pattern:$0x73625140]
      %2281 = vst [vmem:[#allocation1] ss:$4 sm:$0xff] %v1500
      %2282 = vst [vmem:[%s2165] ss:$4 sm:$0xff] %v1501
      %2283 = vst [vmem:[%s2167] ss:$4 sm:$0xff] %v1502
      %2284 = vst [vmem:[%s2169] ss:$4 sm:$0xff] %v1503
      %2285 = vst [vmem:[%s2171] ss:$4 sm:$0xff] %v1504
      %2286 = vst [vmem:[%s2173] ss:$4 sm:$0xff] %v1505
      %2287 = vst [vmem:[%s2175] ss:$4 sm:$0xff] %v1506
      %2288 = vst [vmem:[%s2177] ss:$4 sm:$0xff] %v1507
      %v2289 = vld.sshfl [vmem:[#allocation1] sm:$0xff pattern:$0x73625140]
      %v2290 = vld.sshfl [vmem:[#allocation1 + $0x20] sm:$0xff pattern:$0x73625140]
      %2291 = vst [vmem:[#allocation1] ss:$4 sm:$0xff] %v1050
      %2292 = vst [vmem:[%s2165] ss:$4 sm:$0xff] %v1051
      %2293 = vst [vmem:[%s2167] ss:$4 sm:$0xff] %v1052
      %2294 = vst [vmem:[%s2169] ss:$4 sm:$0xff] %v1053
      %2295 = vst [vmem:[%s2171] ss:$4 sm:$0xff] %v1054
      %2296 = vst [vmem:[%s2173] ss:$4 sm:$0xff] %v1055
      %2297 = vst [vmem:[%s2175] ss:$4 sm:$0xff] %v1056
      %2298 = vst [vmem:[%s2177] ss:$4 sm:$0xff] %v1057
      %v2299 = vld.sshfl [vmem:[#allocation1] sm:$0xff pattern:$0x73625140]
      %v2300 = vld.sshfl [vmem:[#allocation1 + $0x20] sm:$0xff pattern:$0x73625140]
      %2301 = vst [vmem:[#allocation1] ss:$4 sm:$0xff] %v1508
      %2302 = vst [vmem:[%s2165] ss:$4 sm:$0xff] %v1509
      %2303 = vst [vmem:[%s2167] ss:$4 sm:$0xff] %v1510
      %2304 = vst [vmem:[%s2169] ss:$4 sm:$0xff] %v1511
      %2305 = vst [vmem:[%s2171] ss:$4 sm:$0xff] %v1512
      %2306 = vst [vmem:[%s2173] ss:$4 sm:$0xff] %v1513
      %2307 = vst [vmem:[%s2175] ss:$4 sm:$0xff] %v1514
      %2308 = vst [vmem:[%s2177] ss:$4 sm:$0xff] %v1515
      %v2309 = vld.sshfl [vmem:[#allocation1] sm:$0xff pattern:$0x73625140]
      %v2310 = vld.sshfl [vmem:[#allocation1 + $0x20] sm:$0xff pattern:$0x73625140]
      %2311 = vst [vmem:[#allocation1] ss:$4 sm:$0xff] %v1058
      %2312 = vst [vmem:[%s2165] ss:$4 sm:$0xff] %v1059
      %2313 = vst [vmem:[%s2167] ss:$4 sm:$0xff] %v1060
      %2314 = vst [vmem:[%s2169] ss:$4 sm:$0xff] %v1061
      %2315 = vst [vmem:[%s2171] ss:$4 sm:$0xff] %v1062
      %2316 = vst [vmem:[%s2173] ss:$4 sm:$0xff] %v1063
      %2317 = vst [vmem:[%s2175] ss:$4 sm:$0xff] %v1064
      %2318 = vst [vmem:[%s2177] ss:$4 sm:$0xff] %v1065
      %v2319 = vld.sshfl [vmem:[#allocation1] sm:$0xff pattern:$0x73625140]
      %v2320 = vld.sshfl [vmem:[#allocation1 + $0x20] sm:$0xff pattern:$0x73625140]
      %2321 = vst [vmem:[#allocation1] ss:$4 sm:$0xff] %v1516
      %2322 = vst [vmem:[%s2165] ss:$4 sm:$0xff] %v1517
      %2323 = vst [vmem:[%s2167] ss:$4 sm:$0xff] %v1518
      %2324 = vst [vmem:[%s2169] ss:$4 sm:$0xff] %v1519
      %2325 = vst [vmem:[%s2171] ss:$4 sm:$0xff] %v1520
      %2326 = vst [vmem:[%s2173] ss:$4 sm:$0xff] %v1521
      %2327 = vst [vmem:[%s2175] ss:$4 sm:$0xff] %v1522
      %2328 = vst [vmem:[%s2177] ss:$4 sm:$0xff] %v1523
      %v2329 = vld.sshfl [vmem:[#allocation1] sm:$0xff pattern:$0x73625140]
      %v2330 = vld.sshfl [vmem:[#allocation1 + $0x20] sm:$0xff pattern:$0x73625140]
      %v2331 = vsel %vm434, %v2179, 0
      %v2333 = vsel %vm434, %v2180, 0
      %v2335 = vsel %vm434, %v2189, 0
      %v2337 = vsel %vm434, %v2190, 0
      %v2339 = vsel %vm434, %v2199, 0
      %v2341 = vsel %vm434, %v2200, 0
      %v2343 = vsel %vm434, %v2209, 0
      %v2345 = vsel %vm434, %v2210, 0
      %v2347 = vsel %vm434, %v2219, 0
      %v2349 = vsel %vm434, %v2220, 0
      %v2351 = vsel %vm434, %v2229, 0
      %v2353 = vsel %vm434, %v2230, 0
      %v2355 = vsel %vm434, %v2239, 0
      %v2357 = vsel %vm434, %v2240, 0
      %v2359 = vsel %vm434, %v2249, 0
      %v2361 = vsel %vm434, %v2250, 0
      %v2363 = vsel %vm434, %v2259, 0
      %v2365 = vsel %vm434, %v2260, 0
      %v2367 = vsel %vm434, %v2269, 0
      %v2369 = vsel %vm434, %v2270, 0
      %v2371 = vsel %vm434, %v2279, 0
      %v2373 = vsel %vm434, %v2280, 0
      %v2375 = vsel %vm434, %v2289, 0
      %v2377 = vsel %vm434, %v2290, 0
      %v2379 = vsel %vm434, %v2299, 0
      %v2381 = vsel %vm434, %v2300, 0
      %v2383 = vsel %vm434, %v2309, 0
      %v2385 = vsel %vm434, %v2310, 0
      %v2387 = vsel %vm434, %v2319, 0
      %v2389 = vsel %vm434, %v2320, 0
      %v2391 = vsel %vm434, %v2329, 0
      %v2393 = vsel %vm434, %v2330, 0
      %v2396 = vsel %vm2047, %v1949, 0
      %2398 = vmatpush.msra.mxu0 0.0
      %2399 = vmatpush.msra.mxu0 0.0
      %2400 = vmatpush.msra.mxu0 0.0
      %2401 = vmatpush.msra.mxu0 0.0
      %2402 = vmatpush.msra.mxu0 0.0
      %2403 = vmatpush.msra.mxu0 0.0
      %2404 = vmatpush.msra.mxu0 0.0
      %2405 = vmatpush.msra.mxu0 0.0
      %2406 = vmatpush.msra.mxu0 0.0
      %2407 = vmatpush.msra.mxu0 0.0
      %2408 = vmatpush.msra.mxu0 0.0
      %2409 = vmatpush.msra.mxu0 0.0
      %2410 = vmatpush.msra.mxu0 0.0
      %2411 = vmatpush.msra.mxu0 0.0
      %2412 = vmatpush.msra.mxu0 0.0
      %2413 = vmatpush.msra.mxu0 %v2396
      %2414 = vmatmul.f32.gmra.mxu0 %v2331
      %v2415 = vpop.f32.mrf.mxu0
      %v2416 = vadd.f32 %v2069, %v2415
      %2417 = vmatmul.f32.gmra.mxu0 %v2333
      %v2418 = vpop.f32.mrf.mxu0
      %v2419 = vadd.f32 %v2072, %v2418
      %2420 = vmatmul.f32.gmra.mxu0 %v2335
      %v2421 = vpop.f32.mrf.mxu0
      %v2422 = vadd.f32 %v2075, %v2421
      %2423 = vmatmul.f32.gmra.mxu0 %v2337
      %v2424 = vpop.f32.mrf.mxu0
      %v2425 = vadd.f32 %v2078, %v2424
      %2426 = vmatmul.f32.gmra.mxu0 %v2339
      %v2427 = vpop.f32.mrf.mxu0
      %v2428 = vadd.f32 %v2081, %v2427
      %2429 = vmatmul.f32.gmra.mxu0 %v2341
      %v2430 = vpop.f32.mrf.mxu0
      %v2431 = vadd.f32 %v2084, %v2430
      %2432 = vmatmul.f32.gmra.mxu0 %v2343
      %v2433 = vpop.f32.mrf.mxu0
      %v2434 = vadd.f32 %v2087, %v2433
      %2435 = vmatmul.f32.gmra.mxu0 %v2345
      %v2436 = vpop.f32.mrf.mxu0
      %v2437 = vadd.f32 %v2090, %v2436
      %2438 = vmatmul.f32.gmra.mxu0 %v2347
      %v2439 = vpop.f32.mrf.mxu0
      %v2440 = vadd.f32 %v2093, %v2439
      %2441 = vmatmul.f32.gmra.mxu0 %v2349
      %v2442 = vpop.f32.mrf.mxu0
      %v2443 = vadd.f32 %v2096, %v2442
      %2444 = vmatmul.f32.gmra.mxu0 %v2351
      %v2445 = vpop.f32.mrf.mxu0
      %v2446 = vadd.f32 %v2099, %v2445
      %2447 = vmatmul.f32.gmra.mxu0 %v2353
      %v2448 = vpop.f32.mrf.mxu0
      %v2449 = vadd.f32 %v2102, %v2448
      %2450 = vmatmul.f32.gmra.mxu0 %v2355
      %v2451 = vpop.f32.mrf.mxu0
      %v2452 = vadd.f32 %v2105, %v2451
      %2453 = vmatmul.f32.gmra.mxu0 %v2357
      %v2454 = vpop.f32.mrf.mxu0
      %v2455 = vadd.f32 %v2108, %v2454
      %2456 = vmatmul.f32.gmra.mxu0 %v2359
      %v2457 = vpop.f32.mrf.mxu0
      %v2458 = vadd.f32 %v2111, %v2457
      %2459 = vmatmul.f32.gmra.mxu0 %v2361
      %v2460 = vpop.f32.mrf.mxu0
      %v2461 = vadd.f32 %v2114, %v2460
      %2462 = vmatmul.f32.gmra.mxu0 %v2363
      %v2463 = vpop.f32.mrf.mxu0
      %v2464 = vadd.f32 %v2117, %v2463
      %2465 = vmatmul.f32.gmra.mxu0 %v2365
      %v2466 = vpop.f32.mrf.mxu0
      %v2467 = vadd.f32 %v2120, %v2466
      %2468 = vmatmul.f32.gmra.mxu0 %v2367
      %v2469 = vpop.f32.mrf.mxu0
      %v2470 = vadd.f32 %v2123, %v2469
      %2471 = vmatmul.f32.gmra.mxu0 %v2369
      %v2472 = vpop.f32.mrf.mxu0
      %v2473 = vadd.f32 %v2126, %v2472
      %2474 = vmatmul.f32.gmra.mxu0 %v2371
      %v2475 = vpop.f32.mrf.mxu0
      %v2476 = vadd.f32 %v2129, %v2475
      %2477 = vmatmul.f32.gmra.mxu0 %v2373
      %v2478 = vpop.f32.mrf.mxu0
      %v2479 = vadd.f32 %v2132, %v2478
      %2480 = vmatmul.f32.gmra.mxu0 %v2375
      %v2481 = vpop.f32.mrf.mxu0
      %v2482 = vadd.f32 %v2135, %v2481
      %2483 = vmatmul.f32.gmra.mxu0 %v2377
      %v2484 = vpop.f32.mrf.mxu0
      %v2485 = vadd.f32 %v2138, %v2484
      %2486 = vmatmul.f32.gmra.mxu0 %v2379
      %v2487 = vpop.f32.mrf.mxu0
      %v2488 = vadd.f32 %v2141, %v2487
      %2489 = vmatmul.f32.gmra.mxu0 %v2381
      %v2490 = vpop.f32.mrf.mxu0
      %v2491 = vadd.f32 %v2144, %v2490
      %2492 = vmatmul.f32.gmra.mxu0 %v2383
      %v2493 = vpop.f32.mrf.mxu0
      %v2494 = vadd.f32 %v2147, %v2493
      %2495 = vmatmul.f32.gmra.mxu0 %v2385
      %v2496 = vpop.f32.mrf.mxu0
      %v2497 = vadd.f32 %v2150, %v2496
      %2498 = vmatmul.f32.gmra.mxu0 %v2387
      %v2499 = vpop.f32.mrf.mxu0
      %v2500 = vadd.f32 %v2153, %v2499
      %2501 = vmatmul.f32.gmra.mxu0 %v2389
      %v2502 = vpop.f32.mrf.mxu0
      %v2503 = vadd.f32 %v2156, %v2502
      %2504 = vmatmul.f32.gmra.mxu0 %v2391
      %v2505 = vpop.f32.mrf.mxu0
      %v2506 = vadd.f32 %v2159, %v2505
      %2507 = vmatmul.f32.gmra.mxu0 %v2393
      %v2508 = vpop.f32.mrf.mxu0
      %v2509 = vadd.f32 %v2162, %v2508
      %2510 = vdwg.mxu0
      %v2511 = vld [vmem:[%s11] sm:$0x1]
      %v2513 = vperm.slane %v2511, 0
      %v2515 = vadd.f32 %v2416, %v2513
      %v2516 = vadd.f32 %v2419, %v2513
      %v2517 = vadd.f32 %v2422, %v2513
      %v2518 = vadd.f32 %v2425, %v2513
      %v2519 = vadd.f32 %v2428, %v2513
      %v2520 = vadd.f32 %v2431, %v2513
      %v2521 = vadd.f32 %v2434, %v2513
      %v2522 = vadd.f32 %v2437, %v2513
      %v2523 = vadd.f32 %v2440, %v2513
      %v2524 = vadd.f32 %v2443, %v2513
      %v2525 = vadd.f32 %v2446, %v2513
      %v2526 = vadd.f32 %v2449, %v2513
      %v2527 = vadd.f32 %v2452, %v2513
      %v2528 = vadd.f32 %v2455, %v2513
      %v2529 = vadd.f32 %v2458, %v2513
      %v2530 = vadd.f32 %v2461, %v2513
      %v2531 = vadd.f32 %v2464, %v2513
      %v2532 = vadd.f32 %v2467, %v2513
      %v2533 = vadd.f32 %v2470, %v2513
      %v2534 = vadd.f32 %v2473, %v2513
      %v2535 = vadd.f32 %v2476, %v2513
      %v2536 = vadd.f32 %v2479, %v2513
      %v2537 = vadd.f32 %v2482, %v2513
      %v2538 = vadd.f32 %v2485, %v2513
      %v2539 = vadd.f32 %v2488, %v2513
      %v2540 = vadd.f32 %v2491, %v2513
      %v2541 = vadd.f32 %v2494, %v2513
      %v2542 = vadd.f32 %v2497, %v2513
      %v2543 = vadd.f32 %v2500, %v2513
      %v2544 = vadd.f32 %v2503, %v2513
      %v2545 = vadd.f32 %v2506, %v2513
      %v2546 = vadd.f32 %v2509, %v2513
      %v2547 = vld [vmem:[%s4] sm:$0xf]
      %v2548 = vld [vmem:[%s4 + $0x4] sm:$0xf]
      %v2549 = vld [vmem:[%s4 + $0x8] sm:$0xf]
      %v2550 = vld [vmem:[%s4 + $0xc] sm:$0xf]
      %v2551 = vld [vmem:[%s4 + $0x10] sm:$0xf]
      %v2552 = vld [vmem:[%s4 + $0x14] sm:$0xf]
      %v2553 = vld [vmem:[%s4 + $0x18] sm:$0xf]
      %v2554 = vld [vmem:[%s4 + $0x1c] sm:$0xf]
      %v2555 = vld [vmem:[%s4 + $0x20] sm:$0xf]
      %v2556 = vld [vmem:[#allocation2] sm:$0xff]
      %v2557 = vld [vmem:[#allocation2 + $0x8] sm:$0xff]
      %v2558 = vld [vmem:[#allocation2 + $0x18] sm:$0xff]
      %v2559 = vld [vmem:[#allocation2 + $0x20] sm:$0xff]
      %v2560 = vld [vmem:[#allocation2 + $0x30] sm:$0xff]
      %v2561 = vld [vmem:[#allocation2 + $0x38] sm:$0xff]
      %v2562 = vld [vmem:[#allocation2 + $0x48] sm:$0xff]
      %v2563 = vld [vmem:[#allocation2 + $0x50] sm:$0xff]
      %v2564 = vld [vmem:[#allocation2 + $0x60] sm:$0xff]
      %v2565 = vld [vmem:[#allocation2 + $0x68] sm:$0xff]
      %v2566 = vld [vmem:[#allocation2 + $0x78] sm:$0xff]
      %v2567 = vld [vmem:[#allocation2 + $0x80] sm:$0xff]
      %v2568 = vld [vmem:[#allocation2 + $0x90] sm:$0xff]
      %v2569 = vld [vmem:[#allocation2 + $0x98] sm:$0xff]
      %v2570 = vld [vmem:[#allocation2 + $0xa8] sm:$0xff]
      %v2571 = vld [vmem:[#allocation2 + $0xb0] sm:$0xff]
      %v2572 = vld [vmem:[#allocation2 + $0xc0] sm:$0xff]
      %v2573 = vld [vmem:[#allocation2 + $0xc8] sm:$0xff]
      %v2574 = vld [vmem:[#allocation2 + $0xd8] sm:$0xff]
      %v2575 = vld [vmem:[#allocation2 + $0xe0] sm:$0xff]
      %v2576 = vld [vmem:[#allocation2 + $0xf0] sm:$0xff]
      %v2577 = vld [vmem:[#allocation2 + $0xf8] sm:$0xff]
      %v2578 = vld [vmem:[#allocation2 + $0x108] sm:$0xff]
      %v2579 = vld [vmem:[#allocation2 + $0x110] sm:$0xff]
      %v2580 = vld [vmem:[#allocation2 + $0x120] sm:$0xff]
      %v2581 = vld [vmem:[#allocation2 + $0x128] sm:$0xff]
      %v2582 = vld [vmem:[#allocation2 + $0x138] sm:$0xff]
      %v2583 = vld [vmem:[#allocation2 + $0x140] sm:$0xff]
      %v2584 = vld [vmem:[#allocation2 + $0x150] sm:$0xff]
      %v2585 = vld [vmem:[#allocation2 + $0x158] sm:$0xff]
      %v2586 = vld [vmem:[#allocation2 + $0x168] sm:$0xff]
      %v2587 = vld [vmem:[#allocation2 + $0x170] sm:$0xff]
      %v2588 = vld [vmem:[#allocation2 + $0x1] sm:$0xff]
      %v2589 = vld [vmem:[#allocation2 + $0x9] sm:$0xff]
      %v2590 = vld [vmem:[#allocation2 + $0x19] sm:$0xff]
      %v2591 = vld [vmem:[#allocation2 + $0x21] sm:$0xff]
      %v2592 = vld [vmem:[#allocation2 + $0x31] sm:$0xff]
      %v2593 = vld [vmem:[#allocation2 + $0x39] sm:$0xff]
      %v2594 = vld [vmem:[#allocation2 + $0x49] sm:$0xff]
      %v2595 = vld [vmem:[#allocation2 + $0x51] sm:$0xff]
      %v2596 = vld [vmem:[#allocation2 + $0x61] sm:$0xff]
      %v2597 = vld [vmem:[#allocation2 + $0x69] sm:$0xff]
      %v2598 = vld [vmem:[#allocation2 + $0x79] sm:$0xff]
      %v2599 = vld [vmem:[#allocation2 + $0x81] sm:$0xff]
      %v2600 = vld [vmem:[#allocation2 + $0x91] sm:$0xff]
      %v2601 = vld [vmem:[#allocation2 + $0x99] sm:$0xff]
      %v2602 = vld [vmem:[#allocation2 + $0xa9] sm:$0xff]
      %v2603 = vld [vmem:[#allocation2 + $0xb1] sm:$0xff]
      %v2604 = vld [vmem:[#allocation2 + $0xc1] sm:$0xff]
      %v2605 = vld [vmem:[#allocation2 + $0xc9] sm:$0xff]
      %v2606 = vld [vmem:[#allocation2 + $0xd9] sm:$0xff]
      %v2607 = vld [vmem:[#allocation2 + $0xe1] sm:$0xff]
      %v2608 = vld [vmem:[#allocation2 + $0xf1] sm:$0xff]
      %v2609 = vld [vmem:[#allocation2 + $0xf9] sm:$0xff]
      %v2610 = vld [vmem:[#allocation2 + $0x109] sm:$0xff]
      %v2611 = vld [vmem:[#allocation2 + $0x111] sm:$0xff]
      %v2612 = vld [vmem:[#allocation2 + $0x121] sm:$0xff]
      %v2613 = vld [vmem:[#allocation2 + $0x129] sm:$0xff]
      %v2614 = vld [vmem:[#allocation2 + $0x139] sm:$0xff]
      %v2615 = vld [vmem:[#allocation2 + $0x141] sm:$0xff]
      %v2616 = vld [vmem:[#allocation2 + $0x151] sm:$0xff]
      %v2617 = vld [vmem:[#allocation2 + $0x159] sm:$0xff]
      %v2618 = vld [vmem:[#allocation2 + $0x169] sm:$0xff]
      %v2619 = vld [vmem:[#allocation2 + $0x171] sm:$0xff]
      %v2621 = vsel %vm434, %v2588, 0
      %v2624 = vsel %vm434, %v2589, 0
      %v2627 = vsel %vm434, %v2590, 0
      %v2630 = vsel %vm434, %v2591, 0
      %v2633 = vsel %vm434, %v2592, 0
      %v2636 = vsel %vm434, %v2593, 0
      %v2639 = vsel %vm434, %v2594, 0
      %v2642 = vsel %vm434, %v2595, 0
      %v2645 = vsel %vm434, %v2596, 0
      %v2648 = vsel %vm434, %v2597, 0
      %v2651 = vsel %vm434, %v2598, 0
      %v2654 = vsel %vm434, %v2599, 0
      %v2657 = vsel %vm434, %v2600, 0
      %v2660 = vsel %vm434, %v2601, 0
      %v2663 = vsel %vm434, %v2602, 0
      %v2666 = vsel %vm434, %v2603, 0
      %v2669 = vsel %vm434, %v2604, 0
      %v2672 = vsel %vm434, %v2605, 0
      %v2675 = vsel %vm434, %v2606, 0
      %v2678 = vsel %vm434, %v2607, 0
      %v2681 = vsel %vm434, %v2608, 0
      %v2684 = vsel %vm434, %v2609, 0
      %v2687 = vsel %vm434, %v2610, 0
      %v2690 = vsel %vm434, %v2611, 0
      %v2693 = vsel %vm434, %v2612, 0
      %v2696 = vsel %vm434, %v2613, 0
      %v2699 = vsel %vm434, %v2614, 0
      %v2702 = vsel %vm434, %v2615, 0
      %v2705 = vsel %vm434, %v2616, 0
      %v2708 = vsel %vm434, %v2617, 0
      %v2711 = vsel %vm434, %v2618, 0
      %v2714 = vsel %vm434, %v2619, 0
      %v2717 = vsel %vm2047, %v2548, 0
      %2719 = vmatpush.msra.mxu0 0.0
      %2720 = vmatpush.msra.mxu0 0.0
      %2721 = vmatpush.msra.mxu0 0.0
      %2722 = vmatpush.msra.mxu0 0.0
      %2723 = vmatpush.msra.mxu0 0.0
      %2724 = vmatpush.msra.mxu0 0.0
      %2725 = vmatpush.msra.mxu0 0.0
      %2726 = vmatpush.msra.mxu0 0.0
      %2727 = vmatpush.msra.mxu0 0.0
      %2728 = vmatpush.msra.mxu0 0.0
      %2729 = vmatpush.msra.mxu0 0.0
      %2730 = vmatpush.msra.mxu0 0.0
      %2731 = vmatpush.msra.mxu0 0.0
      %2732 = vmatpush.msra.mxu0 0.0
      %2733 = vmatpush.msra.mxu0 0.0
      %2734 = vmatpush.msra.mxu0 %v2717
      %2735 = vmatmul.f32.gmra.mxu0 %v2621
      %v2736 = vpop.f32.mrf.mxu0
      %v2737 = vadd.f32 0.0, %v2736
      %2738 = vmatmul.f32.gmra.mxu0 %v2624
      %v2739 = vpop.f32.mrf.mxu0
      %v2740 = vadd.f32 0.0, %v2739
      %2741 = vmatmul.f32.gmra.mxu0 %v2627
      %v2742 = vpop.f32.mrf.mxu0
      %v2743 = vadd.f32 0.0, %v2742
      %2744 = vmatmul.f32.gmra.mxu0 %v2630
      %v2745 = vpop.f32.mrf.mxu0
      %v2746 = vadd.f32 0.0, %v2745
      %2747 = vmatmul.f32.gmra.mxu0 %v2633
      %v2748 = vpop.f32.mrf.mxu0
      %v2749 = vadd.f32 0.0, %v2748
      %2750 = vmatmul.f32.gmra.mxu0 %v2636
      %v2751 = vpop.f32.mrf.mxu0
      %v2752 = vadd.f32 0.0, %v2751
      %2753 = vmatmul.f32.gmra.mxu0 %v2639
      %v2754 = vpop.f32.mrf.mxu0
      %v2755 = vadd.f32 0.0, %v2754
      %2756 = vmatmul.f32.gmra.mxu0 %v2642
      %v2757 = vpop.f32.mrf.mxu0
      %v2758 = vadd.f32 0.0, %v2757
      %2759 = vmatmul.f32.gmra.mxu0 %v2645
      %v2760 = vpop.f32.mrf.mxu0
      %v2761 = vadd.f32 0.0, %v2760
      %2762 = vmatmul.f32.gmra.mxu0 %v2648
      %v2763 = vpop.f32.mrf.mxu0
      %v2764 = vadd.f32 0.0, %v2763
      %2765 = vmatmul.f32.gmra.mxu0 %v2651
      %v2766 = vpop.f32.mrf.mxu0
      %v2767 = vadd.f32 0.0, %v2766
      %2768 = vmatmul.f32.gmra.mxu0 %v2654
      %v2769 = vpop.f32.mrf.mxu0
      %v2770 = vadd.f32 0.0, %v2769
      %2771 = vmatmul.f32.gmra.mxu0 %v2657
      %v2772 = vpop.f32.mrf.mxu0
      %v2773 = vadd.f32 0.0, %v2772
      %2774 = vmatmul.f32.gmra.mxu0 %v2660
      %v2775 = vpop.f32.mrf.mxu0
      %v2776 = vadd.f32 0.0, %v2775
      %2777 = vmatmul.f32.gmra.mxu0 %v2663
      %v2778 = vpop.f32.mrf.mxu0
      %v2779 = vadd.f32 0.0, %v2778
      %2780 = vmatmul.f32.gmra.mxu0 %v2666
      %v2781 = vpop.f32.mrf.mxu0
      %v2782 = vadd.f32 0.0, %v2781
      %2783 = vmatmul.f32.gmra.mxu0 %v2669
      %v2784 = vpop.f32.mrf.mxu0
      %v2785 = vadd.f32 0.0, %v2784
      %2786 = vmatmul.f32.gmra.mxu0 %v2672
      %v2787 = vpop.f32.mrf.mxu0
      %v2788 = vadd.f32 0.0, %v2787
      %2789 = vmatmul.f32.gmra.mxu0 %v2675
      %v2790 = vpop.f32.mrf.mxu0
      %v2791 = vadd.f32 0.0, %v2790
      %2792 = vmatmul.f32.gmra.mxu0 %v2678
      %v2793 = vpop.f32.mrf.mxu0
      %v2794 = vadd.f32 0.0, %v2793
      %2795 = vmatmul.f32.gmra.mxu0 %v2681
      %v2796 = vpop.f32.mrf.mxu0
      %v2797 = vadd.f32 0.0, %v2796
      %2798 = vmatmul.f32.gmra.mxu0 %v2684
      %v2799 = vpop.f32.mrf.mxu0
      %v2800 = vadd.f32 0.0, %v2799
      %2801 = vmatmul.f32.gmra.mxu0 %v2687
      %v2802 = vpop.f32.mrf.mxu0
      %v2803 = vadd.f32 0.0, %v2802
      %2804 = vmatmul.f32.gmra.mxu0 %v2690
      %v2805 = vpop.f32.mrf.mxu0
      %v2806 = vadd.f32 0.0, %v2805
      %2807 = vmatmul.f32.gmra.mxu0 %v2693
      %v2808 = vpop.f32.mrf.mxu0
      %v2809 = vadd.f32 0.0, %v2808
      %2810 = vmatmul.f32.gmra.mxu0 %v2696
      %v2811 = vpop.f32.mrf.mxu0
      %v2812 = vadd.f32 0.0, %v2811
      %2813 = vmatmul.f32.gmra.mxu0 %v2699
      %v2814 = vpop.f32.mrf.mxu0
      %v2815 = vadd.f32 0.0, %v2814
      %2816 = vmatmul.f32.gmra.mxu0 %v2702
      %v2817 = vpop.f32.mrf.mxu0
      %v2818 = vadd.f32 0.0, %v2817
      %2819 = vmatmul.f32.gmra.mxu0 %v2705
      %v2820 = vpop.f32.mrf.mxu0
      %v2821 = vadd.f32 0.0, %v2820
      %2822 = vmatmul.f32.gmra.mxu0 %v2708
      %v2823 = vpop.f32.mrf.mxu0
      %v2824 = vadd.f32 0.0, %v2823
      %2825 = vmatmul.f32.gmra.mxu0 %v2711
      %v2826 = vpop.f32.mrf.mxu0
      %v2827 = vadd.f32 0.0, %v2826
      %2828 = vmatmul.f32.gmra.mxu0 %v2714
      %v2829 = vpop.f32.mrf.mxu0
      %v2830 = vadd.f32 0.0, %v2829
      %2831 = vdwg.mxu0
      %v2833 = vsel %vm434, %v2556, 0
      %v2836 = vsel %vm434, %v2557, 0
      %v2839 = vsel %vm434, %v2558, 0
      %v2842 = vsel %vm434, %v2559, 0
      %v2845 = vsel %vm434, %v2560, 0
      %v2848 = vsel %vm434, %v2561, 0
      %v2851 = vsel %vm434, %v2562, 0
      %v2854 = vsel %vm434, %v2563, 0
      %v2857 = vsel %vm434, %v2564, 0
      %v2860 = vsel %vm434, %v2565, 0
      %v2863 = vsel %vm434, %v2566, 0
      %v2866 = vsel %vm434, %v2567, 0
      %v2869 = vsel %vm434, %v2568, 0
      %v2872 = vsel %vm434, %v2569, 0
      %v2875 = vsel %vm434, %v2570, 0
      %v2878 = vsel %vm434, %v2571, 0
      %v2881 = vsel %vm434, %v2572, 0
      %v2884 = vsel %vm434, %v2573, 0
      %v2887 = vsel %vm434, %v2574, 0
      %v2890 = vsel %vm434, %v2575, 0
      %v2893 = vsel %vm434, %v2576, 0
      %v2896 = vsel %vm434, %v2577, 0
      %v2899 = vsel %vm434, %v2578, 0
      %v2902 = vsel %vm434, %v2579, 0
      %v2905 = vsel %vm434, %v2580, 0
      %v2908 = vsel %vm434, %v2581, 0
      %v2911 = vsel %vm434, %v2582, 0
      %v2914 = vsel %vm434, %v2583, 0
      %v2917 = vsel %vm434, %v2584, 0
      %v2920 = vsel %vm434, %v2585, 0
      %v2923 = vsel %vm434, %v2586, 0
      %v2926 = vsel %vm434, %v2587, 0
      %v2929 = vsel %vm2047, %v2547, 0
      %2931 = vmatpush.msra.mxu0 0.0
      %2932 = vmatpush.msra.mxu0 0.0
      %2933 = vmatpush.msra.mxu0 0.0
      %2934 = vmatpush.msra.mxu0 0.0
      %2935 = vmatpush.msra.mxu0 0.0
      %2936 = vmatpush.msra.mxu0 0.0
      %2937 = vmatpush.msra.mxu0 0.0
      %2938 = vmatpush.msra.mxu0 0.0
      %2939 = vmatpush.msra.mxu0 0.0
      %2940 = vmatpush.msra.mxu0 0.0
      %2941 = vmatpush.msra.mxu0 0.0
      %2942 = vmatpush.msra.mxu0 0.0
      %2943 = vmatpush.msra.mxu0 0.0
      %2944 = vmatpush.msra.mxu0 0.0
      %2945 = vmatpush.msra.mxu0 0.0
      %2946 = vmatpush.msra.mxu0 %v2929
      %2947 = vmatmul.f32.gmra.mxu0 %v2833
      %v2948 = vpop.f32.mrf.mxu0
      %v2949 = vadd.f32 %v2737, %v2948
      %2950 = vmatmul.f32.gmra.mxu0 %v2836
      %v2951 = vpop.f32.mrf.mxu0
      %v2952 = vadd.f32 %v2740, %v2951
      %2953 = vmatmul.f32.gmra.mxu0 %v2839
      %v2954 = vpop.f32.mrf.mxu0
      %v2955 = vadd.f32 %v2743, %v2954
      %2956 = vmatmul.f32.gmra.mxu0 %v2842
      %v2957 = vpop.f32.mrf.mxu0
      %v2958 = vadd.f32 %v2746, %v2957
      %2959 = vmatmul.f32.gmra.mxu0 %v2845
      %v2960 = vpop.f32.mrf.mxu0
      %v2961 = vadd.f32 %v2749, %v2960
      %2962 = vmatmul.f32.gmra.mxu0 %v2848
      %v2963 = vpop.f32.mrf.mxu0
      %v2964 = vadd.f32 %v2752, %v2963
      %2965 = vmatmul.f32.gmra.mxu0 %v2851
      %v2966 = vpop.f32.mrf.mxu0
      %v2967 = vadd.f32 %v2755, %v2966
      %2968 = vmatmul.f32.gmra.mxu0 %v2854
      %v2969 = vpop.f32.mrf.mxu0
      %v2970 = vadd.f32 %v2758, %v2969
      %2971 = vmatmul.f32.gmra.mxu0 %v2857
      %v2972 = vpop.f32.mrf.mxu0
      %v2973 = vadd.f32 %v2761, %v2972
      %2974 = vmatmul.f32.gmra.mxu0 %v2860
      %v2975 = vpop.f32.mrf.mxu0
      %v2976 = vadd.f32 %v2764, %v2975
      %2977 = vmatmul.f32.gmra.mxu0 %v2863
      %v2978 = vpop.f32.mrf.mxu0
      %v2979 = vadd.f32 %v2767, %v2978
      %2980 = vmatmul.f32.gmra.mxu0 %v2866
      %v2981 = vpop.f32.mrf.mxu0
      %v2982 = vadd.f32 %v2770, %v2981
      %2983 = vmatmul.f32.gmra.mxu0 %v2869
      %v2984 = vpop.f32.mrf.mxu0
      %v2985 = vadd.f32 %v2773, %v2984
      %2986 = vmatmul.f32.gmra.mxu0 %v2872
      %v2987 = vpop.f32.mrf.mxu0
      %v2988 = vadd.f32 %v2776, %v2987
      %2989 = vmatmul.f32.gmra.mxu0 %v2875
      %v2990 = vpop.f32.mrf.mxu0
      %v2991 = vadd.f32 %v2779, %v2990
      %2992 = vmatmul.f32.gmra.mxu0 %v2878
      %v2993 = vpop.f32.mrf.mxu0
      %v2994 = vadd.f32 %v2782, %v2993
      %2995 = vmatmul.f32.gmra.mxu0 %v2881
      %v2996 = vpop.f32.mrf.mxu0
      %v2997 = vadd.f32 %v2785, %v2996
      %2998 = vmatmul.f32.gmra.mxu0 %v2884
      %v2999 = vpop.f32.mrf.mxu0
      %v3000 = vadd.f32 %v2788, %v2999
      %3001 = vmatmul.f32.gmra.mxu0 %v2887
      %v3002 = vpop.f32.mrf.mxu0
      %v3003 = vadd.f32 %v2791, %v3002
      %3004 = vmatmul.f32.gmra.mxu0 %v2890
      %v3005 = vpop.f32.mrf.mxu0
      %v3006 = vadd.f32 %v2794, %v3005
      %3007 = vmatmul.f32.gmra.mxu0 %v2893
      %v3008 = vpop.f32.mrf.mxu0
      %v3009 = vadd.f32 %v2797, %v3008
      %3010 = vmatmul.f32.gmra.mxu0 %v2896
      %v3011 = vpop.f32.mrf.mxu0
      %v3012 = vadd.f32 %v2800, %v3011
      %3013 = vmatmul.f32.gmra.mxu0 %v2899
      %v3014 = vpop.f32.mrf.mxu0
      %v3015 = vadd.f32 %v2803, %v3014
      %3016 = vmatmul.f32.gmra.mxu0 %v2902
      %v3017 = vpop.f32.mrf.mxu0
      %v3018 = vadd.f32 %v2806, %v3017
      %3019 = vmatmul.f32.gmra.mxu0 %v2905
      %v3020 = vpop.f32.mrf.mxu0
      %v3021 = vadd.f32 %v2809, %v3020
      %3022 = vmatmul.f32.gmra.mxu0 %v2908
      %v3023 = vpop.f32.mrf.mxu0
      %v3024 = vadd.f32 %v2812, %v3023
      %3025 = vmatmul.f32.gmra.mxu0 %v2911
      %v3026 = vpop.f32.mrf.mxu0
      %v3027 = vadd.f32 %v2815, %v3026
      %3028 = vmatmul.f32.gmra.mxu0 %v2914
      %v3029 = vpop.f32.mrf.mxu0
      %v3030 = vadd.f32 %v2818, %v3029
      %3031 = vmatmul.f32.gmra.mxu0 %v2917
      %v3032 = vpop.f32.mrf.mxu0
      %v3033 = vadd.f32 %v2821, %v3032
      %3034 = vmatmul.f32.gmra.mxu0 %v2920
      %v3035 = vpop.f32.mrf.mxu0
      %v3036 = vadd.f32 %v2824, %v3035
      %3037 = vmatmul.f32.gmra.mxu0 %v2923
      %v3038 = vpop.f32.mrf.mxu0
      %v3039 = vadd.f32 %v2827, %v3038
      %3040 = vmatmul.f32.gmra.mxu0 %v2926
      %v3041 = vpop.f32.mrf.mxu0
      %v3042 = vadd.f32 %v2830, %v3041
      %3043 = vdwg.mxu0
      %v3044 = vld [vmem:[#allocation2 + $0x2] sm:$0xff]
      %v3045 = vld [vmem:[#allocation2 + $0xa] sm:$0xff]
      %v3046 = vld [vmem:[#allocation2 + $0x1a] sm:$0xff]
      %v3047 = vld [vmem:[#allocation2 + $0x22] sm:$0xff]
      %v3048 = vld [vmem:[#allocation2 + $0x32] sm:$0xff]
      %v3049 = vld [vmem:[#allocation2 + $0x3a] sm:$0xff]
      %v3050 = vld [vmem:[#allocation2 + $0x4a] sm:$0xff]
      %v3051 = vld [vmem:[#allocation2 + $0x52] sm:$0xff]
      %v3052 = vld [vmem:[#allocation2 + $0x62] sm:$0xff]
      %v3053 = vld [vmem:[#allocation2 + $0x6a] sm:$0xff]
      %v3054 = vld [vmem:[#allocation2 + $0x7a] sm:$0xff]
      %v3055 = vld [vmem:[#allocation2 + $0x82] sm:$0xff]
      %v3056 = vld [vmem:[#allocation2 + $0x92] sm:$0xff]
      %v3057 = vld [vmem:[#allocation2 + $0x9a] sm:$0xff]
      %v3058 = vld [vmem:[#allocation2 + $0xaa] sm:$0xff]
      %v3059 = vld [vmem:[#allocation2 + $0xb2] sm:$0xff]
      %v3060 = vld [vmem:[#allocation2 + $0xc2] sm:$0xff]
      %v3061 = vld [vmem:[#allocation2 + $0xca] sm:$0xff]
      %v3062 = vld [vmem:[#allocation2 + $0xda] sm:$0xff]
      %v3063 = vld [vmem:[#allocation2 + $0xe2] sm:$0xff]
      %v3064 = vld [vmem:[#allocation2 + $0xf2] sm:$0xff]
      %v3065 = vld [vmem:[#allocation2 + $0xfa] sm:$0xff]
      %v3066 = vld [vmem:[#allocation2 + $0x10a] sm:$0xff]
      %v3067 = vld [vmem:[#allocation2 + $0x112] sm:$0xff]
      %v3068 = vld [vmem:[#allocation2 + $0x122] sm:$0xff]
      %v3069 = vld [vmem:[#allocation2 + $0x12a] sm:$0xff]
      %v3070 = vld [vmem:[#allocation2 + $0x13a] sm:$0xff]
      %v3071 = vld [vmem:[#allocation2 + $0x142] sm:$0xff]
      %v3072 = vld [vmem:[#allocation2 + $0x152] sm:$0xff]
      %v3073 = vld [vmem:[#allocation2 + $0x15a] sm:$0xff]
      %v3074 = vld [vmem:[#allocation2 + $0x16a] sm:$0xff]
      %v3075 = vld [vmem:[#allocation2 + $0x172] sm:$0xff]
      %v3077 = vsel %vm434, %v3044, 0
      %v3080 = vsel %vm434, %v3045, 0
      %v3083 = vsel %vm434, %v3046, 0
      %v3086 = vsel %vm434, %v3047, 0
      %v3089 = vsel %vm434, %v3048, 0
      %v3092 = vsel %vm434, %v3049, 0
      %v3095 = vsel %vm434, %v3050, 0
      %v3098 = vsel %vm434, %v3051, 0
      %v3101 = vsel %vm434, %v3052, 0
      %v3104 = vsel %vm434, %v3053, 0
      %v3107 = vsel %vm434, %v3054, 0
      %v3110 = vsel %vm434, %v3055, 0
      %v3113 = vsel %vm434, %v3056, 0
      %v3116 = vsel %vm434, %v3057, 0
      %v3119 = vsel %vm434, %v3058, 0
      %v3122 = vsel %vm434, %v3059, 0
      %v3125 = vsel %vm434, %v3060, 0
      %v3128 = vsel %vm434, %v3061, 0
      %v3131 = vsel %vm434, %v3062, 0
      %v3134 = vsel %vm434, %v3063, 0
      %v3137 = vsel %vm434, %v3064, 0
      %v3140 = vsel %vm434, %v3065, 0
      %v3143 = vsel %vm434, %v3066, 0
      %v3146 = vsel %vm434, %v3067, 0
      %v3149 = vsel %vm434, %v3068, 0
      %v3152 = vsel %vm434, %v3069, 0
      %v3155 = vsel %vm434, %v3070, 0
      %v3158 = vsel %vm434, %v3071, 0
      %v3161 = vsel %vm434, %v3072, 0
      %v3164 = vsel %vm434, %v3073, 0
      %v3167 = vsel %vm434, %v3074, 0
      %v3170 = vsel %vm434, %v3075, 0
      %v3173 = vsel %vm2047, %v2549, 0
      %3175 = vmatpush.msra.mxu0 0.0
      %3176 = vmatpush.msra.mxu0 0.0
      %3177 = vmatpush.msra.mxu0 0.0
      %3178 = vmatpush.msra.mxu0 0.0
      %3179 = vmatpush.msra.mxu0 0.0
      %3180 = vmatpush.msra.mxu0 0.0
      %3181 = vmatpush.msra.mxu0 0.0
      %3182 = vmatpush.msra.mxu0 0.0
      %3183 = vmatpush.msra.mxu0 0.0
      %3184 = vmatpush.msra.mxu0 0.0
      %3185 = vmatpush.msra.mxu0 0.0
      %3186 = vmatpush.msra.mxu0 0.0
      %3187 = vmatpush.msra.mxu0 0.0
      %3188 = vmatpush.msra.mxu0 0.0
      %3189 = vmatpush.msra.mxu0 0.0
      %3190 = vmatpush.msra.mxu0 %v3173
      %3191 = vmatmul.f32.gmra.mxu0 %v3077
      %v3192 = vpop.f32.mrf.mxu0
      %v3193 = vadd.f32 0.0, %v3192
      %3194 = vmatmul.f32.gmra.mxu0 %v3080
      %v3195 = vpop.f32.mrf.mxu0
      %v3196 = vadd.f32 0.0, %v3195
      %3197 = vmatmul.f32.gmra.mxu0 %v3083
      %v3198 = vpop.f32.mrf.mxu0
      %v3199 = vadd.f32 0.0, %v3198
      %3200 = vmatmul.f32.gmra.mxu0 %v3086
      %v3201 = vpop.f32.mrf.mxu0
      %v3202 = vadd.f32 0.0, %v3201
      %3203 = vmatmul.f32.gmra.mxu0 %v3089
      %v3204 = vpop.f32.mrf.mxu0
      %v3205 = vadd.f32 0.0, %v3204
      %3206 = vmatmul.f32.gmra.mxu0 %v3092
      %v3207 = vpop.f32.mrf.mxu0
      %v3208 = vadd.f32 0.0, %v3207
      %3209 = vmatmul.f32.gmra.mxu0 %v3095
      %v3210 = vpop.f32.mrf.mxu0
      %v3211 = vadd.f32 0.0, %v3210
      %3212 = vmatmul.f32.gmra.mxu0 %v3098
      %v3213 = vpop.f32.mrf.mxu0
      %v3214 = vadd.f32 0.0, %v3213
      %3215 = vmatmul.f32.gmra.mxu0 %v3101
      %v3216 = vpop.f32.mrf.mxu0
      %v3217 = vadd.f32 0.0, %v3216
      %3218 = vmatmul.f32.gmra.mxu0 %v3104
      %v3219 = vpop.f32.mrf.mxu0
      %v3220 = vadd.f32 0.0, %v3219
      %3221 = vmatmul.f32.gmra.mxu0 %v3107
      %v3222 = vpop.f32.mrf.mxu0
      %v3223 = vadd.f32 0.0, %v3222
      %3224 = vmatmul.f32.gmra.mxu0 %v3110
      %v3225 = vpop.f32.mrf.mxu0
      %v3226 = vadd.f32 0.0, %v3225
      %3227 = vmatmul.f32.gmra.mxu0 %v3113
      %v3228 = vpop.f32.mrf.mxu0
      %v3229 = vadd.f32 0.0, %v3228
      %3230 = vmatmul.f32.gmra.mxu0 %v3116
      %v3231 = vpop.f32.mrf.mxu0
      %v3232 = vadd.f32 0.0, %v3231
      %3233 = vmatmul.f32.gmra.mxu0 %v3119
      %v3234 = vpop.f32.mrf.mxu0
      %v3235 = vadd.f32 0.0, %v3234
      %3236 = vmatmul.f32.gmra.mxu0 %v3122
      %v3237 = vpop.f32.mrf.mxu0
      %v3238 = vadd.f32 0.0, %v3237
      %3239 = vmatmul.f32.gmra.mxu0 %v3125
      %v3240 = vpop.f32.mrf.mxu0
      %v3241 = vadd.f32 0.0, %v3240
      %3242 = vmatmul.f32.gmra.mxu0 %v3128
      %v3243 = vpop.f32.mrf.mxu0
      %v3244 = vadd.f32 0.0, %v3243
      %3245 = vmatmul.f32.gmra.mxu0 %v3131
      %v3246 = vpop.f32.mrf.mxu0
      %v3247 = vadd.f32 0.0, %v3246
      %3248 = vmatmul.f32.gmra.mxu0 %v3134
      %v3249 = vpop.f32.mrf.mxu0
      %v3250 = vadd.f32 0.0, %v3249
      %3251 = vmatmul.f32.gmra.mxu0 %v3137
      %v3252 = vpop.f32.mrf.mxu0
      %v3253 = vadd.f32 0.0, %v3252
      %3254 = vmatmul.f32.gmra.mxu0 %v3140
      %v3255 = vpop.f32.mrf.mxu0
      %v3256 = vadd.f32 0.0, %v3255
      %3257 = vmatmul.f32.gmra.mxu0 %v3143
      %v3258 = vpop.f32.mrf.mxu0
      %v3259 = vadd.f32 0.0, %v3258
      %3260 = vmatmul.f32.gmra.mxu0 %v3146
      %v3261 = vpop.f32.mrf.mxu0
      %v3262 = vadd.f32 0.0, %v3261
      %3263 = vmatmul.f32.gmra.mxu0 %v3149
      %v3264 = vpop.f32.mrf.mxu0
      %v3265 = vadd.f32 0.0, %v3264
      %3266 = vmatmul.f32.gmra.mxu0 %v3152
      %v3267 = vpop.f32.mrf.mxu0
      %v3268 = vadd.f32 0.0, %v3267
      %3269 = vmatmul.f32.gmra.mxu0 %v3155
      %v3270 = vpop.f32.mrf.mxu0
      %v3271 = vadd.f32 0.0, %v3270
      %3272 = vmatmul.f32.gmra.mxu0 %v3158
      %v3273 = vpop.f32.mrf.mxu0
      %v3274 = vadd.f32 0.0, %v3273
      %3275 = vmatmul.f32.gmra.mxu0 %v3161
      %v3276 = vpop.f32.mrf.mxu0
      %v3277 = vadd.f32 0.0, %v3276
      %3278 = vmatmul.f32.gmra.mxu0 %v3164
      %v3279 = vpop.f32.mrf.mxu0
      %v3280 = vadd.f32 0.0, %v3279
      %3281 = vmatmul.f32.gmra.mxu0 %v3167
      %v3282 = vpop.f32.mrf.mxu0
      %v3283 = vadd.f32 0.0, %v3282
      %3284 = vmatmul.f32.gmra.mxu0 %v3170
      %v3285 = vpop.f32.mrf.mxu0
      %v3286 = vadd.f32 0.0, %v3285
      %3287 = vdwg.mxu0
      %v3288 = vadd.f32 %v2949, %v3193
      %v3289 = vadd.f32 %v2952, %v3196
      %v3290 = vadd.f32 %v2955, %v3199
      %v3291 = vadd.f32 %v2958, %v3202
      %v3292 = vadd.f32 %v2961, %v3205
      %v3293 = vadd.f32 %v2964, %v3208
      %v3294 = vadd.f32 %v2967, %v3211
      %v3295 = vadd.f32 %v2970, %v3214
      %v3296 = vadd.f32 %v2973, %v3217
      %v3297 = vadd.f32 %v2976, %v3220
      %v3298 = vadd.f32 %v2979, %v3223
      %v3299 = vadd.f32 %v2982, %v3226
      %v3300 = vadd.f32 %v2985, %v3229
      %v3301 = vadd.f32 %v2988, %v3232
      %v3302 = vadd.f32 %v2991, %v3235
      %v3303 = vadd.f32 %v2994, %v3238
      %v3304 = vadd.f32 %v2997, %v3241
      %v3305 = vadd.f32 %v3000, %v3244
      %v3306 = vadd.f32 %v3003, %v3247
      %v3307 = vadd.f32 %v3006, %v3250
      %v3308 = vadd.f32 %v3009, %v3253
      %v3309 = vadd.f32 %v3012, %v3256
      %v3310 = vadd.f32 %v3015, %v3259
      %v3311 = vadd.f32 %v3018, %v3262
      %v3312 = vadd.f32 %v3021, %v3265
      %v3313 = vadd.f32 %v3024, %v3268
      %v3314 = vadd.f32 %v3027, %v3271
      %v3315 = vadd.f32 %v3030, %v3274
      %v3316 = vadd.f32 %v3033, %v3277
      %v3317 = vadd.f32 %v3036, %v3280
      %v3318 = vadd.f32 %v3039, %v3283
      %v3319 = vadd.f32 %v3042, %v3286
      %v3320 = vld [vmem:[%s1851] sm:$0xff]
      %v3321 = vld [vmem:[%s1851 + $0x8] sm:$0xff]
      %v3322 = vld [vmem:[%s1851 + $0x18] sm:$0xff]
      %v3323 = vld [vmem:[%s1851 + $0x20] sm:$0xff]
      %v3324 = vld [vmem:[%s1851 + $0x30] sm:$0xff]
      %v3325 = vld [vmem:[%s1851 + $0x38] sm:$0xff]
      %v3326 = vld [vmem:[%s1851 + $0x48] sm:$0xff]
      %v3327 = vld [vmem:[%s1851 + $0x50] sm:$0xff]
      %v3328 = vld [vmem:[%s1851 + $0x60] sm:$0xff]
      %v3329 = vld [vmem:[%s1851 + $0x68] sm:$0xff]
      %v3330 = vld [vmem:[%s1851 + $0x78] sm:$0xff]
      %v3331 = vld [vmem:[%s1851 + $0x80] sm:$0xff]
      %v3332 = vld [vmem:[%s1851 + $0x90] sm:$0xff]
      %v3333 = vld [vmem:[%s1851 + $0x98] sm:$0xff]
      %v3334 = vld [vmem:[%s1851 + $0xa8] sm:$0xff]
      %v3335 = vld [vmem:[%s1851 + $0xb0] sm:$0xff]
      %v3336 = vld [vmem:[%s1851 + $0xc0] sm:$0xff]
      %v3337 = vld [vmem:[%s1851 + $0xc8] sm:$0xff]
      %v3338 = vld [vmem:[%s1851 + $0xd8] sm:$0xff]
      %v3339 = vld [vmem:[%s1851 + $0xe0] sm:$0xff]
      %v3340 = vld [vmem:[%s1851 + $0xf0] sm:$0xff]
      %v3341 = vld [vmem:[%s1851 + $0xf8] sm:$0xff]
      %v3342 = vld [vmem:[%s1851 + $0x108] sm:$0xff]
      %v3343 = vld [vmem:[%s1851 + $0x110] sm:$0xff]
      %v3344 = vld [vmem:[%s1851 + $0x120] sm:$0xff]
      %v3345 = vld [vmem:[%s1851 + $0x128] sm:$0xff]
      %v3346 = vld [vmem:[%s1851 + $0x138] sm:$0xff]
      %v3347 = vld [vmem:[%s1851 + $0x140] sm:$0xff]
      %v3348 = vld [vmem:[%s1851 + $0x150] sm:$0xff]
      %v3349 = vld [vmem:[%s1851 + $0x158] sm:$0xff]
      %v3350 = vld [vmem:[%s1851 + $0x168] sm:$0xff]
      %v3351 = vld [vmem:[%s1851 + $0x170] sm:$0xff]
      %v3353 = vsel %vm434, %v3320, 0
      %v3356 = vsel %vm434, %v3321, 0
      %v3359 = vsel %vm434, %v3322, 0
      %v3362 = vsel %vm434, %v3323, 0
      %v3365 = vsel %vm434, %v3324, 0
      %v3368 = vsel %vm434, %v3325, 0
      %v3371 = vsel %vm434, %v3326, 0
      %v3374 = vsel %vm434, %v3327, 0
      %v3377 = vsel %vm434, %v3328, 0
      %v3380 = vsel %vm434, %v3329, 0
      %v3383 = vsel %vm434, %v3330, 0
      %v3386 = vsel %vm434, %v3331, 0
      %v3389 = vsel %vm434, %v3332, 0
      %v3392 = vsel %vm434, %v3333, 0
      %v3395 = vsel %vm434, %v3334, 0
      %v3398 = vsel %vm434, %v3335, 0
      %v3401 = vsel %vm434, %v3336, 0
      %v3404 = vsel %vm434, %v3337, 0
      %v3407 = vsel %vm434, %v3338, 0
      %v3410 = vsel %vm434, %v3339, 0
      %v3413 = vsel %vm434, %v3340, 0
      %v3416 = vsel %vm434, %v3341, 0
      %v3419 = vsel %vm434, %v3342, 0
      %v3422 = vsel %vm434, %v3343, 0
      %v3425 = vsel %vm434, %v3344, 0
      %v3428 = vsel %vm434, %v3345, 0
      %v3431 = vsel %vm434, %v3346, 0
      %v3434 = vsel %vm434, %v3347, 0
      %v3437 = vsel %vm434, %v3348, 0
      %v3440 = vsel %vm434, %v3349, 0
      %v3443 = vsel %vm434, %v3350, 0
      %v3446 = vsel %vm434, %v3351, 0
      %v3449 = vsel %vm2047, %v2550, 0
      %3451 = vmatpush.msra.mxu0 0.0
      %3452 = vmatpush.msra.mxu0 0.0
      %3453 = vmatpush.msra.mxu0 0.0
      %3454 = vmatpush.msra.mxu0 0.0
      %3455 = vmatpush.msra.mxu0 0.0
      %3456 = vmatpush.msra.mxu0 0.0
      %3457 = vmatpush.msra.mxu0 0.0
      %3458 = vmatpush.msra.mxu0 0.0
      %3459 = vmatpush.msra.mxu0 0.0
      %3460 = vmatpush.msra.mxu0 0.0
      %3461 = vmatpush.msra.mxu0 0.0
      %3462 = vmatpush.msra.mxu0 0.0
      %3463 = vmatpush.msra.mxu0 0.0
      %3464 = vmatpush.msra.mxu0 0.0
      %3465 = vmatpush.msra.mxu0 0.0
      %3466 = vmatpush.msra.mxu0 %v3449
      %3467 = vmatmul.f32.gmra.mxu0 %v3353
      %v3468 = vpop.f32.mrf.mxu0
      %v3469 = vadd.f32 0.0, %v3468
      %3470 = vmatmul.f32.gmra.mxu0 %v3356
      %v3471 = vpop.f32.mrf.mxu0
      %v3472 = vadd.f32 0.0, %v3471
      %3473 = vmatmul.f32.gmra.mxu0 %v3359
      %v3474 = vpop.f32.mrf.mxu0
      %v3475 = vadd.f32 0.0, %v3474
      %3476 = vmatmul.f32.gmra.mxu0 %v3362
      %v3477 = vpop.f32.mrf.mxu0
      %v3478 = vadd.f32 0.0, %v3477
      %3479 = vmatmul.f32.gmra.mxu0 %v3365
      %v3480 = vpop.f32.mrf.mxu0
      %v3481 = vadd.f32 0.0, %v3480
      %3482 = vmatmul.f32.gmra.mxu0 %v3368
      %v3483 = vpop.f32.mrf.mxu0
      %v3484 = vadd.f32 0.0, %v3483
      %3485 = vmatmul.f32.gmra.mxu0 %v3371
      %v3486 = vpop.f32.mrf.mxu0
      %v3487 = vadd.f32 0.0, %v3486
      %3488 = vmatmul.f32.gmra.mxu0 %v3374
      %v3489 = vpop.f32.mrf.mxu0
      %v3490 = vadd.f32 0.0, %v3489
      %3491 = vmatmul.f32.gmra.mxu0 %v3377
      %v3492 = vpop.f32.mrf.mxu0
      %v3493 = vadd.f32 0.0, %v3492
      %3494 = vmatmul.f32.gmra.mxu0 %v3380
      %v3495 = vpop.f32.mrf.mxu0
      %v3496 = vadd.f32 0.0, %v3495
      %3497 = vmatmul.f32.gmra.mxu0 %v3383
      %v3498 = vpop.f32.mrf.mxu0
      %v3499 = vadd.f32 0.0, %v3498
      %3500 = vmatmul.f32.gmra.mxu0 %v3386
      %v3501 = vpop.f32.mrf.mxu0
      %v3502 = vadd.f32 0.0, %v3501
      %3503 = vmatmul.f32.gmra.mxu0 %v3389
      %v3504 = vpop.f32.mrf.mxu0
      %v3505 = vadd.f32 0.0, %v3504
      %3506 = vmatmul.f32.gmra.mxu0 %v3392
      %v3507 = vpop.f32.mrf.mxu0
      %v3508 = vadd.f32 0.0, %v3507
      %3509 = vmatmul.f32.gmra.mxu0 %v3395
      %v3510 = vpop.f32.mrf.mxu0
      %v3511 = vadd.f32 0.0, %v3510
      %3512 = vmatmul.f32.gmra.mxu0 %v3398
      %v3513 = vpop.f32.mrf.mxu0
      %v3514 = vadd.f32 0.0, %v3513
      %3515 = vmatmul.f32.gmra.mxu0 %v3401
      %v3516 = vpop.f32.mrf.mxu0
      %v3517 = vadd.f32 0.0, %v3516
      %3518 = vmatmul.f32.gmra.mxu0 %v3404
      %v3519 = vpop.f32.mrf.mxu0
      %v3520 = vadd.f32 0.0, %v3519
      %3521 = vmatmul.f32.gmra.mxu0 %v3407
      %v3522 = vpop.f32.mrf.mxu0
      %v3523 = vadd.f32 0.0, %v3522
      %3524 = vmatmul.f32.gmra.mxu0 %v3410
      %v3525 = vpop.f32.mrf.mxu0
      %v3526 = vadd.f32 0.0, %v3525
      %3527 = vmatmul.f32.gmra.mxu0 %v3413
      %v3528 = vpop.f32.mrf.mxu0
      %v3529 = vadd.f32 0.0, %v3528
      %3530 = vmatmul.f32.gmra.mxu0 %v3416
      %v3531 = vpop.f32.mrf.mxu0
      %v3532 = vadd.f32 0.0, %v3531
      %3533 = vmatmul.f32.gmra.mxu0 %v3419
      %v3534 = vpop.f32.mrf.mxu0
      %v3535 = vadd.f32 0.0, %v3534
      %3536 = vmatmul.f32.gmra.mxu0 %v3422
      %v3537 = vpop.f32.mrf.mxu0
      %v3538 = vadd.f32 0.0, %v3537
      %3539 = vmatmul.f32.gmra.mxu0 %v3425
      %v3540 = vpop.f32.mrf.mxu0
      %v3541 = vadd.f32 0.0, %v3540
      %3542 = vmatmul.f32.gmra.mxu0 %v3428
      %v3543 = vpop.f32.mrf.mxu0
      %v3544 = vadd.f32 0.0, %v3543
      %3545 = vmatmul.f32.gmra.mxu0 %v3431
      %v3546 = vpop.f32.mrf.mxu0
      %v3547 = vadd.f32 0.0, %v3546
      %3548 = vmatmul.f32.gmra.mxu0 %v3434
      %v3549 = vpop.f32.mrf.mxu0
      %v3550 = vadd.f32 0.0, %v3549
      %3551 = vmatmul.f32.gmra.mxu0 %v3437
      %v3552 = vpop.f32.mrf.mxu0
      %v3553 = vadd.f32 0.0, %v3552
      %3554 = vmatmul.f32.gmra.mxu0 %v3440
      %v3555 = vpop.f32.mrf.mxu0
      %v3556 = vadd.f32 0.0, %v3555
      %3557 = vmatmul.f32.gmra.mxu0 %v3443
      %v3558 = vpop.f32.mrf.mxu0
      %v3559 = vadd.f32 0.0, %v3558
      %3560 = vmatmul.f32.gmra.mxu0 %v3446
      %v3561 = vpop.f32.mrf.mxu0
      %v3562 = vadd.f32 0.0, %v3561
      %3563 = vdwg.mxu0
      %v3564 = vadd.f32 %v3288, %v3469
      %v3565 = vadd.f32 %v3289, %v3472
      %v3566 = vadd.f32 %v3290, %v3475
      %v3567 = vadd.f32 %v3291, %v3478
      %v3568 = vadd.f32 %v3292, %v3481
      %v3569 = vadd.f32 %v3293, %v3484
      %v3570 = vadd.f32 %v3294, %v3487
      %v3571 = vadd.f32 %v3295, %v3490
      %v3572 = vadd.f32 %v3296, %v3493
      %v3573 = vadd.f32 %v3297, %v3496
      %v3574 = vadd.f32 %v3298, %v3499
      %v3575 = vadd.f32 %v3299, %v3502
      %v3576 = vadd.f32 %v3300, %v3505
      %v3577 = vadd.f32 %v3301, %v3508
      %v3578 = vadd.f32 %v3302, %v3511
      %v3579 = vadd.f32 %v3303, %v3514
      %v3580 = vadd.f32 %v3304, %v3517
      %v3581 = vadd.f32 %v3305, %v3520
      %v3582 = vadd.f32 %v3306, %v3523
      %v3583 = vadd.f32 %v3307, %v3526
      %v3584 = vadd.f32 %v3308, %v3529
      %v3585 = vadd.f32 %v3309, %v3532
      %v3586 = vadd.f32 %v3310, %v3535
      %v3587 = vadd.f32 %v3311, %v3538
      %v3588 = vadd.f32 %v3312, %v3541
      %v3589 = vadd.f32 %v3313, %v3544
      %v3590 = vadd.f32 %v3314, %v3547
      %v3591 = vadd.f32 %v3315, %v3550
      %v3592 = vadd.f32 %v3316, %v3553
      %v3593 = vadd.f32 %v3317, %v3556
      %v3594 = vadd.f32 %v3318, %v3559
      %v3595 = vadd.f32 %v3319, %v3562
      %v3596 = vld [vmem:[%s1851 + $0x1] sm:$0xff]
      %v3597 = vld [vmem:[%s1851 + $0x9] sm:$0xff]
      %v3598 = vld [vmem:[%s1851 + $0x19] sm:$0xff]
      %v3599 = vld [vmem:[%s1851 + $0x21] sm:$0xff]
      %v3600 = vld [vmem:[%s1851 + $0x31] sm:$0xff]
      %v3601 = vld [vmem:[%s1851 + $0x39] sm:$0xff]
      %v3602 = vld [vmem:[%s1851 + $0x49] sm:$0xff]
      %v3603 = vld [vmem:[%s1851 + $0x51] sm:$0xff]
      %v3604 = vld [vmem:[%s1851 + $0x61] sm:$0xff]
      %v3605 = vld [vmem:[%s1851 + $0x69] sm:$0xff]
      %v3606 = vld [vmem:[%s1851 + $0x79] sm:$0xff]
      %v3607 = vld [vmem:[%s1851 + $0x81] sm:$0xff]
      %v3608 = vld [vmem:[%s1851 + $0x91] sm:$0xff]
      %v3609 = vld [vmem:[%s1851 + $0x99] sm:$0xff]
      %v3610 = vld [vmem:[%s1851 + $0xa9] sm:$0xff]
      %v3611 = vld [vmem:[%s1851 + $0xb1] sm:$0xff]
      %v3612 = vld [vmem:[%s1851 + $0xc1] sm:$0xff]
      %v3613 = vld [vmem:[%s1851 + $0xc9] sm:$0xff]
      %v3614 = vld [vmem:[%s1851 + $0xd9] sm:$0xff]
      %v3615 = vld [vmem:[%s1851 + $0xe1] sm:$0xff]
      %v3616 = vld [vmem:[%s1851 + $0xf1] sm:$0xff]
      %v3617 = vld [vmem:[%s1851 + $0xf9] sm:$0xff]
      %v3618 = vld [vmem:[%s1851 + $0x109] sm:$0xff]
      %v3619 = vld [vmem:[%s1851 + $0x111] sm:$0xff]
      %v3620 = vld [vmem:[%s1851 + $0x121] sm:$0xff]
      %v3621 = vld [vmem:[%s1851 + $0x129] sm:$0xff]
      %v3622 = vld [vmem:[%s1851 + $0x139] sm:$0xff]
      %v3623 = vld [vmem:[%s1851 + $0x141] sm:$0xff]
      %v3624 = vld [vmem:[%s1851 + $0x151] sm:$0xff]
      %v3625 = vld [vmem:[%s1851 + $0x159] sm:$0xff]
      %v3626 = vld [vmem:[%s1851 + $0x169] sm:$0xff]
      %v3627 = vld [vmem:[%s1851 + $0x171] sm:$0xff]
      %v3629 = vsel %vm434, %v3596, 0
      %v3632 = vsel %vm434, %v3597, 0
      %v3635 = vsel %vm434, %v3598, 0
      %v3638 = vsel %vm434, %v3599, 0
      %v3641 = vsel %vm434, %v3600, 0
      %v3644 = vsel %vm434, %v3601, 0
      %v3647 = vsel %vm434, %v3602, 0
      %v3650 = vsel %vm434, %v3603, 0
      %v3653 = vsel %vm434, %v3604, 0
      %v3656 = vsel %vm434, %v3605, 0
      %v3659 = vsel %vm434, %v3606, 0
      %v3662 = vsel %vm434, %v3607, 0
      %v3665 = vsel %vm434, %v3608, 0
      %v3668 = vsel %vm434, %v3609, 0
      %v3671 = vsel %vm434, %v3610, 0
      %v3674 = vsel %vm434, %v3611, 0
      %v3677 = vsel %vm434, %v3612, 0
      %v3680 = vsel %vm434, %v3613, 0
      %v3683 = vsel %vm434, %v3614, 0
      %v3686 = vsel %vm434, %v3615, 0
      %v3689 = vsel %vm434, %v3616, 0
      %v3692 = vsel %vm434, %v3617, 0
      %v3695 = vsel %vm434, %v3618, 0
      %v3698 = vsel %vm434, %v3619, 0
      %v3701 = vsel %vm434, %v3620, 0
      %v3704 = vsel %vm434, %v3621, 0
      %v3707 = vsel %vm434, %v3622, 0
      %v3710 = vsel %vm434, %v3623, 0
      %v3713 = vsel %vm434, %v3624, 0
      %v3716 = vsel %vm434, %v3625, 0
      %v3719 = vsel %vm434, %v3626, 0
      %v3722 = vsel %vm434, %v3627, 0
      %v3725 = vsel %vm2047, %v2551, 0
      %3727 = vmatpush.msra.mxu0 0.0
      %3728 = vmatpush.msra.mxu0 0.0
      %3729 = vmatpush.msra.mxu0 0.0
      %3730 = vmatpush.msra.mxu0 0.0
      %3731 = vmatpush.msra.mxu0 0.0
      %3732 = vmatpush.msra.mxu0 0.0
      %3733 = vmatpush.msra.mxu0 0.0
      %3734 = vmatpush.msra.mxu0 0.0
      %3735 = vmatpush.msra.mxu0 0.0
      %3736 = vmatpush.msra.mxu0 0.0
      %3737 = vmatpush.msra.mxu0 0.0
      %3738 = vmatpush.msra.mxu0 0.0
      %3739 = vmatpush.msra.mxu0 0.0
      %3740 = vmatpush.msra.mxu0 0.0
      %3741 = vmatpush.msra.mxu0 0.0
      %3742 = vmatpush.msra.mxu0 %v3725
      %3743 = vmatmul.f32.gmra.mxu0 %v3629
      %v3744 = vpop.f32.mrf.mxu0
      %v3745 = vadd.f32 0.0, %v3744
      %3746 = vmatmul.f32.gmra.mxu0 %v3632
      %v3747 = vpop.f32.mrf.mxu0
      %v3748 = vadd.f32 0.0, %v3747
      %3749 = vmatmul.f32.gmra.mxu0 %v3635
      %v3750 = vpop.f32.mrf.mxu0
      %v3751 = vadd.f32 0.0, %v3750
      %3752 = vmatmul.f32.gmra.mxu0 %v3638
      %v3753 = vpop.f32.mrf.mxu0
      %v3754 = vadd.f32 0.0, %v3753
      %3755 = vmatmul.f32.gmra.mxu0 %v3641
      %v3756 = vpop.f32.mrf.mxu0
      %v3757 = vadd.f32 0.0, %v3756
      %3758 = vmatmul.f32.gmra.mxu0 %v3644
      %v3759 = vpop.f32.mrf.mxu0
      %v3760 = vadd.f32 0.0, %v3759
      %3761 = vmatmul.f32.gmra.mxu0 %v3647
      %v3762 = vpop.f32.mrf.mxu0
      %v3763 = vadd.f32 0.0, %v3762
      %3764 = vmatmul.f32.gmra.mxu0 %v3650
      %v3765 = vpop.f32.mrf.mxu0
      %v3766 = vadd.f32 0.0, %v3765
      %3767 = vmatmul.f32.gmra.mxu0 %v3653
      %v3768 = vpop.f32.mrf.mxu0
      %v3769 = vadd.f32 0.0, %v3768
      %3770 = vmatmul.f32.gmra.mxu0 %v3656
      %v3771 = vpop.f32.mrf.mxu0
      %v3772 = vadd.f32 0.0, %v3771
      %3773 = vmatmul.f32.gmra.mxu0 %v3659
      %v3774 = vpop.f32.mrf.mxu0
      %v3775 = vadd.f32 0.0, %v3774
      %3776 = vmatmul.f32.gmra.mxu0 %v3662
      %v3777 = vpop.f32.mrf.mxu0
      %v3778 = vadd.f32 0.0, %v3777
      %3779 = vmatmul.f32.gmra.mxu0 %v3665
      %v3780 = vpop.f32.mrf.mxu0
      %v3781 = vadd.f32 0.0, %v3780
      %3782 = vmatmul.f32.gmra.mxu0 %v3668
      %v3783 = vpop.f32.mrf.mxu0
      %v3784 = vadd.f32 0.0, %v3783
      %3785 = vmatmul.f32.gmra.mxu0 %v3671
      %v3786 = vpop.f32.mrf.mxu0
      %v3787 = vadd.f32 0.0, %v3786
      %3788 = vmatmul.f32.gmra.mxu0 %v3674
      %v3789 = vpop.f32.mrf.mxu0
      %v3790 = vadd.f32 0.0, %v3789
      %3791 = vmatmul.f32.gmra.mxu0 %v3677
      %v3792 = vpop.f32.mrf.mxu0
      %v3793 = vadd.f32 0.0, %v3792
      %3794 = vmatmul.f32.gmra.mxu0 %v3680
      %v3795 = vpop.f32.mrf.mxu0
      %v3796 = vadd.f32 0.0, %v3795
      %3797 = vmatmul.f32.gmra.mxu0 %v3683
      %v3798 = vpop.f32.mrf.mxu0
      %v3799 = vadd.f32 0.0, %v3798
      %3800 = vmatmul.f32.gmra.mxu0 %v3686
      %v3801 = vpop.f32.mrf.mxu0
      %v3802 = vadd.f32 0.0, %v3801
      %3803 = vmatmul.f32.gmra.mxu0 %v3689
      %v3804 = vpop.f32.mrf.mxu0
      %v3805 = vadd.f32 0.0, %v3804
      %3806 = vmatmul.f32.gmra.mxu0 %v3692
      %v3807 = vpop.f32.mrf.mxu0
      %v3808 = vadd.f32 0.0, %v3807
      %3809 = vmatmul.f32.gmra.mxu0 %v3695
      %v3810 = vpop.f32.mrf.mxu0
      %v3811 = vadd.f32 0.0, %v3810
      %3812 = vmatmul.f32.gmra.mxu0 %v3698
      %v3813 = vpop.f32.mrf.mxu0
      %v3814 = vadd.f32 0.0, %v3813
      %3815 = vmatmul.f32.gmra.mxu0 %v3701
      %v3816 = vpop.f32.mrf.mxu0
      %v3817 = vadd.f32 0.0, %v3816
      %3818 = vmatmul.f32.gmra.mxu0 %v3704
      %v3819 = vpop.f32.mrf.mxu0
      %v3820 = vadd.f32 0.0, %v3819
      %3821 = vmatmul.f32.gmra.mxu0 %v3707
      %v3822 = vpop.f32.mrf.mxu0
      %v3823 = vadd.f32 0.0, %v3822
      %3824 = vmatmul.f32.gmra.mxu0 %v3710
      %v3825 = vpop.f32.mrf.mxu0
      %v3826 = vadd.f32 0.0, %v3825
      %3827 = vmatmul.f32.gmra.mxu0 %v3713
      %v3828 = vpop.f32.mrf.mxu0
      %v3829 = vadd.f32 0.0, %v3828
      %3830 = vmatmul.f32.gmra.mxu0 %v3716
      %v3831 = vpop.f32.mrf.mxu0
      %v3832 = vadd.f32 0.0, %v3831
      %3833 = vmatmul.f32.gmra.mxu0 %v3719
      %v3834 = vpop.f32.mrf.mxu0
      %v3835 = vadd.f32 0.0, %v3834
      %3836 = vmatmul.f32.gmra.mxu0 %v3722
      %v3837 = vpop.f32.mrf.mxu0
      %v3838 = vadd.f32 0.0, %v3837
      %3839 = vdwg.mxu0
      %v3840 = vadd.f32 %v3564, %v3745
      %v3841 = vadd.f32 %v3565, %v3748
      %v3842 = vadd.f32 %v3566, %v3751
      %v3843 = vadd.f32 %v3567, %v3754
      %v3844 = vadd.f32 %v3568, %v3757
      %v3845 = vadd.f32 %v3569, %v3760
      %v3846 = vadd.f32 %v3570, %v3763
      %v3847 = vadd.f32 %v3571, %v3766
      %v3848 = vadd.f32 %v3572, %v3769
      %v3849 = vadd.f32 %v3573, %v3772
      %v3850 = vadd.f32 %v3574, %v3775
      %v3851 = vadd.f32 %v3575, %v3778
      %v3852 = vadd.f32 %v3576, %v3781
      %v3853 = vadd.f32 %v3577, %v3784
      %v3854 = vadd.f32 %v3578, %v3787
      %v3855 = vadd.f32 %v3579, %v3790
      %v3856 = vadd.f32 %v3580, %v3793
      %v3857 = vadd.f32 %v3581, %v3796
      %v3858 = vadd.f32 %v3582, %v3799
      %v3859 = vadd.f32 %v3583, %v3802
      %v3860 = vadd.f32 %v3584, %v3805
      %v3861 = vadd.f32 %v3585, %v3808
      %v3862 = vadd.f32 %v3586, %v3811
      %v3863 = vadd.f32 %v3587, %v3814
      %v3864 = vadd.f32 %v3588, %v3817
      %v3865 = vadd.f32 %v3589, %v3820
      %v3866 = vadd.f32 %v3590, %v3823
      %v3867 = vadd.f32 %v3591, %v3826
      %v3868 = vadd.f32 %v3592, %v3829
      %v3869 = vadd.f32 %v3593, %v3832
      %v3870 = vadd.f32 %v3594, %v3835
      %v3871 = vadd.f32 %v3595, %v3838
      %v3872 = vld [vmem:[%s1851 + $0x2] sm:$0xff]
      %v3873 = vld [vmem:[%s1851 + $0xa] sm:$0xff]
      %v3874 = vld [vmem:[%s1851 + $0x1a] sm:$0xff]
      %v3875 = vld [vmem:[%s1851 + $0x22] sm:$0xff]
      %v3876 = vld [vmem:[%s1851 + $0x32] sm:$0xff]
      %v3877 = vld [vmem:[%s1851 + $0x3a] sm:$0xff]
      %v3878 = vld [vmem:[%s1851 + $0x4a] sm:$0xff]
      %v3879 = vld [vmem:[%s1851 + $0x52] sm:$0xff]
      %v3880 = vld [vmem:[%s1851 + $0x62] sm:$0xff]
      %v3881 = vld [vmem:[%s1851 + $0x6a] sm:$0xff]
      %v3882 = vld [vmem:[%s1851 + $0x7a] sm:$0xff]
      %v3883 = vld [vmem:[%s1851 + $0x82] sm:$0xff]
      %v3884 = vld [vmem:[%s1851 + $0x92] sm:$0xff]
      %v3885 = vld [vmem:[%s1851 + $0x9a] sm:$0xff]
      %v3886 = vld [vmem:[%s1851 + $0xaa] sm:$0xff]
      %v3887 = vld [vmem:[%s1851 + $0xb2] sm:$0xff]
      %v3888 = vld [vmem:[%s1851 + $0xc2] sm:$0xff]
      %v3889 = vld [vmem:[%s1851 + $0xca] sm:$0xff]
      %v3890 = vld [vmem:[%s1851 + $0xda] sm:$0xff]
      %v3891 = vld [vmem:[%s1851 + $0xe2] sm:$0xff]
      %v3892 = vld [vmem:[%s1851 + $0xf2] sm:$0xff]
      %v3893 = vld [vmem:[%s1851 + $0xfa] sm:$0xff]
      %v3894 = vld [vmem:[%s1851 + $0x10a] sm:$0xff]
      %v3895 = vld [vmem:[%s1851 + $0x112] sm:$0xff]
      %v3896 = vld [vmem:[%s1851 + $0x122] sm:$0xff]
      %v3897 = vld [vmem:[%s1851 + $0x12a] sm:$0xff]
      %v3898 = vld [vmem:[%s1851 + $0x13a] sm:$0xff]
      %v3899 = vld [vmem:[%s1851 + $0x142] sm:$0xff]
      %v3900 = vld [vmem:[%s1851 + $0x152] sm:$0xff]
      %v3901 = vld [vmem:[%s1851 + $0x15a] sm:$0xff]
      %v3902 = vld [vmem:[%s1851 + $0x16a] sm:$0xff]
      %v3903 = vld [vmem:[%s1851 + $0x172] sm:$0xff]
      %v3905 = vsel %vm434, %v3872, 0
      %v3908 = vsel %vm434, %v3873, 0
      %v3911 = vsel %vm434, %v3874, 0
      %v3914 = vsel %vm434, %v3875, 0
      %v3917 = vsel %vm434, %v3876, 0
      %v3920 = vsel %vm434, %v3877, 0
      %v3923 = vsel %vm434, %v3878, 0
      %v3926 = vsel %vm434, %v3879, 0
      %v3929 = vsel %vm434, %v3880, 0
      %v3932 = vsel %vm434, %v3881, 0
      %v3935 = vsel %vm434, %v3882, 0
      %v3938 = vsel %vm434, %v3883, 0
      %v3941 = vsel %vm434, %v3884, 0
      %v3944 = vsel %vm434, %v3885, 0
      %v3947 = vsel %vm434, %v3886, 0
      %v3950 = vsel %vm434, %v3887, 0
      %v3953 = vsel %vm434, %v3888, 0
      %v3956 = vsel %vm434, %v3889, 0
      %v3959 = vsel %vm434, %v3890, 0
      %v3962 = vsel %vm434, %v3891, 0
      %v3965 = vsel %vm434, %v3892, 0
      %v3968 = vsel %vm434, %v3893, 0
      %v3971 = vsel %vm434, %v3894, 0
      %v3974 = vsel %vm434, %v3895, 0
      %v3977 = vsel %vm434, %v3896, 0
      %v3980 = vsel %vm434, %v3897, 0
      %v3983 = vsel %vm434, %v3898, 0
      %v3986 = vsel %vm434, %v3899, 0
      %v3989 = vsel %vm434, %v3900, 0
      %v3992 = vsel %vm434, %v3901, 0
      %v3995 = vsel %vm434, %v3902, 0
      %v3998 = vsel %vm434, %v3903, 0
      %v4001 = vsel %vm2047, %v2552, 0
      %4003 = vmatpush.msra.mxu0 0.0
      %4004 = vmatpush.msra.mxu0 0.0
      %4005 = vmatpush.msra.mxu0 0.0
      %4006 = vmatpush.msra.mxu0 0.0
      %4007 = vmatpush.msra.mxu0 0.0
      %4008 = vmatpush.msra.mxu0 0.0
      %4009 = vmatpush.msra.mxu0 0.0
      %4010 = vmatpush.msra.mxu0 0.0
      %4011 = vmatpush.msra.mxu0 0.0
      %4012 = vmatpush.msra.mxu0 0.0
      %4013 = vmatpush.msra.mxu0 0.0
      %4014 = vmatpush.msra.mxu0 0.0
      %4015 = vmatpush.msra.mxu0 0.0
      %4016 = vmatpush.msra.mxu0 0.0
      %4017 = vmatpush.msra.mxu0 0.0
      %4018 = vmatpush.msra.mxu0 %v4001
      %4019 = vmatmul.f32.gmra.mxu0 %v3905
      %v4020 = vpop.f32.mrf.mxu0
      %v4021 = vadd.f32 0.0, %v4020
      %4022 = vmatmul.f32.gmra.mxu0 %v3908
      %v4023 = vpop.f32.mrf.mxu0
      %v4024 = vadd.f32 0.0, %v4023
      %4025 = vmatmul.f32.gmra.mxu0 %v3911
      %v4026 = vpop.f32.mrf.mxu0
      %v4027 = vadd.f32 0.0, %v4026
      %4028 = vmatmul.f32.gmra.mxu0 %v3914
      %v4029 = vpop.f32.mrf.mxu0
      %v4030 = vadd.f32 0.0, %v4029
      %4031 = vmatmul.f32.gmra.mxu0 %v3917
      %v4032 = vpop.f32.mrf.mxu0
      %v4033 = vadd.f32 0.0, %v4032
      %4034 = vmatmul.f32.gmra.mxu0 %v3920
      %v4035 = vpop.f32.mrf.mxu0
      %v4036 = vadd.f32 0.0, %v4035
      %4037 = vmatmul.f32.gmra.mxu0 %v3923
      %v4038 = vpop.f32.mrf.mxu0
      %v4039 = vadd.f32 0.0, %v4038
      %4040 = vmatmul.f32.gmra.mxu0 %v3926
      %v4041 = vpop.f32.mrf.mxu0
      %v4042 = vadd.f32 0.0, %v4041
      %4043 = vmatmul.f32.gmra.mxu0 %v3929
      %v4044 = vpop.f32.mrf.mxu0
      %v4045 = vadd.f32 0.0, %v4044
      %4046 = vmatmul.f32.gmra.mxu0 %v3932
      %v4047 = vpop.f32.mrf.mxu0
      %v4048 = vadd.f32 0.0, %v4047
      %4049 = vmatmul.f32.gmra.mxu0 %v3935
      %v4050 = vpop.f32.mrf.mxu0
      %v4051 = vadd.f32 0.0, %v4050
      %4052 = vmatmul.f32.gmra.mxu0 %v3938
      %v4053 = vpop.f32.mrf.mxu0
      %v4054 = vadd.f32 0.0, %v4053
      %4055 = vmatmul.f32.gmra.mxu0 %v3941
      %v4056 = vpop.f32.mrf.mxu0
      %v4057 = vadd.f32 0.0, %v4056
      %4058 = vmatmul.f32.gmra.mxu0 %v3944
      %v4059 = vpop.f32.mrf.mxu0
      %v4060 = vadd.f32 0.0, %v4059
      %4061 = vmatmul.f32.gmra.mxu0 %v3947
      %v4062 = vpop.f32.mrf.mxu0
      %v4063 = vadd.f32 0.0, %v4062
      %4064 = vmatmul.f32.gmra.mxu0 %v3950
      %v4065 = vpop.f32.mrf.mxu0
      %v4066 = vadd.f32 0.0, %v4065
      %4067 = vmatmul.f32.gmra.mxu0 %v3953
      %v4068 = vpop.f32.mrf.mxu0
      %v4069 = vadd.f32 0.0, %v4068
      %4070 = vmatmul.f32.gmra.mxu0 %v3956
      %v4071 = vpop.f32.mrf.mxu0
      %v4072 = vadd.f32 0.0, %v4071
      %4073 = vmatmul.f32.gmra.mxu0 %v3959
      %v4074 = vpop.f32.mrf.mxu0
      %v4075 = vadd.f32 0.0, %v4074
      %4076 = vmatmul.f32.gmra.mxu0 %v3962
      %v4077 = vpop.f32.mrf.mxu0
      %v4078 = vadd.f32 0.0, %v4077
      %4079 = vmatmul.f32.gmra.mxu0 %v3965
      %v4080 = vpop.f32.mrf.mxu0
      %v4081 = vadd.f32 0.0, %v4080
      %4082 = vmatmul.f32.gmra.mxu0 %v3968
      %v4083 = vpop.f32.mrf.mxu0
      %v4084 = vadd.f32 0.0, %v4083
      %4085 = vmatmul.f32.gmra.mxu0 %v3971
      %v4086 = vpop.f32.mrf.mxu0
      %v4087 = vadd.f32 0.0, %v4086
      %4088 = vmatmul.f32.gmra.mxu0 %v3974
      %v4089 = vpop.f32.mrf.mxu0
      %v4090 = vadd.f32 0.0, %v4089
      %4091 = vmatmul.f32.gmra.mxu0 %v3977
      %v4092 = vpop.f32.mrf.mxu0
      %v4093 = vadd.f32 0.0, %v4092
      %4094 = vmatmul.f32.gmra.mxu0 %v3980
      %v4095 = vpop.f32.mrf.mxu0
      %v4096 = vadd.f32 0.0, %v4095
      %4097 = vmatmul.f32.gmra.mxu0 %v3983
      %v4098 = vpop.f32.mrf.mxu0
      %v4099 = vadd.f32 0.0, %v4098
      %4100 = vmatmul.f32.gmra.mxu0 %v3986
      %v4101 = vpop.f32.mrf.mxu0
      %v4102 = vadd.f32 0.0, %v4101
      %4103 = vmatmul.f32.gmra.mxu0 %v3989
      %v4104 = vpop.f32.mrf.mxu0
      %v4105 = vadd.f32 0.0, %v4104
      %4106 = vmatmul.f32.gmra.mxu0 %v3992
      %v4107 = vpop.f32.mrf.mxu0
      %v4108 = vadd.f32 0.0, %v4107
      %4109 = vmatmul.f32.gmra.mxu0 %v3995
      %v4110 = vpop.f32.mrf.mxu0
      %v4111 = vadd.f32 0.0, %v4110
      %4112 = vmatmul.f32.gmra.mxu0 %v3998
      %v4113 = vpop.f32.mrf.mxu0
      %v4114 = vadd.f32 0.0, %v4113
      %4115 = vdwg.mxu0
      %v4116 = vadd.f32 %v3840, %v4021
      %v4117 = vadd.f32 %v3841, %v4024
      %v4118 = vadd.f32 %v3842, %v4027
      %v4119 = vadd.f32 %v3843, %v4030
      %v4120 = vadd.f32 %v3844, %v4033
      %v4121 = vadd.f32 %v3845, %v4036
      %v4122 = vadd.f32 %v3846, %v4039
      %v4123 = vadd.f32 %v3847, %v4042
      %v4124 = vadd.f32 %v3848, %v4045
      %v4125 = vadd.f32 %v3849, %v4048
      %v4126 = vadd.f32 %v3850, %v4051
      %v4127 = vadd.f32 %v3851, %v4054
      %v4128 = vadd.f32 %v3852, %v4057
      %v4129 = vadd.f32 %v3853, %v4060
      %v4130 = vadd.f32 %v3854, %v4063
      %v4131 = vadd.f32 %v3855, %v4066
      %v4132 = vadd.f32 %v3856, %v4069
      %v4133 = vadd.f32 %v3857, %v4072
      %v4134 = vadd.f32 %v3858, %v4075
      %v4135 = vadd.f32 %v3859, %v4078
      %v4136 = vadd.f32 %v3860, %v4081
      %v4137 = vadd.f32 %v3861, %v4084
      %v4138 = vadd.f32 %v3862, %v4087
      %v4139 = vadd.f32 %v3863, %v4090
      %v4140 = vadd.f32 %v3864, %v4093
      %v4141 = vadd.f32 %v3865, %v4096
      %v4142 = vadd.f32 %v3866, %v4099
      %v4143 = vadd.f32 %v3867, %v4102
      %v4144 = vadd.f32 %v3868, %v4105
      %v4145 = vadd.f32 %v3869, %v4108
      %v4146 = vadd.f32 %v3870, %v4111
      %v4147 = vadd.f32 %v3871, %v4114
      %s4148 = scalar_lea.vmem [#allocation2], 48
      %v4149 = vld [vmem:[%s4148] sm:$0xff]
      %v4150 = vld [vmem:[%s4148 + $0x8] sm:$0xff]
      %v4151 = vld [vmem:[%s4148 + $0x18] sm:$0xff]
      %v4152 = vld [vmem:[%s4148 + $0x20] sm:$0xff]
      %v4153 = vld [vmem:[%s4148 + $0x30] sm:$0xff]
      %v4154 = vld [vmem:[%s4148 + $0x38] sm:$0xff]
      %v4155 = vld [vmem:[%s4148 + $0x48] sm:$0xff]
      %v4156 = vld [vmem:[%s4148 + $0x50] sm:$0xff]
      %v4157 = vld [vmem:[%s4148 + $0x60] sm:$0xff]
      %v4158 = vld [vmem:[%s4148 + $0x68] sm:$0xff]
      %v4159 = vld [vmem:[%s4148 + $0x78] sm:$0xff]
      %v4160 = vld [vmem:[%s4148 + $0x80] sm:$0xff]
      %v4161 = vld [vmem:[%s4148 + $0x90] sm:$0xff]
      %v4162 = vld [vmem:[%s4148 + $0x98] sm:$0xff]
      %v4163 = vld [vmem:[%s4148 + $0xa8] sm:$0xff]
      %v4164 = vld [vmem:[%s4148 + $0xb0] sm:$0xff]
      %v4165 = vld [vmem:[%s4148 + $0xc0] sm:$0xff]
      %v4166 = vld [vmem:[%s4148 + $0xc8] sm:$0xff]
      %v4167 = vld [vmem:[%s4148 + $0xd8] sm:$0xff]
      %v4168 = vld [vmem:[%s4148 + $0xe0] sm:$0xff]
      %v4169 = vld [vmem:[%s4148 + $0xf0] sm:$0xff]
      %v4170 = vld [vmem:[%s4148 + $0xf8] sm:$0xff]
      %v4171 = vld [vmem:[%s4148 + $0x108] sm:$0xff]
      %v4172 = vld [vmem:[%s4148 + $0x110] sm:$0xff]
      %v4173 = vld [vmem:[%s4148 + $0x120] sm:$0xff]
      %v4174 = vld [vmem:[%s4148 + $0x128] sm:$0xff]
      %v4175 = vld [vmem:[%s4148 + $0x138] sm:$0xff]
      %v4176 = vld [vmem:[%s4148 + $0x140] sm:$0xff]
      %v4177 = vld [vmem:[%s4148 + $0x150] sm:$0xff]
      %v4178 = vld [vmem:[%s4148 + $0x158] sm:$0xff]
      %v4179 = vld [vmem:[%s4148 + $0x168] sm:$0xff]
      %v4180 = vld [vmem:[%s4148 + $0x170] sm:$0xff]
      %v4182 = vsel %vm434, %v4149, 0
      %v4185 = vsel %vm434, %v4150, 0
      %v4188 = vsel %vm434, %v4151, 0
      %v4191 = vsel %vm434, %v4152, 0
      %v4194 = vsel %vm434, %v4153, 0
      %v4197 = vsel %vm434, %v4154, 0
      %v4200 = vsel %vm434, %v4155, 0
      %v4203 = vsel %vm434, %v4156, 0
      %v4206 = vsel %vm434, %v4157, 0
      %v4209 = vsel %vm434, %v4158, 0
      %v4212 = vsel %vm434, %v4159, 0
      %v4215 = vsel %vm434, %v4160, 0
      %v4218 = vsel %vm434, %v4161, 0
      %v4221 = vsel %vm434, %v4162, 0
      %v4224 = vsel %vm434, %v4163, 0
      %v4227 = vsel %vm434, %v4164, 0
      %v4230 = vsel %vm434, %v4165, 0
      %v4233 = vsel %vm434, %v4166, 0
      %v4236 = vsel %vm434, %v4167, 0
      %v4239 = vsel %vm434, %v4168, 0
      %v4242 = vsel %vm434, %v4169, 0
      %v4245 = vsel %vm434, %v4170, 0
      %v4248 = vsel %vm434, %v4171, 0
      %v4251 = vsel %vm434, %v4172, 0
      %v4254 = vsel %vm434, %v4173, 0
      %v4257 = vsel %vm434, %v4174, 0
      %v4260 = vsel %vm434, %v4175, 0
      %v4263 = vsel %vm434, %v4176, 0
      %v4266 = vsel %vm434, %v4177, 0
      %v4269 = vsel %vm434, %v4178, 0
      %v4272 = vsel %vm434, %v4179, 0
      %v4275 = vsel %vm434, %v4180, 0
      %v4278 = vsel %vm2047, %v2553, 0
      %4280 = vmatpush.msra.mxu0 0.0
      %4281 = vmatpush.msra.mxu0 0.0
      %4282 = vmatpush.msra.mxu0 0.0
      %4283 = vmatpush.msra.mxu0 0.0
      %4284 = vmatpush.msra.mxu0 0.0
      %4285 = vmatpush.msra.mxu0 0.0
      %4286 = vmatpush.msra.mxu0 0.0
      %4287 = vmatpush.msra.mxu0 0.0
      %4288 = vmatpush.msra.mxu0 0.0
      %4289 = vmatpush.msra.mxu0 0.0
      %4290 = vmatpush.msra.mxu0 0.0
      %4291 = vmatpush.msra.mxu0 0.0
      %4292 = vmatpush.msra.mxu0 0.0
      %4293 = vmatpush.msra.mxu0 0.0
      %4294 = vmatpush.msra.mxu0 0.0
      %4295 = vmatpush.msra.mxu0 %v4278
      %4296 = vmatmul.f32.gmra.mxu0 %v4182
      %v4297 = vpop.f32.mrf.mxu0
      %v4298 = vadd.f32 0.0, %v4297
      %4299 = vmatmul.f32.gmra.mxu0 %v4185
      %v4300 = vpop.f32.mrf.mxu0
      %v4301 = vadd.f32 0.0, %v4300
      %4302 = vmatmul.f32.gmra.mxu0 %v4188
      %v4303 = vpop.f32.mrf.mxu0
      %v4304 = vadd.f32 0.0, %v4303
      %4305 = vmatmul.f32.gmra.mxu0 %v4191
      %v4306 = vpop.f32.mrf.mxu0
      %v4307 = vadd.f32 0.0, %v4306
      %4308 = vmatmul.f32.gmra.mxu0 %v4194
      %v4309 = vpop.f32.mrf.mxu0
      %v4310 = vadd.f32 0.0, %v4309
      %4311 = vmatmul.f32.gmra.mxu0 %v4197
      %v4312 = vpop.f32.mrf.mxu0
      %v4313 = vadd.f32 0.0, %v4312
      %4314 = vmatmul.f32.gmra.mxu0 %v4200
      %v4315 = vpop.f32.mrf.mxu0
      %v4316 = vadd.f32 0.0, %v4315
      %4317 = vmatmul.f32.gmra.mxu0 %v4203
      %v4318 = vpop.f32.mrf.mxu0
      %v4319 = vadd.f32 0.0, %v4318
      %4320 = vmatmul.f32.gmra.mxu0 %v4206
      %v4321 = vpop.f32.mrf.mxu0
      %v4322 = vadd.f32 0.0, %v4321
      %4323 = vmatmul.f32.gmra.mxu0 %v4209
      %v4324 = vpop.f32.mrf.mxu0
      %v4325 = vadd.f32 0.0, %v4324
      %4326 = vmatmul.f32.gmra.mxu0 %v4212
      %v4327 = vpop.f32.mrf.mxu0
      %v4328 = vadd.f32 0.0, %v4327
      %4329 = vmatmul.f32.gmra.mxu0 %v4215
      %v4330 = vpop.f32.mrf.mxu0
      %v4331 = vadd.f32 0.0, %v4330
      %4332 = vmatmul.f32.gmra.mxu0 %v4218
      %v4333 = vpop.f32.mrf.mxu0
      %v4334 = vadd.f32 0.0, %v4333
      %4335 = vmatmul.f32.gmra.mxu0 %v4221
      %v4336 = vpop.f32.mrf.mxu0
      %v4337 = vadd.f32 0.0, %v4336
      %4338 = vmatmul.f32.gmra.mxu0 %v4224
      %v4339 = vpop.f32.mrf.mxu0
      %v4340 = vadd.f32 0.0, %v4339
      %4341 = vmatmul.f32.gmra.mxu0 %v4227
      %v4342 = vpop.f32.mrf.mxu0
      %v4343 = vadd.f32 0.0, %v4342
      %4344 = vmatmul.f32.gmra.mxu0 %v4230
      %v4345 = vpop.f32.mrf.mxu0
      %v4346 = vadd.f32 0.0, %v4345
      %4347 = vmatmul.f32.gmra.mxu0 %v4233
      %v4348 = vpop.f32.mrf.mxu0
      %v4349 = vadd.f32 0.0, %v4348
      %4350 = vmatmul.f32.gmra.mxu0 %v4236
      %v4351 = vpop.f32.mrf.mxu0
      %v4352 = vadd.f32 0.0, %v4351
      %4353 = vmatmul.f32.gmra.mxu0 %v4239
      %v4354 = vpop.f32.mrf.mxu0
      %v4355 = vadd.f32 0.0, %v4354
      %4356 = vmatmul.f32.gmra.mxu0 %v4242
      %v4357 = vpop.f32.mrf.mxu0
      %v4358 = vadd.f32 0.0, %v4357
      %4359 = vmatmul.f32.gmra.mxu0 %v4245
      %v4360 = vpop.f32.mrf.mxu0
      %v4361 = vadd.f32 0.0, %v4360
      %4362 = vmatmul.f32.gmra.mxu0 %v4248
      %v4363 = vpop.f32.mrf.mxu0
      %v4364 = vadd.f32 0.0, %v4363
      %4365 = vmatmul.f32.gmra.mxu0 %v4251
      %v4366 = vpop.f32.mrf.mxu0
      %v4367 = vadd.f32 0.0, %v4366
      %4368 = vmatmul.f32.gmra.mxu0 %v4254
      %v4369 = vpop.f32.mrf.mxu0
      %v4370 = vadd.f32 0.0, %v4369
      %4371 = vmatmul.f32.gmra.mxu0 %v4257
      %v4372 = vpop.f32.mrf.mxu0
      %v4373 = vadd.f32 0.0, %v4372
      %4374 = vmatmul.f32.gmra.mxu0 %v4260
      %v4375 = vpop.f32.mrf.mxu0
      %v4376 = vadd.f32 0.0, %v4375
      %4377 = vmatmul.f32.gmra.mxu0 %v4263
      %v4378 = vpop.f32.mrf.mxu0
      %v4379 = vadd.f32 0.0, %v4378
      %4380 = vmatmul.f32.gmra.mxu0 %v4266
      %v4381 = vpop.f32.mrf.mxu0
      %v4382 = vadd.f32 0.0, %v4381
      %4383 = vmatmul.f32.gmra.mxu0 %v4269
      %v4384 = vpop.f32.mrf.mxu0
      %v4385 = vadd.f32 0.0, %v4384
      %4386 = vmatmul.f32.gmra.mxu0 %v4272
      %v4387 = vpop.f32.mrf.mxu0
      %v4388 = vadd.f32 0.0, %v4387
      %4389 = vmatmul.f32.gmra.mxu0 %v4275
      %v4390 = vpop.f32.mrf.mxu0
      %v4391 = vadd.f32 0.0, %v4390
      %4392 = vdwg.mxu0
      %v4393 = vadd.f32 %v4116, %v4298
      %v4394 = vadd.f32 %v4117, %v4301
      %v4395 = vadd.f32 %v4118, %v4304
      %v4396 = vadd.f32 %v4119, %v4307
      %v4397 = vadd.f32 %v4120, %v4310
      %v4398 = vadd.f32 %v4121, %v4313
      %v4399 = vadd.f32 %v4122, %v4316
      %v4400 = vadd.f32 %v4123, %v4319
      %v4401 = vadd.f32 %v4124, %v4322
      %v4402 = vadd.f32 %v4125, %v4325
      %v4403 = vadd.f32 %v4126, %v4328
      %v4404 = vadd.f32 %v4127, %v4331
      %v4405 = vadd.f32 %v4128, %v4334
      %v4406 = vadd.f32 %v4129, %v4337
      %v4407 = vadd.f32 %v4130, %v4340
      %v4408 = vadd.f32 %v4131, %v4343
      %v4409 = vadd.f32 %v4132, %v4346
      %v4410 = vadd.f32 %v4133, %v4349
      %v4411 = vadd.f32 %v4134, %v4352
      %v4412 = vadd.f32 %v4135, %v4355
      %v4413 = vadd.f32 %v4136, %v4358
      %v4414 = vadd.f32 %v4137, %v4361
      %v4415 = vadd.f32 %v4138, %v4364
      %v4416 = vadd.f32 %v4139, %v4367
      %v4417 = vadd.f32 %v4140, %v4370
      %v4418 = vadd.f32 %v4141, %v4373
      %v4419 = vadd.f32 %v4142, %v4376
      %v4420 = vadd.f32 %v4143, %v4379
      %v4421 = vadd.f32 %v4144, %v4382
      %v4422 = vadd.f32 %v4145, %v4385
      %v4423 = vadd.f32 %v4146, %v4388
      %v4424 = vadd.f32 %v4147, %v4391
      %v4425 = vld [vmem:[%s4148 + $0x1] sm:$0xff]
      %v4426 = vld [vmem:[%s4148 + $0x9] sm:$0xff]
      %v4427 = vld [vmem:[%s4148 + $0x19] sm:$0xff]
      %v4428 = vld [vmem:[%s4148 + $0x21] sm:$0xff]
      %v4429 = vld [vmem:[%s4148 + $0x31] sm:$0xff]
      %v4430 = vld [vmem:[%s4148 + $0x39] sm:$0xff]
      %v4431 = vld [vmem:[%s4148 + $0x49] sm:$0xff]
      %v4432 = vld [vmem:[%s4148 + $0x51] sm:$0xff]
      %v4433 = vld [vmem:[%s4148 + $0x61] sm:$0xff]
      %v4434 = vld [vmem:[%s4148 + $0x69] sm:$0xff]
      %v4435 = vld [vmem:[%s4148 + $0x79] sm:$0xff]
      %v4436 = vld [vmem:[%s4148 + $0x81] sm:$0xff]
      %v4437 = vld [vmem:[%s4148 + $0x91] sm:$0xff]
      %v4438 = vld [vmem:[%s4148 + $0x99] sm:$0xff]
      %v4439 = vld [vmem:[%s4148 + $0xa9] sm:$0xff]
      %v4440 = vld [vmem:[%s4148 + $0xb1] sm:$0xff]
      %v4441 = vld [vmem:[%s4148 + $0xc1] sm:$0xff]
      %v4442 = vld [vmem:[%s4148 + $0xc9] sm:$0xff]
      %v4443 = vld [vmem:[%s4148 + $0xd9] sm:$0xff]
      %v4444 = vld [vmem:[%s4148 + $0xe1] sm:$0xff]
      %v4445 = vld [vmem:[%s4148 + $0xf1] sm:$0xff]
      %v4446 = vld [vmem:[%s4148 + $0xf9] sm:$0xff]
      %v4447 = vld [vmem:[%s4148 + $0x109] sm:$0xff]
      %v4448 = vld [vmem:[%s4148 + $0x111] sm:$0xff]
      %v4449 = vld [vmem:[%s4148 + $0x121] sm:$0xff]
      %v4450 = vld [vmem:[%s4148 + $0x129] sm:$0xff]
      %v4451 = vld [vmem:[%s4148 + $0x139] sm:$0xff]
      %v4452 = vld [vmem:[%s4148 + $0x141] sm:$0xff]
      %v4453 = vld [vmem:[%s4148 + $0x151] sm:$0xff]
      %v4454 = vld [vmem:[%s4148 + $0x159] sm:$0xff]
      %v4455 = vld [vmem:[%s4148 + $0x169] sm:$0xff]
      %v4456 = vld [vmem:[%s4148 + $0x171] sm:$0xff]
      %v4458 = vsel %vm434, %v4425, 0
      %v4461 = vsel %vm434, %v4426, 0
      %v4464 = vsel %vm434, %v4427, 0
      %v4467 = vsel %vm434, %v4428, 0
      %v4470 = vsel %vm434, %v4429, 0
      %v4473 = vsel %vm434, %v4430, 0
      %v4476 = vsel %vm434, %v4431, 0
      %v4479 = vsel %vm434, %v4432, 0
      %v4482 = vsel %vm434, %v4433, 0
      %v4485 = vsel %vm434, %v4434, 0
      %v4488 = vsel %vm434, %v4435, 0
      %v4491 = vsel %vm434, %v4436, 0
      %v4494 = vsel %vm434, %v4437, 0
      %v4497 = vsel %vm434, %v4438, 0
      %v4500 = vsel %vm434, %v4439, 0
      %v4503 = vsel %vm434, %v4440, 0
      %v4506 = vsel %vm434, %v4441, 0
      %v4509 = vsel %vm434, %v4442, 0
      %v4512 = vsel %vm434, %v4443, 0
      %v4515 = vsel %vm434, %v4444, 0
      %v4518 = vsel %vm434, %v4445, 0
      %v4521 = vsel %vm434, %v4446, 0
      %v4524 = vsel %vm434, %v4447, 0
      %v4527 = vsel %vm434, %v4448, 0
      %v4530 = vsel %vm434, %v4449, 0
      %v4533 = vsel %vm434, %v4450, 0
      %v4536 = vsel %vm434, %v4451, 0
      %v4539 = vsel %vm434, %v4452, 0
      %v4542 = vsel %vm434, %v4453, 0
      %v4545 = vsel %vm434, %v4454, 0
      %v4548 = vsel %vm434, %v4455, 0
      %v4551 = vsel %vm434, %v4456, 0
      %v4554 = vsel %vm2047, %v2554, 0
      %4556 = vmatpush.msra.mxu0 0.0
      %4557 = vmatpush.msra.mxu0 0.0
      %4558 = vmatpush.msra.mxu0 0.0
      %4559 = vmatpush.msra.mxu0 0.0
      %4560 = vmatpush.msra.mxu0 0.0
      %4561 = vmatpush.msra.mxu0 0.0
      %4562 = vmatpush.msra.mxu0 0.0
      %4563 = vmatpush.msra.mxu0 0.0
      %4564 = vmatpush.msra.mxu0 0.0
      %4565 = vmatpush.msra.mxu0 0.0
      %4566 = vmatpush.msra.mxu0 0.0
      %4567 = vmatpush.msra.mxu0 0.0
      %4568 = vmatpush.msra.mxu0 0.0
      %4569 = vmatpush.msra.mxu0 0.0
      %4570 = vmatpush.msra.mxu0 0.0
      %4571 = vmatpush.msra.mxu0 %v4554
      %4572 = vmatmul.f32.gmra.mxu0 %v4458
      %v4573 = vpop.f32.mrf.mxu0
      %v4574 = vadd.f32 0.0, %v4573
      %4575 = vmatmul.f32.gmra.mxu0 %v4461
      %v4576 = vpop.f32.mrf.mxu0
      %v4577 = vadd.f32 0.0, %v4576
      %4578 = vmatmul.f32.gmra.mxu0 %v4464
      %v4579 = vpop.f32.mrf.mxu0
      %v4580 = vadd.f32 0.0, %v4579
      %4581 = vmatmul.f32.gmra.mxu0 %v4467
      %v4582 = vpop.f32.mrf.mxu0
      %v4583 = vadd.f32 0.0, %v4582
      %4584 = vmatmul.f32.gmra.mxu0 %v4470
      %v4585 = vpop.f32.mrf.mxu0
      %v4586 = vadd.f32 0.0, %v4585
      %4587 = vmatmul.f32.gmra.mxu0 %v4473
      %v4588 = vpop.f32.mrf.mxu0
      %v4589 = vadd.f32 0.0, %v4588
      %4590 = vmatmul.f32.gmra.mxu0 %v4476
      %v4591 = vpop.f32.mrf.mxu0
      %v4592 = vadd.f32 0.0, %v4591
      %4593 = vmatmul.f32.gmra.mxu0 %v4479
      %v4594 = vpop.f32.mrf.mxu0
      %v4595 = vadd.f32 0.0, %v4594
      %4596 = vmatmul.f32.gmra.mxu0 %v4482
      %v4597 = vpop.f32.mrf.mxu0
      %v4598 = vadd.f32 0.0, %v4597
      %4599 = vmatmul.f32.gmra.mxu0 %v4485
      %v4600 = vpop.f32.mrf.mxu0
      %v4601 = vadd.f32 0.0, %v4600
      %4602 = vmatmul.f32.gmra.mxu0 %v4488
      %v4603 = vpop.f32.mrf.mxu0
      %v4604 = vadd.f32 0.0, %v4603
      %4605 = vmatmul.f32.gmra.mxu0 %v4491
      %v4606 = vpop.f32.mrf.mxu0
      %v4607 = vadd.f32 0.0, %v4606
      %4608 = vmatmul.f32.gmra.mxu0 %v4494
      %v4609 = vpop.f32.mrf.mxu0
      %v4610 = vadd.f32 0.0, %v4609
      %4611 = vmatmul.f32.gmra.mxu0 %v4497
      %v4612 = vpop.f32.mrf.mxu0
      %v4613 = vadd.f32 0.0, %v4612
      %4614 = vmatmul.f32.gmra.mxu0 %v4500
      %v4615 = vpop.f32.mrf.mxu0
      %v4616 = vadd.f32 0.0, %v4615
      %4617 = vmatmul.f32.gmra.mxu0 %v4503
      %v4618 = vpop.f32.mrf.mxu0
      %v4619 = vadd.f32 0.0, %v4618
      %4620 = vmatmul.f32.gmra.mxu0 %v4506
      %v4621 = vpop.f32.mrf.mxu0
      %v4622 = vadd.f32 0.0, %v4621
      %4623 = vmatmul.f32.gmra.mxu0 %v4509
      %v4624 = vpop.f32.mrf.mxu0
      %v4625 = vadd.f32 0.0, %v4624
      %4626 = vmatmul.f32.gmra.mxu0 %v4512
      %v4627 = vpop.f32.mrf.mxu0
      %v4628 = vadd.f32 0.0, %v4627
      %4629 = vmatmul.f32.gmra.mxu0 %v4515
      %v4630 = vpop.f32.mrf.mxu0
      %v4631 = vadd.f32 0.0, %v4630
      %4632 = vmatmul.f32.gmra.mxu0 %v4518
      %v4633 = vpop.f32.mrf.mxu0
      %v4634 = vadd.f32 0.0, %v4633
      %4635 = vmatmul.f32.gmra.mxu0 %v4521
      %v4636 = vpop.f32.mrf.mxu0
      %v4637 = vadd.f32 0.0, %v4636
      %4638 = vmatmul.f32.gmra.mxu0 %v4524
      %v4639 = vpop.f32.mrf.mxu0
      %v4640 = vadd.f32 0.0, %v4639
      %4641 = vmatmul.f32.gmra.mxu0 %v4527
      %v4642 = vpop.f32.mrf.mxu0
      %v4643 = vadd.f32 0.0, %v4642
      %4644 = vmatmul.f32.gmra.mxu0 %v4530
      %v4645 = vpop.f32.mrf.mxu0
      %v4646 = vadd.f32 0.0, %v4645
      %4647 = vmatmul.f32.gmra.mxu0 %v4533
      %v4648 = vpop.f32.mrf.mxu0
      %v4649 = vadd.f32 0.0, %v4648
      %4650 = vmatmul.f32.gmra.mxu0 %v4536
      %v4651 = vpop.f32.mrf.mxu0
      %v4652 = vadd.f32 0.0, %v4651
      %4653 = vmatmul.f32.gmra.mxu0 %v4539
      %v4654 = vpop.f32.mrf.mxu0
      %v4655 = vadd.f32 0.0, %v4654
      %4656 = vmatmul.f32.gmra.mxu0 %v4542
      %v4657 = vpop.f32.mrf.mxu0
      %v4658 = vadd.f32 0.0, %v4657
      %4659 = vmatmul.f32.gmra.mxu0 %v4545
      %v4660 = vpop.f32.mrf.mxu0
      %v4661 = vadd.f32 0.0, %v4660
      %4662 = vmatmul.f32.gmra.mxu0 %v4548
      %v4663 = vpop.f32.mrf.mxu0
      %v4664 = vadd.f32 0.0, %v4663
      %4665 = vmatmul.f32.gmra.mxu0 %v4551
      %v4666 = vpop.f32.mrf.mxu0
      %v4667 = vadd.f32 0.0, %v4666
      %4668 = vdwg.mxu0
      %v4669 = vadd.f32 %v4393, %v4574
      %v4670 = vadd.f32 %v4394, %v4577
      %v4671 = vadd.f32 %v4395, %v4580
      %v4672 = vadd.f32 %v4396, %v4583
      %v4673 = vadd.f32 %v4397, %v4586
      %v4674 = vadd.f32 %v4398, %v4589
      %v4675 = vadd.f32 %v4399, %v4592
      %v4676 = vadd.f32 %v4400, %v4595
      %v4677 = vadd.f32 %v4401, %v4598
      %v4678 = vadd.f32 %v4402, %v4601
      %v4679 = vadd.f32 %v4403, %v4604
      %v4680 = vadd.f32 %v4404, %v4607
      %v4681 = vadd.f32 %v4405, %v4610
      %v4682 = vadd.f32 %v4406, %v4613
      %v4683 = vadd.f32 %v4407, %v4616
      %v4684 = vadd.f32 %v4408, %v4619
      %v4685 = vadd.f32 %v4409, %v4622
      %v4686 = vadd.f32 %v4410, %v4625
      %v4687 = vadd.f32 %v4411, %v4628
      %v4688 = vadd.f32 %v4412, %v4631
      %v4689 = vadd.f32 %v4413, %v4634
      %v4690 = vadd.f32 %v4414, %v4637
      %v4691 = vadd.f32 %v4415, %v4640
      %v4692 = vadd.f32 %v4416, %v4643
      %v4693 = vadd.f32 %v4417, %v4646
      %v4694 = vadd.f32 %v4418, %v4649
      %v4695 = vadd.f32 %v4419, %v4652
      %v4696 = vadd.f32 %v4420, %v4655
      %v4697 = vadd.f32 %v4421, %v4658
      %v4698 = vadd.f32 %v4422, %v4661
      %v4699 = vadd.f32 %v4423, %v4664
      %v4700 = vadd.f32 %v4424, %v4667
      %v4701 = vld [vmem:[%s4148 + $0x2] sm:$0xff]
      %v4702 = vld [vmem:[%s4148 + $0xa] sm:$0xff]
      %v4703 = vld [vmem:[%s4148 + $0x1a] sm:$0xff]
      %v4704 = vld [vmem:[%s4148 + $0x22] sm:$0xff]
      %v4705 = vld [vmem:[%s4148 + $0x32] sm:$0xff]
      %v4706 = vld [vmem:[%s4148 + $0x3a] sm:$0xff]
      %v4707 = vld [vmem:[%s4148 + $0x4a] sm:$0xff]
      %v4708 = vld [vmem:[%s4148 + $0x52] sm:$0xff]
      %v4709 = vld [vmem:[%s4148 + $0x62] sm:$0xff]
      %v4710 = vld [vmem:[%s4148 + $0x6a] sm:$0xff]
      %v4711 = vld [vmem:[%s4148 + $0x7a] sm:$0xff]
      %v4712 = vld [vmem:[%s4148 + $0x82] sm:$0xff]
      %v4713 = vld [vmem:[%s4148 + $0x92] sm:$0xff]
      %v4714 = vld [vmem:[%s4148 + $0x9a] sm:$0xff]
      %v4715 = vld [vmem:[%s4148 + $0xaa] sm:$0xff]
      %v4716 = vld [vmem:[%s4148 + $0xb2] sm:$0xff]
      %v4717 = vld [vmem:[%s4148 + $0xc2] sm:$0xff]
      %v4718 = vld [vmem:[%s4148 + $0xca] sm:$0xff]
      %v4719 = vld [vmem:[%s4148 + $0xda] sm:$0xff]
      %v4720 = vld [vmem:[%s4148 + $0xe2] sm:$0xff]
      %v4721 = vld [vmem:[%s4148 + $0xf2] sm:$0xff]
      %v4722 = vld [vmem:[%s4148 + $0xfa] sm:$0xff]
      %v4723 = vld [vmem:[%s4148 + $0x10a] sm:$0xff]
      %v4724 = vld [vmem:[%s4148 + $0x112] sm:$0xff]
      %v4725 = vld [vmem:[%s4148 + $0x122] sm:$0xff]
      %v4726 = vld [vmem:[%s4148 + $0x12a] sm:$0xff]
      %v4727 = vld [vmem:[%s4148 + $0x13a] sm:$0xff]
      %v4728 = vld [vmem:[%s4148 + $0x142] sm:$0xff]
      %v4729 = vld [vmem:[%s4148 + $0x152] sm:$0xff]
      %v4730 = vld [vmem:[%s4148 + $0x15a] sm:$0xff]
      %v4731 = vld [vmem:[%s4148 + $0x16a] sm:$0xff]
      %v4732 = vld [vmem:[%s4148 + $0x172] sm:$0xff]
      %v4734 = vsel %vm434, %v4701, 0
      %v4737 = vsel %vm434, %v4702, 0
      %v4740 = vsel %vm434, %v4703, 0
      %v4743 = vsel %vm434, %v4704, 0
      %v4746 = vsel %vm434, %v4705, 0
      %v4749 = vsel %vm434, %v4706, 0
      %v4752 = vsel %vm434, %v4707, 0
      %v4755 = vsel %vm434, %v4708, 0
      %v4758 = vsel %vm434, %v4709, 0
      %v4761 = vsel %vm434, %v4710, 0
      %v4764 = vsel %vm434, %v4711, 0
      %v4767 = vsel %vm434, %v4712, 0
      %v4770 = vsel %vm434, %v4713, 0
      %v4773 = vsel %vm434, %v4714, 0
      %v4776 = vsel %vm434, %v4715, 0
      %v4779 = vsel %vm434, %v4716, 0
      %v4782 = vsel %vm434, %v4717, 0
      %v4785 = vsel %vm434, %v4718, 0
      %v4788 = vsel %vm434, %v4719, 0
      %v4791 = vsel %vm434, %v4720, 0
      %v4794 = vsel %vm434, %v4721, 0
      %v4797 = vsel %vm434, %v4722, 0
      %v4800 = vsel %vm434, %v4723, 0
      %v4803 = vsel %vm434, %v4724, 0
      %v4806 = vsel %vm434, %v4725, 0
      %v4809 = vsel %vm434, %v4726, 0
      %v4812 = vsel %vm434, %v4727, 0
      %v4815 = vsel %vm434, %v4728, 0
      %v4818 = vsel %vm434, %v4729, 0
      %v4821 = vsel %vm434, %v4730, 0
      %v4824 = vsel %vm434, %v4731, 0
      %v4827 = vsel %vm434, %v4732, 0
      %v4830 = vsel %vm2047, %v2555, 0
      %4832 = vmatpush.msra.mxu0 0.0
      %4833 = vmatpush.msra.mxu0 0.0
      %4834 = vmatpush.msra.mxu0 0.0
      %4835 = vmatpush.msra.mxu0 0.0
      %4836 = vmatpush.msra.mxu0 0.0
      %4837 = vmatpush.msra.mxu0 0.0
      %4838 = vmatpush.msra.mxu0 0.0
      %4839 = vmatpush.msra.mxu0 0.0
      %4840 = vmatpush.msra.mxu0 0.0
      %4841 = vmatpush.msra.mxu0 0.0
      %4842 = vmatpush.msra.mxu0 0.0
      %4843 = vmatpush.msra.mxu0 0.0
      %4844 = vmatpush.msra.mxu0 0.0
      %4845 = vmatpush.msra.mxu0 0.0
      %4846 = vmatpush.msra.mxu0 0.0
      %4847 = vmatpush.msra.mxu0 %v4830
      %4848 = vmatmul.f32.gmra.mxu0 %v4734
      %v4849 = vpop.f32.mrf.mxu0
      %v4850 = vadd.f32 0.0, %v4849
      %4851 = vmatmul.f32.gmra.mxu0 %v4737
      %v4852 = vpop.f32.mrf.mxu0
      %v4853 = vadd.f32 0.0, %v4852
      %4854 = vmatmul.f32.gmra.mxu0 %v4740
      %v4855 = vpop.f32.mrf.mxu0
      %v4856 = vadd.f32 0.0, %v4855
      %4857 = vmatmul.f32.gmra.mxu0 %v4743
      %v4858 = vpop.f32.mrf.mxu0
      %v4859 = vadd.f32 0.0, %v4858
      %4860 = vmatmul.f32.gmra.mxu0 %v4746
      %v4861 = vpop.f32.mrf.mxu0
      %v4862 = vadd.f32 0.0, %v4861
      %4863 = vmatmul.f32.gmra.mxu0 %v4749
      %v4864 = vpop.f32.mrf.mxu0
      %v4865 = vadd.f32 0.0, %v4864
      %4866 = vmatmul.f32.gmra.mxu0 %v4752
      %v4867 = vpop.f32.mrf.mxu0
      %v4868 = vadd.f32 0.0, %v4867
      %4869 = vmatmul.f32.gmra.mxu0 %v4755
      %v4870 = vpop.f32.mrf.mxu0
      %v4871 = vadd.f32 0.0, %v4870
      %4872 = vmatmul.f32.gmra.mxu0 %v4758
      %v4873 = vpop.f32.mrf.mxu0
      %v4874 = vadd.f32 0.0, %v4873
      %4875 = vmatmul.f32.gmra.mxu0 %v4761
      %v4876 = vpop.f32.mrf.mxu0
      %v4877 = vadd.f32 0.0, %v4876
      %4878 = vmatmul.f32.gmra.mxu0 %v4764
      %v4879 = vpop.f32.mrf.mxu0
      %v4880 = vadd.f32 0.0, %v4879
      %4881 = vmatmul.f32.gmra.mxu0 %v4767
      %v4882 = vpop.f32.mrf.mxu0
      %v4883 = vadd.f32 0.0, %v4882
      %4884 = vmatmul.f32.gmra.mxu0 %v4770
      %v4885 = vpop.f32.mrf.mxu0
      %v4886 = vadd.f32 0.0, %v4885
      %4887 = vmatmul.f32.gmra.mxu0 %v4773
      %v4888 = vpop.f32.mrf.mxu0
      %v4889 = vadd.f32 0.0, %v4888
      %4890 = vmatmul.f32.gmra.mxu0 %v4776
      %v4891 = vpop.f32.mrf.mxu0
      %v4892 = vadd.f32 0.0, %v4891
      %4893 = vmatmul.f32.gmra.mxu0 %v4779
      %v4894 = vpop.f32.mrf.mxu0
      %v4895 = vadd.f32 0.0, %v4894
      %4896 = vmatmul.f32.gmra.mxu0 %v4782
      %v4897 = vpop.f32.mrf.mxu0
      %v4898 = vadd.f32 0.0, %v4897
      %4899 = vmatmul.f32.gmra.mxu0 %v4785
      %v4900 = vpop.f32.mrf.mxu0
      %v4901 = vadd.f32 0.0, %v4900
      %4902 = vmatmul.f32.gmra.mxu0 %v4788
      %v4903 = vpop.f32.mrf.mxu0
      %v4904 = vadd.f32 0.0, %v4903
      %4905 = vmatmul.f32.gmra.mxu0 %v4791
      %v4906 = vpop.f32.mrf.mxu0
      %v4907 = vadd.f32 0.0, %v4906
      %4908 = vmatmul.f32.gmra.mxu0 %v4794
      %v4909 = vpop.f32.mrf.mxu0
      %v4910 = vadd.f32 0.0, %v4909
      %4911 = vmatmul.f32.gmra.mxu0 %v4797
      %v4912 = vpop.f32.mrf.mxu0
      %v4913 = vadd.f32 0.0, %v4912
      %4914 = vmatmul.f32.gmra.mxu0 %v4800
      %v4915 = vpop.f32.mrf.mxu0
      %v4916 = vadd.f32 0.0, %v4915
      %4917 = vmatmul.f32.gmra.mxu0 %v4803
      %v4918 = vpop.f32.mrf.mxu0
      %v4919 = vadd.f32 0.0, %v4918
      %4920 = vmatmul.f32.gmra.mxu0 %v4806
      %v4921 = vpop.f32.mrf.mxu0
      %v4922 = vadd.f32 0.0, %v4921
      %4923 = vmatmul.f32.gmra.mxu0 %v4809
      %v4924 = vpop.f32.mrf.mxu0
      %v4925 = vadd.f32 0.0, %v4924
      %4926 = vmatmul.f32.gmra.mxu0 %v4812
      %v4927 = vpop.f32.mrf.mxu0
      %v4928 = vadd.f32 0.0, %v4927
      %4929 = vmatmul.f32.gmra.mxu0 %v4815
      %v4930 = vpop.f32.mrf.mxu0
      %v4931 = vadd.f32 0.0, %v4930
      %4932 = vmatmul.f32.gmra.mxu0 %v4818
      %v4933 = vpop.f32.mrf.mxu0
      %v4934 = vadd.f32 0.0, %v4933
      %4935 = vmatmul.f32.gmra.mxu0 %v4821
      %v4936 = vpop.f32.mrf.mxu0
      %v4937 = vadd.f32 0.0, %v4936
      %4938 = vmatmul.f32.gmra.mxu0 %v4824
      %v4939 = vpop.f32.mrf.mxu0
      %v4940 = vadd.f32 0.0, %v4939
      %4941 = vmatmul.f32.gmra.mxu0 %v4827
      %v4942 = vpop.f32.mrf.mxu0
      %v4943 = vadd.f32 0.0, %v4942
      %4944 = vdwg.mxu0
      %v4945 = vadd.f32 %v4669, %v4850
      %v4946 = vadd.f32 %v4670, %v4853
      %v4947 = vadd.f32 %v4671, %v4856
      %v4948 = vadd.f32 %v4672, %v4859
      %v4949 = vadd.f32 %v4673, %v4862
      %v4950 = vadd.f32 %v4674, %v4865
      %v4951 = vadd.f32 %v4675, %v4868
      %v4952 = vadd.f32 %v4676, %v4871
      %v4953 = vadd.f32 %v4677, %v4874
      %v4954 = vadd.f32 %v4678, %v4877
      %v4955 = vadd.f32 %v4679, %v4880
      %v4956 = vadd.f32 %v4680, %v4883
      %v4957 = vadd.f32 %v4681, %v4886
      %v4958 = vadd.f32 %v4682, %v4889
      %v4959 = vadd.f32 %v4683, %v4892
      %v4960 = vadd.f32 %v4684, %v4895
      %v4961 = vadd.f32 %v4685, %v4898
      %v4962 = vadd.f32 %v4686, %v4901
      %v4963 = vadd.f32 %v4687, %v4904
      %v4964 = vadd.f32 %v4688, %v4907
      %v4965 = vadd.f32 %v4689, %v4910
      %v4966 = vadd.f32 %v4690, %v4913
      %v4967 = vadd.f32 %v4691, %v4916
      %v4968 = vadd.f32 %v4692, %v4919
      %v4969 = vadd.f32 %v4693, %v4922
      %v4970 = vadd.f32 %v4694, %v4925
      %v4971 = vadd.f32 %v4695, %v4928
      %v4972 = vadd.f32 %v4696, %v4931
      %v4973 = vadd.f32 %v4697, %v4934
      %v4974 = vadd.f32 %v4698, %v4937
      %v4975 = vadd.f32 %v4699, %v4940
      %v4976 = vadd.f32 %v4700, %v4943
      %v4977 = vld [vmem:[%s5] sm:$0xf]
      %v4978 = vld [vmem:[%s5 + $0x4] sm:$0xf]
      %v4979 = vld [vmem:[%s5 + $0x8] sm:$0xf]
      %v4980 = vld [vmem:[%s5 + $0xc] sm:$0xf]
      %v4981 = vld [vmem:[%s5 + $0x10] sm:$0xf]
      %v4982 = vld [vmem:[%s5 + $0x14] sm:$0xf]
      %v4983 = vld [vmem:[%s5 + $0x18] sm:$0xf]
      %v4984 = vld [vmem:[%s5 + $0x1c] sm:$0xf]
      %v4985 = vld [vmem:[%s5 + $0x20] sm:$0xf]
      %v4986 = vld [vmem:[#allocation3] sm:$0xff]
      %v4987 = vld [vmem:[#allocation3 + $0x8] sm:$0xff]
      %v4988 = vld [vmem:[#allocation3 + $0x18] sm:$0xff]
      %v4989 = vld [vmem:[#allocation3 + $0x20] sm:$0xff]
      %v4990 = vld [vmem:[#allocation3 + $0x30] sm:$0xff]
      %v4991 = vld [vmem:[#allocation3 + $0x38] sm:$0xff]
      %v4992 = vld [vmem:[#allocation3 + $0x48] sm:$0xff]
      %v4993 = vld [vmem:[#allocation3 + $0x50] sm:$0xff]
      %v4994 = vld [vmem:[#allocation3 + $0x60] sm:$0xff]
      %v4995 = vld [vmem:[#allocation3 + $0x68] sm:$0xff]
      %v4996 = vld [vmem:[#allocation3 + $0x78] sm:$0xff]
      %v4997 = vld [vmem:[#allocation3 + $0x80] sm:$0xff]
      %v4998 = vld [vmem:[#allocation3 + $0x90] sm:$0xff]
      %v4999 = vld [vmem:[#allocation3 + $0x98] sm:$0xff]
      %v5000 = vld [vmem:[#allocation3 + $0xa8] sm:$0xff]
      %v5001 = vld [vmem:[#allocation3 + $0xb0] sm:$0xff]
      %v5002 = vld [vmem:[#allocation3 + $0xc0] sm:$0xff]
      %v5003 = vld [vmem:[#allocation3 + $0xc8] sm:$0xff]
      %v5004 = vld [vmem:[#allocation3 + $0xd8] sm:$0xff]
      %v5005 = vld [vmem:[#allocation3 + $0xe0] sm:$0xff]
      %v5006 = vld [vmem:[#allocation3 + $0xf0] sm:$0xff]
      %v5007 = vld [vmem:[#allocation3 + $0xf8] sm:$0xff]
      %v5008 = vld [vmem:[#allocation3 + $0x108] sm:$0xff]
      %v5009 = vld [vmem:[#allocation3 + $0x110] sm:$0xff]
      %v5010 = vld [vmem:[#allocation3 + $0x120] sm:$0xff]
      %v5011 = vld [vmem:[#allocation3 + $0x128] sm:$0xff]
      %v5012 = vld [vmem:[#allocation3 + $0x138] sm:$0xff]
      %v5013 = vld [vmem:[#allocation3 + $0x140] sm:$0xff]
      %v5014 = vld [vmem:[#allocation3 + $0x150] sm:$0xff]
      %v5015 = vld [vmem:[#allocation3 + $0x158] sm:$0xff]
      %v5016 = vld [vmem:[#allocation3 + $0x168] sm:$0xff]
      %v5017 = vld [vmem:[#allocation3 + $0x170] sm:$0xff]
      %v5018 = vld [vmem:[#allocation3 + $0x1] sm:$0xff]
      %v5019 = vld [vmem:[#allocation3 + $0x9] sm:$0xff]
      %v5020 = vld [vmem:[#allocation3 + $0x19] sm:$0xff]
      %v5021 = vld [vmem:[#allocation3 + $0x21] sm:$0xff]
      %v5022 = vld [vmem:[#allocation3 + $0x31] sm:$0xff]
      %v5023 = vld [vmem:[#allocation3 + $0x39] sm:$0xff]
      %v5024 = vld [vmem:[#allocation3 + $0x49] sm:$0xff]
      %v5025 = vld [vmem:[#allocation3 + $0x51] sm:$0xff]
      %v5026 = vld [vmem:[#allocation3 + $0x61] sm:$0xff]
      %v5027 = vld [vmem:[#allocation3 + $0x69] sm:$0xff]
      %v5028 = vld [vmem:[#allocation3 + $0x79] sm:$0xff]
      %v5029 = vld [vmem:[#allocation3 + $0x81] sm:$0xff]
      %v5030 = vld [vmem:[#allocation3 + $0x91] sm:$0xff]
      %v5031 = vld [vmem:[#allocation3 + $0x99] sm:$0xff]
      %v5032 = vld [vmem:[#allocation3 + $0xa9] sm:$0xff]
      %v5033 = vld [vmem:[#allocation3 + $0xb1] sm:$0xff]
      %v5034 = vld [vmem:[#allocation3 + $0xc1] sm:$0xff]
      %v5035 = vld [vmem:[#allocation3 + $0xc9] sm:$0xff]
      %v5036 = vld [vmem:[#allocation3 + $0xd9] sm:$0xff]
      %v5037 = vld [vmem:[#allocation3 + $0xe1] sm:$0xff]
      %v5038 = vld [vmem:[#allocation3 + $0xf1] sm:$0xff]
      %v5039 = vld [vmem:[#allocation3 + $0xf9] sm:$0xff]
      %v5040 = vld [vmem:[#allocation3 + $0x109] sm:$0xff]
      %v5041 = vld [vmem:[#allocation3 + $0x111] sm:$0xff]
      %v5042 = vld [vmem:[#allocation3 + $0x121] sm:$0xff]
      %v5043 = vld [vmem:[#allocation3 + $0x129] sm:$0xff]
      %v5044 = vld [vmem:[#allocation3 + $0x139] sm:$0xff]
      %v5045 = vld [vmem:[#allocation3 + $0x141] sm:$0xff]
      %v5046 = vld [vmem:[#allocation3 + $0x151] sm:$0xff]
      %v5047 = vld [vmem:[#allocation3 + $0x159] sm:$0xff]
      %v5048 = vld [vmem:[#allocation3 + $0x169] sm:$0xff]
      %v5049 = vld [vmem:[#allocation3 + $0x171] sm:$0xff]
      %v5051 = vsel %vm434, %v5018, 0
      %v5054 = vsel %vm434, %v5019, 0
      %v5057 = vsel %vm434, %v5020, 0
      %v5060 = vsel %vm434, %v5021, 0
      %v5063 = vsel %vm434, %v5022, 0
      %v5066 = vsel %vm434, %v5023, 0
      %v5069 = vsel %vm434, %v5024, 0
      %v5072 = vsel %vm434, %v5025, 0
      %v5075 = vsel %vm434, %v5026, 0
      %v5078 = vsel %vm434, %v5027, 0
      %v5081 = vsel %vm434, %v5028, 0
      %v5084 = vsel %vm434, %v5029, 0
      %v5087 = vsel %vm434, %v5030, 0
      %v5090 = vsel %vm434, %v5031, 0
      %v5093 = vsel %vm434, %v5032, 0
      %v5096 = vsel %vm434, %v5033, 0
      %v5099 = vsel %vm434, %v5034, 0
      %v5102 = vsel %vm434, %v5035, 0
      %v5105 = vsel %vm434, %v5036, 0
      %v5108 = vsel %vm434, %v5037, 0
      %v5111 = vsel %vm434, %v5038, 0
      %v5114 = vsel %vm434, %v5039, 0
      %v5117 = vsel %vm434, %v5040, 0
      %v5120 = vsel %vm434, %v5041, 0
      %v5123 = vsel %vm434, %v5042, 0
      %v5126 = vsel %vm434, %v5043, 0
      %v5129 = vsel %vm434, %v5044, 0
      %v5132 = vsel %vm434, %v5045, 0
      %v5135 = vsel %vm434, %v5046, 0
      %v5138 = vsel %vm434, %v5047, 0
      %v5141 = vsel %vm434, %v5048, 0
      %v5144 = vsel %vm434, %v5049, 0
      %v5147 = vsel %vm2047, %v4978, 0
      %5149 = vmatpush.msra.mxu0 0.0
      %5150 = vmatpush.msra.mxu0 0.0
      %5151 = vmatpush.msra.mxu0 0.0
      %5152 = vmatpush.msra.mxu0 0.0
      %5153 = vmatpush.msra.mxu0 0.0
      %5154 = vmatpush.msra.mxu0 0.0
      %5155 = vmatpush.msra.mxu0 0.0
      %5156 = vmatpush.msra.mxu0 0.0
      %5157 = vmatpush.msra.mxu0 0.0
      %5158 = vmatpush.msra.mxu0 0.0
      %5159 = vmatpush.msra.mxu0 0.0
      %5160 = vmatpush.msra.mxu0 0.0
      %5161 = vmatpush.msra.mxu0 0.0
      %5162 = vmatpush.msra.mxu0 0.0
      %5163 = vmatpush.msra.mxu0 0.0
      %5164 = vmatpush.msra.mxu0 %v5147
      %5165 = vmatmul.f32.gmra.mxu0 %v5051
      %v5166 = vpop.f32.mrf.mxu0
      %v5167 = vadd.f32 0.0, %v5166
      %5168 = vmatmul.f32.gmra.mxu0 %v5054
      %v5169 = vpop.f32.mrf.mxu0
      %v5170 = vadd.f32 0.0, %v5169
      %5171 = vmatmul.f32.gmra.mxu0 %v5057
      %v5172 = vpop.f32.mrf.mxu0
      %v5173 = vadd.f32 0.0, %v5172
      %5174 = vmatmul.f32.gmra.mxu0 %v5060
      %v5175 = vpop.f32.mrf.mxu0
      %v5176 = vadd.f32 0.0, %v5175
      %5177 = vmatmul.f32.gmra.mxu0 %v5063
      %v5178 = vpop.f32.mrf.mxu0
      %v5179 = vadd.f32 0.0, %v5178
      %5180 = vmatmul.f32.gmra.mxu0 %v5066
      %v5181 = vpop.f32.mrf.mxu0
      %v5182 = vadd.f32 0.0, %v5181
      %5183 = vmatmul.f32.gmra.mxu0 %v5069
      %v5184 = vpop.f32.mrf.mxu0
      %v5185 = vadd.f32 0.0, %v5184
      %5186 = vmatmul.f32.gmra.mxu0 %v5072
      %v5187 = vpop.f32.mrf.mxu0
      %v5188 = vadd.f32 0.0, %v5187
      %5189 = vmatmul.f32.gmra.mxu0 %v5075
      %v5190 = vpop.f32.mrf.mxu0
      %v5191 = vadd.f32 0.0, %v5190
      %5192 = vmatmul.f32.gmra.mxu0 %v5078
      %v5193 = vpop.f32.mrf.mxu0
      %v5194 = vadd.f32 0.0, %v5193
      %5195 = vmatmul.f32.gmra.mxu0 %v5081
      %v5196 = vpop.f32.mrf.mxu0
      %v5197 = vadd.f32 0.0, %v5196
      %5198 = vmatmul.f32.gmra.mxu0 %v5084
      %v5199 = vpop.f32.mrf.mxu0
      %v5200 = vadd.f32 0.0, %v5199
      %5201 = vmatmul.f32.gmra.mxu0 %v5087
      %v5202 = vpop.f32.mrf.mxu0
      %v5203 = vadd.f32 0.0, %v5202
      %5204 = vmatmul.f32.gmra.mxu0 %v5090
      %v5205 = vpop.f32.mrf.mxu0
      %v5206 = vadd.f32 0.0, %v5205
      %5207 = vmatmul.f32.gmra.mxu0 %v5093
      %v5208 = vpop.f32.mrf.mxu0
      %v5209 = vadd.f32 0.0, %v5208
      %5210 = vmatmul.f32.gmra.mxu0 %v5096
      %v5211 = vpop.f32.mrf.mxu0
      %v5212 = vadd.f32 0.0, %v5211
      %5213 = vmatmul.f32.gmra.mxu0 %v5099
      %v5214 = vpop.f32.mrf.mxu0
      %v5215 = vadd.f32 0.0, %v5214
      %5216 = vmatmul.f32.gmra.mxu0 %v5102
      %v5217 = vpop.f32.mrf.mxu0
      %v5218 = vadd.f32 0.0, %v5217
      %5219 = vmatmul.f32.gmra.mxu0 %v5105
      %v5220 = vpop.f32.mrf.mxu0
      %v5221 = vadd.f32 0.0, %v5220
      %5222 = vmatmul.f32.gmra.mxu0 %v5108
      %v5223 = vpop.f32.mrf.mxu0
      %v5224 = vadd.f32 0.0, %v5223
      %5225 = vmatmul.f32.gmra.mxu0 %v5111
      %v5226 = vpop.f32.mrf.mxu0
      %v5227 = vadd.f32 0.0, %v5226
      %5228 = vmatmul.f32.gmra.mxu0 %v5114
      %v5229 = vpop.f32.mrf.mxu0
      %v5230 = vadd.f32 0.0, %v5229
      %5231 = vmatmul.f32.gmra.mxu0 %v5117
      %v5232 = vpop.f32.mrf.mxu0
      %v5233 = vadd.f32 0.0, %v5232
      %5234 = vmatmul.f32.gmra.mxu0 %v5120
      %v5235 = vpop.f32.mrf.mxu0
      %v5236 = vadd.f32 0.0, %v5235
      %5237 = vmatmul.f32.gmra.mxu0 %v5123
      %v5238 = vpop.f32.mrf.mxu0
      %v5239 = vadd.f32 0.0, %v5238
      %5240 = vmatmul.f32.gmra.mxu0 %v5126
      %v5241 = vpop.f32.mrf.mxu0
      %v5242 = vadd.f32 0.0, %v5241
      %5243 = vmatmul.f32.gmra.mxu0 %v5129
      %v5244 = vpop.f32.mrf.mxu0
      %v5245 = vadd.f32 0.0, %v5244
      %5246 = vmatmul.f32.gmra.mxu0 %v5132
      %v5247 = vpop.f32.mrf.mxu0
      %v5248 = vadd.f32 0.0, %v5247
      %5249 = vmatmul.f32.gmra.mxu0 %v5135
      %v5250 = vpop.f32.mrf.mxu0
      %v5251 = vadd.f32 0.0, %v5250
      %5252 = vmatmul.f32.gmra.mxu0 %v5138
      %v5253 = vpop.f32.mrf.mxu0
      %v5254 = vadd.f32 0.0, %v5253
      %5255 = vmatmul.f32.gmra.mxu0 %v5141
      %v5256 = vpop.f32.mrf.mxu0
      %v5257 = vadd.f32 0.0, %v5256
      %5258 = vmatmul.f32.gmra.mxu0 %v5144
      %v5259 = vpop.f32.mrf.mxu0
      %v5260 = vadd.f32 0.0, %v5259
      %5261 = vdwg.mxu0
      %v5263 = vsel %vm434, %v4986, 0
      %v5266 = vsel %vm434, %v4987, 0
      %v5269 = vsel %vm434, %v4988, 0
      %v5272 = vsel %vm434, %v4989, 0
      %v5275 = vsel %vm434, %v4990, 0
      %v5278 = vsel %vm434, %v4991, 0
      %v5281 = vsel %vm434, %v4992, 0
      %v5284 = vsel %vm434, %v4993, 0
      %v5287 = vsel %vm434, %v4994, 0
      %v5290 = vsel %vm434, %v4995, 0
      %v5293 = vsel %vm434, %v4996, 0
      %v5296 = vsel %vm434, %v4997, 0
      %v5299 = vsel %vm434, %v4998, 0
      %v5302 = vsel %vm434, %v4999, 0
      %v5305 = vsel %vm434, %v5000, 0
      %v5308 = vsel %vm434, %v5001, 0
      %v5311 = vsel %vm434, %v5002, 0
      %v5314 = vsel %vm434, %v5003, 0
      %v5317 = vsel %vm434, %v5004, 0
      %v5320 = vsel %vm434, %v5005, 0
      %v5323 = vsel %vm434, %v5006, 0
      %v5326 = vsel %vm434, %v5007, 0
      %v5329 = vsel %vm434, %v5008, 0
      %v5332 = vsel %vm434, %v5009, 0
      %v5335 = vsel %vm434, %v5010, 0
      %v5338 = vsel %vm434, %v5011, 0
      %v5341 = vsel %vm434, %v5012, 0
      %v5344 = vsel %vm434, %v5013, 0
      %v5347 = vsel %vm434, %v5014, 0
      %v5350 = vsel %vm434, %v5015, 0
      %v5353 = vsel %vm434, %v5016, 0
      %v5356 = vsel %vm434, %v5017, 0
      %v5359 = vsel %vm2047, %v4977, 0
      %5361 = vmatpush.msra.mxu0 0.0
      %5362 = vmatpush.msra.mxu0 0.0
      %5363 = vmatpush.msra.mxu0 0.0
      %5364 = vmatpush.msra.mxu0 0.0
      %5365 = vmatpush.msra.mxu0 0.0
      %5366 = vmatpush.msra.mxu0 0.0
      %5367 = vmatpush.msra.mxu0 0.0
      %5368 = vmatpush.msra.mxu0 0.0
      %5369 = vmatpush.msra.mxu0 0.0
      %5370 = vmatpush.msra.mxu0 0.0
      %5371 = vmatpush.msra.mxu0 0.0
      %5372 = vmatpush.msra.mxu0 0.0
      %5373 = vmatpush.msra.mxu0 0.0
      %5374 = vmatpush.msra.mxu0 0.0
      %5375 = vmatpush.msra.mxu0 0.0
      %5376 = vmatpush.msra.mxu0 %v5359
      %5377 = vmatmul.f32.gmra.mxu0 %v5263
      %v5378 = vpop.f32.mrf.mxu0
      %v5379 = vadd.f32 %v5167, %v5378
      %5380 = vmatmul.f32.gmra.mxu0 %v5266
      %v5381 = vpop.f32.mrf.mxu0
      %v5382 = vadd.f32 %v5170, %v5381
      %5383 = vmatmul.f32.gmra.mxu0 %v5269
      %v5384 = vpop.f32.mrf.mxu0
      %v5385 = vadd.f32 %v5173, %v5384
      %5386 = vmatmul.f32.gmra.mxu0 %v5272
      %v5387 = vpop.f32.mrf.mxu0
      %v5388 = vadd.f32 %v5176, %v5387
      %5389 = vmatmul.f32.gmra.mxu0 %v5275
      %v5390 = vpop.f32.mrf.mxu0
      %v5391 = vadd.f32 %v5179, %v5390
      %5392 = vmatmul.f32.gmra.mxu0 %v5278
      %v5393 = vpop.f32.mrf.mxu0
      %v5394 = vadd.f32 %v5182, %v5393
      %5395 = vmatmul.f32.gmra.mxu0 %v5281
      %v5396 = vpop.f32.mrf.mxu0
      %v5397 = vadd.f32 %v5185, %v5396
      %5398 = vmatmul.f32.gmra.mxu0 %v5284
      %v5399 = vpop.f32.mrf.mxu0
      %v5400 = vadd.f32 %v5188, %v5399
      %5401 = vmatmul.f32.gmra.mxu0 %v5287
      %v5402 = vpop.f32.mrf.mxu0
      %v5403 = vadd.f32 %v5191, %v5402
      %5404 = vmatmul.f32.gmra.mxu0 %v5290
      %v5405 = vpop.f32.mrf.mxu0
      %v5406 = vadd.f32 %v5194, %v5405
      %5407 = vmatmul.f32.gmra.mxu0 %v5293
      %v5408 = vpop.f32.mrf.mxu0
      %v5409 = vadd.f32 %v5197, %v5408
      %5410 = vmatmul.f32.gmra.mxu0 %v5296
      %v5411 = vpop.f32.mrf.mxu0
      %v5412 = vadd.f32 %v5200, %v5411
      %5413 = vmatmul.f32.gmra.mxu0 %v5299
      %v5414 = vpop.f32.mrf.mxu0
      %v5415 = vadd.f32 %v5203, %v5414
      %5416 = vmatmul.f32.gmra.mxu0 %v5302
      %v5417 = vpop.f32.mrf.mxu0
      %v5418 = vadd.f32 %v5206, %v5417
      %5419 = vmatmul.f32.gmra.mxu0 %v5305
      %v5420 = vpop.f32.mrf.mxu0
      %v5421 = vadd.f32 %v5209, %v5420
      %5422 = vmatmul.f32.gmra.mxu0 %v5308
      %v5423 = vpop.f32.mrf.mxu0
      %v5424 = vadd.f32 %v5212, %v5423
      %5425 = vmatmul.f32.gmra.mxu0 %v5311
      %v5426 = vpop.f32.mrf.mxu0
      %v5427 = vadd.f32 %v5215, %v5426
      %5428 = vmatmul.f32.gmra.mxu0 %v5314
      %v5429 = vpop.f32.mrf.mxu0
      %v5430 = vadd.f32 %v5218, %v5429
      %5431 = vmatmul.f32.gmra.mxu0 %v5317
      %v5432 = vpop.f32.mrf.mxu0
      %v5433 = vadd.f32 %v5221, %v5432
      %5434 = vmatmul.f32.gmra.mxu0 %v5320
      %v5435 = vpop.f32.mrf.mxu0
      %v5436 = vadd.f32 %v5224, %v5435
      %5437 = vmatmul.f32.gmra.mxu0 %v5323
      %v5438 = vpop.f32.mrf.mxu0
      %v5439 = vadd.f32 %v5227, %v5438
      %5440 = vmatmul.f32.gmra.mxu0 %v5326
      %v5441 = vpop.f32.mrf.mxu0
      %v5442 = vadd.f32 %v5230, %v5441
      %5443 = vmatmul.f32.gmra.mxu0 %v5329
      %v5444 = vpop.f32.mrf.mxu0
      %v5445 = vadd.f32 %v5233, %v5444
      %5446 = vmatmul.f32.gmra.mxu0 %v5332
      %v5447 = vpop.f32.mrf.mxu0
      %v5448 = vadd.f32 %v5236, %v5447
      %5449 = vmatmul.f32.gmra.mxu0 %v5335
      %v5450 = vpop.f32.mrf.mxu0
      %v5451 = vadd.f32 %v5239, %v5450
      %5452 = vmatmul.f32.gmra.mxu0 %v5338
      %v5453 = vpop.f32.mrf.mxu0
      %v5454 = vadd.f32 %v5242, %v5453
      %5455 = vmatmul.f32.gmra.mxu0 %v5341
      %v5456 = vpop.f32.mrf.mxu0
      %v5457 = vadd.f32 %v5245, %v5456
      %5458 = vmatmul.f32.gmra.mxu0 %v5344
      %v5459 = vpop.f32.mrf.mxu0
      %v5460 = vadd.f32 %v5248, %v5459
      %5461 = vmatmul.f32.gmra.mxu0 %v5347
      %v5462 = vpop.f32.mrf.mxu0
      %v5463 = vadd.f32 %v5251, %v5462
      %5464 = vmatmul.f32.gmra.mxu0 %v5350
      %v5465 = vpop.f32.mrf.mxu0
      %v5466 = vadd.f32 %v5254, %v5465
      %5467 = vmatmul.f32.gmra.mxu0 %v5353
      %v5468 = vpop.f32.mrf.mxu0
      %v5469 = vadd.f32 %v5257, %v5468
      %5470 = vmatmul.f32.gmra.mxu0 %v5356
      %v5471 = vpop.f32.mrf.mxu0
      %v5472 = vadd.f32 %v5260, %v5471
      %5473 = vdwg.mxu0
      %v5474 = vld [vmem:[#allocation3 + $0x2] sm:$0xff]
      %v5475 = vld [vmem:[#allocation3 + $0xa] sm:$0xff]
      %v5476 = vld [vmem:[#allocation3 + $0x1a] sm:$0xff]
      %v5477 = vld [vmem:[#allocation3 + $0x22] sm:$0xff]
      %v5478 = vld [vmem:[#allocation3 + $0x32] sm:$0xff]
      %v5479 = vld [vmem:[#allocation3 + $0x3a] sm:$0xff]
      %v5480 = vld [vmem:[#allocation3 + $0x4a] sm:$0xff]
      %v5481 = vld [vmem:[#allocation3 + $0x52] sm:$0xff]
      %v5482 = vld [vmem:[#allocation3 + $0x62] sm:$0xff]
      %v5483 = vld [vmem:[#allocation3 + $0x6a] sm:$0xff]
      %v5484 = vld [vmem:[#allocation3 + $0x7a] sm:$0xff]
      %v5485 = vld [vmem:[#allocation3 + $0x82] sm:$0xff]
      %v5486 = vld [vmem:[#allocation3 + $0x92] sm:$0xff]
      %v5487 = vld [vmem:[#allocation3 + $0x9a] sm:$0xff]
      %v5488 = vld [vmem:[#allocation3 + $0xaa] sm:$0xff]
      %v5489 = vld [vmem:[#allocation3 + $0xb2] sm:$0xff]
      %v5490 = vld [vmem:[#allocation3 + $0xc2] sm:$0xff]
      %v5491 = vld [vmem:[#allocation3 + $0xca] sm:$0xff]
      %v5492 = vld [vmem:[#allocation3 + $0xda] sm:$0xff]
      %v5493 = vld [vmem:[#allocation3 + $0xe2] sm:$0xff]
      %v5494 = vld [vmem:[#allocation3 + $0xf2] sm:$0xff]
      %v5495 = vld [vmem:[#allocation3 + $0xfa] sm:$0xff]
      %v5496 = vld [vmem:[#allocation3 + $0x10a] sm:$0xff]
      %v5497 = vld [vmem:[#allocation3 + $0x112] sm:$0xff]
      %v5498 = vld [vmem:[#allocation3 + $0x122] sm:$0xff]
      %v5499 = vld [vmem:[#allocation3 + $0x12a] sm:$0xff]
      %v5500 = vld [vmem:[#allocation3 + $0x13a] sm:$0xff]
      %v5501 = vld [vmem:[#allocation3 + $0x142] sm:$0xff]
      %v5502 = vld [vmem:[#allocation3 + $0x152] sm:$0xff]
      %v5503 = vld [vmem:[#allocation3 + $0x15a] sm:$0xff]
      %v5504 = vld [vmem:[#allocation3 + $0x16a] sm:$0xff]
      %v5505 = vld [vmem:[#allocation3 + $0x172] sm:$0xff]
      %v5507 = vsel %vm434, %v5474, 0
      %v5510 = vsel %vm434, %v5475, 0
      %v5513 = vsel %vm434, %v5476, 0
      %v5516 = vsel %vm434, %v5477, 0
      %v5519 = vsel %vm434, %v5478, 0
      %v5522 = vsel %vm434, %v5479, 0
      %v5525 = vsel %vm434, %v5480, 0
      %v5528 = vsel %vm434, %v5481, 0
      %v5531 = vsel %vm434, %v5482, 0
      %v5534 = vsel %vm434, %v5483, 0
      %v5537 = vsel %vm434, %v5484, 0
      %v5540 = vsel %vm434, %v5485, 0
      %v5543 = vsel %vm434, %v5486, 0
      %v5546 = vsel %vm434, %v5487, 0
      %v5549 = vsel %vm434, %v5488, 0
      %v5552 = vsel %vm434, %v5489, 0
      %v5555 = vsel %vm434, %v5490, 0
      %v5558 = vsel %vm434, %v5491, 0
      %v5561 = vsel %vm434, %v5492, 0
      %v5564 = vsel %vm434, %v5493, 0
      %v5567 = vsel %vm434, %v5494, 0
      %v5570 = vsel %vm434, %v5495, 0
      %v5573 = vsel %vm434, %v5496, 0
      %v5576 = vsel %vm434, %v5497, 0
      %v5579 = vsel %vm434, %v5498, 0
      %v5582 = vsel %vm434, %v5499, 0
      %v5585 = vsel %vm434, %v5500, 0
      %v5588 = vsel %vm434, %v5501, 0
      %v5591 = vsel %vm434, %v5502, 0
      %v5594 = vsel %vm434, %v5503, 0
      %v5597 = vsel %vm434, %v5504, 0
      %v5600 = vsel %vm434, %v5505, 0
      %v5603 = vsel %vm2047, %v4979, 0
      %5605 = vmatpush.msra.mxu0 0.0
      %5606 = vmatpush.msra.mxu0 0.0
      %5607 = vmatpush.msra.mxu0 0.0
      %5608 = vmatpush.msra.mxu0 0.0
      %5609 = vmatpush.msra.mxu0 0.0
      %5610 = vmatpush.msra.mxu0 0.0
      %5611 = vmatpush.msra.mxu0 0.0
      %5612 = vmatpush.msra.mxu0 0.0
      %5613 = vmatpush.msra.mxu0 0.0
      %5614 = vmatpush.msra.mxu0 0.0
      %5615 = vmatpush.msra.mxu0 0.0
      %5616 = vmatpush.msra.mxu0 0.0
      %5617 = vmatpush.msra.mxu0 0.0
      %5618 = vmatpush.msra.mxu0 0.0
      %5619 = vmatpush.msra.mxu0 0.0
      %5620 = vmatpush.msra.mxu0 %v5603
      %5621 = vmatmul.f32.gmra.mxu0 %v5507
      %v5622 = vpop.f32.mrf.mxu0
      %v5623 = vadd.f32 0.0, %v5622
      %5624 = vmatmul.f32.gmra.mxu0 %v5510
      %v5625 = vpop.f32.mrf.mxu0
      %v5626 = vadd.f32 0.0, %v5625
      %5627 = vmatmul.f32.gmra.mxu0 %v5513
      %v5628 = vpop.f32.mrf.mxu0
      %v5629 = vadd.f32 0.0, %v5628
      %5630 = vmatmul.f32.gmra.mxu0 %v5516
      %v5631 = vpop.f32.mrf.mxu0
      %v5632 = vadd.f32 0.0, %v5631
      %5633 = vmatmul.f32.gmra.mxu0 %v5519
      %v5634 = vpop.f32.mrf.mxu0
      %v5635 = vadd.f32 0.0, %v5634
      %5636 = vmatmul.f32.gmra.mxu0 %v5522
      %v5637 = vpop.f32.mrf.mxu0
      %v5638 = vadd.f32 0.0, %v5637
      %5639 = vmatmul.f32.gmra.mxu0 %v5525
      %v5640 = vpop.f32.mrf.mxu0
      %v5641 = vadd.f32 0.0, %v5640
      %5642 = vmatmul.f32.gmra.mxu0 %v5528
      %v5643 = vpop.f32.mrf.mxu0
      %v5644 = vadd.f32 0.0, %v5643
      %5645 = vmatmul.f32.gmra.mxu0 %v5531
      %v5646 = vpop.f32.mrf.mxu0
      %v5647 = vadd.f32 0.0, %v5646
      %5648 = vmatmul.f32.gmra.mxu0 %v5534
      %v5649 = vpop.f32.mrf.mxu0
      %v5650 = vadd.f32 0.0, %v5649
      %5651 = vmatmul.f32.gmra.mxu0 %v5537
      %v5652 = vpop.f32.mrf.mxu0
      %v5653 = vadd.f32 0.0, %v5652
      %5654 = vmatmul.f32.gmra.mxu0 %v5540
      %v5655 = vpop.f32.mrf.mxu0
      %v5656 = vadd.f32 0.0, %v5655
      %5657 = vmatmul.f32.gmra.mxu0 %v5543
      %v5658 = vpop.f32.mrf.mxu0
      %v5659 = vadd.f32 0.0, %v5658
      %5660 = vmatmul.f32.gmra.mxu0 %v5546
      %v5661 = vpop.f32.mrf.mxu0
      %v5662 = vadd.f32 0.0, %v5661
      %5663 = vmatmul.f32.gmra.mxu0 %v5549
      %v5664 = vpop.f32.mrf.mxu0
      %v5665 = vadd.f32 0.0, %v5664
      %5666 = vmatmul.f32.gmra.mxu0 %v5552
      %v5667 = vpop.f32.mrf.mxu0
      %v5668 = vadd.f32 0.0, %v5667
      %5669 = vmatmul.f32.gmra.mxu0 %v5555
      %v5670 = vpop.f32.mrf.mxu0
      %v5671 = vadd.f32 0.0, %v5670
      %5672 = vmatmul.f32.gmra.mxu0 %v5558
      %v5673 = vpop.f32.mrf.mxu0
      %v5674 = vadd.f32 0.0, %v5673
      %5675 = vmatmul.f32.gmra.mxu0 %v5561
      %v5676 = vpop.f32.mrf.mxu0
      %v5677 = vadd.f32 0.0, %v5676
      %5678 = vmatmul.f32.gmra.mxu0 %v5564
      %v5679 = vpop.f32.mrf.mxu0
      %v5680 = vadd.f32 0.0, %v5679
      %5681 = vmatmul.f32.gmra.mxu0 %v5567
      %v5682 = vpop.f32.mrf.mxu0
      %v5683 = vadd.f32 0.0, %v5682
      %5684 = vmatmul.f32.gmra.mxu0 %v5570
      %v5685 = vpop.f32.mrf.mxu0
      %v5686 = vadd.f32 0.0, %v5685
      %5687 = vmatmul.f32.gmra.mxu0 %v5573
      %v5688 = vpop.f32.mrf.mxu0
      %v5689 = vadd.f32 0.0, %v5688
      %5690 = vmatmul.f32.gmra.mxu0 %v5576
      %v5691 = vpop.f32.mrf.mxu0
      %v5692 = vadd.f32 0.0, %v5691
      %5693 = vmatmul.f32.gmra.mxu0 %v5579
      %v5694 = vpop.f32.mrf.mxu0
      %v5695 = vadd.f32 0.0, %v5694
      %5696 = vmatmul.f32.gmra.mxu0 %v5582
      %v5697 = vpop.f32.mrf.mxu0
      %v5698 = vadd.f32 0.0, %v5697
      %5699 = vmatmul.f32.gmra.mxu0 %v5585
      %v5700 = vpop.f32.mrf.mxu0
      %v5701 = vadd.f32 0.0, %v5700
      %5702 = vmatmul.f32.gmra.mxu0 %v5588
      %v5703 = vpop.f32.mrf.mxu0
      %v5704 = vadd.f32 0.0, %v5703
      %5705 = vmatmul.f32.gmra.mxu0 %v5591
      %v5706 = vpop.f32.mrf.mxu0
      %v5707 = vadd.f32 0.0, %v5706
      %5708 = vmatmul.f32.gmra.mxu0 %v5594
      %v5709 = vpop.f32.mrf.mxu0
      %v5710 = vadd.f32 0.0, %v5709
      %5711 = vmatmul.f32.gmra.mxu0 %v5597
      %v5712 = vpop.f32.mrf.mxu0
      %v5713 = vadd.f32 0.0, %v5712
      %5714 = vmatmul.f32.gmra.mxu0 %v5600
      %v5715 = vpop.f32.mrf.mxu0
      %v5716 = vadd.f32 0.0, %v5715
      %5717 = vdwg.mxu0
      %v5718 = vadd.f32 %v5379, %v5623
      %v5719 = vadd.f32 %v5382, %v5626
      %v5720 = vadd.f32 %v5385, %v5629
      %v5721 = vadd.f32 %v5388, %v5632
      %v5722 = vadd.f32 %v5391, %v5635
      %v5723 = vadd.f32 %v5394, %v5638
      %v5724 = vadd.f32 %v5397, %v5641
      %v5725 = vadd.f32 %v5400, %v5644
      %v5726 = vadd.f32 %v5403, %v5647
      %v5727 = vadd.f32 %v5406, %v5650
      %v5728 = vadd.f32 %v5409, %v5653
      %v5729 = vadd.f32 %v5412, %v5656
      %v5730 = vadd.f32 %v5415, %v5659
      %v5731 = vadd.f32 %v5418, %v5662
      %v5732 = vadd.f32 %v5421, %v5665
      %v5733 = vadd.f32 %v5424, %v5668
      %v5734 = vadd.f32 %v5427, %v5671
      %v5735 = vadd.f32 %v5430, %v5674
      %v5736 = vadd.f32 %v5433, %v5677
      %v5737 = vadd.f32 %v5436, %v5680
      %v5738 = vadd.f32 %v5439, %v5683
      %v5739 = vadd.f32 %v5442, %v5686
      %v5740 = vadd.f32 %v5445, %v5689
      %v5741 = vadd.f32 %v5448, %v5692
      %v5742 = vadd.f32 %v5451, %v5695
      %v5743 = vadd.f32 %v5454, %v5698
      %v5744 = vadd.f32 %v5457, %v5701
      %v5745 = vadd.f32 %v5460, %v5704
      %v5746 = vadd.f32 %v5463, %v5707
      %v5747 = vadd.f32 %v5466, %v5710
      %v5748 = vadd.f32 %v5469, %v5713
      %v5749 = vadd.f32 %v5472, %v5716
      %v5750 = vld [vmem:[%s1916] sm:$0xff]
      %v5751 = vld [vmem:[%s1916 + $0x8] sm:$0xff]
      %v5752 = vld [vmem:[%s1916 + $0x18] sm:$0xff]
      %v5753 = vld [vmem:[%s1916 + $0x20] sm:$0xff]
      %v5754 = vld [vmem:[%s1916 + $0x30] sm:$0xff]
      %v5755 = vld [vmem:[%s1916 + $0x38] sm:$0xff]
      %v5756 = vld [vmem:[%s1916 + $0x48] sm:$0xff]
      %v5757 = vld [vmem:[%s1916 + $0x50] sm:$0xff]
      %v5758 = vld [vmem:[%s1916 + $0x60] sm:$0xff]
      %v5759 = vld [vmem:[%s1916 + $0x68] sm:$0xff]
      %v5760 = vld [vmem:[%s1916 + $0x78] sm:$0xff]
      %v5761 = vld [vmem:[%s1916 + $0x80] sm:$0xff]
      %v5762 = vld [vmem:[%s1916 + $0x90] sm:$0xff]
      %v5763 = vld [vmem:[%s1916 + $0x98] sm:$0xff]
      %v5764 = vld [vmem:[%s1916 + $0xa8] sm:$0xff]
      %v5765 = vld [vmem:[%s1916 + $0xb0] sm:$0xff]
      %v5766 = vld [vmem:[%s1916 + $0xc0] sm:$0xff]
      %v5767 = vld [vmem:[%s1916 + $0xc8] sm:$0xff]
      %v5768 = vld [vmem:[%s1916 + $0xd8] sm:$0xff]
      %v5769 = vld [vmem:[%s1916 + $0xe0] sm:$0xff]
      %v5770 = vld [vmem:[%s1916 + $0xf0] sm:$0xff]
      %v5771 = vld [vmem:[%s1916 + $0xf8] sm:$0xff]
      %v5772 = vld [vmem:[%s1916 + $0x108] sm:$0xff]
      %v5773 = vld [vmem:[%s1916 + $0x110] sm:$0xff]
      %v5774 = vld [vmem:[%s1916 + $0x120] sm:$0xff]
      %v5775 = vld [vmem:[%s1916 + $0x128] sm:$0xff]
      %v5776 = vld [vmem:[%s1916 + $0x138] sm:$0xff]
      %v5777 = vld [vmem:[%s1916 + $0x140] sm:$0xff]
      %v5778 = vld [vmem:[%s1916 + $0x150] sm:$0xff]
      %v5779 = vld [vmem:[%s1916 + $0x158] sm:$0xff]
      %v5780 = vld [vmem:[%s1916 + $0x168] sm:$0xff]
      %v5781 = vld [vmem:[%s1916 + $0x170] sm:$0xff]
      %v5783 = vsel %vm434, %v5750, 0
      %v5786 = vsel %vm434, %v5751, 0
      %v5789 = vsel %vm434, %v5752, 0
      %v5792 = vsel %vm434, %v5753, 0
      %v5795 = vsel %vm434, %v5754, 0
      %v5798 = vsel %vm434, %v5755, 0
      %v5801 = vsel %vm434, %v5756, 0
      %v5804 = vsel %vm434, %v5757, 0
      %v5807 = vsel %vm434, %v5758, 0
      %v5810 = vsel %vm434, %v5759, 0
      %v5813 = vsel %vm434, %v5760, 0
      %v5816 = vsel %vm434, %v5761, 0
      %v5819 = vsel %vm434, %v5762, 0
      %v5822 = vsel %vm434, %v5763, 0
      %v5825 = vsel %vm434, %v5764, 0
      %v5828 = vsel %vm434, %v5765, 0
      %v5831 = vsel %vm434, %v5766, 0
      %v5834 = vsel %vm434, %v5767, 0
      %v5837 = vsel %vm434, %v5768, 0
      %v5840 = vsel %vm434, %v5769, 0
      %v5843 = vsel %vm434, %v5770, 0
      %v5846 = vsel %vm434, %v5771, 0
      %v5849 = vsel %vm434, %v5772, 0
      %v5852 = vsel %vm434, %v5773, 0
      %v5855 = vsel %vm434, %v5774, 0
      %v5858 = vsel %vm434, %v5775, 0
      %v5861 = vsel %vm434, %v5776, 0
      %v5864 = vsel %vm434, %v5777, 0
      %v5867 = vsel %vm434, %v5778, 0
      %v5870 = vsel %vm434, %v5779, 0
      %v5873 = vsel %vm434, %v5780, 0
      %v5876 = vsel %vm434, %v5781, 0
      %v5879 = vsel %vm2047, %v4980, 0
      %5881 = vmatpush.msra.mxu0 0.0
      %5882 = vmatpush.msra.mxu0 0.0
      %5883 = vmatpush.msra.mxu0 0.0
      %5884 = vmatpush.msra.mxu0 0.0
      %5885 = vmatpush.msra.mxu0 0.0
      %5886 = vmatpush.msra.mxu0 0.0
      %5887 = vmatpush.msra.mxu0 0.0
      %5888 = vmatpush.msra.mxu0 0.0
      %5889 = vmatpush.msra.mxu0 0.0
      %5890 = vmatpush.msra.mxu0 0.0
      %5891 = vmatpush.msra.mxu0 0.0
      %5892 = vmatpush.msra.mxu0 0.0
      %5893 = vmatpush.msra.mxu0 0.0
      %5894 = vmatpush.msra.mxu0 0.0
      %5895 = vmatpush.msra.mxu0 0.0
      %5896 = vmatpush.msra.mxu0 %v5879
      %5897 = vmatmul.f32.gmra.mxu0 %v5783
      %v5898 = vpop.f32.mrf.mxu0
      %v5899 = vadd.f32 0.0, %v5898
      %5900 = vmatmul.f32.gmra.mxu0 %v5786
      %v5901 = vpop.f32.mrf.mxu0
      %v5902 = vadd.f32 0.0, %v5901
      %5903 = vmatmul.f32.gmra.mxu0 %v5789
      %v5904 = vpop.f32.mrf.mxu0
      %v5905 = vadd.f32 0.0, %v5904
      %5906 = vmatmul.f32.gmra.mxu0 %v5792
      %v5907 = vpop.f32.mrf.mxu0
      %v5908 = vadd.f32 0.0, %v5907
      %5909 = vmatmul.f32.gmra.mxu0 %v5795
      %v5910 = vpop.f32.mrf.mxu0
      %v5911 = vadd.f32 0.0, %v5910
      %5912 = vmatmul.f32.gmra.mxu0 %v5798
      %v5913 = vpop.f32.mrf.mxu0
      %v5914 = vadd.f32 0.0, %v5913
      %5915 = vmatmul.f32.gmra.mxu0 %v5801
      %v5916 = vpop.f32.mrf.mxu0
      %v5917 = vadd.f32 0.0, %v5916
      %5918 = vmatmul.f32.gmra.mxu0 %v5804
      %v5919 = vpop.f32.mrf.mxu0
      %v5920 = vadd.f32 0.0, %v5919
      %5921 = vmatmul.f32.gmra.mxu0 %v5807
      %v5922 = vpop.f32.mrf.mxu0
      %v5923 = vadd.f32 0.0, %v5922
      %5924 = vmatmul.f32.gmra.mxu0 %v5810
      %v5925 = vpop.f32.mrf.mxu0
      %v5926 = vadd.f32 0.0, %v5925
      %5927 = vmatmul.f32.gmra.mxu0 %v5813
      %v5928 = vpop.f32.mrf.mxu0
      %v5929 = vadd.f32 0.0, %v5928
      %5930 = vmatmul.f32.gmra.mxu0 %v5816
      %v5931 = vpop.f32.mrf.mxu0
      %v5932 = vadd.f32 0.0, %v5931
      %5933 = vmatmul.f32.gmra.mxu0 %v5819
      %v5934 = vpop.f32.mrf.mxu0
      %v5935 = vadd.f32 0.0, %v5934
      %5936 = vmatmul.f32.gmra.mxu0 %v5822
      %v5937 = vpop.f32.mrf.mxu0
      %v5938 = vadd.f32 0.0, %v5937
      %5939 = vmatmul.f32.gmra.mxu0 %v5825
      %v5940 = vpop.f32.mrf.mxu0
      %v5941 = vadd.f32 0.0, %v5940
      %5942 = vmatmul.f32.gmra.mxu0 %v5828
      %v5943 = vpop.f32.mrf.mxu0
      %v5944 = vadd.f32 0.0, %v5943
      %5945 = vmatmul.f32.gmra.mxu0 %v5831
      %v5946 = vpop.f32.mrf.mxu0
      %v5947 = vadd.f32 0.0, %v5946
      %5948 = vmatmul.f32.gmra.mxu0 %v5834
      %v5949 = vpop.f32.mrf.mxu0
      %v5950 = vadd.f32 0.0, %v5949
      %5951 = vmatmul.f32.gmra.mxu0 %v5837
      %v5952 = vpop.f32.mrf.mxu0
      %v5953 = vadd.f32 0.0, %v5952
      %5954 = vmatmul.f32.gmra.mxu0 %v5840
      %v5955 = vpop.f32.mrf.mxu0
      %v5956 = vadd.f32 0.0, %v5955
      %5957 = vmatmul.f32.gmra.mxu0 %v5843
      %v5958 = vpop.f32.mrf.mxu0
      %v5959 = vadd.f32 0.0, %v5958
      %5960 = vmatmul.f32.gmra.mxu0 %v5846
      %v5961 = vpop.f32.mrf.mxu0
      %v5962 = vadd.f32 0.0, %v5961
      %5963 = vmatmul.f32.gmra.mxu0 %v5849
      %v5964 = vpop.f32.mrf.mxu0
      %v5965 = vadd.f32 0.0, %v5964
      %5966 = vmatmul.f32.gmra.mxu0 %v5852
      %v5967 = vpop.f32.mrf.mxu0
      %v5968 = vadd.f32 0.0, %v5967
      %5969 = vmatmul.f32.gmra.mxu0 %v5855
      %v5970 = vpop.f32.mrf.mxu0
      %v5971 = vadd.f32 0.0, %v5970
      %5972 = vmatmul.f32.gmra.mxu0 %v5858
      %v5973 = vpop.f32.mrf.mxu0
      %v5974 = vadd.f32 0.0, %v5973
      %5975 = vmatmul.f32.gmra.mxu0 %v5861
      %v5976 = vpop.f32.mrf.mxu0
      %v5977 = vadd.f32 0.0, %v5976
      %5978 = vmatmul.f32.gmra.mxu0 %v5864
      %v5979 = vpop.f32.mrf.mxu0
      %v5980 = vadd.f32 0.0, %v5979
      %5981 = vmatmul.f32.gmra.mxu0 %v5867
      %v5982 = vpop.f32.mrf.mxu0
      %v5983 = vadd.f32 0.0, %v5982
      %5984 = vmatmul.f32.gmra.mxu0 %v5870
      %v5985 = vpop.f32.mrf.mxu0
      %v5986 = vadd.f32 0.0, %v5985
      %5987 = vmatmul.f32.gmra.mxu0 %v5873
      %v5988 = vpop.f32.mrf.mxu0
      %v5989 = vadd.f32 0.0, %v5988
      %5990 = vmatmul.f32.gmra.mxu0 %v5876
      %v5991 = vpop.f32.mrf.mxu0
      %v5992 = vadd.f32 0.0, %v5991
      %5993 = vdwg.mxu0
      %v5994 = vadd.f32 %v5718, %v5899
      %v5995 = vadd.f32 %v5719, %v5902
      %v5996 = vadd.f32 %v5720, %v5905
      %v5997 = vadd.f32 %v5721, %v5908
      %v5998 = vadd.f32 %v5722, %v5911
      %v5999 = vadd.f32 %v5723, %v5914
      %v6000 = vadd.f32 %v5724, %v5917
      %v6001 = vadd.f32 %v5725, %v5920
      %v6002 = vadd.f32 %v5726, %v5923
      %v6003 = vadd.f32 %v5727, %v5926
      %v6004 = vadd.f32 %v5728, %v5929
      %v6005 = vadd.f32 %v5729, %v5932
      %v6006 = vadd.f32 %v5730, %v5935
      %v6007 = vadd.f32 %v5731, %v5938
      %v6008 = vadd.f32 %v5732, %v5941
      %v6009 = vadd.f32 %v5733, %v5944
      %v6010 = vadd.f32 %v5734, %v5947
      %v6011 = vadd.f32 %v5735, %v5950
      %v6012 = vadd.f32 %v5736, %v5953
      %v6013 = vadd.f32 %v5737, %v5956
      %v6014 = vadd.f32 %v5738, %v5959
      %v6015 = vadd.f32 %v5739, %v5962
      %v6016 = vadd.f32 %v5740, %v5965
      %v6017 = vadd.f32 %v5741, %v5968
      %v6018 = vadd.f32 %v5742, %v5971
      %v6019 = vadd.f32 %v5743, %v5974
      %v6020 = vadd.f32 %v5744, %v5977
      %v6021 = vadd.f32 %v5745, %v5980
      %v6022 = vadd.f32 %v5746, %v5983
      %v6023 = vadd.f32 %v5747, %v5986
      %v6024 = vadd.f32 %v5748, %v5989
      %v6025 = vadd.f32 %v5749, %v5992
      %v6026 = vld [vmem:[%s1916 + $0x1] sm:$0xff]
      %v6027 = vld [vmem:[%s1916 + $0x9] sm:$0xff]
      %v6028 = vld [vmem:[%s1916 + $0x19] sm:$0xff]
      %v6029 = vld [vmem:[%s1916 + $0x21] sm:$0xff]
      %v6030 = vld [vmem:[%s1916 + $0x31] sm:$0xff]
      %v6031 = vld [vmem:[%s1916 + $0x39] sm:$0xff]
      %v6032 = vld [vmem:[%s1916 + $0x49] sm:$0xff]
      %v6033 = vld [vmem:[%s1916 + $0x51] sm:$0xff]
      %v6034 = vld [vmem:[%s1916 + $0x61] sm:$0xff]
      %v6035 = vld [vmem:[%s1916 + $0x69] sm:$0xff]
      %v6036 = vld [vmem:[%s1916 + $0x79] sm:$0xff]
      %v6037 = vld [vmem:[%s1916 + $0x81] sm:$0xff]
      %v6038 = vld [vmem:[%s1916 + $0x91] sm:$0xff]
      %v6039 = vld [vmem:[%s1916 + $0x99] sm:$0xff]
      %v6040 = vld [vmem:[%s1916 + $0xa9] sm:$0xff]
      %v6041 = vld [vmem:[%s1916 + $0xb1] sm:$0xff]
      %v6042 = vld [vmem:[%s1916 + $0xc1] sm:$0xff]
      %v6043 = vld [vmem:[%s1916 + $0xc9] sm:$0xff]
      %v6044 = vld [vmem:[%s1916 + $0xd9] sm:$0xff]
      %v6045 = vld [vmem:[%s1916 + $0xe1] sm:$0xff]
      %v6046 = vld [vmem:[%s1916 + $0xf1] sm:$0xff]
      %v6047 = vld [vmem:[%s1916 + $0xf9] sm:$0xff]
      %v6048 = vld [vmem:[%s1916 + $0x109] sm:$0xff]
      %v6049 = vld [vmem:[%s1916 + $0x111] sm:$0xff]
      %v6050 = vld [vmem:[%s1916 + $0x121] sm:$0xff]
      %v6051 = vld [vmem:[%s1916 + $0x129] sm:$0xff]
      %v6052 = vld [vmem:[%s1916 + $0x139] sm:$0xff]
      %v6053 = vld [vmem:[%s1916 + $0x141] sm:$0xff]
      %v6054 = vld [vmem:[%s1916 + $0x151] sm:$0xff]
      %v6055 = vld [vmem:[%s1916 + $0x159] sm:$0xff]
      %v6056 = vld [vmem:[%s1916 + $0x169] sm:$0xff]
      %v6057 = vld [vmem:[%s1916 + $0x171] sm:$0xff]
      %v6059 = vsel %vm434, %v6026, 0
      %v6062 = vsel %vm434, %v6027, 0
      %v6065 = vsel %vm434, %v6028, 0
      %v6068 = vsel %vm434, %v6029, 0
      %v6071 = vsel %vm434, %v6030, 0
      %v6074 = vsel %vm434, %v6031, 0
      %v6077 = vsel %vm434, %v6032, 0
      %v6080 = vsel %vm434, %v6033, 0
      %v6083 = vsel %vm434, %v6034, 0
      %v6086 = vsel %vm434, %v6035, 0
      %v6089 = vsel %vm434, %v6036, 0
      %v6092 = vsel %vm434, %v6037, 0
      %v6095 = vsel %vm434, %v6038, 0
      %v6098 = vsel %vm434, %v6039, 0
      %v6101 = vsel %vm434, %v6040, 0
      %v6104 = vsel %vm434, %v6041, 0
      %v6107 = vsel %vm434, %v6042, 0
      %v6110 = vsel %vm434, %v6043, 0
      %v6113 = vsel %vm434, %v6044, 0
      %v6116 = vsel %vm434, %v6045, 0
      %v6119 = vsel %vm434, %v6046, 0
      %v6122 = vsel %vm434, %v6047, 0
      %v6125 = vsel %vm434, %v6048, 0
      %v6128 = vsel %vm434, %v6049, 0
      %v6131 = vsel %vm434, %v6050, 0
      %v6134 = vsel %vm434, %v6051, 0
      %v6137 = vsel %vm434, %v6052, 0
      %v6140 = vsel %vm434, %v6053, 0
      %v6143 = vsel %vm434, %v6054, 0
      %v6146 = vsel %vm434, %v6055, 0
      %v6149 = vsel %vm434, %v6056, 0
      %v6152 = vsel %vm434, %v6057, 0
      %v6155 = vsel %vm2047, %v4981, 0
      %6157 = vmatpush.msra.mxu0 0.0
      %6158 = vmatpush.msra.mxu0 0.0
      %6159 = vmatpush.msra.mxu0 0.0
      %6160 = vmatpush.msra.mxu0 0.0
      %6161 = vmatpush.msra.mxu0 0.0
      %6162 = vmatpush.msra.mxu0 0.0
      %6163 = vmatpush.msra.mxu0 0.0
      %6164 = vmatpush.msra.mxu0 0.0
      %6165 = vmatpush.msra.mxu0 0.0
      %6166 = vmatpush.msra.mxu0 0.0
      %6167 = vmatpush.msra.mxu0 0.0
      %6168 = vmatpush.msra.mxu0 0.0
      %6169 = vmatpush.msra.mxu0 0.0
      %6170 = vmatpush.msra.mxu0 0.0
      %6171 = vmatpush.msra.mxu0 0.0
      %6172 = vmatpush.msra.mxu0 %v6155
      %6173 = vmatmul.f32.gmra.mxu0 %v6059
      %v6174 = vpop.f32.mrf.mxu0
      %v6175 = vadd.f32 0.0, %v6174
      %6176 = vmatmul.f32.gmra.mxu0 %v6062
      %v6177 = vpop.f32.mrf.mxu0
      %v6178 = vadd.f32 0.0, %v6177
      %6179 = vmatmul.f32.gmra.mxu0 %v6065
      %v6180 = vpop.f32.mrf.mxu0
      %v6181 = vadd.f32 0.0, %v6180
      %6182 = vmatmul.f32.gmra.mxu0 %v6068
      %v6183 = vpop.f32.mrf.mxu0
      %v6184 = vadd.f32 0.0, %v6183
      %6185 = vmatmul.f32.gmra.mxu0 %v6071
      %v6186 = vpop.f32.mrf.mxu0
      %v6187 = vadd.f32 0.0, %v6186
      %6188 = vmatmul.f32.gmra.mxu0 %v6074
      %v6189 = vpop.f32.mrf.mxu0
      %v6190 = vadd.f32 0.0, %v6189
      %6191 = vmatmul.f32.gmra.mxu0 %v6077
      %v6192 = vpop.f32.mrf.mxu0
      %v6193 = vadd.f32 0.0, %v6192
      %6194 = vmatmul.f32.gmra.mxu0 %v6080
      %v6195 = vpop.f32.mrf.mxu0
      %v6196 = vadd.f32 0.0, %v6195
      %6197 = vmatmul.f32.gmra.mxu0 %v6083
      %v6198 = vpop.f32.mrf.mxu0
      %v6199 = vadd.f32 0.0, %v6198
      %6200 = vmatmul.f32.gmra.mxu0 %v6086
      %v6201 = vpop.f32.mrf.mxu0
      %v6202 = vadd.f32 0.0, %v6201
      %6203 = vmatmul.f32.gmra.mxu0 %v6089
      %v6204 = vpop.f32.mrf.mxu0
      %v6205 = vadd.f32 0.0, %v6204
      %6206 = vmatmul.f32.gmra.mxu0 %v6092
      %v6207 = vpop.f32.mrf.mxu0
      %v6208 = vadd.f32 0.0, %v6207
      %6209 = vmatmul.f32.gmra.mxu0 %v6095
      %v6210 = vpop.f32.mrf.mxu0
      %v6211 = vadd.f32 0.0, %v6210
      %6212 = vmatmul.f32.gmra.mxu0 %v6098
      %v6213 = vpop.f32.mrf.mxu0
      %v6214 = vadd.f32 0.0, %v6213
      %6215 = vmatmul.f32.gmra.mxu0 %v6101
      %v6216 = vpop.f32.mrf.mxu0
      %v6217 = vadd.f32 0.0, %v6216
      %6218 = vmatmul.f32.gmra.mxu0 %v6104
      %v6219 = vpop.f32.mrf.mxu0
      %v6220 = vadd.f32 0.0, %v6219
      %6221 = vmatmul.f32.gmra.mxu0 %v6107
      %v6222 = vpop.f32.mrf.mxu0
      %v6223 = vadd.f32 0.0, %v6222
      %6224 = vmatmul.f32.gmra.mxu0 %v6110
      %v6225 = vpop.f32.mrf.mxu0
      %v6226 = vadd.f32 0.0, %v6225
      %6227 = vmatmul.f32.gmra.mxu0 %v6113
      %v6228 = vpop.f32.mrf.mxu0
      %v6229 = vadd.f32 0.0, %v6228
      %6230 = vmatmul.f32.gmra.mxu0 %v6116
      %v6231 = vpop.f32.mrf.mxu0
      %v6232 = vadd.f32 0.0, %v6231
      %6233 = vmatmul.f32.gmra.mxu0 %v6119
      %v6234 = vpop.f32.mrf.mxu0
      %v6235 = vadd.f32 0.0, %v6234
      %6236 = vmatmul.f32.gmra.mxu0 %v6122
      %v6237 = vpop.f32.mrf.mxu0
      %v6238 = vadd.f32 0.0, %v6237
      %6239 = vmatmul.f32.gmra.mxu0 %v6125
      %v6240 = vpop.f32.mrf.mxu0
      %v6241 = vadd.f32 0.0, %v6240
      %6242 = vmatmul.f32.gmra.mxu0 %v6128
      %v6243 = vpop.f32.mrf.mxu0
      %v6244 = vadd.f32 0.0, %v6243
      %6245 = vmatmul.f32.gmra.mxu0 %v6131
      %v6246 = vpop.f32.mrf.mxu0
      %v6247 = vadd.f32 0.0, %v6246
      %6248 = vmatmul.f32.gmra.mxu0 %v6134
      %v6249 = vpop.f32.mrf.mxu0
      %v6250 = vadd.f32 0.0, %v6249
      %6251 = vmatmul.f32.gmra.mxu0 %v6137
      %v6252 = vpop.f32.mrf.mxu0
      %v6253 = vadd.f32 0.0, %v6252
      %6254 = vmatmul.f32.gmra.mxu0 %v6140
      %v6255 = vpop.f32.mrf.mxu0
      %v6256 = vadd.f32 0.0, %v6255
      %6257 = vmatmul.f32.gmra.mxu0 %v6143
      %v6258 = vpop.f32.mrf.mxu0
      %v6259 = vadd.f32 0.0, %v6258
      %6260 = vmatmul.f32.gmra.mxu0 %v6146
      %v6261 = vpop.f32.mrf.mxu0
      %v6262 = vadd.f32 0.0, %v6261
      %6263 = vmatmul.f32.gmra.mxu0 %v6149
      %v6264 = vpop.f32.mrf.mxu0
      %v6265 = vadd.f32 0.0, %v6264
      %6266 = vmatmul.f32.gmra.mxu0 %v6152
      %v6267 = vpop.f32.mrf.mxu0
      %v6268 = vadd.f32 0.0, %v6267
      %6269 = vdwg.mxu0
      %v6270 = vadd.f32 %v5994, %v6175
      %v6271 = vadd.f32 %v5995, %v6178
      %v6272 = vadd.f32 %v5996, %v6181
      %v6273 = vadd.f32 %v5997, %v6184
      %v6274 = vadd.f32 %v5998, %v6187
      %v6275 = vadd.f32 %v5999, %v6190
      %v6276 = vadd.f32 %v6000, %v6193
      %v6277 = vadd.f32 %v6001, %v6196
      %v6278 = vadd.f32 %v6002, %v6199
      %v6279 = vadd.f32 %v6003, %v6202
      %v6280 = vadd.f32 %v6004, %v6205
      %v6281 = vadd.f32 %v6005, %v6208
      %v6282 = vadd.f32 %v6006, %v6211
      %v6283 = vadd.f32 %v6007, %v6214
      %v6284 = vadd.f32 %v6008, %v6217
      %v6285 = vadd.f32 %v6009, %v6220
      %v6286 = vadd.f32 %v6010, %v6223
      %v6287 = vadd.f32 %v6011, %v6226
      %v6288 = vadd.f32 %v6012, %v6229
      %v6289 = vadd.f32 %v6013, %v6232
      %v6290 = vadd.f32 %v6014, %v6235
      %v6291 = vadd.f32 %v6015, %v6238
      %v6292 = vadd.f32 %v6016, %v6241
      %v6293 = vadd.f32 %v6017, %v6244
      %v6294 = vadd.f32 %v6018, %v6247
      %v6295 = vadd.f32 %v6019, %v6250
      %v6296 = vadd.f32 %v6020, %v6253
      %v6297 = vadd.f32 %v6021, %v6256
      %v6298 = vadd.f32 %v6022, %v6259
      %v6299 = vadd.f32 %v6023, %v6262
      %v6300 = vadd.f32 %v6024, %v6265
      %v6301 = vadd.f32 %v6025, %v6268
      %v6302 = vld [vmem:[%s1916 + $0x2] sm:$0xff]
      %v6303 = vld [vmem:[%s1916 + $0xa] sm:$0xff]
      %v6304 = vld [vmem:[%s1916 + $0x1a] sm:$0xff]
      %v6305 = vld [vmem:[%s1916 + $0x22] sm:$0xff]
      %v6306 = vld [vmem:[%s1916 + $0x32] sm:$0xff]
      %v6307 = vld [vmem:[%s1916 + $0x3a] sm:$0xff]
      %v6308 = vld [vmem:[%s1916 + $0x4a] sm:$0xff]
      %v6309 = vld [vmem:[%s1916 + $0x52] sm:$0xff]
      %v6310 = vld [vmem:[%s1916 + $0x62] sm:$0xff]
      %v6311 = vld [vmem:[%s1916 + $0x6a] sm:$0xff]
      %v6312 = vld [vmem:[%s1916 + $0x7a] sm:$0xff]
      %v6313 = vld [vmem:[%s1916 + $0x82] sm:$0xff]
      %v6314 = vld [vmem:[%s1916 + $0x92] sm:$0xff]
      %v6315 = vld [vmem:[%s1916 + $0x9a] sm:$0xff]
      %v6316 = vld [vmem:[%s1916 + $0xaa] sm:$0xff]
      %v6317 = vld [vmem:[%s1916 + $0xb2] sm:$0xff]
      %v6318 = vld [vmem:[%s1916 + $0xc2] sm:$0xff]
      %v6319 = vld [vmem:[%s1916 + $0xca] sm:$0xff]
      %v6320 = vld [vmem:[%s1916 + $0xda] sm:$0xff]
      %v6321 = vld [vmem:[%s1916 + $0xe2] sm:$0xff]
      %v6322 = vld [vmem:[%s1916 + $0xf2] sm:$0xff]
      %v6323 = vld [vmem:[%s1916 + $0xfa] sm:$0xff]
      %v6324 = vld [vmem:[%s1916 + $0x10a] sm:$0xff]
      %v6325 = vld [vmem:[%s1916 + $0x112] sm:$0xff]
      %v6326 = vld [vmem:[%s1916 + $0x122] sm:$0xff]
      %v6327 = vld [vmem:[%s1916 + $0x12a] sm:$0xff]
      %v6328 = vld [vmem:[%s1916 + $0x13a] sm:$0xff]
      %v6329 = vld [vmem:[%s1916 + $0x142] sm:$0xff]
      %v6330 = vld [vmem:[%s1916 + $0x152] sm:$0xff]
      %v6331 = vld [vmem:[%s1916 + $0x15a] sm:$0xff]
      %v6332 = vld [vmem:[%s1916 + $0x16a] sm:$0xff]
      %v6333 = vld [vmem:[%s1916 + $0x172] sm:$0xff]
      %v6335 = vsel %vm434, %v6302, 0
      %v6338 = vsel %vm434, %v6303, 0
      %v6341 = vsel %vm434, %v6304, 0
      %v6344 = vsel %vm434, %v6305, 0
      %v6347 = vsel %vm434, %v6306, 0
      %v6350 = vsel %vm434, %v6307, 0
      %v6353 = vsel %vm434, %v6308, 0
      %v6356 = vsel %vm434, %v6309, 0
      %v6359 = vsel %vm434, %v6310, 0
      %v6362 = vsel %vm434, %v6311, 0
      %v6365 = vsel %vm434, %v6312, 0
      %v6368 = vsel %vm434, %v6313, 0
      %v6371 = vsel %vm434, %v6314, 0
      %v6374 = vsel %vm434, %v6315, 0
      %v6377 = vsel %vm434, %v6316, 0
      %v6380 = vsel %vm434, %v6317, 0
      %v6383 = vsel %vm434, %v6318, 0
      %v6386 = vsel %vm434, %v6319, 0
      %v6389 = vsel %vm434, %v6320, 0
      %v6392 = vsel %vm434, %v6321, 0
      %v6395 = vsel %vm434, %v6322, 0
      %v6398 = vsel %vm434, %v6323, 0
      %v6401 = vsel %vm434, %v6324, 0
      %v6404 = vsel %vm434, %v6325, 0
      %v6407 = vsel %vm434, %v6326, 0
      %v6410 = vsel %vm434, %v6327, 0
      %v6413 = vsel %vm434, %v6328, 0
      %v6416 = vsel %vm434, %v6329, 0
      %v6419 = vsel %vm434, %v6330, 0
      %v6422 = vsel %vm434, %v6331, 0
      %v6425 = vsel %vm434, %v6332, 0
      %v6428 = vsel %vm434, %v6333, 0
      %v6431 = vsel %vm2047, %v4982, 0
      %6433 = vmatpush.msra.mxu0 0.0
      %6434 = vmatpush.msra.mxu0 0.0
      %6435 = vmatpush.msra.mxu0 0.0
      %6436 = vmatpush.msra.mxu0 0.0
      %6437 = vmatpush.msra.mxu0 0.0
      %6438 = vmatpush.msra.mxu0 0.0
      %6439 = vmatpush.msra.mxu0 0.0
      %6440 = vmatpush.msra.mxu0 0.0
      %6441 = vmatpush.msra.mxu0 0.0
      %6442 = vmatpush.msra.mxu0 0.0
      %6443 = vmatpush.msra.mxu0 0.0
      %6444 = vmatpush.msra.mxu0 0.0
      %6445 = vmatpush.msra.mxu0 0.0
      %6446 = vmatpush.msra.mxu0 0.0
      %6447 = vmatpush.msra.mxu0 0.0
      %6448 = vmatpush.msra.mxu0 %v6431
      %6449 = vmatmul.f32.gmra.mxu0 %v6335
      %v6450 = vpop.f32.mrf.mxu0
      %v6451 = vadd.f32 0.0, %v6450
      %6452 = vmatmul.f32.gmra.mxu0 %v6338
      %v6453 = vpop.f32.mrf.mxu0
      %v6454 = vadd.f32 0.0, %v6453
      %6455 = vmatmul.f32.gmra.mxu0 %v6341
      %v6456 = vpop.f32.mrf.mxu0
      %v6457 = vadd.f32 0.0, %v6456
      %6458 = vmatmul.f32.gmra.mxu0 %v6344
      %v6459 = vpop.f32.mrf.mxu0
      %v6460 = vadd.f32 0.0, %v6459
      %6461 = vmatmul.f32.gmra.mxu0 %v6347
      %v6462 = vpop.f32.mrf.mxu0
      %v6463 = vadd.f32 0.0, %v6462
      %6464 = vmatmul.f32.gmra.mxu0 %v6350
      %v6465 = vpop.f32.mrf.mxu0
      %v6466 = vadd.f32 0.0, %v6465
      %6467 = vmatmul.f32.gmra.mxu0 %v6353
      %v6468 = vpop.f32.mrf.mxu0
      %v6469 = vadd.f32 0.0, %v6468
      %6470 = vmatmul.f32.gmra.mxu0 %v6356
      %v6471 = vpop.f32.mrf.mxu0
      %v6472 = vadd.f32 0.0, %v6471
      %6473 = vmatmul.f32.gmra.mxu0 %v6359
      %v6474 = vpop.f32.mrf.mxu0
      %v6475 = vadd.f32 0.0, %v6474
      %6476 = vmatmul.f32.gmra.mxu0 %v6362
      %v6477 = vpop.f32.mrf.mxu0
      %v6478 = vadd.f32 0.0, %v6477
      %6479 = vmatmul.f32.gmra.mxu0 %v6365
      %v6480 = vpop.f32.mrf.mxu0
      %v6481 = vadd.f32 0.0, %v6480
      %6482 = vmatmul.f32.gmra.mxu0 %v6368
      %v6483 = vpop.f32.mrf.mxu0
      %v6484 = vadd.f32 0.0, %v6483
      %6485 = vmatmul.f32.gmra.mxu0 %v6371
      %v6486 = vpop.f32.mrf.mxu0
      %v6487 = vadd.f32 0.0, %v6486
      %6488 = vmatmul.f32.gmra.mxu0 %v6374
      %v6489 = vpop.f32.mrf.mxu0
      %v6490 = vadd.f32 0.0, %v6489
      %6491 = vmatmul.f32.gmra.mxu0 %v6377
      %v6492 = vpop.f32.mrf.mxu0
      %v6493 = vadd.f32 0.0, %v6492
      %6494 = vmatmul.f32.gmra.mxu0 %v6380
      %v6495 = vpop.f32.mrf.mxu0
      %v6496 = vadd.f32 0.0, %v6495
      %6497 = vmatmul.f32.gmra.mxu0 %v6383
      %v6498 = vpop.f32.mrf.mxu0
      %v6499 = vadd.f32 0.0, %v6498
      %6500 = vmatmul.f32.gmra.mxu0 %v6386
      %v6501 = vpop.f32.mrf.mxu0
      %v6502 = vadd.f32 0.0, %v6501
      %6503 = vmatmul.f32.gmra.mxu0 %v6389
      %v6504 = vpop.f32.mrf.mxu0
      %v6505 = vadd.f32 0.0, %v6504
      %6506 = vmatmul.f32.gmra.mxu0 %v6392
      %v6507 = vpop.f32.mrf.mxu0
      %v6508 = vadd.f32 0.0, %v6507
      %6509 = vmatmul.f32.gmra.mxu0 %v6395
      %v6510 = vpop.f32.mrf.mxu0
      %v6511 = vadd.f32 0.0, %v6510
      %6512 = vmatmul.f32.gmra.mxu0 %v6398
      %v6513 = vpop.f32.mrf.mxu0
      %v6514 = vadd.f32 0.0, %v6513
      %6515 = vmatmul.f32.gmra.mxu0 %v6401
      %v6516 = vpop.f32.mrf.mxu0
      %v6517 = vadd.f32 0.0, %v6516
      %6518 = vmatmul.f32.gmra.mxu0 %v6404
      %v6519 = vpop.f32.mrf.mxu0
      %v6520 = vadd.f32 0.0, %v6519
      %6521 = vmatmul.f32.gmra.mxu0 %v6407
      %v6522 = vpop.f32.mrf.mxu0
      %v6523 = vadd.f32 0.0, %v6522
      %6524 = vmatmul.f32.gmra.mxu0 %v6410
      %v6525 = vpop.f32.mrf.mxu0
      %v6526 = vadd.f32 0.0, %v6525
      %6527 = vmatmul.f32.gmra.mxu0 %v6413
      %v6528 = vpop.f32.mrf.mxu0
      %v6529 = vadd.f32 0.0, %v6528
      %6530 = vmatmul.f32.gmra.mxu0 %v6416
      %v6531 = vpop.f32.mrf.mxu0
      %v6532 = vadd.f32 0.0, %v6531
      %6533 = vmatmul.f32.gmra.mxu0 %v6419
      %v6534 = vpop.f32.mrf.mxu0
      %v6535 = vadd.f32 0.0, %v6534
      %6536 = vmatmul.f32.gmra.mxu0 %v6422
      %v6537 = vpop.f32.mrf.mxu0
      %v6538 = vadd.f32 0.0, %v6537
      %6539 = vmatmul.f32.gmra.mxu0 %v6425
      %v6540 = vpop.f32.mrf.mxu0
      %v6541 = vadd.f32 0.0, %v6540
      %6542 = vmatmul.f32.gmra.mxu0 %v6428
      %v6543 = vpop.f32.mrf.mxu0
      %v6544 = vadd.f32 0.0, %v6543
      %6545 = vdwg.mxu0
      %v6546 = vadd.f32 %v6270, %v6451
      %v6547 = vadd.f32 %v6271, %v6454
      %v6548 = vadd.f32 %v6272, %v6457
      %v6549 = vadd.f32 %v6273, %v6460
      %v6550 = vadd.f32 %v6274, %v6463
      %v6551 = vadd.f32 %v6275, %v6466
      %v6552 = vadd.f32 %v6276, %v6469
      %v6553 = vadd.f32 %v6277, %v6472
      %v6554 = vadd.f32 %v6278, %v6475
      %v6555 = vadd.f32 %v6279, %v6478
      %v6556 = vadd.f32 %v6280, %v6481
      %v6557 = vadd.f32 %v6281, %v6484
      %v6558 = vadd.f32 %v6282, %v6487
      %v6559 = vadd.f32 %v6283, %v6490
      %v6560 = vadd.f32 %v6284, %v6493
      %v6561 = vadd.f32 %v6285, %v6496
      %v6562 = vadd.f32 %v6286, %v6499
      %v6563 = vadd.f32 %v6287, %v6502
      %v6564 = vadd.f32 %v6288, %v6505
      %v6565 = vadd.f32 %v6289, %v6508
      %v6566 = vadd.f32 %v6290, %v6511
      %v6567 = vadd.f32 %v6291, %v6514
      %v6568 = vadd.f32 %v6292, %v6517
      %v6569 = vadd.f32 %v6293, %v6520
      %v6570 = vadd.f32 %v6294, %v6523
      %v6571 = vadd.f32 %v6295, %v6526
      %v6572 = vadd.f32 %v6296, %v6529
      %v6573 = vadd.f32 %v6297, %v6532
      %v6574 = vadd.f32 %v6298, %v6535
      %v6575 = vadd.f32 %v6299, %v6538
      %v6576 = vadd.f32 %v6300, %v6541
      %v6577 = vadd.f32 %v6301, %v6544
      %s6578 = scalar_lea.vmem [#allocation3], 48
      %v6579 = vld [vmem:[%s6578] sm:$0xff]
      %v6580 = vld [vmem:[%s6578 + $0x8] sm:$0xff]
      %v6581 = vld [vmem:[%s6578 + $0x18] sm:$0xff]
      %v6582 = vld [vmem:[%s6578 + $0x20] sm:$0xff]
      %v6583 = vld [vmem:[%s6578 + $0x30] sm:$0xff]
      %v6584 = vld [vmem:[%s6578 + $0x38] sm:$0xff]
      %v6585 = vld [vmem:[%s6578 + $0x48] sm:$0xff]
      %v6586 = vld [vmem:[%s6578 + $0x50] sm:$0xff]
      %v6587 = vld [vmem:[%s6578 + $0x60] sm:$0xff]
      %v6588 = vld [vmem:[%s6578 + $0x68] sm:$0xff]
      %v6589 = vld [vmem:[%s6578 + $0x78] sm:$0xff]
      %v6590 = vld [vmem:[%s6578 + $0x80] sm:$0xff]
      %v6591 = vld [vmem:[%s6578 + $0x90] sm:$0xff]
      %v6592 = vld [vmem:[%s6578 + $0x98] sm:$0xff]
      %v6593 = vld [vmem:[%s6578 + $0xa8] sm:$0xff]
      %v6594 = vld [vmem:[%s6578 + $0xb0] sm:$0xff]
      %v6595 = vld [vmem:[%s6578 + $0xc0] sm:$0xff]
      %v6596 = vld [vmem:[%s6578 + $0xc8] sm:$0xff]
      %v6597 = vld [vmem:[%s6578 + $0xd8] sm:$0xff]
      %v6598 = vld [vmem:[%s6578 + $0xe0] sm:$0xff]
      %v6599 = vld [vmem:[%s6578 + $0xf0] sm:$0xff]
      %v6600 = vld [vmem:[%s6578 + $0xf8] sm:$0xff]
      %v6601 = vld [vmem:[%s6578 + $0x108] sm:$0xff]
      %v6602 = vld [vmem:[%s6578 + $0x110] sm:$0xff]
      %v6603 = vld [vmem:[%s6578 + $0x120] sm:$0xff]
      %v6604 = vld [vmem:[%s6578 + $0x128] sm:$0xff]
      %v6605 = vld [vmem:[%s6578 + $0x138] sm:$0xff]
      %v6606 = vld [vmem:[%s6578 + $0x140] sm:$0xff]
      %v6607 = vld [vmem:[%s6578 + $0x150] sm:$0xff]
      %v6608 = vld [vmem:[%s6578 + $0x158] sm:$0xff]
      %v6609 = vld [vmem:[%s6578 + $0x168] sm:$0xff]
      %v6610 = vld [vmem:[%s6578 + $0x170] sm:$0xff]
      %v6612 = vsel %vm434, %v6579, 0
      %v6615 = vsel %vm434, %v6580, 0
      %v6618 = vsel %vm434, %v6581, 0
      %v6621 = vsel %vm434, %v6582, 0
      %v6624 = vsel %vm434, %v6583, 0
      %v6627 = vsel %vm434, %v6584, 0
      %v6630 = vsel %vm434, %v6585, 0
      %v6633 = vsel %vm434, %v6586, 0
      %v6636 = vsel %vm434, %v6587, 0
      %v6639 = vsel %vm434, %v6588, 0
      %v6642 = vsel %vm434, %v6589, 0
      %v6645 = vsel %vm434, %v6590, 0
      %v6648 = vsel %vm434, %v6591, 0
      %v6651 = vsel %vm434, %v6592, 0
      %v6654 = vsel %vm434, %v6593, 0
      %v6657 = vsel %vm434, %v6594, 0
      %v6660 = vsel %vm434, %v6595, 0
      %v6663 = vsel %vm434, %v6596, 0
      %v6666 = vsel %vm434, %v6597, 0
      %v6669 = vsel %vm434, %v6598, 0
      %v6672 = vsel %vm434, %v6599, 0
      %v6675 = vsel %vm434, %v6600, 0
      %v6678 = vsel %vm434, %v6601, 0
      %v6681 = vsel %vm434, %v6602, 0
      %v6684 = vsel %vm434, %v6603, 0
      %v6687 = vsel %vm434, %v6604, 0
      %v6690 = vsel %vm434, %v6605, 0
      %v6693 = vsel %vm434, %v6606, 0
      %v6696 = vsel %vm434, %v6607, 0
      %v6699 = vsel %vm434, %v6608, 0
      %v6702 = vsel %vm434, %v6609, 0
      %v6705 = vsel %vm434, %v6610, 0
      %v6708 = vsel %vm2047, %v4983, 0
      %6710 = vmatpush.msra.mxu0 0.0
      %6711 = vmatpush.msra.mxu0 0.0
      %6712 = vmatpush.msra.mxu0 0.0
      %6713 = vmatpush.msra.mxu0 0.0
      %6714 = vmatpush.msra.mxu0 0.0
      %6715 = vmatpush.msra.mxu0 0.0
      %6716 = vmatpush.msra.mxu0 0.0
      %6717 = vmatpush.msra.mxu0 0.0
      %6718 = vmatpush.msra.mxu0 0.0
      %6719 = vmatpush.msra.mxu0 0.0
      %6720 = vmatpush.msra.mxu0 0.0
      %6721 = vmatpush.msra.mxu0 0.0
      %6722 = vmatpush.msra.mxu0 0.0
      %6723 = vmatpush.msra.mxu0 0.0
      %6724 = vmatpush.msra.mxu0 0.0
      %6725 = vmatpush.msra.mxu0 %v6708
      %6726 = vmatmul.f32.gmra.mxu0 %v6612
      %v6727 = vpop.f32.mrf.mxu0
      %v6728 = vadd.f32 0.0, %v6727
      %6729 = vmatmul.f32.gmra.mxu0 %v6615
      %v6730 = vpop.f32.mrf.mxu0
      %v6731 = vadd.f32 0.0, %v6730
      %6732 = vmatmul.f32.gmra.mxu0 %v6618
      %v6733 = vpop.f32.mrf.mxu0
      %v6734 = vadd.f32 0.0, %v6733
      %6735 = vmatmul.f32.gmra.mxu0 %v6621
      %v6736 = vpop.f32.mrf.mxu0
      %v6737 = vadd.f32 0.0, %v6736
      %6738 = vmatmul.f32.gmra.mxu0 %v6624
      %v6739 = vpop.f32.mrf.mxu0
      %v6740 = vadd.f32 0.0, %v6739
      %6741 = vmatmul.f32.gmra.mxu0 %v6627
      %v6742 = vpop.f32.mrf.mxu0
      %v6743 = vadd.f32 0.0, %v6742
      %6744 = vmatmul.f32.gmra.mxu0 %v6630
      %v6745 = vpop.f32.mrf.mxu0
      %v6746 = vadd.f32 0.0, %v6745
      %6747 = vmatmul.f32.gmra.mxu0 %v6633
      %v6748 = vpop.f32.mrf.mxu0
      %v6749 = vadd.f32 0.0, %v6748
      %6750 = vmatmul.f32.gmra.mxu0 %v6636
      %v6751 = vpop.f32.mrf.mxu0
      %v6752 = vadd.f32 0.0, %v6751
      %6753 = vmatmul.f32.gmra.mxu0 %v6639
      %v6754 = vpop.f32.mrf.mxu0
      %v6755 = vadd.f32 0.0, %v6754
      %6756 = vmatmul.f32.gmra.mxu0 %v6642
      %v6757 = vpop.f32.mrf.mxu0
      %v6758 = vadd.f32 0.0, %v6757
      %6759 = vmatmul.f32.gmra.mxu0 %v6645
      %v6760 = vpop.f32.mrf.mxu0
      %v6761 = vadd.f32 0.0, %v6760
      %6762 = vmatmul.f32.gmra.mxu0 %v6648
      %v6763 = vpop.f32.mrf.mxu0
      %v6764 = vadd.f32 0.0, %v6763
      %6765 = vmatmul.f32.gmra.mxu0 %v6651
      %v6766 = vpop.f32.mrf.mxu0
      %v6767 = vadd.f32 0.0, %v6766
      %6768 = vmatmul.f32.gmra.mxu0 %v6654
      %v6769 = vpop.f32.mrf.mxu0
      %v6770 = vadd.f32 0.0, %v6769
      %6771 = vmatmul.f32.gmra.mxu0 %v6657
      %v6772 = vpop.f32.mrf.mxu0
      %v6773 = vadd.f32 0.0, %v6772
      %6774 = vmatmul.f32.gmra.mxu0 %v6660
      %v6775 = vpop.f32.mrf.mxu0
      %v6776 = vadd.f32 0.0, %v6775
      %6777 = vmatmul.f32.gmra.mxu0 %v6663
      %v6778 = vpop.f32.mrf.mxu0
      %v6779 = vadd.f32 0.0, %v6778
      %6780 = vmatmul.f32.gmra.mxu0 %v6666
      %v6781 = vpop.f32.mrf.mxu0
      %v6782 = vadd.f32 0.0, %v6781
      %6783 = vmatmul.f32.gmra.mxu0 %v6669
      %v6784 = vpop.f32.mrf.mxu0
      %v6785 = vadd.f32 0.0, %v6784
      %6786 = vmatmul.f32.gmra.mxu0 %v6672
      %v6787 = vpop.f32.mrf.mxu0
      %v6788 = vadd.f32 0.0, %v6787
      %6789 = vmatmul.f32.gmra.mxu0 %v6675
      %v6790 = vpop.f32.mrf.mxu0
      %v6791 = vadd.f32 0.0, %v6790
      %6792 = vmatmul.f32.gmra.mxu0 %v6678
      %v6793 = vpop.f32.mrf.mxu0
      %v6794 = vadd.f32 0.0, %v6793
      %6795 = vmatmul.f32.gmra.mxu0 %v6681
      %v6796 = vpop.f32.mrf.mxu0
      %v6797 = vadd.f32 0.0, %v6796
      %6798 = vmatmul.f32.gmra.mxu0 %v6684
      %v6799 = vpop.f32.mrf.mxu0
      %v6800 = vadd.f32 0.0, %v6799
      %6801 = vmatmul.f32.gmra.mxu0 %v6687
      %v6802 = vpop.f32.mrf.mxu0
      %v6803 = vadd.f32 0.0, %v6802
      %6804 = vmatmul.f32.gmra.mxu0 %v6690
      %v6805 = vpop.f32.mrf.mxu0
      %v6806 = vadd.f32 0.0, %v6805
      %6807 = vmatmul.f32.gmra.mxu0 %v6693
      %v6808 = vpop.f32.mrf.mxu0
      %v6809 = vadd.f32 0.0, %v6808
      %6810 = vmatmul.f32.gmra.mxu0 %v6696
      %v6811 = vpop.f32.mrf.mxu0
      %v6812 = vadd.f32 0.0, %v6811
      %6813 = vmatmul.f32.gmra.mxu0 %v6699
      %v6814 = vpop.f32.mrf.mxu0
      %v6815 = vadd.f32 0.0, %v6814
      %6816 = vmatmul.f32.gmra.mxu0 %v6702
      %v6817 = vpop.f32.mrf.mxu0
      %v6818 = vadd.f32 0.0, %v6817
      %6819 = vmatmul.f32.gmra.mxu0 %v6705
      %v6820 = vpop.f32.mrf.mxu0
      %v6821 = vadd.f32 0.0, %v6820
      %6822 = vdwg.mxu0
      %v6823 = vadd.f32 %v6546, %v6728
      %v6824 = vadd.f32 %v6547, %v6731
      %v6825 = vadd.f32 %v6548, %v6734
      %v6826 = vadd.f32 %v6549, %v6737
      %v6827 = vadd.f32 %v6550, %v6740
      %v6828 = vadd.f32 %v6551, %v6743
      %v6829 = vadd.f32 %v6552, %v6746
      %v6830 = vadd.f32 %v6553, %v6749
      %v6831 = vadd.f32 %v6554, %v6752
      %v6832 = vadd.f32 %v6555, %v6755
      %v6833 = vadd.f32 %v6556, %v6758
      %v6834 = vadd.f32 %v6557, %v6761
      %v6835 = vadd.f32 %v6558, %v6764
      %v6836 = vadd.f32 %v6559, %v6767
      %v6837 = vadd.f32 %v6560, %v6770
      %v6838 = vadd.f32 %v6561, %v6773
      %v6839 = vadd.f32 %v6562, %v6776
      %v6840 = vadd.f32 %v6563, %v6779
      %v6841 = vadd.f32 %v6564, %v6782
      %v6842 = vadd.f32 %v6565, %v6785
      %v6843 = vadd.f32 %v6566, %v6788
      %v6844 = vadd.f32 %v6567, %v6791
      %v6845 = vadd.f32 %v6568, %v6794
      %v6846 = vadd.f32 %v6569, %v6797
      %v6847 = vadd.f32 %v6570, %v6800
      %v6848 = vadd.f32 %v6571, %v6803
      %v6849 = vadd.f32 %v6572, %v6806
      %v6850 = vadd.f32 %v6573, %v6809
      %v6851 = vadd.f32 %v6574, %v6812
      %v6852 = vadd.f32 %v6575, %v6815
      %v6853 = vadd.f32 %v6576, %v6818
      %v6854 = vadd.f32 %v6577, %v6821
      %v6855 = vld [vmem:[%s6578 + $0x1] sm:$0xff]
      %v6856 = vld [vmem:[%s6578 + $0x9] sm:$0xff]
      %v6857 = vld [vmem:[%s6578 + $0x19] sm:$0xff]
      %v6858 = vld [vmem:[%s6578 + $0x21] sm:$0xff]
      %v6859 = vld [vmem:[%s6578 + $0x31] sm:$0xff]
      %v6860 = vld [vmem:[%s6578 + $0x39] sm:$0xff]
      %v6861 = vld [vmem:[%s6578 + $0x49] sm:$0xff]
      %v6862 = vld [vmem:[%s6578 + $0x51] sm:$0xff]
      %v6863 = vld [vmem:[%s6578 + $0x61] sm:$0xff]
      %v6864 = vld [vmem:[%s6578 + $0x69] sm:$0xff]
      %v6865 = vld [vmem:[%s6578 + $0x79] sm:$0xff]
      %v6866 = vld [vmem:[%s6578 + $0x81] sm:$0xff]
      %v6867 = vld [vmem:[%s6578 + $0x91] sm:$0xff]
      %v6868 = vld [vmem:[%s6578 + $0x99] sm:$0xff]
      %v6869 = vld [vmem:[%s6578 + $0xa9] sm:$0xff]
      %v6870 = vld [vmem:[%s6578 + $0xb1] sm:$0xff]
      %v6871 = vld [vmem:[%s6578 + $0xc1] sm:$0xff]
      %v6872 = vld [vmem:[%s6578 + $0xc9] sm:$0xff]
      %v6873 = vld [vmem:[%s6578 + $0xd9] sm:$0xff]
      %v6874 = vld [vmem:[%s6578 + $0xe1] sm:$0xff]
      %v6875 = vld [vmem:[%s6578 + $0xf1] sm:$0xff]
      %v6876 = vld [vmem:[%s6578 + $0xf9] sm:$0xff]
      %v6877 = vld [vmem:[%s6578 + $0x109] sm:$0xff]
      %v6878 = vld [vmem:[%s6578 + $0x111] sm:$0xff]
      %v6879 = vld [vmem:[%s6578 + $0x121] sm:$0xff]
      %v6880 = vld [vmem:[%s6578 + $0x129] sm:$0xff]
      %v6881 = vld [vmem:[%s6578 + $0x139] sm:$0xff]
      %v6882 = vld [vmem:[%s6578 + $0x141] sm:$0xff]
      %v6883 = vld [vmem:[%s6578 + $0x151] sm:$0xff]
      %v6884 = vld [vmem:[%s6578 + $0x159] sm:$0xff]
      %v6885 = vld [vmem:[%s6578 + $0x169] sm:$0xff]
      %v6886 = vld [vmem:[%s6578 + $0x171] sm:$0xff]
      %v6888 = vsel %vm434, %v6855, 0
      %v6891 = vsel %vm434, %v6856, 0
      %v6894 = vsel %vm434, %v6857, 0
      %v6897 = vsel %vm434, %v6858, 0
      %v6900 = vsel %vm434, %v6859, 0
      %v6903 = vsel %vm434, %v6860, 0
      %v6906 = vsel %vm434, %v6861, 0
      %v6909 = vsel %vm434, %v6862, 0
      %v6912 = vsel %vm434, %v6863, 0
      %v6915 = vsel %vm434, %v6864, 0
      %v6918 = vsel %vm434, %v6865, 0
      %v6921 = vsel %vm434, %v6866, 0
      %v6924 = vsel %vm434, %v6867, 0
      %v6927 = vsel %vm434, %v6868, 0
      %v6930 = vsel %vm434, %v6869, 0
      %v6933 = vsel %vm434, %v6870, 0
      %v6936 = vsel %vm434, %v6871, 0
      %v6939 = vsel %vm434, %v6872, 0
      %v6942 = vsel %vm434, %v6873, 0
      %v6945 = vsel %vm434, %v6874, 0
      %v6948 = vsel %vm434, %v6875, 0
      %v6951 = vsel %vm434, %v6876, 0
      %v6954 = vsel %vm434, %v6877, 0
      %v6957 = vsel %vm434, %v6878, 0
      %v6960 = vsel %vm434, %v6879, 0
      %v6963 = vsel %vm434, %v6880, 0
      %v6966 = vsel %vm434, %v6881, 0
      %v6969 = vsel %vm434, %v6882, 0
      %v6972 = vsel %vm434, %v6883, 0
      %v6975 = vsel %vm434, %v6884, 0
      %v6978 = vsel %vm434, %v6885, 0
      %v6981 = vsel %vm434, %v6886, 0
      %v6984 = vsel %vm2047, %v4984, 0
      %6986 = vmatpush.msra.mxu0 0.0
      %6987 = vmatpush.msra.mxu0 0.0
      %6988 = vmatpush.msra.mxu0 0.0
      %6989 = vmatpush.msra.mxu0 0.0
      %6990 = vmatpush.msra.mxu0 0.0
      %6991 = vmatpush.msra.mxu0 0.0
      %6992 = vmatpush.msra.mxu0 0.0
      %6993 = vmatpush.msra.mxu0 0.0
      %6994 = vmatpush.msra.mxu0 0.0
      %6995 = vmatpush.msra.mxu0 0.0
      %6996 = vmatpush.msra.mxu0 0.0
      %6997 = vmatpush.msra.mxu0 0.0
      %6998 = vmatpush.msra.mxu0 0.0
      %6999 = vmatpush.msra.mxu0 0.0
      %7000 = vmatpush.msra.mxu0 0.0
      %7001 = vmatpush.msra.mxu0 %v6984
      %7002 = vmatmul.f32.gmra.mxu0 %v6888
      %v7003 = vpop.f32.mrf.mxu0
      %v7004 = vadd.f32 0.0, %v7003
      %7005 = vmatmul.f32.gmra.mxu0 %v6891
      %v7006 = vpop.f32.mrf.mxu0
      %v7007 = vadd.f32 0.0, %v7006
      %7008 = vmatmul.f32.gmra.mxu0 %v6894
      %v7009 = vpop.f32.mrf.mxu0
      %v7010 = vadd.f32 0.0, %v7009
      %7011 = vmatmul.f32.gmra.mxu0 %v6897
      %v7012 = vpop.f32.mrf.mxu0
      %v7013 = vadd.f32 0.0, %v7012
      %7014 = vmatmul.f32.gmra.mxu0 %v6900
      %v7015 = vpop.f32.mrf.mxu0
      %v7016 = vadd.f32 0.0, %v7015
      %7017 = vmatmul.f32.gmra.mxu0 %v6903
      %v7018 = vpop.f32.mrf.mxu0
      %v7019 = vadd.f32 0.0, %v7018
      %7020 = vmatmul.f32.gmra.mxu0 %v6906
      %v7021 = vpop.f32.mrf.mxu0
      %v7022 = vadd.f32 0.0, %v7021
      %7023 = vmatmul.f32.gmra.mxu0 %v6909
      %v7024 = vpop.f32.mrf.mxu0
      %v7025 = vadd.f32 0.0, %v7024
      %7026 = vmatmul.f32.gmra.mxu0 %v6912
      %v7027 = vpop.f32.mrf.mxu0
      %v7028 = vadd.f32 0.0, %v7027
      %7029 = vmatmul.f32.gmra.mxu0 %v6915
      %v7030 = vpop.f32.mrf.mxu0
      %v7031 = vadd.f32 0.0, %v7030
      %7032 = vmatmul.f32.gmra.mxu0 %v6918
      %v7033 = vpop.f32.mrf.mxu0
      %v7034 = vadd.f32 0.0, %v7033
      %7035 = vmatmul.f32.gmra.mxu0 %v6921
      %v7036 = vpop.f32.mrf.mxu0
      %v7037 = vadd.f32 0.0, %v7036
      %7038 = vmatmul.f32.gmra.mxu0 %v6924
      %v7039 = vpop.f32.mrf.mxu0
      %v7040 = vadd.f32 0.0, %v7039
      %7041 = vmatmul.f32.gmra.mxu0 %v6927
      %v7042 = vpop.f32.mrf.mxu0
      %v7043 = vadd.f32 0.0, %v7042
      %7044 = vmatmul.f32.gmra.mxu0 %v6930
      %v7045 = vpop.f32.mrf.mxu0
      %v7046 = vadd.f32 0.0, %v7045
      %7047 = vmatmul.f32.gmra.mxu0 %v6933
      %v7048 = vpop.f32.mrf.mxu0
      %v7049 = vadd.f32 0.0, %v7048
      %7050 = vmatmul.f32.gmra.mxu0 %v6936
      %v7051 = vpop.f32.mrf.mxu0
      %v7052 = vadd.f32 0.0, %v7051
      %7053 = vmatmul.f32.gmra.mxu0 %v6939
      %v7054 = vpop.f32.mrf.mxu0
      %v7055 = vadd.f32 0.0, %v7054
      %7056 = vmatmul.f32.gmra.mxu0 %v6942
      %v7057 = vpop.f32.mrf.mxu0
      %v7058 = vadd.f32 0.0, %v7057
      %7059 = vmatmul.f32.gmra.mxu0 %v6945
      %v7060 = vpop.f32.mrf.mxu0
      %v7061 = vadd.f32 0.0, %v7060
      %7062 = vmatmul.f32.gmra.mxu0 %v6948
      %v7063 = vpop.f32.mrf.mxu0
      %v7064 = vadd.f32 0.0, %v7063
      %7065 = vmatmul.f32.gmra.mxu0 %v6951
      %v7066 = vpop.f32.mrf.mxu0
      %v7067 = vadd.f32 0.0, %v7066
      %7068 = vmatmul.f32.gmra.mxu0 %v6954
      %v7069 = vpop.f32.mrf.mxu0
      %v7070 = vadd.f32 0.0, %v7069
      %7071 = vmatmul.f32.gmra.mxu0 %v6957
      %v7072 = vpop.f32.mrf.mxu0
      %v7073 = vadd.f32 0.0, %v7072
      %7074 = vmatmul.f32.gmra.mxu0 %v6960
      %v7075 = vpop.f32.mrf.mxu0
      %v7076 = vadd.f32 0.0, %v7075
      %7077 = vmatmul.f32.gmra.mxu0 %v6963
      %v7078 = vpop.f32.mrf.mxu0
      %v7079 = vadd.f32 0.0, %v7078
      %7080 = vmatmul.f32.gmra.mxu0 %v6966
      %v7081 = vpop.f32.mrf.mxu0
      %v7082 = vadd.f32 0.0, %v7081
      %7083 = vmatmul.f32.gmra.mxu0 %v6969
      %v7084 = vpop.f32.mrf.mxu0
      %v7085 = vadd.f32 0.0, %v7084
      %7086 = vmatmul.f32.gmra.mxu0 %v6972
      %v7087 = vpop.f32.mrf.mxu0
      %v7088 = vadd.f32 0.0, %v7087
      %7089 = vmatmul.f32.gmra.mxu0 %v6975
      %v7090 = vpop.f32.mrf.mxu0
      %v7091 = vadd.f32 0.0, %v7090
      %7092 = vmatmul.f32.gmra.mxu0 %v6978
      %v7093 = vpop.f32.mrf.mxu0
      %v7094 = vadd.f32 0.0, %v7093
      %7095 = vmatmul.f32.gmra.mxu0 %v6981
      %v7096 = vpop.f32.mrf.mxu0
      %v7097 = vadd.f32 0.0, %v7096
      %7098 = vdwg.mxu0
      %v7099 = vadd.f32 %v6823, %v7004
      %v7100 = vadd.f32 %v6824, %v7007
      %v7101 = vadd.f32 %v6825, %v7010
      %v7102 = vadd.f32 %v6826, %v7013
      %v7103 = vadd.f32 %v6827, %v7016
      %v7104 = vadd.f32 %v6828, %v7019
      %v7105 = vadd.f32 %v6829, %v7022
      %v7106 = vadd.f32 %v6830, %v7025
      %v7107 = vadd.f32 %v6831, %v7028
      %v7108 = vadd.f32 %v6832, %v7031
      %v7109 = vadd.f32 %v6833, %v7034
      %v7110 = vadd.f32 %v6834, %v7037
      %v7111 = vadd.f32 %v6835, %v7040
      %v7112 = vadd.f32 %v6836, %v7043
      %v7113 = vadd.f32 %v6837, %v7046
      %v7114 = vadd.f32 %v6838, %v7049
      %v7115 = vadd.f32 %v6839, %v7052
      %v7116 = vadd.f32 %v6840, %v7055
      %v7117 = vadd.f32 %v6841, %v7058
      %v7118 = vadd.f32 %v6842, %v7061
      %v7119 = vadd.f32 %v6843, %v7064
      %v7120 = vadd.f32 %v6844, %v7067
      %v7121 = vadd.f32 %v6845, %v7070
      %v7122 = vadd.f32 %v6846, %v7073
      %v7123 = vadd.f32 %v6847, %v7076
      %v7124 = vadd.f32 %v6848, %v7079
      %v7125 = vadd.f32 %v6849, %v7082
      %v7126 = vadd.f32 %v6850, %v7085
      %v7127 = vadd.f32 %v6851, %v7088
      %v7128 = vadd.f32 %v6852, %v7091
      %v7129 = vadd.f32 %v6853, %v7094
      %v7130 = vadd.f32 %v6854, %v7097
      %v7131 = vld [vmem:[%s6578 + $0x2] sm:$0xff]
      %v7132 = vld [vmem:[%s6578 + $0xa] sm:$0xff]
      %v7133 = vld [vmem:[%s6578 + $0x1a] sm:$0xff]
      %v7134 = vld [vmem:[%s6578 + $0x22] sm:$0xff]
      %v7135 = vld [vmem:[%s6578 + $0x32] sm:$0xff]
      %v7136 = vld [vmem:[%s6578 + $0x3a] sm:$0xff]
      %v7137 = vld [vmem:[%s6578 + $0x4a] sm:$0xff]
      %v7138 = vld [vmem:[%s6578 + $0x52] sm:$0xff]
      %v7139 = vld [vmem:[%s6578 + $0x62] sm:$0xff]
      %v7140 = vld [vmem:[%s6578 + $0x6a] sm:$0xff]
      %v7141 = vld [vmem:[%s6578 + $0x7a] sm:$0xff]
      %v7142 = vld [vmem:[%s6578 + $0x82] sm:$0xff]
      %v7143 = vld [vmem:[%s6578 + $0x92] sm:$0xff]
      %v7144 = vld [vmem:[%s6578 + $0x9a] sm:$0xff]
      %v7145 = vld [vmem:[%s6578 + $0xaa] sm:$0xff]
      %v7146 = vld [vmem:[%s6578 + $0xb2] sm:$0xff]
      %v7147 = vld [vmem:[%s6578 + $0xc2] sm:$0xff]
      %v7148 = vld [vmem:[%s6578 + $0xca] sm:$0xff]
      %v7149 = vld [vmem:[%s6578 + $0xda] sm:$0xff]
      %v7150 = vld [vmem:[%s6578 + $0xe2] sm:$0xff]
      %v7151 = vld [vmem:[%s6578 + $0xf2] sm:$0xff]
      %v7152 = vld [vmem:[%s6578 + $0xfa] sm:$0xff]
      %v7153 = vld [vmem:[%s6578 + $0x10a] sm:$0xff]
      %v7154 = vld [vmem:[%s6578 + $0x112] sm:$0xff]
      %v7155 = vld [vmem:[%s6578 + $0x122] sm:$0xff]
      %v7156 = vld [vmem:[%s6578 + $0x12a] sm:$0xff]
      %v7157 = vld [vmem:[%s6578 + $0x13a] sm:$0xff]
      %v7158 = vld [vmem:[%s6578 + $0x142] sm:$0xff]
      %v7159 = vld [vmem:[%s6578 + $0x152] sm:$0xff]
      %v7160 = vld [vmem:[%s6578 + $0x15a] sm:$0xff]
      %v7161 = vld [vmem:[%s6578 + $0x16a] sm:$0xff]
      %v7162 = vld [vmem:[%s6578 + $0x172] sm:$0xff]
      %v7164 = vsel %vm434, %v7131, 0
      %v7167 = vsel %vm434, %v7132, 0
      %v7170 = vsel %vm434, %v7133, 0
      %v7173 = vsel %vm434, %v7134, 0
      %v7176 = vsel %vm434, %v7135, 0
      %v7179 = vsel %vm434, %v7136, 0
      %v7182 = vsel %vm434, %v7137, 0
      %v7185 = vsel %vm434, %v7138, 0
      %v7188 = vsel %vm434, %v7139, 0
      %v7191 = vsel %vm434, %v7140, 0
      %v7194 = vsel %vm434, %v7141, 0
      %v7197 = vsel %vm434, %v7142, 0
      %v7200 = vsel %vm434, %v7143, 0
      %v7203 = vsel %vm434, %v7144, 0
      %v7206 = vsel %vm434, %v7145, 0
      %v7209 = vsel %vm434, %v7146, 0
      %v7212 = vsel %vm434, %v7147, 0
      %v7215 = vsel %vm434, %v7148, 0
      %v7218 = vsel %vm434, %v7149, 0
      %v7221 = vsel %vm434, %v7150, 0
      %v7224 = vsel %vm434, %v7151, 0
      %v7227 = vsel %vm434, %v7152, 0
      %v7230 = vsel %vm434, %v7153, 0
      %v7233 = vsel %vm434, %v7154, 0
      %v7236 = vsel %vm434, %v7155, 0
      %v7239 = vsel %vm434, %v7156, 0
      %v7242 = vsel %vm434, %v7157, 0
      %v7245 = vsel %vm434, %v7158, 0
      %v7248 = vsel %vm434, %v7159, 0
      %v7251 = vsel %vm434, %v7160, 0
      %v7254 = vsel %vm434, %v7161, 0
      %v7257 = vsel %vm434, %v7162, 0
      %v7260 = vsel %vm2047, %v4985, 0
      %7262 = vmatpush.msra.mxu0 0.0
      %7263 = vmatpush.msra.mxu0 0.0
      %7264 = vmatpush.msra.mxu0 0.0
      %7265 = vmatpush.msra.mxu0 0.0
      %7266 = vmatpush.msra.mxu0 0.0
      %7267 = vmatpush.msra.mxu0 0.0
      %7268 = vmatpush.msra.mxu0 0.0
      %7269 = vmatpush.msra.mxu0 0.0
      %7270 = vmatpush.msra.mxu0 0.0
      %7271 = vmatpush.msra.mxu0 0.0
      %7272 = vmatpush.msra.mxu0 0.0
      %7273 = vmatpush.msra.mxu0 0.0
      %7274 = vmatpush.msra.mxu0 0.0
      %7275 = vmatpush.msra.mxu0 0.0
      %7276 = vmatpush.msra.mxu0 0.0
      %7277 = vmatpush.msra.mxu0 %v7260
      %7278 = vmatmul.f32.gmra.mxu0 %v7164
      %v7279 = vpop.f32.mrf.mxu0
      %v7280 = vadd.f32 0.0, %v7279
      %7281 = vmatmul.f32.gmra.mxu0 %v7167
      %v7282 = vpop.f32.mrf.mxu0
      %v7283 = vadd.f32 0.0, %v7282
      %7284 = vmatmul.f32.gmra.mxu0 %v7170
      %v7285 = vpop.f32.mrf.mxu0
      %v7286 = vadd.f32 0.0, %v7285
      %7287 = vmatmul.f32.gmra.mxu0 %v7173
      %v7288 = vpop.f32.mrf.mxu0
      %v7289 = vadd.f32 0.0, %v7288
      %7290 = vmatmul.f32.gmra.mxu0 %v7176
      %v7291 = vpop.f32.mrf.mxu0
      %v7292 = vadd.f32 0.0, %v7291
      %7293 = vmatmul.f32.gmra.mxu0 %v7179
      %v7294 = vpop.f32.mrf.mxu0
      %v7295 = vadd.f32 0.0, %v7294
      %7296 = vmatmul.f32.gmra.mxu0 %v7182
      %v7297 = vpop.f32.mrf.mxu0
      %v7298 = vadd.f32 0.0, %v7297
      %7299 = vmatmul.f32.gmra.mxu0 %v7185
      %v7300 = vpop.f32.mrf.mxu0
      %v7301 = vadd.f32 0.0, %v7300
      %7302 = vmatmul.f32.gmra.mxu0 %v7188
      %v7303 = vpop.f32.mrf.mxu0
      %v7304 = vadd.f32 0.0, %v7303
      %7305 = vmatmul.f32.gmra.mxu0 %v7191
      %v7306 = vpop.f32.mrf.mxu0
      %v7307 = vadd.f32 0.0, %v7306
      %7308 = vmatmul.f32.gmra.mxu0 %v7194
      %v7309 = vpop.f32.mrf.mxu0
      %v7310 = vadd.f32 0.0, %v7309
      %7311 = vmatmul.f32.gmra.mxu0 %v7197
      %v7312 = vpop.f32.mrf.mxu0
      %v7313 = vadd.f32 0.0, %v7312
      %7314 = vmatmul.f32.gmra.mxu0 %v7200
      %v7315 = vpop.f32.mrf.mxu0
      %v7316 = vadd.f32 0.0, %v7315
      %7317 = vmatmul.f32.gmra.mxu0 %v7203
      %v7318 = vpop.f32.mrf.mxu0
      %v7319 = vadd.f32 0.0, %v7318
      %7320 = vmatmul.f32.gmra.mxu0 %v7206
      %v7321 = vpop.f32.mrf.mxu0
      %v7322 = vadd.f32 0.0, %v7321
      %7323 = vmatmul.f32.gmra.mxu0 %v7209
      %v7324 = vpop.f32.mrf.mxu0
      %v7325 = vadd.f32 0.0, %v7324
      %7326 = vmatmul.f32.gmra.mxu0 %v7212
      %v7327 = vpop.f32.mrf.mxu0
      %v7328 = vadd.f32 0.0, %v7327
      %7329 = vmatmul.f32.gmra.mxu0 %v7215
      %v7330 = vpop.f32.mrf.mxu0
      %v7331 = vadd.f32 0.0, %v7330
      %7332 = vmatmul.f32.gmra.mxu0 %v7218
      %v7333 = vpop.f32.mrf.mxu0
      %v7334 = vadd.f32 0.0, %v7333
      %7335 = vmatmul.f32.gmra.mxu0 %v7221
      %v7336 = vpop.f32.mrf.mxu0
      %v7337 = vadd.f32 0.0, %v7336
      %7338 = vmatmul.f32.gmra.mxu0 %v7224
      %v7339 = vpop.f32.mrf.mxu0
      %v7340 = vadd.f32 0.0, %v7339
      %7341 = vmatmul.f32.gmra.mxu0 %v7227
      %v7342 = vpop.f32.mrf.mxu0
      %v7343 = vadd.f32 0.0, %v7342
      %7344 = vmatmul.f32.gmra.mxu0 %v7230
      %v7345 = vpop.f32.mrf.mxu0
      %v7346 = vadd.f32 0.0, %v7345
      %7347 = vmatmul.f32.gmra.mxu0 %v7233
      %v7348 = vpop.f32.mrf.mxu0
      %v7349 = vadd.f32 0.0, %v7348
      %7350 = vmatmul.f32.gmra.mxu0 %v7236
      %v7351 = vpop.f32.mrf.mxu0
      %v7352 = vadd.f32 0.0, %v7351
      %7353 = vmatmul.f32.gmra.mxu0 %v7239
      %v7354 = vpop.f32.mrf.mxu0
      %v7355 = vadd.f32 0.0, %v7354
      %7356 = vmatmul.f32.gmra.mxu0 %v7242
      %v7357 = vpop.f32.mrf.mxu0
      %v7358 = vadd.f32 0.0, %v7357
      %7359 = vmatmul.f32.gmra.mxu0 %v7245
      %v7360 = vpop.f32.mrf.mxu0
      %v7361 = vadd.f32 0.0, %v7360
      %7362 = vmatmul.f32.gmra.mxu0 %v7248
      %v7363 = vpop.f32.mrf.mxu0
      %v7364 = vadd.f32 0.0, %v7363
      %7365 = vmatmul.f32.gmra.mxu0 %v7251
      %v7366 = vpop.f32.mrf.mxu0
      %v7367 = vadd.f32 0.0, %v7366
      %7368 = vmatmul.f32.gmra.mxu0 %v7254
      %v7369 = vpop.f32.mrf.mxu0
      %v7370 = vadd.f32 0.0, %v7369
      %7371 = vmatmul.f32.gmra.mxu0 %v7257
      %v7372 = vpop.f32.mrf.mxu0
      %v7373 = vadd.f32 0.0, %v7372
      %7374 = vdwg.mxu0
      %v7375 = vadd.f32 %v7099, %v7280
      %v7376 = vadd.f32 %v7100, %v7283
      %v7377 = vadd.f32 %v7101, %v7286
      %v7378 = vadd.f32 %v7102, %v7289
      %v7379 = vadd.f32 %v7103, %v7292
      %v7380 = vadd.f32 %v7104, %v7295
      %v7381 = vadd.f32 %v7105, %v7298
      %v7382 = vadd.f32 %v7106, %v7301
      %v7383 = vadd.f32 %v7107, %v7304
      %v7384 = vadd.f32 %v7108, %v7307
      %v7385 = vadd.f32 %v7109, %v7310
      %v7386 = vadd.f32 %v7110, %v7313
      %v7387 = vadd.f32 %v7111, %v7316
      %v7388 = vadd.f32 %v7112, %v7319
      %v7389 = vadd.f32 %v7113, %v7322
      %v7390 = vadd.f32 %v7114, %v7325
      %v7391 = vadd.f32 %v7115, %v7328
      %v7392 = vadd.f32 %v7116, %v7331
      %v7393 = vadd.f32 %v7117, %v7334
      %v7394 = vadd.f32 %v7118, %v7337
      %v7395 = vadd.f32 %v7119, %v7340
      %v7396 = vadd.f32 %v7120, %v7343
      %v7397 = vadd.f32 %v7121, %v7346
      %v7398 = vadd.f32 %v7122, %v7349
      %v7399 = vadd.f32 %v7123, %v7352
      %v7400 = vadd.f32 %v7124, %v7355
      %v7401 = vadd.f32 %v7125, %v7358
      %v7402 = vadd.f32 %v7126, %v7361
      %v7403 = vadd.f32 %v7127, %v7364
      %v7404 = vadd.f32 %v7128, %v7367
      %v7405 = vadd.f32 %v7129, %v7370
      %v7406 = vadd.f32 %v7130, %v7373
      %v7407 = vadd.f32 %v4945, %v7375
      %v7408 = vadd.f32 %v4946, %v7376
      %v7409 = vadd.f32 %v4947, %v7377
      %v7410 = vadd.f32 %v4948, %v7378
      %v7411 = vadd.f32 %v4949, %v7379
      %v7412 = vadd.f32 %v4950, %v7380
      %v7413 = vadd.f32 %v4951, %v7381
      %v7414 = vadd.f32 %v4952, %v7382
      %v7415 = vadd.f32 %v4953, %v7383
      %v7416 = vadd.f32 %v4954, %v7384
      %v7417 = vadd.f32 %v4955, %v7385
      %v7418 = vadd.f32 %v4956, %v7386
      %v7419 = vadd.f32 %v4957, %v7387
      %v7420 = vadd.f32 %v4958, %v7388
      %v7421 = vadd.f32 %v4959, %v7389
      %v7422 = vadd.f32 %v4960, %v7390
      %v7423 = vadd.f32 %v4961, %v7391
      %v7424 = vadd.f32 %v4962, %v7392
      %v7425 = vadd.f32 %v4963, %v7393
      %v7426 = vadd.f32 %v4964, %v7394
      %v7427 = vadd.f32 %v4965, %v7395
      %v7428 = vadd.f32 %v4966, %v7396
      %v7429 = vadd.f32 %v4967, %v7397
      %v7430 = vadd.f32 %v4968, %v7398
      %v7431 = vadd.f32 %v4969, %v7399
      %v7432 = vadd.f32 %v4970, %v7400
      %v7433 = vadd.f32 %v4971, %v7401
      %v7434 = vadd.f32 %v4972, %v7402
      %v7435 = vadd.f32 %v4973, %v7403
      %v7436 = vadd.f32 %v4974, %v7404
      %v7437 = vadd.f32 %v4975, %v7405
      %v7438 = vadd.f32 %v4976, %v7406
      %v7439 = vld [vmem:[%s6] sm:$0x1]
      %v7441 = vperm.slane %v7439, 0
      %v7443 = vadd.f32 %v7407, %v7441
      %v7444 = vadd.f32 %v7408, %v7441
      %v7445 = vadd.f32 %v7409, %v7441
      %v7446 = vadd.f32 %v7410, %v7441
      %v7447 = vadd.f32 %v7411, %v7441
      %v7448 = vadd.f32 %v7412, %v7441
      %v7449 = vadd.f32 %v7413, %v7441
      %v7450 = vadd.f32 %v7414, %v7441
      %v7451 = vadd.f32 %v7415, %v7441
      %v7452 = vadd.f32 %v7416, %v7441
      %v7453 = vadd.f32 %v7417, %v7441
      %v7454 = vadd.f32 %v7418, %v7441
      %v7455 = vadd.f32 %v7419, %v7441
      %v7456 = vadd.f32 %v7420, %v7441
      %v7457 = vadd.f32 %v7421, %v7441
      %v7458 = vadd.f32 %v7422, %v7441
      %v7459 = vadd.f32 %v7423, %v7441
      %v7460 = vadd.f32 %v7424, %v7441
      %v7461 = vadd.f32 %v7425, %v7441
      %v7462 = vadd.f32 %v7426, %v7441
      %v7463 = vadd.f32 %v7427, %v7441
      %v7464 = vadd.f32 %v7428, %v7441
      %v7465 = vadd.f32 %v7429, %v7441
      %v7466 = vadd.f32 %v7430, %v7441
      %v7467 = vadd.f32 %v7431, %v7441
      %v7468 = vadd.f32 %v7432, %v7441
      %v7469 = vadd.f32 %v7433, %v7441
      %v7470 = vadd.f32 %v7434, %v7441
      %v7471 = vadd.f32 %v7435, %v7441
      %v7472 = vadd.f32 %v7436, %v7441
      %v7473 = vadd.f32 %v7437, %v7441
      %v7474 = vadd.f32 %v7438, %v7441
      %v7475 = vmul.f32 %v7443, 0.2
      %v7476 = vmul.f32 %v7444, 0.2
      %v7477 = vmul.f32 %v7445, 0.2
      %v7478 = vmul.f32 %v7446, 0.2
      %v7479 = vmul.f32 %v7447, 0.2
      %v7480 = vmul.f32 %v7448, 0.2
      %v7481 = vmul.f32 %v7449, 0.2
      %v7482 = vmul.f32 %v7450, 0.2
      %v7483 = vmul.f32 %v7451, 0.2
      %v7484 = vmul.f32 %v7452, 0.2
      %v7485 = vmul.f32 %v7453, 0.2
      %v7486 = vmul.f32 %v7454, 0.2
      %v7487 = vmul.f32 %v7455, 0.2
      %v7488 = vmul.f32 %v7456, 0.2
      %v7489 = vmul.f32 %v7457, 0.2
      %v7490 = vmul.f32 %v7458, 0.2
      %v7491 = vmul.f32 %v7459, 0.2
      %v7492 = vmul.f32 %v7460, 0.2
      %v7493 = vmul.f32 %v7461, 0.2
      %v7494 = vmul.f32 %v7462, 0.2
      %v7495 = vmul.f32 %v7463, 0.2
      %v7496 = vmul.f32 %v7464, 0.2
      %v7497 = vmul.f32 %v7465, 0.2
      %v7498 = vmul.f32 %v7466, 0.2
      %v7499 = vmul.f32 %v7467, 0.2
      %v7500 = vmul.f32 %v7468, 0.2
      %v7501 = vmul.f32 %v7469, 0.2
      %v7502 = vmul.f32 %v7470, 0.2
      %v7503 = vmul.f32 %v7471, 0.2
      %v7504 = vmul.f32 %v7472, 0.2
      %v7505 = vmul.f32 %v7473, 0.2
      %v7506 = vmul.f32 %v7474, 0.2
      %v7507 = vmax.f32 %v7443, %v7475
      %v7508 = vmax.f32 %v7444, %v7476
      %v7509 = vmax.f32 %v7445, %v7477
      %v7510 = vmax.f32 %v7446, %v7478
      %v7511 = vmax.f32 %v7447, %v7479
      %v7512 = vmax.f32 %v7448, %v7480
      %v7513 = vmax.f32 %v7449, %v7481
      %v7514 = vmax.f32 %v7450, %v7482
      %v7515 = vmax.f32 %v7451, %v7483
      %v7516 = vmax.f32 %v7452, %v7484
      %v7517 = vmax.f32 %v7453, %v7485
      %v7518 = vmax.f32 %v7454, %v7486
      %v7519 = vmax.f32 %v7455, %v7487
      %v7520 = vmax.f32 %v7456, %v7488
      %v7521 = vmax.f32 %v7457, %v7489
      %v7522 = vmax.f32 %v7458, %v7490
      %v7523 = vmax.f32 %v7459, %v7491
      %v7524 = vmax.f32 %v7460, %v7492
      %v7525 = vmax.f32 %v7461, %v7493
      %v7526 = vmax.f32 %v7462, %v7494
      %v7527 = vmax.f32 %v7463, %v7495
      %v7528 = vmax.f32 %v7464, %v7496
      %v7529 = vmax.f32 %v7465, %v7497
      %v7530 = vmax.f32 %v7466, %v7498
      %v7531 = vmax.f32 %v7467, %v7499
      %v7532 = vmax.f32 %v7468, %v7500
      %v7533 = vmax.f32 %v7469, %v7501
      %v7534 = vmax.f32 %v7470, %v7502
      %v7535 = vmax.f32 %v7471, %v7503
      %v7536 = vmax.f32 %v7472, %v7504
      %v7537 = vmax.f32 %v7473, %v7505
      %v7538 = vmax.f32 %v7474, %v7506
      %s7539 = scalar_lea.vmem [#allocation4], 24
      %7540 = vst.msk [vmem:[%s7539 + $0x1] sm:$0xff] %vm434, %v7507
      %7541 = vst.msk [vmem:[%s7539 + $0x9] sm:$0xff] %vm434, %v7508
      %7542 = vst.msk [vmem:[%s7539 + $0x19] sm:$0xff] %vm434, %v7509
      %7543 = vst.msk [vmem:[%s7539 + $0x21] sm:$0xff] %vm434, %v7510
      %7544 = vst.msk [vmem:[%s7539 + $0x31] sm:$0xff] %vm434, %v7511
      %7545 = vst.msk [vmem:[%s7539 + $0x39] sm:$0xff] %vm434, %v7512
      %7546 = vst.msk [vmem:[%s7539 + $0x49] sm:$0xff] %vm434, %v7513
      %7547 = vst.msk [vmem:[%s7539 + $0x51] sm:$0xff] %vm434, %v7514
      %7548 = vst.msk [vmem:[%s7539 + $0x61] sm:$0xff] %vm434, %v7515
      %7549 = vst.msk [vmem:[%s7539 + $0x69] sm:$0xff] %vm434, %v7516
      %7550 = vst.msk [vmem:[%s7539 + $0x79] sm:$0xff] %vm434, %v7517
      %7551 = vst.msk [vmem:[%s7539 + $0x81] sm:$0xff] %vm434, %v7518
      %7552 = vst.msk [vmem:[%s7539 + $0x91] sm:$0xff] %vm434, %v7519
      %7553 = vst.msk [vmem:[%s7539 + $0x99] sm:$0xff] %vm434, %v7520
      %7554 = vst.msk [vmem:[%s7539 + $0xa9] sm:$0xff] %vm434, %v7521
      %7555 = vst.msk [vmem:[%s7539 + $0xb1] sm:$0xff] %vm434, %v7522
      %7556 = vst.msk [vmem:[%s7539 + $0xc1] sm:$0xff] %vm434, %v7523
      %7557 = vst.msk [vmem:[%s7539 + $0xc9] sm:$0xff] %vm434, %v7524
      %7558 = vst.msk [vmem:[%s7539 + $0xd9] sm:$0xff] %vm434, %v7525
      %7559 = vst.msk [vmem:[%s7539 + $0xe1] sm:$0xff] %vm434, %v7526
      %7560 = vst.msk [vmem:[%s7539 + $0xf1] sm:$0xff] %vm434, %v7527
      %7561 = vst.msk [vmem:[%s7539 + $0xf9] sm:$0xff] %vm434, %v7528
      %7562 = vst.msk [vmem:[%s7539 + $0x109] sm:$0xff] %vm434, %v7529
      %7563 = vst.msk [vmem:[%s7539 + $0x111] sm:$0xff] %vm434, %v7530
      %7564 = vst.msk [vmem:[%s7539 + $0x121] sm:$0xff] %vm434, %v7531
      %7565 = vst.msk [vmem:[%s7539 + $0x129] sm:$0xff] %vm434, %v7532
      %7566 = vst.msk [vmem:[%s7539 + $0x139] sm:$0xff] %vm434, %v7533
      %7567 = vst.msk [vmem:[%s7539 + $0x141] sm:$0xff] %vm434, %v7534
      %7568 = vst.msk [vmem:[%s7539 + $0x151] sm:$0xff] %vm434, %v7535
      %7569 = vst.msk [vmem:[%s7539 + $0x159] sm:$0xff] %vm434, %v7536
      %7570 = vst.msk [vmem:[%s7539 + $0x169] sm:$0xff] %vm434, %v7537
      %7571 = vst.msk [vmem:[%s7539 + $0x171] sm:$0xff] %vm434, %v7538
      %v7572 = vld [vmem:[%s7] sm:$0xf]
      %v7573 = vld [vmem:[%s7 + $0x4] sm:$0xf]
      %v7574 = vld [vmem:[%s7 + $0x8] sm:$0xf]
      %v7575 = vld [vmem:[%s7 + $0xc] sm:$0xf]
      %v7576 = vld [vmem:[%s7 + $0x10] sm:$0xf]
      %v7577 = vld [vmem:[%s7 + $0x14] sm:$0xf]
      %v7578 = vld [vmem:[%s7 + $0x18] sm:$0xf]
      %v7579 = vld [vmem:[%s7 + $0x1c] sm:$0xf]
      %v7580 = vld [vmem:[%s7 + $0x20] sm:$0xf]
      %v7581 = vld [vmem:[#allocation4] sm:$0xff]
      %v7582 = vld [vmem:[#allocation4 + $0x8] sm:$0xff]
      %v7583 = vld [vmem:[#allocation4 + $0x18] sm:$0xff]
      %v7584 = vld [vmem:[#allocation4 + $0x20] sm:$0xff]
      %v7585 = vld [vmem:[#allocation4 + $0x30] sm:$0xff]
      %v7586 = vld [vmem:[#allocation4 + $0x38] sm:$0xff]
      %v7587 = vld [vmem:[#allocation4 + $0x48] sm:$0xff]
      %v7588 = vld [vmem:[#allocation4 + $0x50] sm:$0xff]
      %v7589 = vld [vmem:[#allocation4 + $0x60] sm:$0xff]
      %v7590 = vld [vmem:[#allocation4 + $0x68] sm:$0xff]
      %v7591 = vld [vmem:[#allocation4 + $0x78] sm:$0xff]
      %v7592 = vld [vmem:[#allocation4 + $0x80] sm:$0xff]
      %v7593 = vld [vmem:[#allocation4 + $0x90] sm:$0xff]
      %v7594 = vld [vmem:[#allocation4 + $0x98] sm:$0xff]
      %v7595 = vld [vmem:[#allocation4 + $0xa8] sm:$0xff]
      %v7596 = vld [vmem:[#allocation4 + $0xb0] sm:$0xff]
      %v7597 = vld [vmem:[#allocation4 + $0xc0] sm:$0xff]
      %v7598 = vld [vmem:[#allocation4 + $0xc8] sm:$0xff]
      %v7599 = vld [vmem:[#allocation4 + $0xd8] sm:$0xff]
      %v7600 = vld [vmem:[#allocation4 + $0xe0] sm:$0xff]
      %v7601 = vld [vmem:[#allocation4 + $0xf0] sm:$0xff]
      %v7602 = vld [vmem:[#allocation4 + $0xf8] sm:$0xff]
      %v7603 = vld [vmem:[#allocation4 + $0x108] sm:$0xff]
      %v7604 = vld [vmem:[#allocation4 + $0x110] sm:$0xff]
      %v7605 = vld [vmem:[#allocation4 + $0x120] sm:$0xff]
      %v7606 = vld [vmem:[#allocation4 + $0x128] sm:$0xff]
      %v7607 = vld [vmem:[#allocation4 + $0x138] sm:$0xff]
      %v7608 = vld [vmem:[#allocation4 + $0x140] sm:$0xff]
      %v7609 = vld [vmem:[#allocation4 + $0x150] sm:$0xff]
      %v7610 = vld [vmem:[#allocation4 + $0x158] sm:$0xff]
      %v7611 = vld [vmem:[#allocation4 + $0x168] sm:$0xff]
      %v7612 = vld [vmem:[#allocation4 + $0x170] sm:$0xff]
      %v7613 = vld [vmem:[#allocation4 + $0x1] sm:$0xff]
      %v7614 = vld [vmem:[#allocation4 + $0x9] sm:$0xff]
      %v7615 = vld [vmem:[#allocation4 + $0x19] sm:$0xff]
      %v7616 = vld [vmem:[#allocation4 + $0x21] sm:$0xff]
      %v7617 = vld [vmem:[#allocation4 + $0x31] sm:$0xff]
      %v7618 = vld [vmem:[#allocation4 + $0x39] sm:$0xff]
      %v7619 = vld [vmem:[#allocation4 + $0x49] sm:$0xff]
      %v7620 = vld [vmem:[#allocation4 + $0x51] sm:$0xff]
      %v7621 = vld [vmem:[#allocation4 + $0x61] sm:$0xff]
      %v7622 = vld [vmem:[#allocation4 + $0x69] sm:$0xff]
      %v7623 = vld [vmem:[#allocation4 + $0x79] sm:$0xff]
      %v7624 = vld [vmem:[#allocation4 + $0x81] sm:$0xff]
      %v7625 = vld [vmem:[#allocation4 + $0x91] sm:$0xff]
      %v7626 = vld [vmem:[#allocation4 + $0x99] sm:$0xff]
      %v7627 = vld [vmem:[#allocation4 + $0xa9] sm:$0xff]
      %v7628 = vld [vmem:[#allocation4 + $0xb1] sm:$0xff]
      %v7629 = vld [vmem:[#allocation4 + $0xc1] sm:$0xff]
      %v7630 = vld [vmem:[#allocation4 + $0xc9] sm:$0xff]
      %v7631 = vld [vmem:[#allocation4 + $0xd9] sm:$0xff]
      %v7632 = vld [vmem:[#allocation4 + $0xe1] sm:$0xff]
      %v7633 = vld [vmem:[#allocation4 + $0xf1] sm:$0xff]
      %v7634 = vld [vmem:[#allocation4 + $0xf9] sm:$0xff]
      %v7635 = vld [vmem:[#allocation4 + $0x109] sm:$0xff]
      %v7636 = vld [vmem:[#allocation4 + $0x111] sm:$0xff]
      %v7637 = vld [vmem:[#allocation4 + $0x121] sm:$0xff]
      %v7638 = vld [vmem:[#allocation4 + $0x129] sm:$0xff]
      %v7639 = vld [vmem:[#allocation4 + $0x139] sm:$0xff]
      %v7640 = vld [vmem:[#allocation4 + $0x141] sm:$0xff]
      %v7641 = vld [vmem:[#allocation4 + $0x151] sm:$0xff]
      %v7642 = vld [vmem:[#allocation4 + $0x159] sm:$0xff]
      %v7643 = vld [vmem:[#allocation4 + $0x169] sm:$0xff]
      %v7644 = vld [vmem:[#allocation4 + $0x171] sm:$0xff]
      %v7646 = vsel %vm434, %v7613, 0
      %v7649 = vsel %vm434, %v7614, 0
      %v7652 = vsel %vm434, %v7615, 0
      %v7655 = vsel %vm434, %v7616, 0
      %v7658 = vsel %vm434, %v7617, 0
      %v7661 = vsel %vm434, %v7618, 0
      %v7664 = vsel %vm434, %v7619, 0
      %v7667 = vsel %vm434, %v7620, 0
      %v7670 = vsel %vm434, %v7621, 0
      %v7673 = vsel %vm434, %v7622, 0
      %v7676 = vsel %vm434, %v7623, 0
      %v7679 = vsel %vm434, %v7624, 0
      %v7682 = vsel %vm434, %v7625, 0
      %v7685 = vsel %vm434, %v7626, 0
      %v7688 = vsel %vm434, %v7627, 0
      %v7691 = vsel %vm434, %v7628, 0
      %v7694 = vsel %vm434, %v7629, 0
      %v7697 = vsel %vm434, %v7630, 0
      %v7700 = vsel %vm434, %v7631, 0
      %v7703 = vsel %vm434, %v7632, 0
      %v7706 = vsel %vm434, %v7633, 0
      %v7709 = vsel %vm434, %v7634, 0
      %v7712 = vsel %vm434, %v7635, 0
      %v7715 = vsel %vm434, %v7636, 0
      %v7718 = vsel %vm434, %v7637, 0
      %v7721 = vsel %vm434, %v7638, 0
      %v7724 = vsel %vm434, %v7639, 0
      %v7727 = vsel %vm434, %v7640, 0
      %v7730 = vsel %vm434, %v7641, 0
      %v7733 = vsel %vm434, %v7642, 0
      %v7736 = vsel %vm434, %v7643, 0
      %v7739 = vsel %vm434, %v7644, 0
      %v7742 = vsel %vm2047, %v7573, 0
      %7744 = vmatpush.msra.mxu0 0.0
      %7745 = vmatpush.msra.mxu0 0.0
      %7746 = vmatpush.msra.mxu0 0.0
      %7747 = vmatpush.msra.mxu0 0.0
      %7748 = vmatpush.msra.mxu0 0.0
      %7749 = vmatpush.msra.mxu0 0.0
      %7750 = vmatpush.msra.mxu0 0.0
      %7751 = vmatpush.msra.mxu0 0.0
      %7752 = vmatpush.msra.mxu0 0.0
      %7753 = vmatpush.msra.mxu0 0.0
      %7754 = vmatpush.msra.mxu0 0.0
      %7755 = vmatpush.msra.mxu0 0.0
      %7756 = vmatpush.msra.mxu0 0.0
      %7757 = vmatpush.msra.mxu0 0.0
      %7758 = vmatpush.msra.mxu0 0.0
      %7759 = vmatpush.msra.mxu0 %v7742
      %7760 = vmatmul.f32.gmra.mxu0 %v7646
      %v7761 = vpop.f32.mrf.mxu0
      %v7762 = vadd.f32 0.0, %v7761
      %7763 = vmatmul.f32.gmra.mxu0 %v7649
      %v7764 = vpop.f32.mrf.mxu0
      %v7765 = vadd.f32 0.0, %v7764
      %7766 = vmatmul.f32.gmra.mxu0 %v7652
      %v7767 = vpop.f32.mrf.mxu0
      %v7768 = vadd.f32 0.0, %v7767
      %7769 = vmatmul.f32.gmra.mxu0 %v7655
      %v7770 = vpop.f32.mrf.mxu0
      %v7771 = vadd.f32 0.0, %v7770
      %7772 = vmatmul.f32.gmra.mxu0 %v7658
      %v7773 = vpop.f32.mrf.mxu0
      %v7774 = vadd.f32 0.0, %v7773
      %7775 = vmatmul.f32.gmra.mxu0 %v7661
      %v7776 = vpop.f32.mrf.mxu0
      %v7777 = vadd.f32 0.0, %v7776
      %7778 = vmatmul.f32.gmra.mxu0 %v7664
      %v7779 = vpop.f32.mrf.mxu0
      %v7780 = vadd.f32 0.0, %v7779
      %7781 = vmatmul.f32.gmra.mxu0 %v7667
      %v7782 = vpop.f32.mrf.mxu0
      %v7783 = vadd.f32 0.0, %v7782
      %7784 = vmatmul.f32.gmra.mxu0 %v7670
      %v7785 = vpop.f32.mrf.mxu0
      %v7786 = vadd.f32 0.0, %v7785
      %7787 = vmatmul.f32.gmra.mxu0 %v7673
      %v7788 = vpop.f32.mrf.mxu0
      %v7789 = vadd.f32 0.0, %v7788
      %7790 = vmatmul.f32.gmra.mxu0 %v7676
      %v7791 = vpop.f32.mrf.mxu0
      %v7792 = vadd.f32 0.0, %v7791
      %7793 = vmatmul.f32.gmra.mxu0 %v7679
      %v7794 = vpop.f32.mrf.mxu0
      %v7795 = vadd.f32 0.0, %v7794
      %7796 = vmatmul.f32.gmra.mxu0 %v7682
      %v7797 = vpop.f32.mrf.mxu0
      %v7798 = vadd.f32 0.0, %v7797
      %7799 = vmatmul.f32.gmra.mxu0 %v7685
      %v7800 = vpop.f32.mrf.mxu0
      %v7801 = vadd.f32 0.0, %v7800
      %7802 = vmatmul.f32.gmra.mxu0 %v7688
      %v7803 = vpop.f32.mrf.mxu0
      %v7804 = vadd.f32 0.0, %v7803
      %7805 = vmatmul.f32.gmra.mxu0 %v7691
      %v7806 = vpop.f32.mrf.mxu0
      %v7807 = vadd.f32 0.0, %v7806
      %7808 = vmatmul.f32.gmra.mxu0 %v7694
      %v7809 = vpop.f32.mrf.mxu0
      %v7810 = vadd.f32 0.0, %v7809
      %7811 = vmatmul.f32.gmra.mxu0 %v7697
      %v7812 = vpop.f32.mrf.mxu0
      %v7813 = vadd.f32 0.0, %v7812
      %7814 = vmatmul.f32.gmra.mxu0 %v7700
      %v7815 = vpop.f32.mrf.mxu0
      %v7816 = vadd.f32 0.0, %v7815
      %7817 = vmatmul.f32.gmra.mxu0 %v7703
      %v7818 = vpop.f32.mrf.mxu0
      %v7819 = vadd.f32 0.0, %v7818
      %7820 = vmatmul.f32.gmra.mxu0 %v7706
      %v7821 = vpop.f32.mrf.mxu0
      %v7822 = vadd.f32 0.0, %v7821
      %7823 = vmatmul.f32.gmra.mxu0 %v7709
      %v7824 = vpop.f32.mrf.mxu0
      %v7825 = vadd.f32 0.0, %v7824
      %7826 = vmatmul.f32.gmra.mxu0 %v7712
      %v7827 = vpop.f32.mrf.mxu0
      %v7828 = vadd.f32 0.0, %v7827
      %7829 = vmatmul.f32.gmra.mxu0 %v7715
      %v7830 = vpop.f32.mrf.mxu0
      %v7831 = vadd.f32 0.0, %v7830
      %7832 = vmatmul.f32.gmra.mxu0 %v7718
      %v7833 = vpop.f32.mrf.mxu0
      %v7834 = vadd.f32 0.0, %v7833
      %7835 = vmatmul.f32.gmra.mxu0 %v7721
      %v7836 = vpop.f32.mrf.mxu0
      %v7837 = vadd.f32 0.0, %v7836
      %7838 = vmatmul.f32.gmra.mxu0 %v7724
      %v7839 = vpop.f32.mrf.mxu0
      %v7840 = vadd.f32 0.0, %v7839
      %7841 = vmatmul.f32.gmra.mxu0 %v7727
      %v7842 = vpop.f32.mrf.mxu0
      %v7843 = vadd.f32 0.0, %v7842
      %7844 = vmatmul.f32.gmra.mxu0 %v7730
      %v7845 = vpop.f32.mrf.mxu0
      %v7846 = vadd.f32 0.0, %v7845
      %7847 = vmatmul.f32.gmra.mxu0 %v7733
      %v7848 = vpop.f32.mrf.mxu0
      %v7849 = vadd.f32 0.0, %v7848
      %7850 = vmatmul.f32.gmra.mxu0 %v7736
      %v7851 = vpop.f32.mrf.mxu0
      %v7852 = vadd.f32 0.0, %v7851
      %7853 = vmatmul.f32.gmra.mxu0 %v7739
      %v7854 = vpop.f32.mrf.mxu0
      %v7855 = vadd.f32 0.0, %v7854
      %7856 = vdwg.mxu0
      %v7858 = vsel %vm434, %v7581, 0
      %v7861 = vsel %vm434, %v7582, 0
      %v7864 = vsel %vm434, %v7583, 0
      %v7867 = vsel %vm434, %v7584, 0
      %v7870 = vsel %vm434, %v7585, 0
      %v7873 = vsel %vm434, %v7586, 0
      %v7876 = vsel %vm434, %v7587, 0
      %v7879 = vsel %vm434, %v7588, 0
      %v7882 = vsel %vm434, %v7589, 0
      %v7885 = vsel %vm434, %v7590, 0
      %v7888 = vsel %vm434, %v7591, 0
      %v7891 = vsel %vm434, %v7592, 0
      %v7894 = vsel %vm434, %v7593, 0
      %v7897 = vsel %vm434, %v7594, 0
      %v7900 = vsel %vm434, %v7595, 0
      %v7903 = vsel %vm434, %v7596, 0
      %v7906 = vsel %vm434, %v7597, 0
      %v7909 = vsel %vm434, %v7598, 0
      %v7912 = vsel %vm434, %v7599, 0
      %v7915 = vsel %vm434, %v7600, 0
      %v7918 = vsel %vm434, %v7601, 0
      %v7921 = vsel %vm434, %v7602, 0
      %v7924 = vsel %vm434, %v7603, 0
      %v7927 = vsel %vm434, %v7604, 0
      %v7930 = vsel %vm434, %v7605, 0
      %v7933 = vsel %vm434, %v7606, 0
      %v7936 = vsel %vm434, %v7607, 0
      %v7939 = vsel %vm434, %v7608, 0
      %v7942 = vsel %vm434, %v7609, 0
      %v7945 = vsel %vm434, %v7610, 0
      %v7948 = vsel %vm434, %v7611, 0
      %v7951 = vsel %vm434, %v7612, 0
      %v7954 = vsel %vm2047, %v7572, 0
      %7956 = vmatpush.msra.mxu0 0.0
      %7957 = vmatpush.msra.mxu0 0.0
      %7958 = vmatpush.msra.mxu0 0.0
      %7959 = vmatpush.msra.mxu0 0.0
      %7960 = vmatpush.msra.mxu0 0.0
      %7961 = vmatpush.msra.mxu0 0.0
      %7962 = vmatpush.msra.mxu0 0.0
      %7963 = vmatpush.msra.mxu0 0.0
      %7964 = vmatpush.msra.mxu0 0.0
      %7965 = vmatpush.msra.mxu0 0.0
      %7966 = vmatpush.msra.mxu0 0.0
      %7967 = vmatpush.msra.mxu0 0.0
      %7968 = vmatpush.msra.mxu0 0.0
      %7969 = vmatpush.msra.mxu0 0.0
      %7970 = vmatpush.msra.mxu0 0.0
      %7971 = vmatpush.msra.mxu0 %v7954
      %7972 = vmatmul.f32.gmra.mxu0 %v7858
      %v7973 = vpop.f32.mrf.mxu0
      %v7974 = vadd.f32 %v7762, %v7973
      %7975 = vmatmul.f32.gmra.mxu0 %v7861
      %v7976 = vpop.f32.mrf.mxu0
      %v7977 = vadd.f32 %v7765, %v7976
      %7978 = vmatmul.f32.gmra.mxu0 %v7864
      %v7979 = vpop.f32.mrf.mxu0
      %v7980 = vadd.f32 %v7768, %v7979
      %7981 = vmatmul.f32.gmra.mxu0 %v7867
      %v7982 = vpop.f32.mrf.mxu0
      %v7983 = vadd.f32 %v7771, %v7982
      %7984 = vmatmul.f32.gmra.mxu0 %v7870
      %v7985 = vpop.f32.mrf.mxu0
      %v7986 = vadd.f32 %v7774, %v7985
      %7987 = vmatmul.f32.gmra.mxu0 %v7873
      %v7988 = vpop.f32.mrf.mxu0
      %v7989 = vadd.f32 %v7777, %v7988
      %7990 = vmatmul.f32.gmra.mxu0 %v7876
      %v7991 = vpop.f32.mrf.mxu0
      %v7992 = vadd.f32 %v7780, %v7991
      %7993 = vmatmul.f32.gmra.mxu0 %v7879
      %v7994 = vpop.f32.mrf.mxu0
      %v7995 = vadd.f32 %v7783, %v7994
      %7996 = vmatmul.f32.gmra.mxu0 %v7882
      %v7997 = vpop.f32.mrf.mxu0
      %v7998 = vadd.f32 %v7786, %v7997
      %7999 = vmatmul.f32.gmra.mxu0 %v7885
      %v8000 = vpop.f32.mrf.mxu0
      %v8001 = vadd.f32 %v7789, %v8000
      %8002 = vmatmul.f32.gmra.mxu0 %v7888
      %v8003 = vpop.f32.mrf.mxu0
      %v8004 = vadd.f32 %v7792, %v8003
      %8005 = vmatmul.f32.gmra.mxu0 %v7891
      %v8006 = vpop.f32.mrf.mxu0
      %v8007 = vadd.f32 %v7795, %v8006
      %8008 = vmatmul.f32.gmra.mxu0 %v7894
      %v8009 = vpop.f32.mrf.mxu0
      %v8010 = vadd.f32 %v7798, %v8009
      %8011 = vmatmul.f32.gmra.mxu0 %v7897
      %v8012 = vpop.f32.mrf.mxu0
      %v8013 = vadd.f32 %v7801, %v8012
      %8014 = vmatmul.f32.gmra.mxu0 %v7900
      %v8015 = vpop.f32.mrf.mxu0
      %v8016 = vadd.f32 %v7804, %v8015
      %8017 = vmatmul.f32.gmra.mxu0 %v7903
      %v8018 = vpop.f32.mrf.mxu0
      %v8019 = vadd.f32 %v7807, %v8018
      %8020 = vmatmul.f32.gmra.mxu0 %v7906
      %v8021 = vpop.f32.mrf.mxu0
      %v8022 = vadd.f32 %v7810, %v8021
      %8023 = vmatmul.f32.gmra.mxu0 %v7909
      %v8024 = vpop.f32.mrf.mxu0
      %v8025 = vadd.f32 %v7813, %v8024
      %8026 = vmatmul.f32.gmra.mxu0 %v7912
      %v8027 = vpop.f32.mrf.mxu0
      %v8028 = vadd.f32 %v7816, %v8027
      %8029 = vmatmul.f32.gmra.mxu0 %v7915
      %v8030 = vpop.f32.mrf.mxu0
      %v8031 = vadd.f32 %v7819, %v8030
      %8032 = vmatmul.f32.gmra.mxu0 %v7918
      %v8033 = vpop.f32.mrf.mxu0
      %v8034 = vadd.f32 %v7822, %v8033
      %8035 = vmatmul.f32.gmra.mxu0 %v7921
      %v8036 = vpop.f32.mrf.mxu0
      %v8037 = vadd.f32 %v7825, %v8036
      %8038 = vmatmul.f32.gmra.mxu0 %v7924
      %v8039 = vpop.f32.mrf.mxu0
      %v8040 = vadd.f32 %v7828, %v8039
      %8041 = vmatmul.f32.gmra.mxu0 %v7927
      %v8042 = vpop.f32.mrf.mxu0
      %v8043 = vadd.f32 %v7831, %v8042
      %8044 = vmatmul.f32.gmra.mxu0 %v7930
      %v8045 = vpop.f32.mrf.mxu0
      %v8046 = vadd.f32 %v7834, %v8045
      %8047 = vmatmul.f32.gmra.mxu0 %v7933
      %v8048 = vpop.f32.mrf.mxu0
      %v8049 = vadd.f32 %v7837, %v8048
      %8050 = vmatmul.f32.gmra.mxu0 %v7936
      %v8051 = vpop.f32.mrf.mxu0
      %v8052 = vadd.f32 %v7840, %v8051
      %8053 = vmatmul.f32.gmra.mxu0 %v7939
      %v8054 = vpop.f32.mrf.mxu0
      %v8055 = vadd.f32 %v7843, %v8054
      %8056 = vmatmul.f32.gmra.mxu0 %v7942
      %v8057 = vpop.f32.mrf.mxu0
      %v8058 = vadd.f32 %v7846, %v8057
      %8059 = vmatmul.f32.gmra.mxu0 %v7945
      %v8060 = vpop.f32.mrf.mxu0
      %v8061 = vadd.f32 %v7849, %v8060
      %8062 = vmatmul.f32.gmra.mxu0 %v7948
      %v8063 = vpop.f32.mrf.mxu0
      %v8064 = vadd.f32 %v7852, %v8063
      %8065 = vmatmul.f32.gmra.mxu0 %v7951
      %v8066 = vpop.f32.mrf.mxu0
      %v8067 = vadd.f32 %v7855, %v8066
      %8068 = vdwg.mxu0
      %v8069 = vld [vmem:[#allocation4 + $0x2] sm:$0xff]
      %v8070 = vld [vmem:[#allocation4 + $0xa] sm:$0xff]
      %v8071 = vld [vmem:[#allocation4 + $0x1a] sm:$0xff]
      %v8072 = vld [vmem:[#allocation4 + $0x22] sm:$0xff]
      %v8073 = vld [vmem:[#allocation4 + $0x32] sm:$0xff]
      %v8074 = vld [vmem:[#allocation4 + $0x3a] sm:$0xff]
      %v8075 = vld [vmem:[#allocation4 + $0x4a] sm:$0xff]
      %v8076 = vld [vmem:[#allocation4 + $0x52] sm:$0xff]
      %v8077 = vld [vmem:[#allocation4 + $0x62] sm:$0xff]
      %v8078 = vld [vmem:[#allocation4 + $0x6a] sm:$0xff]
      %v8079 = vld [vmem:[#allocation4 + $0x7a] sm:$0xff]
      %v8080 = vld [vmem:[#allocation4 + $0x82] sm:$0xff]
      %v8081 = vld [vmem:[#allocation4 + $0x92] sm:$0xff]
      %v8082 = vld [vmem:[#allocation4 + $0x9a] sm:$0xff]
      %v8083 = vld [vmem:[#allocation4 + $0xaa] sm:$0xff]
      %v8084 = vld [vmem:[#allocation4 + $0xb2] sm:$0xff]
      %v8085 = vld [vmem:[#allocation4 + $0xc2] sm:$0xff]
      %v8086 = vld [vmem:[#allocation4 + $0xca] sm:$0xff]
      %v8087 = vld [vmem:[#allocation4 + $0xda] sm:$0xff]
      %v8088 = vld [vmem:[#allocation4 + $0xe2] sm:$0xff]
      %v8089 = vld [vmem:[#allocation4 + $0xf2] sm:$0xff]
      %v8090 = vld [vmem:[#allocation4 + $0xfa] sm:$0xff]
      %v8091 = vld [vmem:[#allocation4 + $0x10a] sm:$0xff]
      %v8092 = vld [vmem:[#allocation4 + $0x112] sm:$0xff]
      %v8093 = vld [vmem:[#allocation4 + $0x122] sm:$0xff]
      %v8094 = vld [vmem:[#allocation4 + $0x12a] sm:$0xff]
      %v8095 = vld [vmem:[#allocation4 + $0x13a] sm:$0xff]
      %v8096 = vld [vmem:[#allocation4 + $0x142] sm:$0xff]
      %v8097 = vld [vmem:[#allocation4 + $0x152] sm:$0xff]
      %v8098 = vld [vmem:[#allocation4 + $0x15a] sm:$0xff]
      %v8099 = vld [vmem:[#allocation4 + $0x16a] sm:$0xff]
      %v8100 = vld [vmem:[#allocation4 + $0x172] sm:$0xff]
      %v8102 = vsel %vm434, %v8069, 0
      %v8105 = vsel %vm434, %v8070, 0
      %v8108 = vsel %vm434, %v8071, 0
      %v8111 = vsel %vm434, %v8072, 0
      %v8114 = vsel %vm434, %v8073, 0
      %v8117 = vsel %vm434, %v8074, 0
      %v8120 = vsel %vm434, %v8075, 0
      %v8123 = vsel %vm434, %v8076, 0
      %v8126 = vsel %vm434, %v8077, 0
      %v8129 = vsel %vm434, %v8078, 0
      %v8132 = vsel %vm434, %v8079, 0
      %v8135 = vsel %vm434, %v8080, 0
      %v8138 = vsel %vm434, %v8081, 0
      %v8141 = vsel %vm434, %v8082, 0
      %v8144 = vsel %vm434, %v8083, 0
      %v8147 = vsel %vm434, %v8084, 0
      %v8150 = vsel %vm434, %v8085, 0
      %v8153 = vsel %vm434, %v8086, 0
      %v8156 = vsel %vm434, %v8087, 0
      %v8159 = vsel %vm434, %v8088, 0
      %v8162 = vsel %vm434, %v8089, 0
      %v8165 = vsel %vm434, %v8090, 0
      %v8168 = vsel %vm434, %v8091, 0
      %v8171 = vsel %vm434, %v8092, 0
      %v8174 = vsel %vm434, %v8093, 0
      %v8177 = vsel %vm434, %v8094, 0
      %v8180 = vsel %vm434, %v8095, 0
      %v8183 = vsel %vm434, %v8096, 0
      %v8186 = vsel %vm434, %v8097, 0
      %v8189 = vsel %vm434, %v8098, 0
      %v8192 = vsel %vm434, %v8099, 0
      %v8195 = vsel %vm434, %v8100, 0
      %v8198 = vsel %vm2047, %v7574, 0
      %8200 = vmatpush.msra.mxu0 0.0
      %8201 = vmatpush.msra.mxu0 0.0
      %8202 = vmatpush.msra.mxu0 0.0
      %8203 = vmatpush.msra.mxu0 0.0
      %8204 = vmatpush.msra.mxu0 0.0
      %8205 = vmatpush.msra.mxu0 0.0
      %8206 = vmatpush.msra.mxu0 0.0
      %8207 = vmatpush.msra.mxu0 0.0
      %8208 = vmatpush.msra.mxu0 0.0
      %8209 = vmatpush.msra.mxu0 0.0
      %8210 = vmatpush.msra.mxu0 0.0
      %8211 = vmatpush.msra.mxu0 0.0
      %8212 = vmatpush.msra.mxu0 0.0
      %8213 = vmatpush.msra.mxu0 0.0
      %8214 = vmatpush.msra.mxu0 0.0
      %8215 = vmatpush.msra.mxu0 %v8198
      %8216 = vmatmul.f32.gmra.mxu0 %v8102
      %v8217 = vpop.f32.mrf.mxu0
      %v8218 = vadd.f32 0.0, %v8217
      %8219 = vmatmul.f32.gmra.mxu0 %v8105
      %v8220 = vpop.f32.mrf.mxu0
      %v8221 = vadd.f32 0.0, %v8220
      %8222 = vmatmul.f32.gmra.mxu0 %v8108
      %v8223 = vpop.f32.mrf.mxu0
      %v8224 = vadd.f32 0.0, %v8223
      %8225 = vmatmul.f32.gmra.mxu0 %v8111
      %v8226 = vpop.f32.mrf.mxu0
      %v8227 = vadd.f32 0.0, %v8226
      %8228 = vmatmul.f32.gmra.mxu0 %v8114
      %v8229 = vpop.f32.mrf.mxu0
      %v8230 = vadd.f32 0.0, %v8229
      %8231 = vmatmul.f32.gmra.mxu0 %v8117
      %v8232 = vpop.f32.mrf.mxu0
      %v8233 = vadd.f32 0.0, %v8232
      %8234 = vmatmul.f32.gmra.mxu0 %v8120
      %v8235 = vpop.f32.mrf.mxu0
      %v8236 = vadd.f32 0.0, %v8235
      %8237 = vmatmul.f32.gmra.mxu0 %v8123
      %v8238 = vpop.f32.mrf.mxu0
      %v8239 = vadd.f32 0.0, %v8238
      %8240 = vmatmul.f32.gmra.mxu0 %v8126
      %v8241 = vpop.f32.mrf.mxu0
      %v8242 = vadd.f32 0.0, %v8241
      %8243 = vmatmul.f32.gmra.mxu0 %v8129
      %v8244 = vpop.f32.mrf.mxu0
      %v8245 = vadd.f32 0.0, %v8244
      %8246 = vmatmul.f32.gmra.mxu0 %v8132
      %v8247 = vpop.f32.mrf.mxu0
      %v8248 = vadd.f32 0.0, %v8247
      %8249 = vmatmul.f32.gmra.mxu0 %v8135
      %v8250 = vpop.f32.mrf.mxu0
      %v8251 = vadd.f32 0.0, %v8250
      %8252 = vmatmul.f32.gmra.mxu0 %v8138
      %v8253 = vpop.f32.mrf.mxu0
      %v8254 = vadd.f32 0.0, %v8253
      %8255 = vmatmul.f32.gmra.mxu0 %v8141
      %v8256 = vpop.f32.mrf.mxu0
      %v8257 = vadd.f32 0.0, %v8256
      %8258 = vmatmul.f32.gmra.mxu0 %v8144
      %v8259 = vpop.f32.mrf.mxu0
      %v8260 = vadd.f32 0.0, %v8259
      %8261 = vmatmul.f32.gmra.mxu0 %v8147
      %v8262 = vpop.f32.mrf.mxu0
      %v8263 = vadd.f32 0.0, %v8262
      %8264 = vmatmul.f32.gmra.mxu0 %v8150
      %v8265 = vpop.f32.mrf.mxu0
      %v8266 = vadd.f32 0.0, %v8265
      %8267 = vmatmul.f32.gmra.mxu0 %v8153
      %v8268 = vpop.f32.mrf.mxu0
      %v8269 = vadd.f32 0.0, %v8268
      %8270 = vmatmul.f32.gmra.mxu0 %v8156
      %v8271 = vpop.f32.mrf.mxu0
      %v8272 = vadd.f32 0.0, %v8271
      %8273 = vmatmul.f32.gmra.mxu0 %v8159
      %v8274 = vpop.f32.mrf.mxu0
      %v8275 = vadd.f32 0.0, %v8274
      %8276 = vmatmul.f32.gmra.mxu0 %v8162
      %v8277 = vpop.f32.mrf.mxu0
      %v8278 = vadd.f32 0.0, %v8277
      %8279 = vmatmul.f32.gmra.mxu0 %v8165
      %v8280 = vpop.f32.mrf.mxu0
      %v8281 = vadd.f32 0.0, %v8280
      %8282 = vmatmul.f32.gmra.mxu0 %v8168
      %v8283 = vpop.f32.mrf.mxu0
      %v8284 = vadd.f32 0.0, %v8283
      %8285 = vmatmul.f32.gmra.mxu0 %v8171
      %v8286 = vpop.f32.mrf.mxu0
      %v8287 = vadd.f32 0.0, %v8286
      %8288 = vmatmul.f32.gmra.mxu0 %v8174
      %v8289 = vpop.f32.mrf.mxu0
      %v8290 = vadd.f32 0.0, %v8289
      %8291 = vmatmul.f32.gmra.mxu0 %v8177
      %v8292 = vpop.f32.mrf.mxu0
      %v8293 = vadd.f32 0.0, %v8292
      %8294 = vmatmul.f32.gmra.mxu0 %v8180
      %v8295 = vpop.f32.mrf.mxu0
      %v8296 = vadd.f32 0.0, %v8295
      %8297 = vmatmul.f32.gmra.mxu0 %v8183
      %v8298 = vpop.f32.mrf.mxu0
      %v8299 = vadd.f32 0.0, %v8298
      %8300 = vmatmul.f32.gmra.mxu0 %v8186
      %v8301 = vpop.f32.mrf.mxu0
      %v8302 = vadd.f32 0.0, %v8301
      %8303 = vmatmul.f32.gmra.mxu0 %v8189
      %v8304 = vpop.f32.mrf.mxu0
      %v8305 = vadd.f32 0.0, %v8304
      %8306 = vmatmul.f32.gmra.mxu0 %v8192
      %v8307 = vpop.f32.mrf.mxu0
      %v8308 = vadd.f32 0.0, %v8307
      %8309 = vmatmul.f32.gmra.mxu0 %v8195
      %v8310 = vpop.f32.mrf.mxu0
      %v8311 = vadd.f32 0.0, %v8310
      %8312 = vdwg.mxu0
      %v8313 = vadd.f32 %v7974, %v8218
      %v8314 = vadd.f32 %v7977, %v8221
      %v8315 = vadd.f32 %v7980, %v8224
      %v8316 = vadd.f32 %v7983, %v8227
      %v8317 = vadd.f32 %v7986, %v8230
      %v8318 = vadd.f32 %v7989, %v8233
      %v8319 = vadd.f32 %v7992, %v8236
      %v8320 = vadd.f32 %v7995, %v8239
      %v8321 = vadd.f32 %v7998, %v8242
      %v8322 = vadd.f32 %v8001, %v8245
      %v8323 = vadd.f32 %v8004, %v8248
      %v8324 = vadd.f32 %v8007, %v8251
      %v8325 = vadd.f32 %v8010, %v8254
      %v8326 = vadd.f32 %v8013, %v8257
      %v8327 = vadd.f32 %v8016, %v8260
      %v8328 = vadd.f32 %v8019, %v8263
      %v8329 = vadd.f32 %v8022, %v8266
      %v8330 = vadd.f32 %v8025, %v8269
      %v8331 = vadd.f32 %v8028, %v8272
      %v8332 = vadd.f32 %v8031, %v8275
      %v8333 = vadd.f32 %v8034, %v8278
      %v8334 = vadd.f32 %v8037, %v8281
      %v8335 = vadd.f32 %v8040, %v8284
      %v8336 = vadd.f32 %v8043, %v8287
      %v8337 = vadd.f32 %v8046, %v8290
      %v8338 = vadd.f32 %v8049, %v8293
      %v8339 = vadd.f32 %v8052, %v8296
      %v8340 = vadd.f32 %v8055, %v8299
      %v8341 = vadd.f32 %v8058, %v8302
      %v8342 = vadd.f32 %v8061, %v8305
      %v8343 = vadd.f32 %v8064, %v8308
      %v8344 = vadd.f32 %v8067, %v8311
      %v8345 = vld [vmem:[%s7539] sm:$0xff]
      %v8346 = vld [vmem:[%s7539 + $0x8] sm:$0xff]
      %v8347 = vld [vmem:[%s7539 + $0x18] sm:$0xff]
      %v8348 = vld [vmem:[%s7539 + $0x20] sm:$0xff]
      %v8349 = vld [vmem:[%s7539 + $0x30] sm:$0xff]
      %v8350 = vld [vmem:[%s7539 + $0x38] sm:$0xff]
      %v8351 = vld [vmem:[%s7539 + $0x48] sm:$0xff]
      %v8352 = vld [vmem:[%s7539 + $0x50] sm:$0xff]
      %v8353 = vld [vmem:[%s7539 + $0x60] sm:$0xff]
      %v8354 = vld [vmem:[%s7539 + $0x68] sm:$0xff]
      %v8355 = vld [vmem:[%s7539 + $0x78] sm:$0xff]
      %v8356 = vld [vmem:[%s7539 + $0x80] sm:$0xff]
      %v8357 = vld [vmem:[%s7539 + $0x90] sm:$0xff]
      %v8358 = vld [vmem:[%s7539 + $0x98] sm:$0xff]
      %v8359 = vld [vmem:[%s7539 + $0xa8] sm:$0xff]
      %v8360 = vld [vmem:[%s7539 + $0xb0] sm:$0xff]
      %v8361 = vld [vmem:[%s7539 + $0xc0] sm:$0xff]
      %v8362 = vld [vmem:[%s7539 + $0xc8] sm:$0xff]
      %v8363 = vld [vmem:[%s7539 + $0xd8] sm:$0xff]
      %v8364 = vld [vmem:[%s7539 + $0xe0] sm:$0xff]
      %v8365 = vld [vmem:[%s7539 + $0xf0] sm:$0xff]
      %v8366 = vld [vmem:[%s7539 + $0xf8] sm:$0xff]
      %v8367 = vld [vmem:[%s7539 + $0x108] sm:$0xff]
      %v8368 = vld [vmem:[%s7539 + $0x110] sm:$0xff]
      %v8369 = vld [vmem:[%s7539 + $0x120] sm:$0xff]
      %v8370 = vld [vmem:[%s7539 + $0x128] sm:$0xff]
      %v8371 = vld [vmem:[%s7539 + $0x138] sm:$0xff]
      %v8372 = vld [vmem:[%s7539 + $0x140] sm:$0xff]
      %v8373 = vld [vmem:[%s7539 + $0x150] sm:$0xff]
      %v8374 = vld [vmem:[%s7539 + $0x158] sm:$0xff]
      %v8375 = vld [vmem:[%s7539 + $0x168] sm:$0xff]
      %v8376 = vld [vmem:[%s7539 + $0x170] sm:$0xff]
      %v8378 = vsel %vm434, %v8345, 0
      %v8381 = vsel %vm434, %v8346, 0
      %v8384 = vsel %vm434, %v8347, 0
      %v8387 = vsel %vm434, %v8348, 0
      %v8390 = vsel %vm434, %v8349, 0
      %v8393 = vsel %vm434, %v8350, 0
      %v8396 = vsel %vm434, %v8351, 0
      %v8399 = vsel %vm434, %v8352, 0
      %v8402 = vsel %vm434, %v8353, 0
      %v8405 = vsel %vm434, %v8354, 0
      %v8408 = vsel %vm434, %v8355, 0
      %v8411 = vsel %vm434, %v8356, 0
      %v8414 = vsel %vm434, %v8357, 0
      %v8417 = vsel %vm434, %v8358, 0
      %v8420 = vsel %vm434, %v8359, 0
      %v8423 = vsel %vm434, %v8360, 0
      %v8426 = vsel %vm434, %v8361, 0
      %v8429 = vsel %vm434, %v8362, 0
      %v8432 = vsel %vm434, %v8363, 0
      %v8435 = vsel %vm434, %v8364, 0
      %v8438 = vsel %vm434, %v8365, 0
      %v8441 = vsel %vm434, %v8366, 0
      %v8444 = vsel %vm434, %v8367, 0
      %v8447 = vsel %vm434, %v8368, 0
      %v8450 = vsel %vm434, %v8369, 0
      %v8453 = vsel %vm434, %v8370, 0
      %v8456 = vsel %vm434, %v8371, 0
      %v8459 = vsel %vm434, %v8372, 0
      %v8462 = vsel %vm434, %v8373, 0
      %v8465 = vsel %vm434, %v8374, 0
      %v8468 = vsel %vm434, %v8375, 0
      %v8471 = vsel %vm434, %v8376, 0
      %v8474 = vsel %vm2047, %v7575, 0
      %8476 = vmatpush.msra.mxu0 0.0
      %8477 = vmatpush.msra.mxu0 0.0
      %8478 = vmatpush.msra.mxu0 0.0
      %8479 = vmatpush.msra.mxu0 0.0
      %8480 = vmatpush.msra.mxu0 0.0
      %8481 = vmatpush.msra.mxu0 0.0
      %8482 = vmatpush.msra.mxu0 0.0
      %8483 = vmatpush.msra.mxu0 0.0
      %8484 = vmatpush.msra.mxu0 0.0
      %8485 = vmatpush.msra.mxu0 0.0
      %8486 = vmatpush.msra.mxu0 0.0
      %8487 = vmatpush.msra.mxu0 0.0
      %8488 = vmatpush.msra.mxu0 0.0
      %8489 = vmatpush.msra.mxu0 0.0
      %8490 = vmatpush.msra.mxu0 0.0
      %8491 = vmatpush.msra.mxu0 %v8474
      %8492 = vmatmul.f32.gmra.mxu0 %v8378
      %v8493 = vpop.f32.mrf.mxu0
      %v8494 = vadd.f32 0.0, %v8493
      %8495 = vmatmul.f32.gmra.mxu0 %v8381
      %v8496 = vpop.f32.mrf.mxu0
      %v8497 = vadd.f32 0.0, %v8496
      %8498 = vmatmul.f32.gmra.mxu0 %v8384
      %v8499 = vpop.f32.mrf.mxu0
      %v8500 = vadd.f32 0.0, %v8499
      %8501 = vmatmul.f32.gmra.mxu0 %v8387
      %v8502 = vpop.f32.mrf.mxu0
      %v8503 = vadd.f32 0.0, %v8502
      %8504 = vmatmul.f32.gmra.mxu0 %v8390
      %v8505 = vpop.f32.mrf.mxu0
      %v8506 = vadd.f32 0.0, %v8505
      %8507 = vmatmul.f32.gmra.mxu0 %v8393
      %v8508 = vpop.f32.mrf.mxu0
      %v8509 = vadd.f32 0.0, %v8508
      %8510 = vmatmul.f32.gmra.mxu0 %v8396
      %v8511 = vpop.f32.mrf.mxu0
      %v8512 = vadd.f32 0.0, %v8511
      %8513 = vmatmul.f32.gmra.mxu0 %v8399
      %v8514 = vpop.f32.mrf.mxu0
      %v8515 = vadd.f32 0.0, %v8514
      %8516 = vmatmul.f32.gmra.mxu0 %v8402
      %v8517 = vpop.f32.mrf.mxu0
      %v8518 = vadd.f32 0.0, %v8517
      %8519 = vmatmul.f32.gmra.mxu0 %v8405
      %v8520 = vpop.f32.mrf.mxu0
      %v8521 = vadd.f32 0.0, %v8520
      %8522 = vmatmul.f32.gmra.mxu0 %v8408
      %v8523 = vpop.f32.mrf.mxu0
      %v8524 = vadd.f32 0.0, %v8523
      %8525 = vmatmul.f32.gmra.mxu0 %v8411
      %v8526 = vpop.f32.mrf.mxu0
      %v8527 = vadd.f32 0.0, %v8526
      %8528 = vmatmul.f32.gmra.mxu0 %v8414
      %v8529 = vpop.f32.mrf.mxu0
      %v8530 = vadd.f32 0.0, %v8529
      %8531 = vmatmul.f32.gmra.mxu0 %v8417
      %v8532 = vpop.f32.mrf.mxu0
      %v8533 = vadd.f32 0.0, %v8532
      %8534 = vmatmul.f32.gmra.mxu0 %v8420
      %v8535 = vpop.f32.mrf.mxu0
      %v8536 = vadd.f32 0.0, %v8535
      %8537 = vmatmul.f32.gmra.mxu0 %v8423
      %v8538 = vpop.f32.mrf.mxu0
      %v8539 = vadd.f32 0.0, %v8538
      %8540 = vmatmul.f32.gmra.mxu0 %v8426
      %v8541 = vpop.f32.mrf.mxu0
      %v8542 = vadd.f32 0.0, %v8541
      %8543 = vmatmul.f32.gmra.mxu0 %v8429
      %v8544 = vpop.f32.mrf.mxu0
      %v8545 = vadd.f32 0.0, %v8544
      %8546 = vmatmul.f32.gmra.mxu0 %v8432
      %v8547 = vpop.f32.mrf.mxu0
      %v8548 = vadd.f32 0.0, %v8547
      %8549 = vmatmul.f32.gmra.mxu0 %v8435
      %v8550 = vpop.f32.mrf.mxu0
      %v8551 = vadd.f32 0.0, %v8550
      %8552 = vmatmul.f32.gmra.mxu0 %v8438
      %v8553 = vpop.f32.mrf.mxu0
      %v8554 = vadd.f32 0.0, %v8553
      %8555 = vmatmul.f32.gmra.mxu0 %v8441
      %v8556 = vpop.f32.mrf.mxu0
      %v8557 = vadd.f32 0.0, %v8556
      %8558 = vmatmul.f32.gmra.mxu0 %v8444
      %v8559 = vpop.f32.mrf.mxu0
      %v8560 = vadd.f32 0.0, %v8559
      %8561 = vmatmul.f32.gmra.mxu0 %v8447
      %v8562 = vpop.f32.mrf.mxu0
      %v8563 = vadd.f32 0.0, %v8562
      %8564 = vmatmul.f32.gmra.mxu0 %v8450
      %v8565 = vpop.f32.mrf.mxu0
      %v8566 = vadd.f32 0.0, %v8565
      %8567 = vmatmul.f32.gmra.mxu0 %v8453
      %v8568 = vpop.f32.mrf.mxu0
      %v8569 = vadd.f32 0.0, %v8568
      %8570 = vmatmul.f32.gmra.mxu0 %v8456
      %v8571 = vpop.f32.mrf.mxu0
      %v8572 = vadd.f32 0.0, %v8571
      %8573 = vmatmul.f32.gmra.mxu0 %v8459
      %v8574 = vpop.f32.mrf.mxu0
      %v8575 = vadd.f32 0.0, %v8574
      %8576 = vmatmul.f32.gmra.mxu0 %v8462
      %v8577 = vpop.f32.mrf.mxu0
      %v8578 = vadd.f32 0.0, %v8577
      %8579 = vmatmul.f32.gmra.mxu0 %v8465
      %v8580 = vpop.f32.mrf.mxu0
      %v8581 = vadd.f32 0.0, %v8580
      %8582 = vmatmul.f32.gmra.mxu0 %v8468
      %v8583 = vpop.f32.mrf.mxu0
      %v8584 = vadd.f32 0.0, %v8583
      %8585 = vmatmul.f32.gmra.mxu0 %v8471
      %v8586 = vpop.f32.mrf.mxu0
      %v8587 = vadd.f32 0.0, %v8586
      %8588 = vdwg.mxu0
      %v8589 = vadd.f32 %v8313, %v8494
      %v8590 = vadd.f32 %v8314, %v8497
      %v8591 = vadd.f32 %v8315, %v8500
      %v8592 = vadd.f32 %v8316, %v8503
      %v8593 = vadd.f32 %v8317, %v8506
      %v8594 = vadd.f32 %v8318, %v8509
      %v8595 = vadd.f32 %v8319, %v8512
      %v8596 = vadd.f32 %v8320, %v8515
      %v8597 = vadd.f32 %v8321, %v8518
      %v8598 = vadd.f32 %v8322, %v8521
      %v8599 = vadd.f32 %v8323, %v8524
      %v8600 = vadd.f32 %v8324, %v8527
      %v8601 = vadd.f32 %v8325, %v8530
      %v8602 = vadd.f32 %v8326, %v8533
      %v8603 = vadd.f32 %v8327, %v8536
      %v8604 = vadd.f32 %v8328, %v8539
      %v8605 = vadd.f32 %v8329, %v8542
      %v8606 = vadd.f32 %v8330, %v8545
      %v8607 = vadd.f32 %v8331, %v8548
      %v8608 = vadd.f32 %v8332, %v8551
      %v8609 = vadd.f32 %v8333, %v8554
      %v8610 = vadd.f32 %v8334, %v8557
      %v8611 = vadd.f32 %v8335, %v8560
      %v8612 = vadd.f32 %v8336, %v8563
      %v8613 = vadd.f32 %v8337, %v8566
      %v8614 = vadd.f32 %v8338, %v8569
      %v8615 = vadd.f32 %v8339, %v8572
      %v8616 = vadd.f32 %v8340, %v8575
      %v8617 = vadd.f32 %v8341, %v8578
      %v8618 = vadd.f32 %v8342, %v8581
      %v8619 = vadd.f32 %v8343, %v8584
      %v8620 = vadd.f32 %v8344, %v8587
      %v8621 = vld [vmem:[%s7539 + $0x1] sm:$0xff]
      %v8622 = vld [vmem:[%s7539 + $0x9] sm:$0xff]
      %v8623 = vld [vmem:[%s7539 + $0x19] sm:$0xff]
      %v8624 = vld [vmem:[%s7539 + $0x21] sm:$0xff]
      %v8625 = vld [vmem:[%s7539 + $0x31] sm:$0xff]
      %v8626 = vld [vmem:[%s7539 + $0x39] sm:$0xff]
      %v8627 = vld [vmem:[%s7539 + $0x49] sm:$0xff]
      %v8628 = vld [vmem:[%s7539 + $0x51] sm:$0xff]
      %v8629 = vld [vmem:[%s7539 + $0x61] sm:$0xff]
      %v8630 = vld [vmem:[%s7539 + $0x69] sm:$0xff]
      %v8631 = vld [vmem:[%s7539 + $0x79] sm:$0xff]
      %v8632 = vld [vmem:[%s7539 + $0x81] sm:$0xff]
      %v8633 = vld [vmem:[%s7539 + $0x91] sm:$0xff]
      %v8634 = vld [vmem:[%s7539 + $0x99] sm:$0xff]
      %v8635 = vld [vmem:[%s7539 + $0xa9] sm:$0xff]
      %v8636 = vld [vmem:[%s7539 + $0xb1] sm:$0xff]
      %v8637 = vld [vmem:[%s7539 + $0xc1] sm:$0xff]
      %v8638 = vld [vmem:[%s7539 + $0xc9] sm:$0xff]
      %v8639 = vld [vmem:[%s7539 + $0xd9] sm:$0xff]
      %v8640 = vld [vmem:[%s7539 + $0xe1] sm:$0xff]
      %v8641 = vld [vmem:[%s7539 + $0xf1] sm:$0xff]
      %v8642 = vld [vmem:[%s7539 + $0xf9] sm:$0xff]
      %v8643 = vld [vmem:[%s7539 + $0x109] sm:$0xff]
      %v8644 = vld [vmem:[%s7539 + $0x111] sm:$0xff]
      %v8645 = vld [vmem:[%s7539 + $0x121] sm:$0xff]
      %v8646 = vld [vmem:[%s7539 + $0x129] sm:$0xff]
      %v8647 = vld [vmem:[%s7539 + $0x139] sm:$0xff]
      %v8648 = vld [vmem:[%s7539 + $0x141] sm:$0xff]
      %v8649 = vld [vmem:[%s7539 + $0x151] sm:$0xff]
      %v8650 = vld [vmem:[%s7539 + $0x159] sm:$0xff]
      %v8651 = vld [vmem:[%s7539 + $0x169] sm:$0xff]
      %v8652 = vld [vmem:[%s7539 + $0x171] sm:$0xff]
      %v8654 = vsel %vm434, %v8621, 0
      %v8657 = vsel %vm434, %v8622, 0
      %v8660 = vsel %vm434, %v8623, 0
      %v8663 = vsel %vm434, %v8624, 0
      %v8666 = vsel %vm434, %v8625, 0
      %v8669 = vsel %vm434, %v8626, 0
      %v8672 = vsel %vm434, %v8627, 0
      %v8675 = vsel %vm434, %v8628, 0
      %v8678 = vsel %vm434, %v8629, 0
      %v8681 = vsel %vm434, %v8630, 0
      %v8684 = vsel %vm434, %v8631, 0
      %v8687 = vsel %vm434, %v8632, 0
      %v8690 = vsel %vm434, %v8633, 0
      %v8693 = vsel %vm434, %v8634, 0
      %v8696 = vsel %vm434, %v8635, 0
      %v8699 = vsel %vm434, %v8636, 0
      %v8702 = vsel %vm434, %v8637, 0
      %v8705 = vsel %vm434, %v8638, 0
      %v8708 = vsel %vm434, %v8639, 0
      %v8711 = vsel %vm434, %v8640, 0
      %v8714 = vsel %vm434, %v8641, 0
      %v8717 = vsel %vm434, %v8642, 0
      %v8720 = vsel %vm434, %v8643, 0
      %v8723 = vsel %vm434, %v8644, 0
      %v8726 = vsel %vm434, %v8645, 0
      %v8729 = vsel %vm434, %v8646, 0
      %v8732 = vsel %vm434, %v8647, 0
      %v8735 = vsel %vm434, %v8648, 0
      %v8738 = vsel %vm434, %v8649, 0
      %v8741 = vsel %vm434, %v8650, 0
      %v8744 = vsel %vm434, %v8651, 0
      %v8747 = vsel %vm434, %v8652, 0
      %v8750 = vsel %vm2047, %v7576, 0
      %8752 = vmatpush.msra.mxu0 0.0
      %8753 = vmatpush.msra.mxu0 0.0
      %8754 = vmatpush.msra.mxu0 0.0
      %8755 = vmatpush.msra.mxu0 0.0
      %8756 = vmatpush.msra.mxu0 0.0
      %8757 = vmatpush.msra.mxu0 0.0
      %8758 = vmatpush.msra.mxu0 0.0
      %8759 = vmatpush.msra.mxu0 0.0
      %8760 = vmatpush.msra.mxu0 0.0
      %8761 = vmatpush.msra.mxu0 0.0
      %8762 = vmatpush.msra.mxu0 0.0
      %8763 = vmatpush.msra.mxu0 0.0
      %8764 = vmatpush.msra.mxu0 0.0
      %8765 = vmatpush.msra.mxu0 0.0
      %8766 = vmatpush.msra.mxu0 0.0
      %8767 = vmatpush.msra.mxu0 %v8750
      %8768 = vmatmul.f32.gmra.mxu0 %v8654
      %v8769 = vpop.f32.mrf.mxu0
      %v8770 = vadd.f32 0.0, %v8769
      %8771 = vmatmul.f32.gmra.mxu0 %v8657
      %v8772 = vpop.f32.mrf.mxu0
      %v8773 = vadd.f32 0.0, %v8772
      %8774 = vmatmul.f32.gmra.mxu0 %v8660
      %v8775 = vpop.f32.mrf.mxu0
      %v8776 = vadd.f32 0.0, %v8775
      %8777 = vmatmul.f32.gmra.mxu0 %v8663
      %v8778 = vpop.f32.mrf.mxu0
      %v8779 = vadd.f32 0.0, %v8778
      %8780 = vmatmul.f32.gmra.mxu0 %v8666
      %v8781 = vpop.f32.mrf.mxu0
      %v8782 = vadd.f32 0.0, %v8781
      %8783 = vmatmul.f32.gmra.mxu0 %v8669
      %v8784 = vpop.f32.mrf.mxu0
      %v8785 = vadd.f32 0.0, %v8784
      %8786 = vmatmul.f32.gmra.mxu0 %v8672
      %v8787 = vpop.f32.mrf.mxu0
      %v8788 = vadd.f32 0.0, %v8787
      %8789 = vmatmul.f32.gmra.mxu0 %v8675
      %v8790 = vpop.f32.mrf.mxu0
      %v8791 = vadd.f32 0.0, %v8790
      %8792 = vmatmul.f32.gmra.mxu0 %v8678
      %v8793 = vpop.f32.mrf.mxu0
      %v8794 = vadd.f32 0.0, %v8793
      %8795 = vmatmul.f32.gmra.mxu0 %v8681
      %v8796 = vpop.f32.mrf.mxu0
      %v8797 = vadd.f32 0.0, %v8796
      %8798 = vmatmul.f32.gmra.mxu0 %v8684
      %v8799 = vpop.f32.mrf.mxu0
      %v8800 = vadd.f32 0.0, %v8799
      %8801 = vmatmul.f32.gmra.mxu0 %v8687
      %v8802 = vpop.f32.mrf.mxu0
      %v8803 = vadd.f32 0.0, %v8802
      %8804 = vmatmul.f32.gmra.mxu0 %v8690
      %v8805 = vpop.f32.mrf.mxu0
      %v8806 = vadd.f32 0.0, %v8805
      %8807 = vmatmul.f32.gmra.mxu0 %v8693
      %v8808 = vpop.f32.mrf.mxu0
      %v8809 = vadd.f32 0.0, %v8808
      %8810 = vmatmul.f32.gmra.mxu0 %v8696
      %v8811 = vpop.f32.mrf.mxu0
      %v8812 = vadd.f32 0.0, %v8811
      %8813 = vmatmul.f32.gmra.mxu0 %v8699
      %v8814 = vpop.f32.mrf.mxu0
      %v8815 = vadd.f32 0.0, %v8814
      %8816 = vmatmul.f32.gmra.mxu0 %v8702
      %v8817 = vpop.f32.mrf.mxu0
      %v8818 = vadd.f32 0.0, %v8817
      %8819 = vmatmul.f32.gmra.mxu0 %v8705
      %v8820 = vpop.f32.mrf.mxu0
      %v8821 = vadd.f32 0.0, %v8820
      %8822 = vmatmul.f32.gmra.mxu0 %v8708
      %v8823 = vpop.f32.mrf.mxu0
      %v8824 = vadd.f32 0.0, %v8823
      %8825 = vmatmul.f32.gmra.mxu0 %v8711
      %v8826 = vpop.f32.mrf.mxu0
      %v8827 = vadd.f32 0.0, %v8826
      %8828 = vmatmul.f32.gmra.mxu0 %v8714
      %v8829 = vpop.f32.mrf.mxu0
      %v8830 = vadd.f32 0.0, %v8829
      %8831 = vmatmul.f32.gmra.mxu0 %v8717
      %v8832 = vpop.f32.mrf.mxu0
      %v8833 = vadd.f32 0.0, %v8832
      %8834 = vmatmul.f32.gmra.mxu0 %v8720
      %v8835 = vpop.f32.mrf.mxu0
      %v8836 = vadd.f32 0.0, %v8835
      %8837 = vmatmul.f32.gmra.mxu0 %v8723
      %v8838 = vpop.f32.mrf.mxu0
      %v8839 = vadd.f32 0.0, %v8838
      %8840 = vmatmul.f32.gmra.mxu0 %v8726
      %v8841 = vpop.f32.mrf.mxu0
      %v8842 = vadd.f32 0.0, %v8841
      %8843 = vmatmul.f32.gmra.mxu0 %v8729
      %v8844 = vpop.f32.mrf.mxu0
      %v8845 = vadd.f32 0.0, %v8844
      %8846 = vmatmul.f32.gmra.mxu0 %v8732
      %v8847 = vpop.f32.mrf.mxu0
      %v8848 = vadd.f32 0.0, %v8847
      %8849 = vmatmul.f32.gmra.mxu0 %v8735
      %v8850 = vpop.f32.mrf.mxu0
      %v8851 = vadd.f32 0.0, %v8850
      %8852 = vmatmul.f32.gmra.mxu0 %v8738
      %v8853 = vpop.f32.mrf.mxu0
      %v8854 = vadd.f32 0.0, %v8853
      %8855 = vmatmul.f32.gmra.mxu0 %v8741
      %v8856 = vpop.f32.mrf.mxu0
      %v8857 = vadd.f32 0.0, %v8856
      %8858 = vmatmul.f32.gmra.mxu0 %v8744
      %v8859 = vpop.f32.mrf.mxu0
      %v8860 = vadd.f32 0.0, %v8859
      %8861 = vmatmul.f32.gmra.mxu0 %v8747
      %v8862 = vpop.f32.mrf.mxu0
      %v8863 = vadd.f32 0.0, %v8862
      %8864 = vdwg.mxu0
      %v8865 = vadd.f32 %v8589, %v8770
      %v8866 = vadd.f32 %v8590, %v8773
      %v8867 = vadd.f32 %v8591, %v8776
      %v8868 = vadd.f32 %v8592, %v8779
      %v8869 = vadd.f32 %v8593, %v8782
      %v8870 = vadd.f32 %v8594, %v8785
      %v8871 = vadd.f32 %v8595, %v8788
      %v8872 = vadd.f32 %v8596, %v8791
      %v8873 = vadd.f32 %v8597, %v8794
      %v8874 = vadd.f32 %v8598, %v8797
      %v8875 = vadd.f32 %v8599, %v8800
      %v8876 = vadd.f32 %v8600, %v8803
      %v8877 = vadd.f32 %v8601, %v8806
      %v8878 = vadd.f32 %v8602, %v8809
      %v8879 = vadd.f32 %v8603, %v8812
      %v8880 = vadd.f32 %v8604, %v8815
      %v8881 = vadd.f32 %v8605, %v8818
      %v8882 = vadd.f32 %v8606, %v8821
      %v8883 = vadd.f32 %v8607, %v8824
      %v8884 = vadd.f32 %v8608, %v8827
      %v8885 = vadd.f32 %v8609, %v8830
      %v8886 = vadd.f32 %v8610, %v8833
      %v8887 = vadd.f32 %v8611, %v8836
      %v8888 = vadd.f32 %v8612, %v8839
      %v8889 = vadd.f32 %v8613, %v8842
      %v8890 = vadd.f32 %v8614, %v8845
      %v8891 = vadd.f32 %v8615, %v8848
      %v8892 = vadd.f32 %v8616, %v8851
      %v8893 = vadd.f32 %v8617, %v8854
      %v8894 = vadd.f32 %v8618, %v8857
      %v8895 = vadd.f32 %v8619, %v8860
      %v8896 = vadd.f32 %v8620, %v8863
      %v8897 = vld [vmem:[%s7539 + $0x2] sm:$0xff]
      %v8898 = vld [vmem:[%s7539 + $0xa] sm:$0xff]
      %v8899 = vld [vmem:[%s7539 + $0x1a] sm:$0xff]
      %v8900 = vld [vmem:[%s7539 + $0x22] sm:$0xff]
      %v8901 = vld [vmem:[%s7539 + $0x32] sm:$0xff]
      %v8902 = vld [vmem:[%s7539 + $0x3a] sm:$0xff]
      %v8903 = vld [vmem:[%s7539 + $0x4a] sm:$0xff]
      %v8904 = vld [vmem:[%s7539 + $0x52] sm:$0xff]
      %v8905 = vld [vmem:[%s7539 + $0x62] sm:$0xff]
      %v8906 = vld [vmem:[%s7539 + $0x6a] sm:$0xff]
      %v8907 = vld [vmem:[%s7539 + $0x7a] sm:$0xff]
      %v8908 = vld [vmem:[%s7539 + $0x82] sm:$0xff]
      %v8909 = vld [vmem:[%s7539 + $0x92] sm:$0xff]
      %v8910 = vld [vmem:[%s7539 + $0x9a] sm:$0xff]
      %v8911 = vld [vmem:[%s7539 + $0xaa] sm:$0xff]
      %v8912 = vld [vmem:[%s7539 + $0xb2] sm:$0xff]
      %v8913 = vld [vmem:[%s7539 + $0xc2] sm:$0xff]
      %v8914 = vld [vmem:[%s7539 + $0xca] sm:$0xff]
      %v8915 = vld [vmem:[%s7539 + $0xda] sm:$0xff]
      %v8916 = vld [vmem:[%s7539 + $0xe2] sm:$0xff]
      %v8917 = vld [vmem:[%s7539 + $0xf2] sm:$0xff]
      %v8918 = vld [vmem:[%s7539 + $0xfa] sm:$0xff]
      %v8919 = vld [vmem:[%s7539 + $0x10a] sm:$0xff]
      %v8920 = vld [vmem:[%s7539 + $0x112] sm:$0xff]
      %v8921 = vld [vmem:[%s7539 + $0x122] sm:$0xff]
      %v8922 = vld [vmem:[%s7539 + $0x12a] sm:$0xff]
      %v8923 = vld [vmem:[%s7539 + $0x13a] sm:$0xff]
      %v8924 = vld [vmem:[%s7539 + $0x142] sm:$0xff]
      %v8925 = vld [vmem:[%s7539 + $0x152] sm:$0xff]
      %v8926 = vld [vmem:[%s7539 + $0x15a] sm:$0xff]
      %v8927 = vld [vmem:[%s7539 + $0x16a] sm:$0xff]
      %v8928 = vld [vmem:[%s7539 + $0x172] sm:$0xff]
      %v8930 = vsel %vm434, %v8897, 0
      %v8933 = vsel %vm434, %v8898, 0
      %v8936 = vsel %vm434, %v8899, 0
      %v8939 = vsel %vm434, %v8900, 0
      %v8942 = vsel %vm434, %v8901, 0
      %v8945 = vsel %vm434, %v8902, 0
      %v8948 = vsel %vm434, %v8903, 0
      %v8951 = vsel %vm434, %v8904, 0
      %v8954 = vsel %vm434, %v8905, 0
      %v8957 = vsel %vm434, %v8906, 0
      %v8960 = vsel %vm434, %v8907, 0
      %v8963 = vsel %vm434, %v8908, 0
      %v8966 = vsel %vm434, %v8909, 0
      %v8969 = vsel %vm434, %v8910, 0
      %v8972 = vsel %vm434, %v8911, 0
      %v8975 = vsel %vm434, %v8912, 0
      %v8978 = vsel %vm434, %v8913, 0
      %v8981 = vsel %vm434, %v8914, 0
      %v8984 = vsel %vm434, %v8915, 0
      %v8987 = vsel %vm434, %v8916, 0
      %v8990 = vsel %vm434, %v8917, 0
      %v8993 = vsel %vm434, %v8918, 0
      %v8996 = vsel %vm434, %v8919, 0
      %v8999 = vsel %vm434, %v8920, 0
      %v9002 = vsel %vm434, %v8921, 0
      %v9005 = vsel %vm434, %v8922, 0
      %v9008 = vsel %vm434, %v8923, 0
      %v9011 = vsel %vm434, %v8924, 0
      %v9014 = vsel %vm434, %v8925, 0
      %v9017 = vsel %vm434, %v8926, 0
      %v9020 = vsel %vm434, %v8927, 0
      %v9023 = vsel %vm434, %v8928, 0
      %v9026 = vsel %vm2047, %v7577, 0
      %9028 = vmatpush.msra.mxu0 0.0
      %9029 = vmatpush.msra.mxu0 0.0
      %9030 = vmatpush.msra.mxu0 0.0
      %9031 = vmatpush.msra.mxu0 0.0
      %9032 = vmatpush.msra.mxu0 0.0
      %9033 = vmatpush.msra.mxu0 0.0
      %9034 = vmatpush.msra.mxu0 0.0
      %9035 = vmatpush.msra.mxu0 0.0
      %9036 = vmatpush.msra.mxu0 0.0
      %9037 = vmatpush.msra.mxu0 0.0
      %9038 = vmatpush.msra.mxu0 0.0
      %9039 = vmatpush.msra.mxu0 0.0
      %9040 = vmatpush.msra.mxu0 0.0
      %9041 = vmatpush.msra.mxu0 0.0
      %9042 = vmatpush.msra.mxu0 0.0
      %9043 = vmatpush.msra.mxu0 %v9026
      %9044 = vmatmul.f32.gmra.mxu0 %v8930
      %v9045 = vpop.f32.mrf.mxu0
      %v9046 = vadd.f32 0.0, %v9045
      %9047 = vmatmul.f32.gmra.mxu0 %v8933
      %v9048 = vpop.f32.mrf.mxu0
      %v9049 = vadd.f32 0.0, %v9048
      %9050 = vmatmul.f32.gmra.mxu0 %v8936
      %v9051 = vpop.f32.mrf.mxu0
      %v9052 = vadd.f32 0.0, %v9051
      %9053 = vmatmul.f32.gmra.mxu0 %v8939
      %v9054 = vpop.f32.mrf.mxu0
      %v9055 = vadd.f32 0.0, %v9054
      %9056 = vmatmul.f32.gmra.mxu0 %v8942
      %v9057 = vpop.f32.mrf.mxu0
      %v9058 = vadd.f32 0.0, %v9057
      %9059 = vmatmul.f32.gmra.mxu0 %v8945
      %v9060 = vpop.f32.mrf.mxu0
      %v9061 = vadd.f32 0.0, %v9060
      %9062 = vmatmul.f32.gmra.mxu0 %v8948
      %v9063 = vpop.f32.mrf.mxu0
      %v9064 = vadd.f32 0.0, %v9063
      %9065 = vmatmul.f32.gmra.mxu0 %v8951
      %v9066 = vpop.f32.mrf.mxu0
      %v9067 = vadd.f32 0.0, %v9066
      %9068 = vmatmul.f32.gmra.mxu0 %v8954
      %v9069 = vpop.f32.mrf.mxu0
      %v9070 = vadd.f32 0.0, %v9069
      %9071 = vmatmul.f32.gmra.mxu0 %v8957
      %v9072 = vpop.f32.mrf.mxu0
      %v9073 = vadd.f32 0.0, %v9072
      %9074 = vmatmul.f32.gmra.mxu0 %v8960
      %v9075 = vpop.f32.mrf.mxu0
      %v9076 = vadd.f32 0.0, %v9075
      %9077 = vmatmul.f32.gmra.mxu0 %v8963
      %v9078 = vpop.f32.mrf.mxu0
      %v9079 = vadd.f32 0.0, %v9078
      %9080 = vmatmul.f32.gmra.mxu0 %v8966
      %v9081 = vpop.f32.mrf.mxu0
      %v9082 = vadd.f32 0.0, %v9081
      %9083 = vmatmul.f32.gmra.mxu0 %v8969
      %v9084 = vpop.f32.mrf.mxu0
      %v9085 = vadd.f32 0.0, %v9084
      %9086 = vmatmul.f32.gmra.mxu0 %v8972
      %v9087 = vpop.f32.mrf.mxu0
      %v9088 = vadd.f32 0.0, %v9087
      %9089 = vmatmul.f32.gmra.mxu0 %v8975
      %v9090 = vpop.f32.mrf.mxu0
      %v9091 = vadd.f32 0.0, %v9090
      %9092 = vmatmul.f32.gmra.mxu0 %v8978
      %v9093 = vpop.f32.mrf.mxu0
      %v9094 = vadd.f32 0.0, %v9093
      %9095 = vmatmul.f32.gmra.mxu0 %v8981
      %v9096 = vpop.f32.mrf.mxu0
      %v9097 = vadd.f32 0.0, %v9096
      %9098 = vmatmul.f32.gmra.mxu0 %v8984
      %v9099 = vpop.f32.mrf.mxu0
      %v9100 = vadd.f32 0.0, %v9099
      %9101 = vmatmul.f32.gmra.mxu0 %v8987
      %v9102 = vpop.f32.mrf.mxu0
      %v9103 = vadd.f32 0.0, %v9102
      %9104 = vmatmul.f32.gmra.mxu0 %v8990
      %v9105 = vpop.f32.mrf.mxu0
      %v9106 = vadd.f32 0.0, %v9105
      %9107 = vmatmul.f32.gmra.mxu0 %v8993
      %v9108 = vpop.f32.mrf.mxu0
      %v9109 = vadd.f32 0.0, %v9108
      %9110 = vmatmul.f32.gmra.mxu0 %v8996
      %v9111 = vpop.f32.mrf.mxu0
      %v9112 = vadd.f32 0.0, %v9111
      %9113 = vmatmul.f32.gmra.mxu0 %v8999
      %v9114 = vpop.f32.mrf.mxu0
      %v9115 = vadd.f32 0.0, %v9114
      %9116 = vmatmul.f32.gmra.mxu0 %v9002
      %v9117 = vpop.f32.mrf.mxu0
      %v9118 = vadd.f32 0.0, %v9117
      %9119 = vmatmul.f32.gmra.mxu0 %v9005
      %v9120 = vpop.f32.mrf.mxu0
      %v9121 = vadd.f32 0.0, %v9120
      %9122 = vmatmul.f32.gmra.mxu0 %v9008
      %v9123 = vpop.f32.mrf.mxu0
      %v9124 = vadd.f32 0.0, %v9123
      %9125 = vmatmul.f32.gmra.mxu0 %v9011
      %v9126 = vpop.f32.mrf.mxu0
      %v9127 = vadd.f32 0.0, %v9126
      %9128 = vmatmul.f32.gmra.mxu0 %v9014
      %v9129 = vpop.f32.mrf.mxu0
      %v9130 = vadd.f32 0.0, %v9129
      %9131 = vmatmul.f32.gmra.mxu0 %v9017
      %v9132 = vpop.f32.mrf.mxu0
      %v9133 = vadd.f32 0.0, %v9132
      %9134 = vmatmul.f32.gmra.mxu0 %v9020
      %v9135 = vpop.f32.mrf.mxu0
      %v9136 = vadd.f32 0.0, %v9135
      %9137 = vmatmul.f32.gmra.mxu0 %v9023
      %v9138 = vpop.f32.mrf.mxu0
      %v9139 = vadd.f32 0.0, %v9138
      %9140 = vdwg.mxu0
      %v9141 = vadd.f32 %v8865, %v9046
      %v9142 = vadd.f32 %v8866, %v9049
      %v9143 = vadd.f32 %v8867, %v9052
      %v9144 = vadd.f32 %v8868, %v9055
      %v9145 = vadd.f32 %v8869, %v9058
      %v9146 = vadd.f32 %v8870, %v9061
      %v9147 = vadd.f32 %v8871, %v9064
      %v9148 = vadd.f32 %v8872, %v9067
      %v9149 = vadd.f32 %v8873, %v9070
      %v9150 = vadd.f32 %v8874, %v9073
      %v9151 = vadd.f32 %v8875, %v9076
      %v9152 = vadd.f32 %v8876, %v9079
      %v9153 = vadd.f32 %v8877, %v9082
      %v9154 = vadd.f32 %v8878, %v9085
      %v9155 = vadd.f32 %v8879, %v9088
      %v9156 = vadd.f32 %v8880, %v9091
      %v9157 = vadd.f32 %v8881, %v9094
      %v9158 = vadd.f32 %v8882, %v9097
      %v9159 = vadd.f32 %v8883, %v9100
      %v9160 = vadd.f32 %v8884, %v9103
      %v9161 = vadd.f32 %v8885, %v9106
      %v9162 = vadd.f32 %v8886, %v9109
      %v9163 = vadd.f32 %v8887, %v9112
      %v9164 = vadd.f32 %v8888, %v9115
      %v9165 = vadd.f32 %v8889, %v9118
      %v9166 = vadd.f32 %v8890, %v9121
      %v9167 = vadd.f32 %v8891, %v9124
      %v9168 = vadd.f32 %v8892, %v9127
      %v9169 = vadd.f32 %v8893, %v9130
      %v9170 = vadd.f32 %v8894, %v9133
      %v9171 = vadd.f32 %v8895, %v9136
      %v9172 = vadd.f32 %v8896, %v9139
      %s9173 = scalar_lea.vmem [#allocation4], 48
      %v9174 = vld [vmem:[%s9173] sm:$0xff]
      %v9175 = vld [vmem:[%s9173 + $0x8] sm:$0xff]
      %v9176 = vld [vmem:[%s9173 + $0x18] sm:$0xff]
      %v9177 = vld [vmem:[%s9173 + $0x20] sm:$0xff]
      %v9178 = vld [vmem:[%s9173 + $0x30] sm:$0xff]
      %v9179 = vld [vmem:[%s9173 + $0x38] sm:$0xff]
      %v9180 = vld [vmem:[%s9173 + $0x48] sm:$0xff]
      %v9181 = vld [vmem:[%s9173 + $0x50] sm:$0xff]
      %v9182 = vld [vmem:[%s9173 + $0x60] sm:$0xff]
      %v9183 = vld [vmem:[%s9173 + $0x68] sm:$0xff]
      %v9184 = vld [vmem:[%s9173 + $0x78] sm:$0xff]
      %v9185 = vld [vmem:[%s9173 + $0x80] sm:$0xff]
      %v9186 = vld [vmem:[%s9173 + $0x90] sm:$0xff]
      %v9187 = vld [vmem:[%s9173 + $0x98] sm:$0xff]
      %v9188 = vld [vmem:[%s9173 + $0xa8] sm:$0xff]
      %v9189 = vld [vmem:[%s9173 + $0xb0] sm:$0xff]
      %v9190 = vld [vmem:[%s9173 + $0xc0] sm:$0xff]
      %v9191 = vld [vmem:[%s9173 + $0xc8] sm:$0xff]
      %v9192 = vld [vmem:[%s9173 + $0xd8] sm:$0xff]
      %v9193 = vld [vmem:[%s9173 + $0xe0] sm:$0xff]
      %v9194 = vld [vmem:[%s9173 + $0xf0] sm:$0xff]
      %v9195 = vld [vmem:[%s9173 + $0xf8] sm:$0xff]
      %v9196 = vld [vmem:[%s9173 + $0x108] sm:$0xff]
      %v9197 = vld [vmem:[%s9173 + $0x110] sm:$0xff]
      %v9198 = vld [vmem:[%s9173 + $0x120] sm:$0xff]
      %v9199 = vld [vmem:[%s9173 + $0x128] sm:$0xff]
      %v9200 = vld [vmem:[%s9173 + $0x138] sm:$0xff]
      %v9201 = vld [vmem:[%s9173 + $0x140] sm:$0xff]
      %v9202 = vld [vmem:[%s9173 + $0x150] sm:$0xff]
      %v9203 = vld [vmem:[%s9173 + $0x158] sm:$0xff]
      %v9204 = vld [vmem:[%s9173 + $0x168] sm:$0xff]
      %v9205 = vld [vmem:[%s9173 + $0x170] sm:$0xff]
      %v9207 = vsel %vm434, %v9174, 0
      %v9210 = vsel %vm434, %v9175, 0
      %v9213 = vsel %vm434, %v9176, 0
      %v9216 = vsel %vm434, %v9177, 0
      %v9219 = vsel %vm434, %v9178, 0
      %v9222 = vsel %vm434, %v9179, 0
      %v9225 = vsel %vm434, %v9180, 0
      %v9228 = vsel %vm434, %v9181, 0
      %v9231 = vsel %vm434, %v9182, 0
      %v9234 = vsel %vm434, %v9183, 0
      %v9237 = vsel %vm434, %v9184, 0
      %v9240 = vsel %vm434, %v9185, 0
      %v9243 = vsel %vm434, %v9186, 0
      %v9246 = vsel %vm434, %v9187, 0
      %v9249 = vsel %vm434, %v9188, 0
      %v9252 = vsel %vm434, %v9189, 0
      %v9255 = vsel %vm434, %v9190, 0
      %v9258 = vsel %vm434, %v9191, 0
      %v9261 = vsel %vm434, %v9192, 0
      %v9264 = vsel %vm434, %v9193, 0
      %v9267 = vsel %vm434, %v9194, 0
      %v9270 = vsel %vm434, %v9195, 0
      %v9273 = vsel %vm434, %v9196, 0
      %v9276 = vsel %vm434, %v9197, 0
      %v9279 = vsel %vm434, %v9198, 0
      %v9282 = vsel %vm434, %v9199, 0
      %v9285 = vsel %vm434, %v9200, 0
      %v9288 = vsel %vm434, %v9201, 0
      %v9291 = vsel %vm434, %v9202, 0
      %v9294 = vsel %vm434, %v9203, 0
      %v9297 = vsel %vm434, %v9204, 0
      %v9300 = vsel %vm434, %v9205, 0
      %v9303 = vsel %vm2047, %v7578, 0
      %9305 = vmatpush.msra.mxu0 0.0
      %9306 = vmatpush.msra.mxu0 0.0
      %9307 = vmatpush.msra.mxu0 0.0
      %9308 = vmatpush.msra.mxu0 0.0
      %9309 = vmatpush.msra.mxu0 0.0
      %9310 = vmatpush.msra.mxu0 0.0
      %9311 = vmatpush.msra.mxu0 0.0
      %9312 = vmatpush.msra.mxu0 0.0
      %9313 = vmatpush.msra.mxu0 0.0
      %9314 = vmatpush.msra.mxu0 0.0
      %9315 = vmatpush.msra.mxu0 0.0
      %9316 = vmatpush.msra.mxu0 0.0
      %9317 = vmatpush.msra.mxu0 0.0
      %9318 = vmatpush.msra.mxu0 0.0
      %9319 = vmatpush.msra.mxu0 0.0
      %9320 = vmatpush.msra.mxu0 %v9303
      %9321 = vmatmul.f32.gmra.mxu0 %v9207
      %v9322 = vpop.f32.mrf.mxu0
      %v9323 = vadd.f32 0.0, %v9322
      %9324 = vmatmul.f32.gmra.mxu0 %v9210
      %v9325 = vpop.f32.mrf.mxu0
      %v9326 = vadd.f32 0.0, %v9325
      %9327 = vmatmul.f32.gmra.mxu0 %v9213
      %v9328 = vpop.f32.mrf.mxu0
      %v9329 = vadd.f32 0.0, %v9328
      %9330 = vmatmul.f32.gmra.mxu0 %v9216
      %v9331 = vpop.f32.mrf.mxu0
      %v9332 = vadd.f32 0.0, %v9331
      %9333 = vmatmul.f32.gmra.mxu0 %v9219
      %v9334 = vpop.f32.mrf.mxu0
      %v9335 = vadd.f32 0.0, %v9334
      %9336 = vmatmul.f32.gmra.mxu0 %v9222
      %v9337 = vpop.f32.mrf.mxu0
      %v9338 = vadd.f32 0.0, %v9337
      %9339 = vmatmul.f32.gmra.mxu0 %v9225
      %v9340 = vpop.f32.mrf.mxu0
      %v9341 = vadd.f32 0.0, %v9340
      %9342 = vmatmul.f32.gmra.mxu0 %v9228
      %v9343 = vpop.f32.mrf.mxu0
      %v9344 = vadd.f32 0.0, %v9343
      %9345 = vmatmul.f32.gmra.mxu0 %v9231
      %v9346 = vpop.f32.mrf.mxu0
      %v9347 = vadd.f32 0.0, %v9346
      %9348 = vmatmul.f32.gmra.mxu0 %v9234
      %v9349 = vpop.f32.mrf.mxu0
      %v9350 = vadd.f32 0.0, %v9349
      %9351 = vmatmul.f32.gmra.mxu0 %v9237
      %v9352 = vpop.f32.mrf.mxu0
      %v9353 = vadd.f32 0.0, %v9352
      %9354 = vmatmul.f32.gmra.mxu0 %v9240
      %v9355 = vpop.f32.mrf.mxu0
      %v9356 = vadd.f32 0.0, %v9355
      %9357 = vmatmul.f32.gmra.mxu0 %v9243
      %v9358 = vpop.f32.mrf.mxu0
      %v9359 = vadd.f32 0.0, %v9358
      %9360 = vmatmul.f32.gmra.mxu0 %v9246
      %v9361 = vpop.f32.mrf.mxu0
      %v9362 = vadd.f32 0.0, %v9361
      %9363 = vmatmul.f32.gmra.mxu0 %v9249
      %v9364 = vpop.f32.mrf.mxu0
      %v9365 = vadd.f32 0.0, %v9364
      %9366 = vmatmul.f32.gmra.mxu0 %v9252
      %v9367 = vpop.f32.mrf.mxu0
      %v9368 = vadd.f32 0.0, %v9367
      %9369 = vmatmul.f32.gmra.mxu0 %v9255
      %v9370 = vpop.f32.mrf.mxu0
      %v9371 = vadd.f32 0.0, %v9370
      %9372 = vmatmul.f32.gmra.mxu0 %v9258
      %v9373 = vpop.f32.mrf.mxu0
      %v9374 = vadd.f32 0.0, %v9373
      %9375 = vmatmul.f32.gmra.mxu0 %v9261
      %v9376 = vpop.f32.mrf.mxu0
      %v9377 = vadd.f32 0.0, %v9376
      %9378 = vmatmul.f32.gmra.mxu0 %v9264
      %v9379 = vpop.f32.mrf.mxu0
      %v9380 = vadd.f32 0.0, %v9379
      %9381 = vmatmul.f32.gmra.mxu0 %v9267
      %v9382 = vpop.f32.mrf.mxu0
      %v9383 = vadd.f32 0.0, %v9382
      %9384 = vmatmul.f32.gmra.mxu0 %v9270
      %v9385 = vpop.f32.mrf.mxu0
      %v9386 = vadd.f32 0.0, %v9385
      %9387 = vmatmul.f32.gmra.mxu0 %v9273
      %v9388 = vpop.f32.mrf.mxu0
      %v9389 = vadd.f32 0.0, %v9388
      %9390 = vmatmul.f32.gmra.mxu0 %v9276
      %v9391 = vpop.f32.mrf.mxu0
      %v9392 = vadd.f32 0.0, %v9391
      %9393 = vmatmul.f32.gmra.mxu0 %v9279
      %v9394 = vpop.f32.mrf.mxu0
      %v9395 = vadd.f32 0.0, %v9394
      %9396 = vmatmul.f32.gmra.mxu0 %v9282
      %v9397 = vpop.f32.mrf.mxu0
      %v9398 = vadd.f32 0.0, %v9397
      %9399 = vmatmul.f32.gmra.mxu0 %v9285
      %v9400 = vpop.f32.mrf.mxu0
      %v9401 = vadd.f32 0.0, %v9400
      %9402 = vmatmul.f32.gmra.mxu0 %v9288
      %v9403 = vpop.f32.mrf.mxu0
      %v9404 = vadd.f32 0.0, %v9403
      %9405 = vmatmul.f32.gmra.mxu0 %v9291
      %v9406 = vpop.f32.mrf.mxu0
      %v9407 = vadd.f32 0.0, %v9406
      %9408 = vmatmul.f32.gmra.mxu0 %v9294
      %v9409 = vpop.f32.mrf.mxu0
      %v9410 = vadd.f32 0.0, %v9409
      %9411 = vmatmul.f32.gmra.mxu0 %v9297
      %v9412 = vpop.f32.mrf.mxu0
      %v9413 = vadd.f32 0.0, %v9412
      %9414 = vmatmul.f32.gmra.mxu0 %v9300
      %v9415 = vpop.f32.mrf.mxu0
      %v9416 = vadd.f32 0.0, %v9415
      %9417 = vdwg.mxu0
      %v9418 = vadd.f32 %v9141, %v9323
      %v9419 = vadd.f32 %v9142, %v9326
      %v9420 = vadd.f32 %v9143, %v9329
      %v9421 = vadd.f32 %v9144, %v9332
      %v9422 = vadd.f32 %v9145, %v9335
      %v9423 = vadd.f32 %v9146, %v9338
      %v9424 = vadd.f32 %v9147, %v9341
      %v9425 = vadd.f32 %v9148, %v9344
      %v9426 = vadd.f32 %v9149, %v9347
      %v9427 = vadd.f32 %v9150, %v9350
      %v9428 = vadd.f32 %v9151, %v9353
      %v9429 = vadd.f32 %v9152, %v9356
      %v9430 = vadd.f32 %v9153, %v9359
      %v9431 = vadd.f32 %v9154, %v9362
      %v9432 = vadd.f32 %v9155, %v9365
      %v9433 = vadd.f32 %v9156, %v9368
      %v9434 = vadd.f32 %v9157, %v9371
      %v9435 = vadd.f32 %v9158, %v9374
      %v9436 = vadd.f32 %v9159, %v9377
      %v9437 = vadd.f32 %v9160, %v9380
      %v9438 = vadd.f32 %v9161, %v9383
      %v9439 = vadd.f32 %v9162, %v9386
      %v9440 = vadd.f32 %v9163, %v9389
      %v9441 = vadd.f32 %v9164, %v9392
      %v9442 = vadd.f32 %v9165, %v9395
      %v9443 = vadd.f32 %v9166, %v9398
      %v9444 = vadd.f32 %v9167, %v9401
      %v9445 = vadd.f32 %v9168, %v9404
      %v9446 = vadd.f32 %v9169, %v9407
      %v9447 = vadd.f32 %v9170, %v9410
      %v9448 = vadd.f32 %v9171, %v9413
      %v9449 = vadd.f32 %v9172, %v9416
      %v9450 = vld [vmem:[%s9173 + $0x1] sm:$0xff]
      %v9451 = vld [vmem:[%s9173 + $0x9] sm:$0xff]
      %v9452 = vld [vmem:[%s9173 + $0x19] sm:$0xff]
      %v9453 = vld [vmem:[%s9173 + $0x21] sm:$0xff]
      %v9454 = vld [vmem:[%s9173 + $0x31] sm:$0xff]
      %v9455 = vld [vmem:[%s9173 + $0x39] sm:$0xff]
      %v9456 = vld [vmem:[%s9173 + $0x49] sm:$0xff]
      %v9457 = vld [vmem:[%s9173 + $0x51] sm:$0xff]
      %v9458 = vld [vmem:[%s9173 + $0x61] sm:$0xff]
      %v9459 = vld [vmem:[%s9173 + $0x69] sm:$0xff]
      %v9460 = vld [vmem:[%s9173 + $0x79] sm:$0xff]
      %v9461 = vld [vmem:[%s9173 + $0x81] sm:$0xff]
      %v9462 = vld [vmem:[%s9173 + $0x91] sm:$0xff]
      %v9463 = vld [vmem:[%s9173 + $0x99] sm:$0xff]
      %v9464 = vld [vmem:[%s9173 + $0xa9] sm:$0xff]
      %v9465 = vld [vmem:[%s9173 + $0xb1] sm:$0xff]
      %v9466 = vld [vmem:[%s9173 + $0xc1] sm:$0xff]
      %v9467 = vld [vmem:[%s9173 + $0xc9] sm:$0xff]
      %v9468 = vld [vmem:[%s9173 + $0xd9] sm:$0xff]
      %v9469 = vld [vmem:[%s9173 + $0xe1] sm:$0xff]
      %v9470 = vld [vmem:[%s9173 + $0xf1] sm:$0xff]
      %v9471 = vld [vmem:[%s9173 + $0xf9] sm:$0xff]
      %v9472 = vld [vmem:[%s9173 + $0x109] sm:$0xff]
      %v9473 = vld [vmem:[%s9173 + $0x111] sm:$0xff]
      %v9474 = vld [vmem:[%s9173 + $0x121] sm:$0xff]
      %v9475 = vld [vmem:[%s9173 + $0x129] sm:$0xff]
      %v9476 = vld [vmem:[%s9173 + $0x139] sm:$0xff]
      %v9477 = vld [vmem:[%s9173 + $0x141] sm:$0xff]
      %v9478 = vld [vmem:[%s9173 + $0x151] sm:$0xff]
      %v9479 = vld [vmem:[%s9173 + $0x159] sm:$0xff]
      %v9480 = vld [vmem:[%s9173 + $0x169] sm:$0xff]
      %v9481 = vld [vmem:[%s9173 + $0x171] sm:$0xff]
      %v9483 = vsel %vm434, %v9450, 0
      %v9486 = vsel %vm434, %v9451, 0
      %v9489 = vsel %vm434, %v9452, 0
      %v9492 = vsel %vm434, %v9453, 0
      %v9495 = vsel %vm434, %v9454, 0
      %v9498 = vsel %vm434, %v9455, 0
      %v9501 = vsel %vm434, %v9456, 0
      %v9504 = vsel %vm434, %v9457, 0
      %v9507 = vsel %vm434, %v9458, 0
      %v9510 = vsel %vm434, %v9459, 0
      %v9513 = vsel %vm434, %v9460, 0
      %v9516 = vsel %vm434, %v9461, 0
      %v9519 = vsel %vm434, %v9462, 0
      %v9522 = vsel %vm434, %v9463, 0
      %v9525 = vsel %vm434, %v9464, 0
      %v9528 = vsel %vm434, %v9465, 0
      %v9531 = vsel %vm434, %v9466, 0
      %v9534 = vsel %vm434, %v9467, 0
      %v9537 = vsel %vm434, %v9468, 0
      %v9540 = vsel %vm434, %v9469, 0
      %v9543 = vsel %vm434, %v9470, 0
      %v9546 = vsel %vm434, %v9471, 0
      %v9549 = vsel %vm434, %v9472, 0
      %v9552 = vsel %vm434, %v9473, 0
      %v9555 = vsel %vm434, %v9474, 0
      %v9558 = vsel %vm434, %v9475, 0
      %v9561 = vsel %vm434, %v9476, 0
      %v9564 = vsel %vm434, %v9477, 0
      %v9567 = vsel %vm434, %v9478, 0
      %v9570 = vsel %vm434, %v9479, 0
      %v9573 = vsel %vm434, %v9480, 0
      %v9576 = vsel %vm434, %v9481, 0
      %v9579 = vsel %vm2047, %v7579, 0
      %9581 = vmatpush.msra.mxu0 0.0
      %9582 = vmatpush.msra.mxu0 0.0
      %9583 = vmatpush.msra.mxu0 0.0
      %9584 = vmatpush.msra.mxu0 0.0
      %9585 = vmatpush.msra.mxu0 0.0
      %9586 = vmatpush.msra.mxu0 0.0
      %9587 = vmatpush.msra.mxu0 0.0
      %9588 = vmatpush.msra.mxu0 0.0
      %9589 = vmatpush.msra.mxu0 0.0
      %9590 = vmatpush.msra.mxu0 0.0
      %9591 = vmatpush.msra.mxu0 0.0
      %9592 = vmatpush.msra.mxu0 0.0
      %9593 = vmatpush.msra.mxu0 0.0
      %9594 = vmatpush.msra.mxu0 0.0
      %9595 = vmatpush.msra.mxu0 0.0
      %9596 = vmatpush.msra.mxu0 %v9579
      %9597 = vmatmul.f32.gmra.mxu0 %v9483
      %v9598 = vpop.f32.mrf.mxu0
      %v9599 = vadd.f32 0.0, %v9598
      %9600 = vmatmul.f32.gmra.mxu0 %v9486
      %v9601 = vpop.f32.mrf.mxu0
      %v9602 = vadd.f32 0.0, %v9601
      %9603 = vmatmul.f32.gmra.mxu0 %v9489
      %v9604 = vpop.f32.mrf.mxu0
      %v9605 = vadd.f32 0.0, %v9604
      %9606 = vmatmul.f32.gmra.mxu0 %v9492
      %v9607 = vpop.f32.mrf.mxu0
      %v9608 = vadd.f32 0.0, %v9607
      %9609 = vmatmul.f32.gmra.mxu0 %v9495
      %v9610 = vpop.f32.mrf.mxu0
      %v9611 = vadd.f32 0.0, %v9610
      %9612 = vmatmul.f32.gmra.mxu0 %v9498
      %v9613 = vpop.f32.mrf.mxu0
      %v9614 = vadd.f32 0.0, %v9613
      %9615 = vmatmul.f32.gmra.mxu0 %v9501
      %v9616 = vpop.f32.mrf.mxu0
      %v9617 = vadd.f32 0.0, %v9616
      %9618 = vmatmul.f32.gmra.mxu0 %v9504
      %v9619 = vpop.f32.mrf.mxu0
      %v9620 = vadd.f32 0.0, %v9619
      %9621 = vmatmul.f32.gmra.mxu0 %v9507
      %v9622 = vpop.f32.mrf.mxu0
      %v9623 = vadd.f32 0.0, %v9622
      %9624 = vmatmul.f32.gmra.mxu0 %v9510
      %v9625 = vpop.f32.mrf.mxu0
      %v9626 = vadd.f32 0.0, %v9625
      %9627 = vmatmul.f32.gmra.mxu0 %v9513
      %v9628 = vpop.f32.mrf.mxu0
      %v9629 = vadd.f32 0.0, %v9628
      %9630 = vmatmul.f32.gmra.mxu0 %v9516
      %v9631 = vpop.f32.mrf.mxu0
      %v9632 = vadd.f32 0.0, %v9631
      %9633 = vmatmul.f32.gmra.mxu0 %v9519
      %v9634 = vpop.f32.mrf.mxu0
      %v9635 = vadd.f32 0.0, %v9634
      %9636 = vmatmul.f32.gmra.mxu0 %v9522
      %v9637 = vpop.f32.mrf.mxu0
      %v9638 = vadd.f32 0.0, %v9637
      %9639 = vmatmul.f32.gmra.mxu0 %v9525
      %v9640 = vpop.f32.mrf.mxu0
      %v9641 = vadd.f32 0.0, %v9640
      %9642 = vmatmul.f32.gmra.mxu0 %v9528
      %v9643 = vpop.f32.mrf.mxu0
      %v9644 = vadd.f32 0.0, %v9643
      %9645 = vmatmul.f32.gmra.mxu0 %v9531
      %v9646 = vpop.f32.mrf.mxu0
      %v9647 = vadd.f32 0.0, %v9646
      %9648 = vmatmul.f32.gmra.mxu0 %v9534
      %v9649 = vpop.f32.mrf.mxu0
      %v9650 = vadd.f32 0.0, %v9649
      %9651 = vmatmul.f32.gmra.mxu0 %v9537
      %v9652 = vpop.f32.mrf.mxu0
      %v9653 = vadd.f32 0.0, %v9652
      %9654 = vmatmul.f32.gmra.mxu0 %v9540
      %v9655 = vpop.f32.mrf.mxu0
      %v9656 = vadd.f32 0.0, %v9655
      %9657 = vmatmul.f32.gmra.mxu0 %v9543
      %v9658 = vpop.f32.mrf.mxu0
      %v9659 = vadd.f32 0.0, %v9658
      %9660 = vmatmul.f32.gmra.mxu0 %v9546
      %v9661 = vpop.f32.mrf.mxu0
      %v9662 = vadd.f32 0.0, %v9661
      %9663 = vmatmul.f32.gmra.mxu0 %v9549
      %v9664 = vpop.f32.mrf.mxu0
      %v9665 = vadd.f32 0.0, %v9664
      %9666 = vmatmul.f32.gmra.mxu0 %v9552
      %v9667 = vpop.f32.mrf.mxu0
      %v9668 = vadd.f32 0.0, %v9667
      %9669 = vmatmul.f32.gmra.mxu0 %v9555
      %v9670 = vpop.f32.mrf.mxu0
      %v9671 = vadd.f32 0.0, %v9670
      %9672 = vmatmul.f32.gmra.mxu0 %v9558
      %v9673 = vpop.f32.mrf.mxu0
      %v9674 = vadd.f32 0.0, %v9673
      %9675 = vmatmul.f32.gmra.mxu0 %v9561
      %v9676 = vpop.f32.mrf.mxu0
      %v9677 = vadd.f32 0.0, %v9676
      %9678 = vmatmul.f32.gmra.mxu0 %v9564
      %v9679 = vpop.f32.mrf.mxu0
      %v9680 = vadd.f32 0.0, %v9679
      %9681 = vmatmul.f32.gmra.mxu0 %v9567
      %v9682 = vpop.f32.mrf.mxu0
      %v9683 = vadd.f32 0.0, %v9682
      %9684 = vmatmul.f32.gmra.mxu0 %v9570
      %v9685 = vpop.f32.mrf.mxu0
      %v9686 = vadd.f32 0.0, %v9685
      %9687 = vmatmul.f32.gmra.mxu0 %v9573
      %v9688 = vpop.f32.mrf.mxu0
      %v9689 = vadd.f32 0.0, %v9688
      %9690 = vmatmul.f32.gmra.mxu0 %v9576
      %v9691 = vpop.f32.mrf.mxu0
      %v9692 = vadd.f32 0.0, %v9691
      %9693 = vdwg.mxu0
      %v9694 = vadd.f32 %v9418, %v9599
      %v9695 = vadd.f32 %v9419, %v9602
      %v9696 = vadd.f32 %v9420, %v9605
      %v9697 = vadd.f32 %v9421, %v9608
      %v9698 = vadd.f32 %v9422, %v9611
      %v9699 = vadd.f32 %v9423, %v9614
      %v9700 = vadd.f32 %v9424, %v9617
      %v9701 = vadd.f32 %v9425, %v9620
      %v9702 = vadd.f32 %v9426, %v9623
      %v9703 = vadd.f32 %v9427, %v9626
      %v9704 = vadd.f32 %v9428, %v9629
      %v9705 = vadd.f32 %v9429, %v9632
      %v9706 = vadd.f32 %v9430, %v9635
      %v9707 = vadd.f32 %v9431, %v9638
      %v9708 = vadd.f32 %v9432, %v9641
      %v9709 = vadd.f32 %v9433, %v9644
      %v9710 = vadd.f32 %v9434, %v9647
      %v9711 = vadd.f32 %v9435, %v9650
      %v9712 = vadd.f32 %v9436, %v9653
      %v9713 = vadd.f32 %v9437, %v9656
      %v9714 = vadd.f32 %v9438, %v9659
      %v9715 = vadd.f32 %v9439, %v9662
      %v9716 = vadd.f32 %v9440, %v9665
      %v9717 = vadd.f32 %v9441, %v9668
      %v9718 = vadd.f32 %v9442, %v9671
      %v9719 = vadd.f32 %v9443, %v9674
      %v9720 = vadd.f32 %v9444, %v9677
      %v9721 = vadd.f32 %v9445, %v9680
      %v9722 = vadd.f32 %v9446, %v9683
      %v9723 = vadd.f32 %v9447, %v9686
      %v9724 = vadd.f32 %v9448, %v9689
      %v9725 = vadd.f32 %v9449, %v9692
      %v9726 = vld [vmem:[%s9173 + $0x2] sm:$0xff]
      %v9727 = vld [vmem:[%s9173 + $0xa] sm:$0xff]
      %v9728 = vld [vmem:[%s9173 + $0x1a] sm:$0xff]
      %v9729 = vld [vmem:[%s9173 + $0x22] sm:$0xff]
      %v9730 = vld [vmem:[%s9173 + $0x32] sm:$0xff]
      %v9731 = vld [vmem:[%s9173 + $0x3a] sm:$0xff]
      %v9732 = vld [vmem:[%s9173 + $0x4a] sm:$0xff]
      %v9733 = vld [vmem:[%s9173 + $0x52] sm:$0xff]
      %v9734 = vld [vmem:[%s9173 + $0x62] sm:$0xff]
      %v9735 = vld [vmem:[%s9173 + $0x6a] sm:$0xff]
      %v9736 = vld [vmem:[%s9173 + $0x7a] sm:$0xff]
      %v9737 = vld [vmem:[%s9173 + $0x82] sm:$0xff]
      %v9738 = vld [vmem:[%s9173 + $0x92] sm:$0xff]
      %v9739 = vld [vmem:[%s9173 + $0x9a] sm:$0xff]
      %v9740 = vld [vmem:[%s9173 + $0xaa] sm:$0xff]
      %v9741 = vld [vmem:[%s9173 + $0xb2] sm:$0xff]
      %v9742 = vld [vmem:[%s9173 + $0xc2] sm:$0xff]
      %v9743 = vld [vmem:[%s9173 + $0xca] sm:$0xff]
      %v9744 = vld [vmem:[%s9173 + $0xda] sm:$0xff]
      %v9745 = vld [vmem:[%s9173 + $0xe2] sm:$0xff]
      %v9746 = vld [vmem:[%s9173 + $0xf2] sm:$0xff]
      %v9747 = vld [vmem:[%s9173 + $0xfa] sm:$0xff]
      %v9748 = vld [vmem:[%s9173 + $0x10a] sm:$0xff]
      %v9749 = vld [vmem:[%s9173 + $0x112] sm:$0xff]
      %v9750 = vld [vmem:[%s9173 + $0x122] sm:$0xff]
      %v9751 = vld [vmem:[%s9173 + $0x12a] sm:$0xff]
      %v9752 = vld [vmem:[%s9173 + $0x13a] sm:$0xff]
      %v9753 = vld [vmem:[%s9173 + $0x142] sm:$0xff]
      %v9754 = vld [vmem:[%s9173 + $0x152] sm:$0xff]
      %v9755 = vld [vmem:[%s9173 + $0x15a] sm:$0xff]
      %v9756 = vld [vmem:[%s9173 + $0x16a] sm:$0xff]
      %v9757 = vld [vmem:[%s9173 + $0x172] sm:$0xff]
      %v9759 = vsel %vm434, %v9726, 0
      %v9762 = vsel %vm434, %v9727, 0
      %v9765 = vsel %vm434, %v9728, 0
      %v9768 = vsel %vm434, %v9729, 0
      %v9771 = vsel %vm434, %v9730, 0
      %v9774 = vsel %vm434, %v9731, 0
      %v9777 = vsel %vm434, %v9732, 0
      %v9780 = vsel %vm434, %v9733, 0
      %v9783 = vsel %vm434, %v9734, 0
      %v9786 = vsel %vm434, %v9735, 0
      %v9789 = vsel %vm434, %v9736, 0
      %v9792 = vsel %vm434, %v9737, 0
      %v9795 = vsel %vm434, %v9738, 0
      %v9798 = vsel %vm434, %v9739, 0
      %v9801 = vsel %vm434, %v9740, 0
      %v9804 = vsel %vm434, %v9741, 0
      %v9807 = vsel %vm434, %v9742, 0
      %v9810 = vsel %vm434, %v9743, 0
      %v9813 = vsel %vm434, %v9744, 0
      %v9816 = vsel %vm434, %v9745, 0
      %v9819 = vsel %vm434, %v9746, 0
      %v9822 = vsel %vm434, %v9747, 0
      %v9825 = vsel %vm434, %v9748, 0
      %v9828 = vsel %vm434, %v9749, 0
      %v9831 = vsel %vm434, %v9750, 0
      %v9834 = vsel %vm434, %v9751, 0
      %v9837 = vsel %vm434, %v9752, 0
      %v9840 = vsel %vm434, %v9753, 0
      %v9843 = vsel %vm434, %v9754, 0
      %v9846 = vsel %vm434, %v9755, 0
      %v9849 = vsel %vm434, %v9756, 0
      %v9852 = vsel %vm434, %v9757, 0
      %v9855 = vsel %vm2047, %v7580, 0
      %9857 = vmatpush.msra.mxu0 0.0
      %9858 = vmatpush.msra.mxu0 0.0
      %9859 = vmatpush.msra.mxu0 0.0
      %9860 = vmatpush.msra.mxu0 0.0
      %9861 = vmatpush.msra.mxu0 0.0
      %9862 = vmatpush.msra.mxu0 0.0
      %9863 = vmatpush.msra.mxu0 0.0
      %9864 = vmatpush.msra.mxu0 0.0
      %9865 = vmatpush.msra.mxu0 0.0
      %9866 = vmatpush.msra.mxu0 0.0
      %9867 = vmatpush.msra.mxu0 0.0
      %9868 = vmatpush.msra.mxu0 0.0
      %9869 = vmatpush.msra.mxu0 0.0
      %9870 = vmatpush.msra.mxu0 0.0
      %9871 = vmatpush.msra.mxu0 0.0
      %9872 = vmatpush.msra.mxu0 %v9855
      %9873 = vmatmul.f32.gmra.mxu0 %v9759
      %v9874 = vpop.f32.mrf.mxu0
      %v9875 = vadd.f32 0.0, %v9874
      %9876 = vmatmul.f32.gmra.mxu0 %v9762
      %v9877 = vpop.f32.mrf.mxu0
      %v9878 = vadd.f32 0.0, %v9877
      %9879 = vmatmul.f32.gmra.mxu0 %v9765
      %v9880 = vpop.f32.mrf.mxu0
      %v9881 = vadd.f32 0.0, %v9880
      %9882 = vmatmul.f32.gmra.mxu0 %v9768
      %v9883 = vpop.f32.mrf.mxu0
      %v9884 = vadd.f32 0.0, %v9883
      %9885 = vmatmul.f32.gmra.mxu0 %v9771
      %v9886 = vpop.f32.mrf.mxu0
      %v9887 = vadd.f32 0.0, %v9886
      %9888 = vmatmul.f32.gmra.mxu0 %v9774
      %v9889 = vpop.f32.mrf.mxu0
      %v9890 = vadd.f32 0.0, %v9889
      %9891 = vmatmul.f32.gmra.mxu0 %v9777
      %v9892 = vpop.f32.mrf.mxu0
      %v9893 = vadd.f32 0.0, %v9892
      %9894 = vmatmul.f32.gmra.mxu0 %v9780
      %v9895 = vpop.f32.mrf.mxu0
      %v9896 = vadd.f32 0.0, %v9895
      %9897 = vmatmul.f32.gmra.mxu0 %v9783
      %v9898 = vpop.f32.mrf.mxu0
      %v9899 = vadd.f32 0.0, %v9898
      %9900 = vmatmul.f32.gmra.mxu0 %v9786
      %v9901 = vpop.f32.mrf.mxu0
      %v9902 = vadd.f32 0.0, %v9901
      %9903 = vmatmul.f32.gmra.mxu0 %v9789
      %v9904 = vpop.f32.mrf.mxu0
      %v9905 = vadd.f32 0.0, %v9904
      %9906 = vmatmul.f32.gmra.mxu0 %v9792
      %v9907 = vpop.f32.mrf.mxu0
      %v9908 = vadd.f32 0.0, %v9907
      %9909 = vmatmul.f32.gmra.mxu0 %v9795
      %v9910 = vpop.f32.mrf.mxu0
      %v9911 = vadd.f32 0.0, %v9910
      %9912 = vmatmul.f32.gmra.mxu0 %v9798
      %v9913 = vpop.f32.mrf.mxu0
      %v9914 = vadd.f32 0.0, %v9913
      %9915 = vmatmul.f32.gmra.mxu0 %v9801
      %v9916 = vpop.f32.mrf.mxu0
      %v9917 = vadd.f32 0.0, %v9916
      %9918 = vmatmul.f32.gmra.mxu0 %v9804
      %v9919 = vpop.f32.mrf.mxu0
      %v9920 = vadd.f32 0.0, %v9919
      %9921 = vmatmul.f32.gmra.mxu0 %v9807
      %v9922 = vpop.f32.mrf.mxu0
      %v9923 = vadd.f32 0.0, %v9922
      %9924 = vmatmul.f32.gmra.mxu0 %v9810
      %v9925 = vpop.f32.mrf.mxu0
      %v9926 = vadd.f32 0.0, %v9925
      %9927 = vmatmul.f32.gmra.mxu0 %v9813
      %v9928 = vpop.f32.mrf.mxu0
      %v9929 = vadd.f32 0.0, %v9928
      %9930 = vmatmul.f32.gmra.mxu0 %v9816
      %v9931 = vpop.f32.mrf.mxu0
      %v9932 = vadd.f32 0.0, %v9931
      %9933 = vmatmul.f32.gmra.mxu0 %v9819
      %v9934 = vpop.f32.mrf.mxu0
      %v9935 = vadd.f32 0.0, %v9934
      %9936 = vmatmul.f32.gmra.mxu0 %v9822
      %v9937 = vpop.f32.mrf.mxu0
      %v9938 = vadd.f32 0.0, %v9937
      %9939 = vmatmul.f32.gmra.mxu0 %v9825
      %v9940 = vpop.f32.mrf.mxu0
      %v9941 = vadd.f32 0.0, %v9940
      %9942 = vmatmul.f32.gmra.mxu0 %v9828
      %v9943 = vpop.f32.mrf.mxu0
      %v9944 = vadd.f32 0.0, %v9943
      %9945 = vmatmul.f32.gmra.mxu0 %v9831
      %v9946 = vpop.f32.mrf.mxu0
      %v9947 = vadd.f32 0.0, %v9946
      %9948 = vmatmul.f32.gmra.mxu0 %v9834
      %v9949 = vpop.f32.mrf.mxu0
      %v9950 = vadd.f32 0.0, %v9949
      %9951 = vmatmul.f32.gmra.mxu0 %v9837
      %v9952 = vpop.f32.mrf.mxu0
      %v9953 = vadd.f32 0.0, %v9952
      %9954 = vmatmul.f32.gmra.mxu0 %v9840
      %v9955 = vpop.f32.mrf.mxu0
      %v9956 = vadd.f32 0.0, %v9955
      %9957 = vmatmul.f32.gmra.mxu0 %v9843
      %v9958 = vpop.f32.mrf.mxu0
      %v9959 = vadd.f32 0.0, %v9958
      %9960 = vmatmul.f32.gmra.mxu0 %v9846
      %v9961 = vpop.f32.mrf.mxu0
      %v9962 = vadd.f32 0.0, %v9961
      %9963 = vmatmul.f32.gmra.mxu0 %v9849
      %v9964 = vpop.f32.mrf.mxu0
      %v9965 = vadd.f32 0.0, %v9964
      %9966 = vmatmul.f32.gmra.mxu0 %v9852
      %v9967 = vpop.f32.mrf.mxu0
      %v9968 = vadd.f32 0.0, %v9967
      %9969 = vdwg.mxu0
      %v9970 = vadd.f32 %v9694, %v9875
      %v9971 = vadd.f32 %v9695, %v9878
      %v9972 = vadd.f32 %v9696, %v9881
      %v9973 = vadd.f32 %v9697, %v9884
      %v9974 = vadd.f32 %v9698, %v9887
      %v9975 = vadd.f32 %v9699, %v9890
      %v9976 = vadd.f32 %v9700, %v9893
      %v9977 = vadd.f32 %v9701, %v9896
      %v9978 = vadd.f32 %v9702, %v9899
      %v9979 = vadd.f32 %v9703, %v9902
      %v9980 = vadd.f32 %v9704, %v9905
      %v9981 = vadd.f32 %v9705, %v9908
      %v9982 = vadd.f32 %v9706, %v9911
      %v9983 = vadd.f32 %v9707, %v9914
      %v9984 = vadd.f32 %v9708, %v9917
      %v9985 = vadd.f32 %v9709, %v9920
      %v9986 = vadd.f32 %v9710, %v9923
      %v9987 = vadd.f32 %v9711, %v9926
      %v9988 = vadd.f32 %v9712, %v9929
      %v9989 = vadd.f32 %v9713, %v9932
      %v9990 = vadd.f32 %v9714, %v9935
      %v9991 = vadd.f32 %v9715, %v9938
      %v9992 = vadd.f32 %v9716, %v9941
      %v9993 = vadd.f32 %v9717, %v9944
      %v9994 = vadd.f32 %v9718, %v9947
      %v9995 = vadd.f32 %v9719, %v9950
      %v9996 = vadd.f32 %v9720, %v9953
      %v9997 = vadd.f32 %v9721, %v9956
      %v9998 = vadd.f32 %v9722, %v9959
      %v9999 = vadd.f32 %v9723, %v9962
      %v10000 = vadd.f32 %v9724, %v9965
      %v10001 = vadd.f32 %v9725, %v9968
      %v10002 = vld [vmem:[%s8] sm:$0x1]
      %v10004 = vperm.slane %v10002, 0
      %v10006 = vadd.f32 %v9970, %v10004
      %v10007 = vadd.f32 %v9971, %v10004
      %v10008 = vadd.f32 %v9972, %v10004
      %v10009 = vadd.f32 %v9973, %v10004
      %v10010 = vadd.f32 %v9974, %v10004
      %v10011 = vadd.f32 %v9975, %v10004
      %v10012 = vadd.f32 %v9976, %v10004
      %v10013 = vadd.f32 %v9977, %v10004
      %v10014 = vadd.f32 %v9978, %v10004
      %v10015 = vadd.f32 %v9979, %v10004
      %v10016 = vadd.f32 %v9980, %v10004
      %v10017 = vadd.f32 %v9981, %v10004
      %v10018 = vadd.f32 %v9982, %v10004
      %v10019 = vadd.f32 %v9983, %v10004
      %v10020 = vadd.f32 %v9984, %v10004
      %v10021 = vadd.f32 %v9985, %v10004
      %v10022 = vadd.f32 %v9986, %v10004
      %v10023 = vadd.f32 %v9987, %v10004
      %v10024 = vadd.f32 %v9988, %v10004
      %v10025 = vadd.f32 %v9989, %v10004
      %v10026 = vadd.f32 %v9990, %v10004
      %v10027 = vadd.f32 %v9991, %v10004
      %v10028 = vadd.f32 %v9992, %v10004
      %v10029 = vadd.f32 %v9993, %v10004
      %v10030 = vadd.f32 %v9994, %v10004
      %v10031 = vadd.f32 %v9995, %v10004
      %v10032 = vadd.f32 %v9996, %v10004
      %v10033 = vadd.f32 %v9997, %v10004
      %v10034 = vadd.f32 %v9998, %v10004
      %v10035 = vadd.f32 %v9999, %v10004
      %v10036 = vadd.f32 %v10000, %v10004
      %v10037 = vadd.f32 %v10001, %v10004
      %v10038 = vmul.f32 %v10006, 0.2
      %v10039 = vmul.f32 %v10007, 0.2
      %v10040 = vmul.f32 %v10008, 0.2
      %v10041 = vmul.f32 %v10009, 0.2
      %v10042 = vmul.f32 %v10010, 0.2
      %v10043 = vmul.f32 %v10011, 0.2
      %v10044 = vmul.f32 %v10012, 0.2
      %v10045 = vmul.f32 %v10013, 0.2
      %v10046 = vmul.f32 %v10014, 0.2
      %v10047 = vmul.f32 %v10015, 0.2
      %v10048 = vmul.f32 %v10016, 0.2
      %v10049 = vmul.f32 %v10017, 0.2
      %v10050 = vmul.f32 %v10018, 0.2
      %v10051 = vmul.f32 %v10019, 0.2
      %v10052 = vmul.f32 %v10020, 0.2
      %v10053 = vmul.f32 %v10021, 0.2
      %v10054 = vmul.f32 %v10022, 0.2
      %v10055 = vmul.f32 %v10023, 0.2
      %v10056 = vmul.f32 %v10024, 0.2
      %v10057 = vmul.f32 %v10025, 0.2
      %v10058 = vmul.f32 %v10026, 0.2
      %v10059 = vmul.f32 %v10027, 0.2
      %v10060 = vmul.f32 %v10028, 0.2
      %v10061 = vmul.f32 %v10029, 0.2
      %v10062 = vmul.f32 %v10030, 0.2
      %v10063 = vmul.f32 %v10031, 0.2
      %v10064 = vmul.f32 %v10032, 0.2
      %v10065 = vmul.f32 %v10033, 0.2
      %v10066 = vmul.f32 %v10034, 0.2
      %v10067 = vmul.f32 %v10035, 0.2
      %v10068 = vmul.f32 %v10036, 0.2
      %v10069 = vmul.f32 %v10037, 0.2
      %v10070 = vmax.f32 %v10006, %v10038
      %v10071 = vmax.f32 %v10007, %v10039
      %v10072 = vmax.f32 %v10008, %v10040
      %v10073 = vmax.f32 %v10009, %v10041
      %v10074 = vmax.f32 %v10010, %v10042
      %v10075 = vmax.f32 %v10011, %v10043
      %v10076 = vmax.f32 %v10012, %v10044
      %v10077 = vmax.f32 %v10013, %v10045
      %v10078 = vmax.f32 %v10014, %v10046
      %v10079 = vmax.f32 %v10015, %v10047
      %v10080 = vmax.f32 %v10016, %v10048
      %v10081 = vmax.f32 %v10017, %v10049
      %v10082 = vmax.f32 %v10018, %v10050
      %v10083 = vmax.f32 %v10019, %v10051
      %v10084 = vmax.f32 %v10020, %v10052
      %v10085 = vmax.f32 %v10021, %v10053
      %v10086 = vmax.f32 %v10022, %v10054
      %v10087 = vmax.f32 %v10023, %v10055
      %v10088 = vmax.f32 %v10024, %v10056
      %v10089 = vmax.f32 %v10025, %v10057
      %v10090 = vmax.f32 %v10026, %v10058
      %v10091 = vmax.f32 %v10027, %v10059
      %v10092 = vmax.f32 %v10028, %v10060
      %v10093 = vmax.f32 %v10029, %v10061
      %v10094 = vmax.f32 %v10030, %v10062
      %v10095 = vmax.f32 %v10031, %v10063
      %v10096 = vmax.f32 %v10032, %v10064
      %v10097 = vmax.f32 %v10033, %v10065
      %v10098 = vmax.f32 %v10034, %v10066
      %v10099 = vmax.f32 %v10035, %v10067
      %v10100 = vmax.f32 %v10036, %v10068
      %v10101 = vmax.f32 %v10037, %v10069
      %v10102 = vadd.f32 %v10070, %v2515
      %v10103 = vadd.f32 %v10071, %v2516
      %v10104 = vadd.f32 %v10072, %v2517
      %v10105 = vadd.f32 %v10073, %v2518
      %v10106 = vadd.f32 %v10074, %v2519
      %v10107 = vadd.f32 %v10075, %v2520
      %v10108 = vadd.f32 %v10076, %v2521
      %v10109 = vadd.f32 %v10077, %v2522
      %v10110 = vadd.f32 %v10078, %v2523
      %v10111 = vadd.f32 %v10079, %v2524
      %v10112 = vadd.f32 %v10080, %v2525
      %v10113 = vadd.f32 %v10081, %v2526
      %v10114 = vadd.f32 %v10082, %v2527
      %v10115 = vadd.f32 %v10083, %v2528
      %v10116 = vadd.f32 %v10084, %v2529
      %v10117 = vadd.f32 %v10085, %v2530
      %v10118 = vadd.f32 %v10086, %v2531
      %v10119 = vadd.f32 %v10087, %v2532
      %v10120 = vadd.f32 %v10088, %v2533
      %v10121 = vadd.f32 %v10089, %v2534
      %v10122 = vadd.f32 %v10090, %v2535
      %v10123 = vadd.f32 %v10091, %v2536
      %v10124 = vadd.f32 %v10092, %v2537
      %v10125 = vadd.f32 %v10093, %v2538
      %v10126 = vadd.f32 %v10094, %v2539
      %v10127 = vadd.f32 %v10095, %v2540
      %v10128 = vadd.f32 %v10096, %v2541
      %v10129 = vadd.f32 %v10097, %v2542
      %v10130 = vadd.f32 %v10098, %v2543
      %v10131 = vadd.f32 %v10099, %v2544
      %v10132 = vadd.f32 %v10100, %v2545
      %v10133 = vadd.f32 %v10101, %v2546
      %10134 = vst.msk [vmem:[%s433] sm:$0xff] %vm434, %v10102
      %10135 = vst.msk [vmem:[%s433 + $0x8] sm:$0xff] %vm434, %v10103
      %10136 = vst.msk [vmem:[%s433 + $0x10] sm:$0xff] %vm434, %v10104
      %10137 = vst.msk [vmem:[%s433 + $0x18] sm:$0xff] %vm434, %v10105
      %10138 = vst.msk [vmem:[%s433 + $0x20] sm:$0xff] %vm434, %v10106
      %10139 = vst.msk [vmem:[%s433 + $0x28] sm:$0xff] %vm434, %v10107
      %10140 = vst.msk [vmem:[%s433 + $0x30] sm:$0xff] %vm434, %v10108
      %10141 = vst.msk [vmem:[%s433 + $0x38] sm:$0xff] %vm434, %v10109
      %10142 = vst.msk [vmem:[%s433 + $0x40] sm:$0xff] %vm434, %v10110
      %10143 = vst.msk [vmem:[%s433 + $0x48] sm:$0xff] %vm434, %v10111
      %10144 = vst.msk [vmem:[%s433 + $0x50] sm:$0xff] %vm434, %v10112
      %10145 = vst.msk [vmem:[%s433 + $0x58] sm:$0xff] %vm434, %v10113
      %10146 = vst.msk [vmem:[%s433 + $0x60] sm:$0xff] %vm434, %v10114
      %10147 = vst.msk [vmem:[%s433 + $0x68] sm:$0xff] %vm434, %v10115
      %10148 = vst.msk [vmem:[%s433 + $0x70] sm:$0xff] %vm434, %v10116
      %10149 = vst.msk [vmem:[%s433 + $0x78] sm:$0xff] %vm434, %v10117
      %10150 = vst.msk [vmem:[%s433 + $0x80] sm:$0xff] %vm434, %v10118
      %10151 = vst.msk [vmem:[%s433 + $0x88] sm:$0xff] %vm434, %v10119
      %10152 = vst.msk [vmem:[%s433 + $0x90] sm:$0xff] %vm434, %v10120
      %10153 = vst.msk [vmem:[%s433 + $0x98] sm:$0xff] %vm434, %v10121
      %10154 = vst.msk [vmem:[%s433 + $0xa0] sm:$0xff] %vm434, %v10122
      %10155 = vst.msk [vmem:[%s433 + $0xa8] sm:$0xff] %vm434, %v10123
      %10156 = vst.msk [vmem:[%s433 + $0xb0] sm:$0xff] %vm434, %v10124
      %10157 = vst.msk [vmem:[%s433 + $0xb8] sm:$0xff] %vm434, %v10125
      %10158 = vst.msk [vmem:[%s433 + $0xc0] sm:$0xff] %vm434, %v10126
      %10159 = vst.msk [vmem:[%s433 + $0xc8] sm:$0xff] %vm434, %v10127
      %10160 = vst.msk [vmem:[%s433 + $0xd0] sm:$0xff] %vm434, %v10128
      %10161 = vst.msk [vmem:[%s433 + $0xd8] sm:$0xff] %vm434, %v10129
      %10162 = vst.msk [vmem:[%s433 + $0xe0] sm:$0xff] %vm434, %v10130
      %10163 = vst.msk [vmem:[%s433 + $0xe8] sm:$0xff] %vm434, %v10131
      %10164 = vst.msk [vmem:[%s433 + $0xf0] sm:$0xff] %vm434, %v10132
      %10165 = vst.msk [vmem:[%s433 + $0xf8] sm:$0xff] %vm434, %v10133
      %p10166 = scmp.lt.s32.totalorder %s23, 1
      %s10167 = scalar_select %p10166, %s23, 1
      %s10168 = smul.addr %s10167, 32
      %s10169 = smul.addr %s10168, 8
      %s10170 = scalar_lea.vmem %s12, %s10169
      // Predicated region
      $region69: #{tpu_custom_call.1} parent=67 // pred_check
        %p10171 = pneg %p303
      $region70: #{tpu_custom_call.1} parent=67 // pred_check_branch
        %10173 = sbr.rel (%p10171) target = $region72
      $region71: #{tpu_custom_call.1} parent=67 // pred_region
        _
      $region72: #{tpu_custom_call.1} parent=67 // pred_fallthru
        _
    $region68: #{tpu_custom_call.1} parent=5 // pred_fallthru
      _
    %p10174 = scmp.le.s32.totalorder 2, %s18
    // Predicated region
    $region73: #{tpu_custom_call.1} parent=5 // pred_check
      %p10175 = pneg %p10174
    $region74: #{tpu_custom_call.1} parent=5 // pred_check_branch
      %10177 = sbr.rel (%p10175) target = $region76
    $region75: #{tpu_custom_call.1} parent=5 // pred_region
      %s10178 = ssub.s32 %s18, 2
      // Predicated region
      $region77: #{tpu_custom_call.1} parent=75 // pred_check
        %p10179 = pneg %p309
      $region78: #{tpu_custom_call.1} parent=75 // pred_check_branch
        %10181 = sbr.rel (%p10179) target = $region80
      $region79: #{tpu_custom_call.1} parent=75 // pred_region
        %p10182 = scmp.lt.s32.totalorder %s24, 1
        %s10183 = scalar_select %p10182, %s24, 1
        %s10184 = smul.addr %s10183, 32
        %s10185 = smul.addr %s10184, 8
        %s10186 = scalar_lea.vmem %s12, %s10185
      $region80: #{tpu_custom_call.1} parent=75 // pred_fallthru
        _
    $region76: #{tpu_custom_call.1} parent=5 // pred_fallthru
      _
  $region6: #{tpu_custom_call.1} parent=0 // loop_footer
    %s22 = sadd.s32 1, %s18
  $region7: #{tpu_custom_call.1} parent=0 // loop_footer_branch
    %17 = sbr.rel target = $region3
  $region8: #{tpu_custom_call.1} parent=0 // loop_exit
    _

</llo_original>
